<compile_context>
chip_gen: v7x
topology: tpu7x:2x2x1
jax: 0.10.0
libtpu: 0.0.40
codegen_flags: <defaults>
</compile_context>

<pallas_src>
import math
from functools import partial

import numpy as np
import jax
import jax.numpy as jnp
from jax import lax
from jax.experimental import pallas as pl
from jax.experimental.pallas import tpu as pltpu  # noqa: F401  (TPU backend)

# ----------------------------- config (small) -------------------------------
VOCAB = 16
N_EMBD = 32
N_HEAD = 4
N_LAYER = 2
BLOCK_SIZE = 8          # token sequence length t
NUM_PROPS = 2
LN_EPS = 1e-5
NEG_BIG = -1e30         # finite mask value (avoids inf/NaN on padded rows)
PREC = lax.Precision.HIGHEST


def _round_up(x, m):
    return (x + m - 1) // m * m


LOGIT_LANES = _round_up(VOCAB, 128)   # lane-dense padded vocab head


# ----------------------------- shared math -----------------------------------
def _layernorm(x, g, b, eps=LN_EPS):
    mu = jnp.mean(x, axis=-1, keepdims=True)
    var = jnp.mean((x - mu) ** 2, axis=-1, keepdims=True)
    return (x - mu) * lax.rsqrt(var + eps) * g + b


def _erf_approx(x):
    # Abramowitz & Stegun 7.1.26 rational approximation (abs err ~1.5e-7).
    a1, a2, a3, a4, a5 = 0.254829592, -0.284496736, 1.421413741, -1.453152027, 1.061405429
    p = 0.3275911
    s = jnp.where(x >= 0.0, 1.0, -1.0)
    z = jnp.abs(x)
    t = 1.0 / (1.0 + p * z)
    poly = t * (a1 + t * (a2 + t * (a3 + t * (a4 + t * a5))))
    return s * (1.0 - poly * jnp.exp(-z * z))


def _gelu_kernel(x):
    # exact (erf-based) GELU semantics, erf via polynomial (Pallas-safe)
    return 0.5 * x * (1.0 + _erf_approx(x * (1.0 / math.sqrt(2.0))))


def _gelu_ref(x):
    return 0.5 * x * (1.0 + lax.erf(x * (1.0 / math.sqrt(2.0))))


# --------------------------- fused Pallas kernel ------------------------------
def mattergpt_fused_kernel(x1_ref, x2_ref, mask_ref,
                           ln1g_ref, ln1b_ref, wqkv_ref, bqkv_ref,
                           wp_ref, bp_ref, ln2g_ref, ln2b_ref,
                           w1_ref, b1_ref, w2_ref, b2_ref,
                           wlin_ref, blin_ref, lnfg_ref, lnfb_ref, whead_ref,
                           logits_ref, attn_ref, *, n_layer, n_head):
    BT, C = x1_ref.shape                     # batch folded into rows
    hd = C // n_head
    scale = 1.0 / math.sqrt(hd)
    mask_bias = mask_ref[...]                # (BT, BT) block-diag causal bias

    def run_branch(x, branch):
        for layer in range(n_layer):
            li = branch * n_layer + layer
            # ---- causal self attention (all heads, whole batch at once) ----
            h = _layernorm(x, ln1g_ref[li], ln1b_ref[li])
            qkv = jnp.dot(h, wqkv_ref[li],
                          preferred_element_type=jnp.float32) + bqkv_ref[li]
            wp_l = wp_ref[li]
            y = jnp.zeros((BT, C), jnp.float32)
            for hi in range(n_head):
                lo = hi * hd
                # scale folded into the small (BT, hd) Q slice instead of the
                # (BT, BT) score matrix.
                qh = qkv[:, lo:lo + hd] * scale
                kh = qkv[:, C + lo:C + lo + hd]
                vh = qkv[:, 2 * C + lo:2 * C + lo + hd]
                att = lax.dot_general(qh, kh, (((1,), (1,)), ((), ())),
                                      preferred_element_type=jnp.float32)
                att = att + mask_bias
                m = jnp.max(att, axis=-1, keepdims=True)
                e = jnp.exp(att - m)
                att = e * pl.reciprocal(jnp.sum(e, axis=-1, keepdims=True),
                                        approx=True)
                attn_ref[li, hi] = att                     # saved attn map
                yh = jnp.dot(att, vh, preferred_element_type=jnp.float32)
                # head slice of the proj weight == concat heads + full proj
                y = y + jnp.dot(yh, wp_l[lo:lo + hd, :],
                                preferred_element_type=jnp.float32)
            x = x + y + bp_ref[li]
            # ---- MLP ----
            h2 = _layernorm(x, ln2g_ref[li], ln2b_ref[li])
            hid = _gelu_kernel(
                jnp.dot(h2, w1_ref[li], preferred_element_type=jnp.float32)
                + b1_ref[li])
            x = x + jnp.dot(hid, w2_ref[li],
                            preferred_element_type=jnp.float32) + b2_ref[li]
        return x

    x1 = run_branch(x1_ref[...], 0)
    x2 = run_branch(x2_ref[...], 1)

    # final head: linear(concat([x1, x2])) == split matmuls (no lane concat)
    wlin = wlin_ref[...]
    xh = (jnp.dot(x1, wlin[:C, :], preferred_element_type=jnp.float32)
          + jnp.dot(x2, wlin[C:, :], preferred_element_type=jnp.float32)
          + blin_ref[...])
    xh = _layernorm(xh, lnfg_ref[...], lnfb_ref[...])
    logits_ref[...] = jnp.dot(xh, whead_ref[...],
                              preferred_element_type=jnp.float32)


# --------------------------- pallas wrapper -----------------------------------
def _stack_blocks(blocks, fn):
    return jnp.stack([fn(bq) for bq in blocks], axis=0)


def _block_causal_mask_bias(batch, t_pad):
    """Additive mask over the (batch*t_pad) folded rows: causal within each
    batch element, -1e30 across batch elements / padded keys."""
    n = batch * t_pad
    r = np.arange(n)
    same_seq = (r[:, None] // t_pad) == (r[None, :] // t_pad)
    causal = r[:, None] >= r[None, :]
    return jnp.asarray(np.where(same_seq & causal, 0.0, NEG_BIG), jnp.float32)


def mattergpt_forward_pallas(params, x_ids, prop, sym):
    bsz, t = x_ids.shape
    assert t <= BLOCK_SIZE
    C = N_EMBD
    T = t + 1                                # + conditioning slot
    T_pad = _round_up(T, 8)                  # sublane-friendly sequence length
    BT = bsz * T_pad

    # -------- embeddings / conditioning prefixes (cheap XLA glue) ------------
    tok = params['wte'][x_ids]                               # (b, t, C)
    pos = params['pos_emb'][:, :t, :]
    x_embed = tok + pos + params['wtype'][1][None, None, :]  # dropout=identity
    embed = x_embed

    pcond = prop @ params['wprop'] + params['bprop']         # (b, C)
    pcond = pcond[:, None, :] + params['wtype'][0][None, None, :]
    x1 = jnp.concatenate([pcond, x_embed], axis=1)           # (b, T, C)

    scond = sym @ params['wsym'] + params['bsym']
    scond = scond[:, None, :] + params['wtype'][2][None, None, :]
    x2 = jnp.concatenate([scond, x_embed], axis=1)           # (b, T, C)

    pad = T_pad - T
    x1p = jnp.pad(x1, ((0, 0), (0, pad), (0, 0))).reshape(BT, C)
    x2p = jnp.pad(x2, ((0, 0), (0, pad), (0, 0))).reshape(BT, C)

    # -------- stacked per-layer weights: [branch1 layers..., branch2 layers...]
    blocks = list(params['blocks_1']) + list(params['blocks_2'])
    ln1g = _stack_blocks(blocks, lambda q: q['ln1g'])        # (2L, 1, C)
    ln1b = _stack_blocks(blocks, lambda q: q['ln1b'])
    wqkv = _stack_blocks(blocks, lambda q: jnp.concatenate(
        [q['wq'], q['wk'], q['wv']], axis=1))                # (2L, C, 3C)
    bqkv = _stack_blocks(blocks, lambda q: jnp.concatenate(
        [q['bq'], q['bk'], q['bv']], axis=1))                # (2L, 1, 3C)
    wp = _stack_blocks(blocks, lambda q: q['wp'])
    bp = _stack_blocks(blocks, lambda q: q['bp'])
    ln2g = _stack_blocks(blocks, lambda q: q['ln2g'])
    ln2b = _stack_blocks(blocks, lambda q: q['ln2b'])
    w1 = _stack_blocks(blocks, lambda q: q['w1'])
    b1 = _stack_blocks(blocks, lambda q: q['b1'])
    w2 = _stack_blocks(blocks, lambda q: q['w2'])
    b2 = _stack_blocks(blocks, lambda q: q['b2'])

    whead_pad = jnp.pad(params['whead'],
                        ((0, 0), (0, LOGIT_LANES - VOCAB)))  # (C, 128)
    mask_bias = _block_causal_mask_bias(bsz, T_pad)          # (BT, BT)

    n_total = 2 * N_LAYER
    logits_pad, attn_all = pl.pallas_call(
        partial(mattergpt_fused_kernel, n_layer=N_LAYER, n_head=N_HEAD),
        out_shape=(
            jax.ShapeDtypeStruct((BT, LOGIT_LANES), jnp.float32),
            jax.ShapeDtypeStruct((n_total, N_HEAD, BT, BT), jnp.float32),
        ),
    )(x1p, x2p, mask_bias,
      ln1g, ln1b, wqkv, bqkv, wp, bp, ln2g, ln2b, w1, b1, w2, b2,
      params['wlin'], params['blin'], params['lnfg'], params['lnfb'],
      whead_pad)

    # drop the conditioning slot, padded positions and padded vocab lanes
    logits = logits_pad.reshape(bsz, T_pad, LOGIT_LANES)[:, 1:T, :VOCAB]

    # extract per-batch (T, T) attention maps from the block-diagonal layout
    attn_maps = []
    for li in range(n_total):
        a = attn_all[li]                                     # (H, BT, BT)
        per_b = [a[:, i * T_pad:i * T_pad + T, i * T_pad:i * T_pad + T]
                 for i in range(bsz)]
        attn_maps.append(jnp.stack(per_b, axis=0))           # (b, H, T, T)

    # TODO(synk): cross-entropy loss path (targets is not None) not implemented.
    # TODO(synk): autoregressive sample() is a host-side loop, not a kernel.
    return logits, attn_maps, embed


# --------------------------- pure-JAX reference --------------------------------
def _block_ref(x, p, n_head=N_HEAD):
    B, T, C = x.shape
    hd = C // n_head
    h = _layernorm(x, p['ln1g'][0], p['ln1b'][0])
    q = jnp.einsum('btc,cd->btd', h, p['wq'], precision=PREC) + p['bq'][0]
    k = jnp.einsum('btc,cd->btd', h, p['wk'], precision=PREC) + p['bk'][0]
    v = jnp.einsum('btc,cd->btd', h, p['wv'], precision=PREC) + p['bv'][0]
    q = q.reshape(B, T, n_head, hd).transpose(0, 2, 1, 3)
    k = k.reshape(B, T, n_head, hd).transpose(0, 2, 1, 3)
    v = v.reshape(B, T, n_head, hd).transpose(0, 2, 1, 3)
    att = jnp.einsum('bhqd,bhkd->bhqk', q, k, precision=PREC) / math.sqrt(hd)
    causal = jnp.tril(jnp.ones((T, T), bool))
    att = jnp.where(causal[None, None], att, -jnp.inf)
    att = jax.nn.softmax(att, axis=-1)
    y = jnp.einsum('bhqk,bhkd->bhqd', att, v, precision=PREC)
    y = y.transpose(0, 2, 1, 3).reshape(B, T, C)
    y = jnp.einsum('btc,cd->btd', y, p['wp'], precision=PREC) + p['bp'][0]
    x = x + y
    h2 = _layernorm(x, p['ln2g'][0], p['ln2b'][0])
    hidden = _gelu_ref(jnp.einsum('btc,cd->btd', h2, p['w1'], precision=PREC)
                       + p['b1'][0])
    x = x + jnp.einsum('btc,cd->btd', hidden, p['w2'], precision=PREC) + p['b2'][0]
    return x, att


def mattergpt_forward_ref(params, x_ids, prop, sym):
    tok = params['wte'][x_ids]
    t = x_ids.shape[1]
    pos = params['pos_emb'][:, :t, :]
    x_embed = tok + pos + params['wtype'][1][None, None, :]
    embed = x_embed
    pcond = prop @ params['wprop'] + params['bprop']
    pcond = pcond[:, None, :] + params['wtype'][0][None, None, :]
    x1 = jnp.concatenate([pcond, x_embed], axis=1)
    scond = sym @ params['wsym'] + params['bsym']
    scond = scond[:, None, :] + params['wtype'][2][None, None, :]
    x2 = jnp.concatenate([scond, x_embed], axis=1)
    attn_maps = []
    for bq in params['blocks_1']:
        x1, a = _block_ref(x1, bq)
        attn_maps.append(a)
    for bq in params['blocks_2']:
        x2, a = _block_ref(x2, bq)
        attn_maps.append(a)
    xcat = jnp.concatenate([x1, x2], axis=-1)
    xh = jnp.einsum('btc,cd->btd', xcat, params['wlin'], precision=PREC) + params['blin'][0]
    xh = _layernorm(xh, params['lnfg'][0], params['lnfb'][0])
    logits = jnp.einsum('btc,cv->btv', xh, params['whead'], precision=PREC)
    return logits[:, 1:, :], attn_maps, embed


# --------------------------- parameters --------------------------------------
def init_params(key):
    C = N_EMBD
    ks = iter(jax.random.split(key, 64))

    def nrm(shape):
        return 0.02 * jax.random.normal(next(ks), shape, jnp.float32)

    def zeros(shape):
        return jnp.zeros(shape, jnp.float32)

    def ones(shape):
        return jnp.ones(shape, jnp.float32)

    def block_params():
        return dict(
            ln1g=ones((1, C)), ln1b=zeros((1, C)),
            wq=nrm((C, C)), bq=zeros((1, C)),
            wk=nrm((C, C)), bk=zeros((1, C)),
            wv=nrm((C, C)), bv=zeros((1, C)),
            wp=nrm((C, C)), bp=zeros((1, C)),
            ln2g=ones((1, C)), ln2b=zeros((1, C)),
            w1=nrm((C, 4 * C)), b1=zeros((1, 4 * C)),
            w2=nrm((4 * C, C)), b2=zeros((1, C)),
        )

    return dict(
        wte=nrm((VOCAB, C)),
        wtype=nrm((3, C)),
        pos_emb=zeros((1, BLOCK_SIZE, C)),     # nn.Parameter(torch.zeros(...))
        wprop=nrm((NUM_PROPS, C)), bprop=zeros((1, C)),
        wsym=nrm((7, C)), bsym=zeros((1, C)),
        blocks_1=[block_params() for _ in range(N_LAYER)],
        blocks_2=[block_params() for _ in range(N_LAYER)],
        wlin=nrm((2 * C, C)), blin=zeros((1, C)),
        lnfg=ones((1, C)), lnfb=zeros((1, C)),
        whead=nrm((C, VOCAB)),
    )


# ------------------------------- main -----------------------------------------
if __name__ == "__main__":
    params = init_params(jax.random.PRNGKey(0))

    kx, kp, ksym = jax.random.split(jax.random.PRNGKey(0), 3)
    B = 2
    x_ids = jax.random.randint(kx, (B, BLOCK_SIZE), 0, VOCAB)
    prop = jax.random.normal(kp, (B, NUM_PROPS), jnp.float32)
    sym = jax.nn.one_hot(jax.random.randint(ksym, (B,), 0, 7), 7, dtype=jnp.float32)

    fwd = jax.jit(mattergpt_forward_pallas)
    logits, attn_maps, embed = fwd(params, x_ids, prop, sym)
    jax.block_until_ready((logits, attn_maps, embed))

    # sanity check vs a pure-JAX reference of the same forward
    logits_ref, attn_ref_maps, embed_ref = mattergpt_forward_ref(
        params, x_ids, prop, sym)

    T = BLOCK_SIZE + 1
    assert logits.shape == (B, BLOCK_SIZE, VOCAB)
    assert len(attn_maps) == 2 * N_LAYER
    assert attn_maps[0].shape == (B, N_HEAD, T, T)
    assert embed.shape == (B, BLOCK_SIZE, N_EMBD)

    max_err = float(jnp.max(jnp.abs(logits - logits_ref)))
    assert max_err < 5e-3, f"logits mismatch vs reference: {max_err}"
    attn_err = max(float(jnp.max(jnp.abs(a - ar)))
                   for a, ar in zip(attn_maps, attn_ref_maps))
    assert attn_err < 5e-3, f"attention-map mismatch vs reference: {attn_err}"
    assert float(jnp.max(jnp.abs(embed - embed_ref))) < 1e-5

    print("KERNEL_OK")
</pallas_src>

<mosaic_0001>
module attributes {stable_mosaic.version = 11 : i64} {
  func.func @mattergpt_fused_kernel(%arg0: memref<32x32xf32, #tpu.memory_space<vmem>>, %arg1: memref<32x32xf32, #tpu.memory_space<vmem>>, %arg2: memref<32x32xf32, #tpu.memory_space<vmem>>, %arg3: memref<4x1x32xf32, #tpu.memory_space<vmem>>, %arg4: memref<4x1x32xf32, #tpu.memory_space<vmem>>, %arg5: memref<4x32x96xf32, #tpu.memory_space<vmem>>, %arg6: memref<4x1x96xf32, #tpu.memory_space<vmem>>, %arg7: memref<4x32x32xf32, #tpu.memory_space<vmem>>, %arg8: memref<4x1x32xf32, #tpu.memory_space<vmem>>, %arg9: memref<4x1x32xf32, #tpu.memory_space<vmem>>, %arg10: memref<4x1x32xf32, #tpu.memory_space<vmem>>, %arg11: memref<4x32x128xf32, #tpu.memory_space<vmem>>, %arg12: memref<4x1x128xf32, #tpu.memory_space<vmem>>, %arg13: memref<4x128x32xf32, #tpu.memory_space<vmem>>, %arg14: memref<4x1x32xf32, #tpu.memory_space<vmem>>, %arg15: memref<64x32xf32, #tpu.memory_space<vmem>>, %arg16: memref<1x32xf32, #tpu.memory_space<vmem>>, %arg17: memref<1x32xf32, #tpu.memory_space<vmem>>, %arg18: memref<1x32xf32, #tpu.memory_space<vmem>>, %arg19: memref<32x128xf32, #tpu.memory_space<vmem>>, %arg20: memref<32x128xf32, #tpu.memory_space<vmem>>, %arg21: memref<4x4x32x32xf32, #tpu.memory_space<vmem>>) attributes {dimension_semantics = [], scalar_prefetch = 0 : i64, scratch_operands = 0 : i64, tpu.core_type = #tpu.core_type<tc>} {
    %c0 = arith.constant 0 : index
    %c0_0 = arith.constant 0 : index
    %0 = vector.load %arg2[%c0, %c0_0] : memref<32x32xf32, #tpu.memory_space<vmem>>, vector<32x32xf32>
    %c0_1 = arith.constant 0 : index
    %c0_2 = arith.constant 0 : index
    %1 = vector.load %arg0[%c0_1, %c0_2] : memref<32x32xf32, #tpu.memory_space<vmem>>, vector<32x32xf32>
    %c0_3 = arith.constant 0 : index
    %c0_4 = arith.constant 0 : index
    %c0_5 = arith.constant 0 : index
    %2 = vector.load %arg3[%c0_3, %c0_4, %c0_5] : memref<4x1x32xf32, #tpu.memory_space<vmem>>, vector<1x1x32xf32>
    %3 = vector.shape_cast %2 : vector<1x1x32xf32> to vector<1x32xf32>
    %c0_6 = arith.constant 0 : index
    %c0_7 = arith.constant 0 : index
    %c0_8 = arith.constant 0 : index
    %4 = vector.load %arg4[%c0_6, %c0_7, %c0_8] : memref<4x1x32xf32, #tpu.memory_space<vmem>>, vector<1x1x32xf32>
    %5 = vector.shape_cast %4 : vector<1x1x32xf32> to vector<1x32xf32>
    %cst = arith.constant dense<0.000000e+00> : vector<32xf32>
    %6 = vector.multi_reduction <add>, %1, %cst [1] : vector<32x32xf32> to vector<32xf32>
    %7 = vector.shape_cast %6 : vector<32xf32> to vector<32x1xf32>
    %cst_9 = arith.constant 3.200000e+01 : f32
    %8 = vector.broadcast %cst_9 : f32 to vector<32x1xf32>
    %9 = arith.divf %7, %8 : vector<32x1xf32>
    %10 = vector.broadcast %9 : vector<32x1xf32> to vector<32x32xf32>
    %11 = arith.subf %1, %10 : vector<32x32xf32>
    %12 = arith.mulf %11, %11 : vector<32x32xf32>
    %cst_10 = arith.constant dense<0.000000e+00> : vector<32xf32>
    %13 = vector.multi_reduction <add>, %12, %cst_10 [1] : vector<32x32xf32> to vector<32xf32>
    %14 = vector.shape_cast %13 : vector<32xf32> to vector<32x1xf32>
    %cst_11 = arith.constant 3.200000e+01 : f32
    %15 = vector.broadcast %cst_11 : f32 to vector<32x1xf32>
    %16 = arith.divf %14, %15 : vector<32x1xf32>
    %17 = vector.broadcast %9 : vector<32x1xf32> to vector<32x32xf32>
    %18 = arith.subf %1, %17 : vector<32x32xf32>
    %cst_12 = arith.constant 9.99999974E-6 : f32
    %19 = vector.broadcast %cst_12 : f32 to vector<32x1xf32>
    %20 = arith.addf %16, %19 : vector<32x1xf32>
    %21 = math.rsqrt %20 : vector<32x1xf32>
    %22 = vector.broadcast %21 : vector<32x1xf32> to vector<32x32xf32>
    %23 = arith.mulf %18, %22 : vector<32x32xf32>
    %24 = vector.broadcast %3 : vector<1x32xf32> to vector<32x32xf32>
    %25 = arith.mulf %23, %24 : vector<32x32xf32>
    %26 = vector.broadcast %5 : vector<1x32xf32> to vector<32x32xf32>
    %27 = arith.addf %25, %26 : vector<32x32xf32>
    %c0_13 = arith.constant 0 : index
    %c0_14 = arith.constant 0 : index
    %c0_15 = arith.constant 0 : index
    %28 = vector.load %arg5[%c0_13, %c0_14, %c0_15] : memref<4x32x96xf32, #tpu.memory_space<vmem>>, vector<1x32x96xf32>
    %29 = vector.shape_cast %28 : vector<1x32x96xf32> to vector<32x96xf32>
    %cst_16 = arith.constant dense<0.000000e+00> : vector<32x96xf32>
    %30 = tpu.matmul %27, %29, %cst_16 {dimension_numbers = #tpu.dot_dimension_numbers<[1], [0], [0], [1], [0, 0, 1, 1], [], []>} : vector<32x32xf32>, vector<32x96xf32>, vector<32x96xf32> -> vector<32x96xf32>
    %c0_17 = arith.constant 0 : index
    %c0_18 = arith.constant 0 : index
    %c0_19 = arith.constant 0 : index
    %31 = vector.load %arg6[%c0_17, %c0_18, %c0_19] : memref<4x1x96xf32, #tpu.memory_space<vmem>>, vector<1x1x96xf32>
    %32 = vector.shape_cast %31 : vector<1x1x96xf32> to vector<1x96xf32>
    %33 = vector.broadcast %32 : vector<1x96xf32> to vector<32x96xf32>
    %34 = arith.addf %30, %33 : vector<32x96xf32>
    %c0_20 = arith.constant 0 : index
    %c0_21 = arith.constant 0 : index
    %c0_22 = arith.constant 0 : index
    %35 = vector.load %arg7[%c0_20, %c0_21, %c0_22] : memref<4x32x32xf32, #tpu.memory_space<vmem>>, vector<1x32x32xf32>
    %36 = vector.shape_cast %35 : vector<1x32x32xf32> to vector<32x32xf32>
    %cst_23 = arith.constant 0.000000e+00 : f32
    %37 = vector.broadcast %cst_23 : f32 to vector<32x32xf32>
    %38 = vector.extract_strided_slice %34 {offsets = [0, 0], sizes = [32, 8], strides = [1, 1]} : vector<32x96xf32> to vector<32x8xf32>
    %cst_24 = arith.constant 0.353553385 : f32
    %39 = vector.broadcast %cst_24 : f32 to vector<32x8xf32>
    %40 = arith.mulf %38, %39 : vector<32x8xf32>
    %41 = vector.extract_strided_slice %34 {offsets = [0, 32], sizes = [32, 8], strides = [1, 1]} : vector<32x96xf32> to vector<32x8xf32>
    %42 = vector.extract_strided_slice %34 {offsets = [0, 64], sizes = [32, 8], strides = [1, 1]} : vector<32x96xf32> to vector<32x8xf32>
    %cst_25 = arith.constant dense<0.000000e+00> : vector<32x32xf32>
    %43 = tpu.matmul %40, %41, %cst_25 {dimension_numbers = #tpu.dot_dimension_numbers<[1], [1], [0], [0], [0, 0, 1, 0], [], []>} : vector<32x8xf32>, vector<32x8xf32>, vector<32x32xf32> -> vector<32x32xf32>
    %44 = arith.addf %43, %0 : vector<32x32xf32>
    %cst_26 = arith.constant dense<0xFF800000> : vector<32xf32>
    %45 = vector.multi_reduction <maximumf>, %44, %cst_26 [1] : vector<32x32xf32> to vector<32xf32>
    %46 = vector.shape_cast %45 : vector<32xf32> to vector<32x1xf32>
    %47 = vector.broadcast %46 : vector<32x1xf32> to vector<32x32xf32>
    %48 = arith.subf %44, %47 : vector<32x32xf32>
    %49 = math.exp %48 : vector<32x32xf32>
    %cst_27 = arith.constant dense<0.000000e+00> : vector<32xf32>
    %50 = vector.multi_reduction <add>, %49, %cst_27 [1] : vector<32x32xf32> to vector<32xf32>
    %51 = vector.shape_cast %50 : vector<32xf32> to vector<32x1xf32>
    %52 = tpu.reciprocal %51 {approx = true} : vector<32x1xf32> -> vector<32x1xf32>
    %53 = vector.broadcast %52 : vector<32x1xf32> to vector<32x32xf32>
    %54 = arith.mulf %49, %53 : vector<32x32xf32>
    %c0_28 = arith.constant 0 : index
    %c0_29 = arith.constant 0 : index
    %c0_30 = arith.constant 0 : index
    %c0_31 = arith.constant 0 : index
    %55 = vector.load %arg21[%c0_28, %c0_29, %c0_30, %c0_31] : memref<4x4x32x32xf32, #tpu.memory_space<vmem>>, vector<1x1x32x32xf32>
    %56 = vector.shape_cast %55 : vector<1x1x32x32xf32> to vector<32x32xf32>
    %57 = vector.shape_cast %54 : vector<32x32xf32> to vector<1x1x32x32xf32>
    tpu.vector_store %arg21[%c0_28, %c0_29, %c0_30, %c0_31], %57 {strides = array<i32>} : memref<4x4x32x32xf32, #tpu.memory_space<vmem>>, vector<1x1x32x32xf32>,
    %cst_32 = arith.constant dense<0.000000e+00> : vector<32x8xf32>
    %58 = tpu.matmul %54, %42, %cst_32 {dimension_numbers = #tpu.dot_dimension_numbers<[1], [0], [0], [1], [0, 0, 1, 1], [], []>} : vector<32x32xf32>, vector<32x8xf32>, vector<32x8xf32> -> vector<32x8xf32>
    %59 = vector.extract_strided_slice %36 {offsets = [0, 0], sizes = [8, 32], strides = [1, 1]} : vector<32x32xf32> to vector<8x32xf32>
    %cst_33 = arith.constant dense<0.000000e+00> : vector<32x32xf32>
    %60 = tpu.matmul %58, %59, %cst_33 {dimension_numbers = #tpu.dot_dimension_numbers<[1], [0], [0], [1], [0, 0, 1, 1], [], []>} : vector<32x8xf32>, vector<8x32xf32>, vector<32x32xf32> -> vector<32x32xf32>
    %61 = arith.addf %37, %60 : vector<32x32xf32>
    %62 = vector.extract_strided_slice %34 {offsets = [0, 8], sizes = [32, 8], strides = [1, 1]} : vector<32x96xf32> to vector<32x8xf32>
    %cst_34 = arith.constant 0.353553385 : f32
    %63 = vector.broadcast %cst_34 : f32 to vector<32x8xf32>
    %64 = arith.mulf %62, %63 : vector<32x8xf32>
    %65 = vector.extract_strided_slice %34 {offsets = [0, 40], sizes = [32, 8], strides = [1, 1]} : vector<32x96xf32> to vector<32x8xf32>
    %66 = vector.extract_strided_slice %34 {offsets = [0, 72], sizes = [32, 8], strides = [1, 1]} : vector<32x96xf32> to vector<32x8xf32>
    %cst_35 = arith.constant dense<0.000000e+00> : vector<32x32xf32>
    %67 = tpu.matmul %64, %65, %cst_35 {dimension_numbers = #tpu.dot_dimension_numbers<[1], [1], [0], [0], [0, 0, 1, 0], [], []>} : vector<32x8xf32>, vector<32x8xf32>, vector<32x32xf32> -> vector<32x32xf32>
    %68 = arith.addf %67, %0 : vector<32x32xf32>
    %cst_36 = arith.constant dense<0xFF800000> : vector<32xf32>
    %69 = vector.multi_reduction <maximumf>, %68, %cst_36 [1] : vector<32x32xf32> to vector<32xf32>
    %70 = vector.shape_cast %69 : vector<32xf32> to vector<32x1xf32>
    %71 = vector.broadcast %70 : vector<32x1xf32> to vector<32x32xf32>
    %72 = arith.subf %68, %71 : vector<32x32xf32>
    %73 = math.exp %72 : vector<32x32xf32>
    %cst_37 = arith.constant dense<0.000000e+00> : vector<32xf32>
    %74 = vector.multi_reduction <add>, %73, %cst_37 [1] : vector<32x32xf32> to vector<32xf32>
    %75 = vector.shape_cast %74 : vector<32xf32> to vector<32x1xf32>
    %76 = tpu.reciprocal %75 {approx = true} : vector<32x1xf32> -> vector<32x1xf32>
    %77 = vector.broadcast %76 : vector<32x1xf32> to vector<32x32xf32>
    %78 = arith.mulf %73, %77 : vector<32x32xf32>
    %c0_38 = arith.constant 0 : index
    %c1 = arith.constant 1 : index
    %c0_39 = arith.constant 0 : index
    %c0_40 = arith.constant 0 : index
    %79 = vector.load %arg21[%c0_38, %c1, %c0_39, %c0_40] : memref<4x4x32x32xf32, #tpu.memory_space<vmem>>, vector<1x1x32x32xf32>
    %80 = vector.shape_cast %79 : vector<1x1x32x32xf32> to vector<32x32xf32>
    %81 = vector.shape_cast %78 : vector<32x32xf32> to vector<1x1x32x32xf32>
    tpu.vector_store %arg21[%c0_38, %c1, %c0_39, %c0_40], %81 {strides = array<i32>} : memref<4x4x32x32xf32, #tpu.memory_space<vmem>>, vector<1x1x32x32xf32>,
    %cst_41 = arith.constant dense<0.000000e+00> : vector<32x8xf32>
    %82 = tpu.matmul %78, %66, %cst_41 {dimension_numbers = #tpu.dot_dimension_numbers<[1], [0], [0], [1], [0, 0, 1, 1], [], []>} : vector<32x32xf32>, vector<32x8xf32>, vector<32x8xf32> -> vector<32x8xf32>
    %83 = vector.extract_strided_slice %36 {offsets = [8, 0], sizes = [8, 32], strides = [1, 1]} : vector<32x32xf32> to vector<8x32xf32>
    %cst_42 = arith.constant dense<0.000000e+00> : vector<32x32xf32>
    %84 = tpu.matmul %82, %83, %cst_42 {dimension_numbers = #tpu.dot_dimension_numbers<[1], [0], [0], [1], [0, 0, 1, 1], [], []>} : vector<32x8xf32>, vector<8x32xf32>, vector<32x32xf32> -> vector<32x32xf32>
    %85 = arith.addf %61, %84 : vector<32x32xf32>
    %86 = vector.extract_strided_slice %34 {offsets = [0, 16], sizes = [32, 8], strides = [1, 1]} : vector<32x96xf32> to vector<32x8xf32>
    %cst_43 = arith.constant 0.353553385 : f32
    %87 = vector.broadcast %cst_43 : f32 to vector<32x8xf32>
    %88 = arith.mulf %86, %87 : vector<32x8xf32>
    %89 = vector.extract_strided_slice %34 {offsets = [0, 48], sizes = [32, 8], strides = [1, 1]} : vector<32x96xf32> to vector<32x8xf32>
    %90 = vector.extract_strided_slice %34 {offsets = [0, 80], sizes = [32, 8], strides = [1, 1]} : vector<32x96xf32> to vector<32x8xf32>
    %cst_44 = arith.constant dense<0.000000e+00> : vector<32x32xf32>
    %91 = tpu.matmul %88, %89, %cst_44 {dimension_numbers = #tpu.dot_dimension_numbers<[1], [1], [0], [0], [0, 0, 1, 0], [], []>} : vector<32x8xf32>, vector<32x8xf32>, vector<32x32xf32> -> vector<32x32xf32>
    %92 = arith.addf %91, %0 : vector<32x32xf32>
    %cst_45 = arith.constant dense<0xFF800000> : vector<32xf32>
    %93 = vector.multi_reduction <maximumf>, %92, %cst_45 [1] : vector<32x32xf32> to vector<32xf32>
    %94 = vector.shape_cast %93 : vector<32xf32> to vector<32x1xf32>
    %95 = vector.broadcast %94 : vector<32x1xf32> to vector<32x32xf32>
    %96 = arith.subf %92, %95 : vector<32x32xf32>
    %97 = math.exp %96 : vector<32x32xf32>
    %cst_46 = arith.constant dense<0.000000e+00> : vector<32xf32>
    %98 = vector.multi_reduction <add>, %97, %cst_46 [1] : vector<32x32xf32> to vector<32xf32>
    %99 = vector.shape_cast %98 : vector<32xf32> to vector<32x1xf32>
    %100 = tpu.reciprocal %99 {approx = true} : vector<32x1xf32> -> vector<32x1xf32>
    %101 = vector.broadcast %100 : vector<32x1xf32> to vector<32x32xf32>
    %102 = arith.mulf %97, %101 : vector<32x32xf32>
    %c0_47 = arith.constant 0 : index
    %c2 = arith.constant 2 : index
    %c0_48 = arith.constant 0 : index
    %c0_49 = arith.constant 0 : index
    %103 = vector.load %arg21[%c0_47, %c2, %c0_48, %c0_49] : memref<4x4x32x32xf32, #tpu.memory_space<vmem>>, vector<1x1x32x32xf32>
    %104 = vector.shape_cast %103 : vector<1x1x32x32xf32> to vector<32x32xf32>
    %105 = vector.shape_cast %102 : vector<32x32xf32> to vector<1x1x32x32xf32>
    tpu.vector_store %arg21[%c0_47, %c2, %c0_48, %c0_49], %105 {strides = array<i32>} : memref<4x4x32x32xf32, #tpu.memory_space<vmem>>, vector<1x1x32x32xf32>,
    %cst_50 = arith.constant dense<0.000000e+00> : vector<32x8xf32>
    %106 = tpu.matmul %102, %90, %cst_50 {dimension_numbers = #tpu.dot_dimension_numbers<[1], [0], [0], [1], [0, 0, 1, 1], [], []>} : vector<32x32xf32>, vector<32x8xf32>, vector<32x8xf32> -> vector<32x8xf32>
    %107 = vector.extract_strided_slice %36 {offsets = [16, 0], sizes = [8, 32], strides = [1, 1]} : vector<32x32xf32> to vector<8x32xf32>
    %cst_51 = arith.constant dense<0.000000e+00> : vector<32x32xf32>
    %108 = tpu.matmul %106, %107, %cst_51 {dimension_numbers = #tpu.dot_dimension_numbers<[1], [0], [0], [1], [0, 0, 1, 1], [], []>} : vector<32x8xf32>, vector<8x32xf32>, vector<32x32xf32> -> vector<32x32xf32>
    %109 = arith.addf %85, %108 : vector<32x32xf32>
    %110 = vector.extract_strided_slice %34 {offsets = [0, 24], sizes = [32, 8], strides = [1, 1]} : vector<32x96xf32> to vector<32x8xf32>
    %cst_52 = arith.constant 0.353553385 : f32
    %111 = vector.broadcast %cst_52 : f32 to vector<32x8xf32>
    %112 = arith.mulf %110, %111 : vector<32x8xf32>
    %113 = vector.extract_strided_slice %34 {offsets = [0, 56], sizes = [32, 8], strides = [1, 1]} : vector<32x96xf32> to vector<32x8xf32>
    %114 = vector.extract_strided_slice %34 {offsets = [0, 88], sizes = [32, 8], strides = [1, 1]} : vector<32x96xf32> to vector<32x8xf32>
    %cst_53 = arith.constant dense<0.000000e+00> : vector<32x32xf32>
    %115 = tpu.matmul %112, %113, %cst_53 {dimension_numbers = #tpu.dot_dimension_numbers<[1], [1], [0], [0], [0, 0, 1, 0], [], []>} : vector<32x8xf32>, vector<32x8xf32>, vector<32x32xf32> -> vector<32x32xf32>
    %116 = arith.addf %115, %0 : vector<32x32xf32>
    %cst_54 = arith.constant dense<0xFF800000> : vector<32xf32>
    %117 = vector.multi_reduction <maximumf>, %116, %cst_54 [1] : vector<32x32xf32> to vector<32xf32>
    %118 = vector.shape_cast %117 : vector<32xf32> to vector<32x1xf32>
    %119 = vector.broadcast %118 : vector<32x1xf32> to vector<32x32xf32>
    %120 = arith.subf %116, %119 : vector<32x32xf32>
    %121 = math.exp %120 : vector<32x32xf32>
    %cst_55 = arith.constant dense<0.000000e+00> : vector<32xf32>
    %122 = vector.multi_reduction <add>, %121, %cst_55 [1] : vector<32x32xf32> to vector<32xf32>
    %123 = vector.shape_cast %122 : vector<32xf32> to vector<32x1xf32>
    %124 = tpu.reciprocal %123 {approx = true} : vector<32x1xf32> -> vector<32x1xf32>
    %125 = vector.broadcast %124 : vector<32x1xf32> to vector<32x32xf32>
    %126 = arith.mulf %121, %125 : vector<32x32xf32>
    %c0_56 = arith.constant 0 : index
    %c3 = arith.constant 3 : index
    %c0_57 = arith.constant 0 : index
    %c0_58 = arith.constant 0 : index
    %127 = vector.load %arg21[%c0_56, %c3, %c0_57, %c0_58] : memref<4x4x32x32xf32, #tpu.memory_space<vmem>>, vector<1x1x32x32xf32>
    %128 = vector.shape_cast %127 : vector<1x1x32x32xf32> to vector<32x32xf32>
    %129 = vector.shape_cast %126 : vector<32x32xf32> to vector<1x1x32x32xf32>
    tpu.vector_store %arg21[%c0_56, %c3, %c0_57, %c0_58], %129 {strides = array<i32>} : memref<4x4x32x32xf32, #tpu.memory_space<vmem>>, vector<1x1x32x32xf32>,
    %cst_59 = arith.constant dense<0.000000e+00> : vector<32x8xf32>
    %130 = tpu.matmul %126, %114, %cst_59 {dimension_numbers = #tpu.dot_dimension_numbers<[1], [0], [0], [1], [0, 0, 1, 1], [], []>} : vector<32x32xf32>, vector<32x8xf32>, vector<32x8xf32> -> vector<32x8xf32>
    %131 = vector.extract_strided_slice %36 {offsets = [24, 0], sizes = [8, 32], strides = [1, 1]} : vector<32x32xf32> to vector<8x32xf32>
    %cst_60 = arith.constant dense<0.000000e+00> : vector<32x32xf32>
    %132 = tpu.matmul %130, %131, %cst_60 {dimension_numbers = #tpu.dot_dimension_numbers<[1], [0], [0], [1], [0, 0, 1, 1], [], []>} : vector<32x8xf32>, vector<8x32xf32>, vector<32x32xf32> -> vector<32x32xf32>
    %133 = arith.addf %109, %132 : vector<32x32xf32>
    %134 = arith.addf %1, %133 : vector<32x32xf32>
    %c0_61 = arith.constant 0 : index
    %c0_62 = arith.constant 0 : index
    %c0_63 = arith.constant 0 : index
    %135 = vector.load %arg8[%c0_61, %c0_62, %c0_63] : memref<4x1x32xf32, #tpu.memory_space<vmem>>, vector<1x1x32xf32>
    %136 = vector.shape_cast %135 : vector<1x1x32xf32> to vector<1x32xf32>
    %137 = vector.broadcast %136 : vector<1x32xf32> to vector<32x32xf32>
    %138 = arith.addf %134, %137 : vector<32x32xf32>
    %c0_64 = arith.constant 0 : index
    %c0_65 = arith.constant 0 : index
    %c0_66 = arith.constant 0 : index
    %139 = vector.load %arg9[%c0_64, %c0_65, %c0_66] : memref<4x1x32xf32, #tpu.memory_space<vmem>>, vector<1x1x32xf32>
    %140 = vector.shape_cast %139 : vector<1x1x32xf32> to vector<1x32xf32>
    %c0_67 = arith.constant 0 : index
    %c0_68 = arith.constant 0 : index
    %c0_69 = arith.constant 0 : index
    %141 = vector.load %arg10[%c0_67, %c0_68, %c0_69] : memref<4x1x32xf32, #tpu.memory_space<vmem>>, vector<1x1x32xf32>
    %142 = vector.shape_cast %141 : vector<1x1x32xf32> to vector<1x32xf32>
    %cst_70 = arith.constant dense<0.000000e+00> : vector<32xf32>
    %143 = vector.multi_reduction <add>, %138, %cst_70 [1] : vector<32x32xf32> to vector<32xf32>
    %144 = vector.shape_cast %143 : vector<32xf32> to vector<32x1xf32>
    %cst_71 = arith.constant 3.200000e+01 : f32
    %145 = vector.broadcast %cst_71 : f32 to vector<32x1xf32>
    %146 = arith.divf %144, %145 : vector<32x1xf32>
    %147 = vector.broadcast %146 : vector<32x1xf32> to vector<32x32xf32>
    %148 = arith.subf %138, %147 : vector<32x32xf32>
    %149 = arith.mulf %148, %148 : vector<32x32xf32>
    %cst_72 = arith.constant dense<0.000000e+00> : vector<32xf32>
    %150 = vector.multi_reduction <add>, %149, %cst_72 [1] : vector<32x32xf32> to vector<32xf32>
    %151 = vector.shape_cast %150 : vector<32xf32> to vector<32x1xf32>
    %cst_73 = arith.constant 3.200000e+01 : f32
    %152 = vector.broadcast %cst_73 : f32 to vector<32x1xf32>
    %153 = arith.divf %151, %152 : vector<32x1xf32>
    %154 = vector.broadcast %146 : vector<32x1xf32> to vector<32x32xf32>
    %155 = arith.subf %138, %154 : vector<32x32xf32>
    %cst_74 = arith.constant 9.99999974E-6 : f32
    %156 = vector.broadcast %cst_74 : f32 to vector<32x1xf32>
    %157 = arith.addf %153, %156 : vector<32x1xf32>
    %158 = math.rsqrt %157 : vector<32x1xf32>
    %159 = vector.broadcast %158 : vector<32x1xf32> to vector<32x32xf32>
    %160 = arith.mulf %155, %159 : vector<32x32xf32>
    %161 = vector.broadcast %140 : vector<1x32xf32> to vector<32x32xf32>
    %162 = arith.mulf %160, %161 : vector<32x32xf32>
    %163 = vector.broadcast %142 : vector<1x32xf32> to vector<32x32xf32>
    %164 = arith.addf %162, %163 : vector<32x32xf32>
    %c0_75 = arith.constant 0 : index
    %c0_76 = arith.constant 0 : index
    %c0_77 = arith.constant 0 : index
    %165 = vector.load %arg11[%c0_75, %c0_76, %c0_77] : memref<4x32x128xf32, #tpu.memory_space<vmem>>, vector<1x32x128xf32>
    %166 = vector.shape_cast %165 : vector<1x32x128xf32> to vector<32x128xf32>
    %cst_78 = arith.constant dense<0.000000e+00> : vector<32x128xf32>
    %167 = tpu.matmul %164, %166, %cst_78 {dimension_numbers = #tpu.dot_dimension_numbers<[1], [0], [0], [1], [0, 0, 1, 1], [], []>} : vector<32x32xf32>, vector<32x128xf32>, vector<32x128xf32> -> vector<32x128xf32>
    %c0_79 = arith.constant 0 : index
    %c0_80 = arith.constant 0 : index
    %c0_81 = arith.constant 0 : index
    %168 = vector.load %arg12[%c0_79, %c0_80, %c0_81] : memref<4x1x128xf32, #tpu.memory_space<vmem>>, vector<1x1x128xf32>
    %169 = vector.shape_cast %168 : vector<1x1x128xf32> to vector<1x128xf32>
    %170 = vector.broadcast %169 : vector<1x128xf32> to vector<32x128xf32>
    %171 = arith.addf %167, %170 : vector<32x128xf32>
    %cst_82 = arith.constant 5.000000e-01 : f32
    %172 = vector.broadcast %cst_82 : f32 to vector<32x128xf32>
    %173 = arith.mulf %172, %171 : vector<32x128xf32>
    %cst_83 = arith.constant 0.707106769 : f32
    %174 = vector.broadcast %cst_83 : f32 to vector<32x128xf32>
    %175 = arith.mulf %171, %174 : vector<32x128xf32>
    %cst_84 = arith.constant 0.000000e+00 : f32
    %176 = vector.broadcast %cst_84 : f32 to vector<32x128xf32>
    %177 = arith.cmpf oge, %175, %176 : vector<32x128xf32>
    %cst_85 = arith.constant 1.000000e+00 : f32
    %cst_86 = arith.constant -1.000000e+00 : f32
    %178 = vector.broadcast %cst_85 : f32 to vector<32x128xf32>
    %179 = vector.broadcast %cst_86 : f32 to vector<32x128xf32>
    %180 = arith.select %177, %178, %179 : vector<32x128xi1>, vector<32x128xf32>
    %181 = math.absf %175 : vector<32x128xf32>
    %cst_87 = arith.constant 0.327591091 : f32
    %182 = vector.broadcast %cst_87 : f32 to vector<32x128xf32>
    %183 = arith.mulf %182, %181 : vector<32x128xf32>
    %cst_88 = arith.constant 1.000000e+00 : f32
    %184 = vector.broadcast %cst_88 : f32 to vector<32x128xf32>
    %185 = arith.addf %184, %183 : vector<32x128xf32>
    %cst_89 = arith.constant 1.000000e+00 : f32
    %186 = vector.broadcast %cst_89 : f32 to vector<32x128xf32>
    %187 = arith.divf %186, %185 : vector<32x128xf32>
    %cst_90 = arith.constant 1.06140542 : f32
    %188 = vector.broadcast %cst_90 : f32 to vector<32x128xf32>
    %189 = arith.mulf %187, %188 : vector<32x128xf32>
    %cst_91 = arith.constant -1.45315206 : f32
    %190 = vector.broadcast %cst_91 : f32 to vector<32x128xf32>
    %191 = arith.addf %190, %189 : vector<32x128xf32>
    %192 = arith.mulf %187, %191 : vector<32x128xf32>
    %cst_92 = arith.constant 1.42141378 : f32
    %193 = vector.broadcast %cst_92 : f32 to vector<32x128xf32>
    %194 = arith.addf %193, %192 : vector<32x128xf32>
    %195 = arith.mulf %187, %194 : vector<32x128xf32>
    %cst_93 = arith.constant -0.284496725 : f32
    %196 = vector.broadcast %cst_93 : f32 to vector<32x128xf32>
    %197 = arith.addf %196, %195 : vector<32x128xf32>
    %198 = arith.mulf %187, %197 : vector<32x128xf32>
    %cst_94 = arith.constant 0.254829586 : f32
    %199 = vector.broadcast %cst_94 : f32 to vector<32x128xf32>
    %200 = arith.addf %199, %198 : vector<32x128xf32>
    %201 = arith.mulf %187, %200 : vector<32x128xf32>
    %cst_95 = arith.constant 0.000000e+00 : f32
    %202 = vector.broadcast %cst_95 : f32 to vector<32x128xf32>
    %203 = arith.subf %202, %181 : vector<32x128xf32>
    %204 = arith.mulf %203, %181 : vector<32x128xf32>
    %205 = math.exp %204 : vector<32x128xf32>
    %206 = arith.mulf %201, %205 : vector<32x128xf32>
    %cst_96 = arith.constant 1.000000e+00 : f32
    %207 = vector.broadcast %cst_96 : f32 to vector<32x128xf32>
    %208 = arith.subf %207, %206 : vector<32x128xf32>
    %209 = arith.mulf %180, %208 : vector<32x128xf32>
    %cst_97 = arith.constant 1.000000e+00 : f32
    %210 = vector.broadcast %cst_97 : f32 to vector<32x128xf32>
    %211 = arith.addf %210, %209 : vector<32x128xf32>
    %212 = arith.mulf %173, %211 : vector<32x128xf32>
    %c0_98 = arith.constant 0 : index
    %c0_99 = arith.constant 0 : index
    %c0_100 = arith.constant 0 : index
    %213 = vector.load %arg13[%c0_98, %c0_99, %c0_100] : memref<4x128x32xf32, #tpu.memory_space<vmem>>, vector<1x128x32xf32>
    %214 = vector.shape_cast %213 : vector<1x128x32xf32> to vector<128x32xf32>
    %cst_101 = arith.constant dense<0.000000e+00> : vector<32x32xf32>
    %215 = tpu.matmul %212, %214, %cst_101 {dimension_numbers = #tpu.dot_dimension_numbers<[1], [0], [0], [1], [0, 0, 1, 1], [], []>} : vector<32x128xf32>, vector<128x32xf32>, vector<32x32xf32> -> vector<32x32xf32>
    %216 = arith.addf %138, %215 : vector<32x32xf32>
    %c0_102 = arith.constant 0 : index
    %c0_103 = arith.constant 0 : index
    %c0_104 = arith.constant 0 : index
    %217 = vector.load %arg14[%c0_102, %c0_103, %c0_104] : memref<4x1x32xf32, #tpu.memory_space<vmem>>, vector<1x1x32xf32>
    %218 = vector.shape_cast %217 : vector<1x1x32xf32> to vector<1x32xf32>
    %219 = vector.broadcast %218 : vector<1x32xf32> to vector<32x32xf32>
    %220 = arith.addf %216, %219 : vector<32x32xf32>
    %c1_105 = arith.constant 1 : index
    %c0_106 = arith.constant 0 : index
    %c0_107 = arith.constant 0 : index
    %221 = vector.load %arg3[%c1_105, %c0_106, %c0_107] : memref<4x1x32xf32, #tpu.memory_space<vmem>>, vector<1x1x32xf32>
    %222 = vector.shape_cast %221 : vector<1x1x32xf32> to vector<1x32xf32>
    %c1_108 = arith.constant 1 : index
    %c0_109 = arith.constant 0 : index
    %c0_110 = arith.constant 0 : index
    %223 = vector.load %arg4[%c1_108, %c0_109, %c0_110] : memref<4x1x32xf32, #tpu.memory_space<vmem>>, vector<1x1x32xf32>
    %224 = vector.shape_cast %223 : vector<1x1x32xf32> to vector<1x32xf32>
    %cst_111 = arith.constant dense<0.000000e+00> : vector<32xf32>
    %225 = vector.multi_reduction <add>, %220, %cst_111 [1] : vector<32x32xf32> to vector<32xf32>
    %226 = vector.shape_cast %225 : vector<32xf32> to vector<32x1xf32>
    %cst_112 = arith.constant 3.200000e+01 : f32
    %227 = vector.broadcast %cst_112 : f32 to vector<32x1xf32>
    %228 = arith.divf %226, %227 : vector<32x1xf32>
    %229 = vector.broadcast %228 : vector<32x1xf32> to vector<32x32xf32>
    %230 = arith.subf %220, %229 : vector<32x32xf32>
    %231 = arith.mulf %230, %230 : vector<32x32xf32>
    %cst_113 = arith.constant dense<0.000000e+00> : vector<32xf32>
    %232 = vector.multi_reduction <add>, %231, %cst_113 [1] : vector<32x32xf32> to vector<32xf32>
    %233 = vector.shape_cast %232 : vector<32xf32> to vector<32x1xf32>
    %cst_114 = arith.constant 3.200000e+01 : f32
    %234 = vector.broadcast %cst_114 : f32 to vector<32x1xf32>
    %235 = arith.divf %233, %234 : vector<32x1xf32>
    %236 = vector.broadcast %228 : vector<32x1xf32> to vector<32x32xf32>
    %237 = arith.subf %220, %236 : vector<32x32xf32>
    %cst_115 = arith.constant 9.99999974E-6 : f32
    %238 = vector.broadcast %cst_115 : f32 to vector<32x1xf32>
    %239 = arith.addf %235, %238 : vector<32x1xf32>
    %240 = math.rsqrt %239 : vector<32x1xf32>
    %241 = vector.broadcast %240 : vector<32x1xf32> to vector<32x32xf32>
    %242 = arith.mulf %237, %241 : vector<32x32xf32>
    %243 = vector.broadcast %222 : vector<1x32xf32> to vector<32x32xf32>
    %244 = arith.mulf %242, %243 : vector<32x32xf32>
    %245 = vector.broadcast %224 : vector<1x32xf32> to vector<32x32xf32>
    %246 = arith.addf %244, %245 : vector<32x32xf32>
    %c1_116 = arith.constant 1 : index
    %c0_117 = arith.constant 0 : index
    %c0_118 = arith.constant 0 : index
    %247 = vector.load %arg5[%c1_116, %c0_117, %c0_118] : memref<4x32x96xf32, #tpu.memory_space<vmem>>, vector<1x32x96xf32>
    %248 = vector.shape_cast %247 : vector<1x32x96xf32> to vector<32x96xf32>
    %cst_119 = arith.constant dense<0.000000e+00> : vector<32x96xf32>
    %249 = tpu.matmul %246, %248, %cst_119 {dimension_numbers = #tpu.dot_dimension_numbers<[1], [0], [0], [1], [0, 0, 1, 1], [], []>} : vector<32x32xf32>, vector<32x96xf32>, vector<32x96xf32> -> vector<32x96xf32>
    %c1_120 = arith.constant 1 : index
    %c0_121 = arith.constant 0 : index
    %c0_122 = arith.constant 0 : index
    %250 = vector.load %arg6[%c1_120, %c0_121, %c0_122] : memref<4x1x96xf32, #tpu.memory_space<vmem>>, vector<1x1x96xf32>
    %251 = vector.shape_cast %250 : vector<1x1x96xf32> to vector<1x96xf32>
    %252 = vector.broadcast %251 : vector<1x96xf32> to vector<32x96xf32>
    %253 = arith.addf %249, %252 : vector<32x96xf32>
    %c1_123 = arith.constant 1 : index
    %c0_124 = arith.constant 0 : index
    %c0_125 = arith.constant 0 : index
    %254 = vector.load %arg7[%c1_123, %c0_124, %c0_125] : memref<4x32x32xf32, #tpu.memory_space<vmem>>, vector<1x32x32xf32>
    %255 = vector.shape_cast %254 : vector<1x32x32xf32> to vector<32x32xf32>
    %cst_126 = arith.constant 0.000000e+00 : f32
    %256 = vector.broadcast %cst_126 : f32 to vector<32x32xf32>
    %257 = vector.extract_strided_slice %253 {offsets = [0, 0], sizes = [32, 8], strides = [1, 1]} : vector<32x96xf32> to vector<32x8xf32>
    %cst_127 = arith.constant 0.353553385 : f32
    %258 = vector.broadcast %cst_127 : f32 to vector<32x8xf32>
    %259 = arith.mulf %257, %258 : vector<32x8xf32>
    %260 = vector.extract_strided_slice %253 {offsets = [0, 32], sizes = [32, 8], strides = [1, 1]} : vector<32x96xf32> to vector<32x8xf32>
    %261 = vector.extract_strided_slice %253 {offsets = [0, 64], sizes = [32, 8], strides = [1, 1]} : vector<32x96xf32> to vector<32x8xf32>
    %cst_128 = arith.constant dense<0.000000e+00> : vector<32x32xf32>
    %262 = tpu.matmul %259, %260, %cst_128 {dimension_numbers = #tpu.dot_dimension_numbers<[1], [1], [0], [0], [0, 0, 1, 0], [], []>} : vector<32x8xf32>, vector<32x8xf32>, vector<32x32xf32> -> vector<32x32xf32>
    %263 = arith.addf %262, %0 : vector<32x32xf32>
    %cst_129 = arith.constant dense<0xFF800000> : vector<32xf32>
    %264 = vector.multi_reduction <maximumf>, %263, %cst_129 [1] : vector<32x32xf32> to vector<32xf32>
    %265 = vector.shape_cast %264 : vector<32xf32> to vector<32x1xf32>
    %266 = vector.broadcast %265 : vector<32x1xf32> to vector<32x32xf32>
    %267 = arith.subf %263, %266 : vector<32x32xf32>
    %268 = math.exp %267 : vector<32x32xf32>
    %cst_130 = arith.constant dense<0.000000e+00> : vector<32xf32>
    %269 = vector.multi_reduction <add>, %268, %cst_130 [1] : vector<32x32xf32> to vector<32xf32>
    %270 = vector.shape_cast %269 : vector<32xf32> to vector<32x1xf32>
    %271 = tpu.reciprocal %270 {approx = true} : vector<32x1xf32> -> vector<32x1xf32>
    %272 = vector.broadcast %271 : vector<32x1xf32> to vector<32x32xf32>
    %273 = arith.mulf %268, %272 : vector<32x32xf32>
    %c1_131 = arith.constant 1 : index
    %c0_132 = arith.constant 0 : index
    %c0_133 = arith.constant 0 : index
    %c0_134 = arith.constant 0 : index
    %274 = vector.load %arg21[%c1_131, %c0_132, %c0_133, %c0_134] : memref<4x4x32x32xf32, #tpu.memory_space<vmem>>, vector<1x1x32x32xf32>
    %275 = vector.shape_cast %274 : vector<1x1x32x32xf32> to vector<32x32xf32>
    %276 = vector.shape_cast %273 : vector<32x32xf32> to vector<1x1x32x32xf32>
    tpu.vector_store %arg21[%c1_131, %c0_132, %c0_133, %c0_134], %276 {strides = array<i32>} : memref<4x4x32x32xf32, #tpu.memory_space<vmem>>, vector<1x1x32x32xf32>,
    %cst_135 = arith.constant dense<0.000000e+00> : vector<32x8xf32>
    %277 = tpu.matmul %273, %261, %cst_135 {dimension_numbers = #tpu.dot_dimension_numbers<[1], [0], [0], [1], [0, 0, 1, 1], [], []>} : vector<32x32xf32>, vector<32x8xf32>, vector<32x8xf32> -> vector<32x8xf32>
    %278 = vector.extract_strided_slice %255 {offsets = [0, 0], sizes = [8, 32], strides = [1, 1]} : vector<32x32xf32> to vector<8x32xf32>
    %cst_136 = arith.constant dense<0.000000e+00> : vector<32x32xf32>
    %279 = tpu.matmul %277, %278, %cst_136 {dimension_numbers = #tpu.dot_dimension_numbers<[1], [0], [0], [1], [0, 0, 1, 1], [], []>} : vector<32x8xf32>, vector<8x32xf32>, vector<32x32xf32> -> vector<32x32xf32>
    %280 = arith.addf %256, %279 : vector<32x32xf32>
    %281 = vector.extract_strided_slice %253 {offsets = [0, 8], sizes = [32, 8], strides = [1, 1]} : vector<32x96xf32> to vector<32x8xf32>
    %cst_137 = arith.constant 0.353553385 : f32
    %282 = vector.broadcast %cst_137 : f32 to vector<32x8xf32>
    %283 = arith.mulf %281, %282 : vector<32x8xf32>
    %284 = vector.extract_strided_slice %253 {offsets = [0, 40], sizes = [32, 8], strides = [1, 1]} : vector<32x96xf32> to vector<32x8xf32>
    %285 = vector.extract_strided_slice %253 {offsets = [0, 72], sizes = [32, 8], strides = [1, 1]} : vector<32x96xf32> to vector<32x8xf32>
    %cst_138 = arith.constant dense<0.000000e+00> : vector<32x32xf32>
    %286 = tpu.matmul %283, %284, %cst_138 {dimension_numbers = #tpu.dot_dimension_numbers<[1], [1], [0], [0], [0, 0, 1, 0], [], []>} : vector<32x8xf32>, vector<32x8xf32>, vector<32x32xf32> -> vector<32x32xf32>
    %287 = arith.addf %286, %0 : vector<32x32xf32>
    %cst_139 = arith.constant dense<0xFF800000> : vector<32xf32>
    %288 = vector.multi_reduction <maximumf>, %287, %cst_139 [1] : vector<32x32xf32> to vector<32xf32>
    %289 = vector.shape_cast %288 : vector<32xf32> to vector<32x1xf32>
    %290 = vector.broadcast %289 : vector<32x1xf32> to vector<32x32xf32>
    %291 = arith.subf %287, %290 : vector<32x32xf32>
    %292 = math.exp %291 : vector<32x32xf32>
    %cst_140 = arith.constant dense<0.000000e+00> : vector<32xf32>
    %293 = vector.multi_reduction <add>, %292, %cst_140 [1] : vector<32x32xf32> to vector<32xf32>
    %294 = vector.shape_cast %293 : vector<32xf32> to vector<32x1xf32>
    %295 = tpu.reciprocal %294 {approx = true} : vector<32x1xf32> -> vector<32x1xf32>
    %296 = vector.broadcast %295 : vector<32x1xf32> to vector<32x32xf32>
    %297 = arith.mulf %292, %296 : vector<32x32xf32>
    %c1_141 = arith.constant 1 : index
    %c1_142 = arith.constant 1 : index
    %c0_143 = arith.constant 0 : index
    %c0_144 = arith.constant 0 : index
    %298 = vector.load %arg21[%c1_141, %c1_142, %c0_143, %c0_144] : memref<4x4x32x32xf32, #tpu.memory_space<vmem>>, vector<1x1x32x32xf32>
    %299 = vector.shape_cast %298 : vector<1x1x32x32xf32> to vector<32x32xf32>
    %300 = vector.shape_cast %297 : vector<32x32xf32> to vector<1x1x32x32xf32>
    tpu.vector_store %arg21[%c1_141, %c1_142, %c0_143, %c0_144], %300 {strides = array<i32>} : memref<4x4x32x32xf32, #tpu.memory_space<vmem>>, vector<1x1x32x32xf32>,
    %cst_145 = arith.constant dense<0.000000e+00> : vector<32x8xf32>
    %301 = tpu.matmul %297, %285, %cst_145 {dimension_numbers = #tpu.dot_dimension_numbers<[1], [0], [0], [1], [0, 0, 1, 1], [], []>} : vector<32x32xf32>, vector<32x8xf32>, vector<32x8xf32> -> vector<32x8xf32>
    %302 = vector.extract_strided_slice %255 {offsets = [8, 0], sizes = [8, 32], strides = [1, 1]} : vector<32x32xf32> to vector<8x32xf32>
    %cst_146 = arith.constant dense<0.000000e+00> : vector<32x32xf32>
    %303 = tpu.matmul %301, %302, %cst_146 {dimension_numbers = #tpu.dot_dimension_numbers<[1], [0], [0], [1], [0, 0, 1, 1], [], []>} : vector<32x8xf32>, vector<8x32xf32>, vector<32x32xf32> -> vector<32x32xf32>
    %304 = arith.addf %280, %303 : vector<32x32xf32>
    %305 = vector.extract_strided_slice %253 {offsets = [0, 16], sizes = [32, 8], strides = [1, 1]} : vector<32x96xf32> to vector<32x8xf32>
    %cst_147 = arith.constant 0.353553385 : f32
    %306 = vector.broadcast %cst_147 : f32 to vector<32x8xf32>
    %307 = arith.mulf %305, %306 : vector<32x8xf32>
    %308 = vector.extract_strided_slice %253 {offsets = [0, 48], sizes = [32, 8], strides = [1, 1]} : vector<32x96xf32> to vector<32x8xf32>
    %309 = vector.extract_strided_slice %253 {offsets = [0, 80], sizes = [32, 8], strides = [1, 1]} : vector<32x96xf32> to vector<32x8xf32>
    %cst_148 = arith.constant dense<0.000000e+00> : vector<32x32xf32>
    %310 = tpu.matmul %307, %308, %cst_148 {dimension_numbers = #tpu.dot_dimension_numbers<[1], [1], [0], [0], [0, 0, 1, 0], [], []>} : vector<32x8xf32>, vector<32x8xf32>, vector<32x32xf32> -> vector<32x32xf32>
    %311 = arith.addf %310, %0 : vector<32x32xf32>
    %cst_149 = arith.constant dense<0xFF800000> : vector<32xf32>
    %312 = vector.multi_reduction <maximumf>, %311, %cst_149 [1] : vector<32x32xf32> to vector<32xf32>
    %313 = vector.shape_cast %312 : vector<32xf32> to vector<32x1xf32>
    %314 = vector.broadcast %313 : vector<32x1xf32> to vector<32x32xf32>
    %315 = arith.subf %311, %314 : vector<32x32xf32>
    %316 = math.exp %315 : vector<32x32xf32>
    %cst_150 = arith.constant dense<0.000000e+00> : vector<32xf32>
    %317 = vector.multi_reduction <add>, %316, %cst_150 [1] : vector<32x32xf32> to vector<32xf32>
    %318 = vector.shape_cast %317 : vector<32xf32> to vector<32x1xf32>
    %319 = tpu.reciprocal %318 {approx = true} : vector<32x1xf32> -> vector<32x1xf32>
    %320 = vector.broadcast %319 : vector<32x1xf32> to vector<32x32xf32>
    %321 = arith.mulf %316, %320 : vector<32x32xf32>
    %c1_151 = arith.constant 1 : index
    %c2_152 = arith.constant 2 : index
    %c0_153 = arith.constant 0 : index
    %c0_154 = arith.constant 0 : index
    %322 = vector.load %arg21[%c1_151, %c2_152, %c0_153, %c0_154] : memref<4x4x32x32xf32, #tpu.memory_space<vmem>>, vector<1x1x32x32xf32>
    %323 = vector.shape_cast %322 : vector<1x1x32x32xf32> to vector<32x32xf32>
    %324 = vector.shape_cast %321 : vector<32x32xf32> to vector<1x1x32x32xf32>
    tpu.vector_store %arg21[%c1_151, %c2_152, %c0_153, %c0_154], %324 {strides = array<i32>} : memref<4x4x32x32xf32, #tpu.memory_space<vmem>>, vector<1x1x32x32xf32>,
    %cst_155 = arith.constant dense<0.000000e+00> : vector<32x8xf32>
    %325 = tpu.matmul %321, %309, %cst_155 {dimension_numbers = #tpu.dot_dimension_numbers<[1], [0], [0], [1], [0, 0, 1, 1], [], []>} : vector<32x32xf32>, vector<32x8xf32>, vector<32x8xf32> -> vector<32x8xf32>
    %326 = vector.extract_strided_slice %255 {offsets = [16, 0], sizes = [8, 32], strides = [1, 1]} : vector<32x32xf32> to vector<8x32xf32>
    %cst_156 = arith.constant dense<0.000000e+00> : vector<32x32xf32>
    %327 = tpu.matmul %325, %326, %cst_156 {dimension_numbers = #tpu.dot_dimension_numbers<[1], [0], [0], [1], [0, 0, 1, 1], [], []>} : vector<32x8xf32>, vector<8x32xf32>, vector<32x32xf32> -> vector<32x32xf32>
    %328 = arith.addf %304, %327 : vector<32x32xf32>
    %329 = vector.extract_strided_slice %253 {offsets = [0, 24], sizes = [32, 8], strides = [1, 1]} : vector<32x96xf32> to vector<32x8xf32>
    %cst_157 = arith.constant 0.353553385 : f32
    %330 = vector.broadcast %cst_157 : f32 to vector<32x8xf32>
    %331 = arith.mulf %329, %330 : vector<32x8xf32>
    %332 = vector.extract_strided_slice %253 {offsets = [0, 56], sizes = [32, 8], strides = [1, 1]} : vector<32x96xf32> to vector<32x8xf32>
    %333 = vector.extract_strided_slice %253 {offsets = [0, 88], sizes = [32, 8], strides = [1, 1]} : vector<32x96xf32> to vector<32x8xf32>
    %cst_158 = arith.constant dense<0.000000e+00> : vector<32x32xf32>
    %334 = tpu.matmul %331, %332, %cst_158 {dimension_numbers = #tpu.dot_dimension_numbers<[1], [1], [0], [0], [0, 0, 1, 0], [], []>} : vector<32x8xf32>, vector<32x8xf32>, vector<32x32xf32> -> vector<32x32xf32>
    %335 = arith.addf %334, %0 : vector<32x32xf32>
    %cst_159 = arith.constant dense<0xFF800000> : vector<32xf32>
    %336 = vector.multi_reduction <maximumf>, %335, %cst_159 [1] : vector<32x32xf32> to vector<32xf32>
    %337 = vector.shape_cast %336 : vector<32xf32> to vector<32x1xf32>
    %338 = vector.broadcast %337 : vector<32x1xf32> to vector<32x32xf32>
    %339 = arith.subf %335, %338 : vector<32x32xf32>
    %340 = math.exp %339 : vector<32x32xf32>
    %cst_160 = arith.constant dense<0.000000e+00> : vector<32xf32>
    %341 = vector.multi_reduction <add>, %340, %cst_160 [1] : vector<32x32xf32> to vector<32xf32>
    %342 = vector.shape_cast %341 : vector<32xf32> to vector<32x1xf32>
    %343 = tpu.reciprocal %342 {approx = true} : vector<32x1xf32> -> vector<32x1xf32>
    %344 = vector.broadcast %343 : vector<32x1xf32> to vector<32x32xf32>
    %345 = arith.mulf %340, %344 : vector<32x32xf32>
    %c1_161 = arith.constant 1 : index
    %c3_162 = arith.constant 3 : index
    %c0_163 = arith.constant 0 : index
    %c0_164 = arith.constant 0 : index
    %346 = vector.load %arg21[%c1_161, %c3_162, %c0_163, %c0_164] : memref<4x4x32x32xf32, #tpu.memory_space<vmem>>, vector<1x1x32x32xf32>
    %347 = vector.shape_cast %346 : vector<1x1x32x32xf32> to vector<32x32xf32>
    %348 = vector.shape_cast %345 : vector<32x32xf32> to vector<1x1x32x32xf32>
    tpu.vector_store %arg21[%c1_161, %c3_162, %c0_163, %c0_164], %348 {strides = array<i32>} : memref<4x4x32x32xf32, #tpu.memory_space<vmem>>, vector<1x1x32x32xf32>,
    %cst_165 = arith.constant dense<0.000000e+00> : vector<32x8xf32>
    %349 = tpu.matmul %345, %333, %cst_165 {dimension_numbers = #tpu.dot_dimension_numbers<[1], [0], [0], [1], [0, 0, 1, 1], [], []>} : vector<32x32xf32>, vector<32x8xf32>, vector<32x8xf32> -> vector<32x8xf32>
    %350 = vector.extract_strided_slice %255 {offsets = [24, 0], sizes = [8, 32], strides = [1, 1]} : vector<32x32xf32> to vector<8x32xf32>
    %cst_166 = arith.constant dense<0.000000e+00> : vector<32x32xf32>
    %351 = tpu.matmul %349, %350, %cst_166 {dimension_numbers = #tpu.dot_dimension_numbers<[1], [0], [0], [1], [0, 0, 1, 1], [], []>} : vector<32x8xf32>, vector<8x32xf32>, vector<32x32xf32> -> vector<32x32xf32>
    %352 = arith.addf %328, %351 : vector<32x32xf32>
    %353 = arith.addf %220, %352 : vector<32x32xf32>
    %c1_167 = arith.constant 1 : index
    %c0_168 = arith.constant 0 : index
    %c0_169 = arith.constant 0 : index
    %354 = vector.load %arg8[%c1_167, %c0_168, %c0_169] : memref<4x1x32xf32, #tpu.memory_space<vmem>>, vector<1x1x32xf32>
    %355 = vector.shape_cast %354 : vector<1x1x32xf32> to vector<1x32xf32>
    %356 = vector.broadcast %355 : vector<1x32xf32> to vector<32x32xf32>
    %357 = arith.addf %353, %356 : vector<32x32xf32>
    %c1_170 = arith.constant 1 : index
    %c0_171 = arith.constant 0 : index
    %c0_172 = arith.constant 0 : index
    %358 = vector.load %arg9[%c1_170, %c0_171, %c0_172] : memref<4x1x32xf32, #tpu.memory_space<vmem>>, vector<1x1x32xf32>
    %359 = vector.shape_cast %358 : vector<1x1x32xf32> to vector<1x32xf32>
    %c1_173 = arith.constant 1 : index
    %c0_174 = arith.constant 0 : index
    %c0_175 = arith.constant 0 : index
    %360 = vector.load %arg10[%c1_173, %c0_174, %c0_175] : memref<4x1x32xf32, #tpu.memory_space<vmem>>, vector<1x1x32xf32>
    %361 = vector.shape_cast %360 : vector<1x1x32xf32> to vector<1x32xf32>
    %cst_176 = arith.constant dense<0.000000e+00> : vector<32xf32>
    %362 = vector.multi_reduction <add>, %357, %cst_176 [1] : vector<32x32xf32> to vector<32xf32>
    %363 = vector.shape_cast %362 : vector<32xf32> to vector<32x1xf32>
    %cst_177 = arith.constant 3.200000e+01 : f32
    %364 = vector.broadcast %cst_177 : f32 to vector<32x1xf32>
    %365 = arith.divf %363, %364 : vector<32x1xf32>
    %366 = vector.broadcast %365 : vector<32x1xf32> to vector<32x32xf32>
    %367 = arith.subf %357, %366 : vector<32x32xf32>
    %368 = arith.mulf %367, %367 : vector<32x32xf32>
    %cst_178 = arith.constant dense<0.000000e+00> : vector<32xf32>
    %369 = vector.multi_reduction <add>, %368, %cst_178 [1] : vector<32x32xf32> to vector<32xf32>
    %370 = vector.shape_cast %369 : vector<32xf32> to vector<32x1xf32>
    %cst_179 = arith.constant 3.200000e+01 : f32
    %371 = vector.broadcast %cst_179 : f32 to vector<32x1xf32>
    %372 = arith.divf %370, %371 : vector<32x1xf32>
    %373 = vector.broadcast %365 : vector<32x1xf32> to vector<32x32xf32>
    %374 = arith.subf %357, %373 : vector<32x32xf32>
    %cst_180 = arith.constant 9.99999974E-6 : f32
    %375 = vector.broadcast %cst_180 : f32 to vector<32x1xf32>
    %376 = arith.addf %372, %375 : vector<32x1xf32>
    %377 = math.rsqrt %376 : vector<32x1xf32>
    %378 = vector.broadcast %377 : vector<32x1xf32> to vector<32x32xf32>
    %379 = arith.mulf %374, %378 : vector<32x32xf32>
    %380 = vector.broadcast %359 : vector<1x32xf32> to vector<32x32xf32>
    %381 = arith.mulf %379, %380 : vector<32x32xf32>
    %382 = vector.broadcast %361 : vector<1x32xf32> to vector<32x32xf32>
    %383 = arith.addf %381, %382 : vector<32x32xf32>
    %c1_181 = arith.constant 1 : index
    %c0_182 = arith.constant 0 : index
    %c0_183 = arith.constant 0 : index
    %384 = vector.load %arg11[%c1_181, %c0_182, %c0_183] : memref<4x32x128xf32, #tpu.memory_space<vmem>>, vector<1x32x128xf32>
    %385 = vector.shape_cast %384 : vector<1x32x128xf32> to vector<32x128xf32>
    %cst_184 = arith.constant dense<0.000000e+00> : vector<32x128xf32>
    %386 = tpu.matmul %383, %385, %cst_184 {dimension_numbers = #tpu.dot_dimension_numbers<[1], [0], [0], [1], [0, 0, 1, 1], [], []>} : vector<32x32xf32>, vector<32x128xf32>, vector<32x128xf32> -> vector<32x128xf32>
    %c1_185 = arith.constant 1 : index
    %c0_186 = arith.constant 0 : index
    %c0_187 = arith.constant 0 : index
    %387 = vector.load %arg12[%c1_185, %c0_186, %c0_187] : memref<4x1x128xf32, #tpu.memory_space<vmem>>, vector<1x1x128xf32>
    %388 = vector.shape_cast %387 : vector<1x1x128xf32> to vector<1x128xf32>
    %389 = vector.broadcast %388 : vector<1x128xf32> to vector<32x128xf32>
    %390 = arith.addf %386, %389 : vector<32x128xf32>
    %cst_188 = arith.constant 5.000000e-01 : f32
    %391 = vector.broadcast %cst_188 : f32 to vector<32x128xf32>
    %392 = arith.mulf %391, %390 : vector<32x128xf32>
    %cst_189 = arith.constant 0.707106769 : f32
    %393 = vector.broadcast %cst_189 : f32 to vector<32x128xf32>
    %394 = arith.mulf %390, %393 : vector<32x128xf32>
    %cst_190 = arith.constant 0.000000e+00 : f32
    %395 = vector.broadcast %cst_190 : f32 to vector<32x128xf32>
    %396 = arith.cmpf oge, %394, %395 : vector<32x128xf32>
    %cst_191 = arith.constant 1.000000e+00 : f32
    %cst_192 = arith.constant -1.000000e+00 : f32
    %397 = vector.broadcast %cst_191 : f32 to vector<32x128xf32>
    %398 = vector.broadcast %cst_192 : f32 to vector<32x128xf32>
    %399 = arith.select %396, %397, %398 : vector<32x128xi1>, vector<32x128xf32>
    %400 = math.absf %394 : vector<32x128xf32>
    %cst_193 = arith.constant 0.327591091 : f32
    %401 = vector.broadcast %cst_193 : f32 to vector<32x128xf32>
    %402 = arith.mulf %401, %400 : vector<32x128xf32>
    %cst_194 = arith.constant 1.000000e+00 : f32
    %403 = vector.broadcast %cst_194 : f32 to vector<32x128xf32>
    %404 = arith.addf %403, %402 : vector<32x128xf32>
    %cst_195 = arith.constant 1.000000e+00 : f32
    %405 = vector.broadcast %cst_195 : f32 to vector<32x128xf32>
    %406 = arith.divf %405, %404 : vector<32x128xf32>
    %cst_196 = arith.constant 1.06140542 : f32
    %407 = vector.broadcast %cst_196 : f32 to vector<32x128xf32>
    %408 = arith.mulf %406, %407 : vector<32x128xf32>
    %cst_197 = arith.constant -1.45315206 : f32
    %409 = vector.broadcast %cst_197 : f32 to vector<32x128xf32>
    %410 = arith.addf %409, %408 : vector<32x128xf32>
    %411 = arith.mulf %406, %410 : vector<32x128xf32>
    %cst_198 = arith.constant 1.42141378 : f32
    %412 = vector.broadcast %cst_198 : f32 to vector<32x128xf32>
    %413 = arith.addf %412, %411 : vector<32x128xf32>
    %414 = arith.mulf %406, %413 : vector<32x128xf32>
    %cst_199 = arith.constant -0.284496725 : f32
    %415 = vector.broadcast %cst_199 : f32 to vector<32x128xf32>
    %416 = arith.addf %415, %414 : vector<32x128xf32>
    %417 = arith.mulf %406, %416 : vector<32x128xf32>
    %cst_200 = arith.constant 0.254829586 : f32
    %418 = vector.broadcast %cst_200 : f32 to vector<32x128xf32>
    %419 = arith.addf %418, %417 : vector<32x128xf32>
    %420 = arith.mulf %406, %419 : vector<32x128xf32>
    %cst_201 = arith.constant 0.000000e+00 : f32
    %421 = vector.broadcast %cst_201 : f32 to vector<32x128xf32>
    %422 = arith.subf %421, %400 : vector<32x128xf32>
    %423 = arith.mulf %422, %400 : vector<32x128xf32>
    %424 = math.exp %423 : vector<32x128xf32>
    %425 = arith.mulf %420, %424 : vector<32x128xf32>
    %cst_202 = arith.constant 1.000000e+00 : f32
    %426 = vector.broadcast %cst_202 : f32 to vector<32x128xf32>
    %427 = arith.subf %426, %425 : vector<32x128xf32>
    %428 = arith.mulf %399, %427 : vector<32x128xf32>
    %cst_203 = arith.constant 1.000000e+00 : f32
    %429 = vector.broadcast %cst_203 : f32 to vector<32x128xf32>
    %430 = arith.addf %429, %428 : vector<32x128xf32>
    %431 = arith.mulf %392, %430 : vector<32x128xf32>
    %c1_204 = arith.constant 1 : index
    %c0_205 = arith.constant 0 : index
    %c0_206 = arith.constant 0 : index
    %432 = vector.load %arg13[%c1_204, %c0_205, %c0_206] : memref<4x128x32xf32, #tpu.memory_space<vmem>>, vector<1x128x32xf32>
    %433 = vector.shape_cast %432 : vector<1x128x32xf32> to vector<128x32xf32>
    %cst_207 = arith.constant dense<0.000000e+00> : vector<32x32xf32>
    %434 = tpu.matmul %431, %433, %cst_207 {dimension_numbers = #tpu.dot_dimension_numbers<[1], [0], [0], [1], [0, 0, 1, 1], [], []>} : vector<32x128xf32>, vector<128x32xf32>, vector<32x32xf32> -> vector<32x32xf32>
    %435 = arith.addf %357, %434 : vector<32x32xf32>
    %c1_208 = arith.constant 1 : index
    %c0_209 = arith.constant 0 : index
    %c0_210 = arith.constant 0 : index
    %436 = vector.load %arg14[%c1_208, %c0_209, %c0_210] : memref<4x1x32xf32, #tpu.memory_space<vmem>>, vector<1x1x32xf32>
    %437 = vector.shape_cast %436 : vector<1x1x32xf32> to vector<1x32xf32>
    %438 = vector.broadcast %437 : vector<1x32xf32> to vector<32x32xf32>
    %439 = arith.addf %435, %438 : vector<32x32xf32>
    %c0_211 = arith.constant 0 : index
    %c0_212 = arith.constant 0 : index
    %440 = vector.load %arg1[%c0_211, %c0_212] : memref<32x32xf32, #tpu.memory_space<vmem>>, vector<32x32xf32>
    %c2_213 = arith.constant 2 : index
    %c0_214 = arith.constant 0 : index
    %c0_215 = arith.constant 0 : index
    %441 = vector.load %arg3[%c2_213, %c0_214, %c0_215] : memref<4x1x32xf32, #tpu.memory_space<vmem>>, vector<1x1x32xf32>
    %442 = vector.shape_cast %441 : vector<1x1x32xf32> to vector<1x32xf32>
    %c2_216 = arith.constant 2 : index
    %c0_217 = arith.constant 0 : index
    %c0_218 = arith.constant 0 : index
    %443 = vector.load %arg4[%c2_216, %c0_217, %c0_218] : memref<4x1x32xf32, #tpu.memory_space<vmem>>, vector<1x1x32xf32>
    %444 = vector.shape_cast %443 : vector<1x1x32xf32> to vector<1x32xf32>
    %cst_219 = arith.constant dense<0.000000e+00> : vector<32xf32>
    %445 = vector.multi_reduction <add>, %440, %cst_219 [1] : vector<32x32xf32> to vector<32xf32>
    %446 = vector.shape_cast %445 : vector<32xf32> to vector<32x1xf32>
    %cst_220 = arith.constant 3.200000e+01 : f32
    %447 = vector.broadcast %cst_220 : f32 to vector<32x1xf32>
    %448 = arith.divf %446, %447 : vector<32x1xf32>
    %449 = vector.broadcast %448 : vector<32x1xf32> to vector<32x32xf32>
    %450 = arith.subf %440, %449 : vector<32x32xf32>
    %451 = arith.mulf %450, %450 : vector<32x32xf32>
    %cst_221 = arith.constant dense<0.000000e+00> : vector<32xf32>
    %452 = vector.multi_reduction <add>, %451, %cst_221 [1] : vector<32x32xf32> to vector<32xf32>
    %453 = vector.shape_cast %452 : vector<32xf32> to vector<32x1xf32>
    %cst_222 = arith.constant 3.200000e+01 : f32
    %454 = vector.broadcast %cst_222 : f32 to vector<32x1xf32>
    %455 = arith.divf %453, %454 : vector<32x1xf32>
    %456 = vector.broadcast %448 : vector<32x1xf32> to vector<32x32xf32>
    %457 = arith.subf %440, %456 : vector<32x32xf32>
    %cst_223 = arith.constant 9.99999974E-6 : f32
    %458 = vector.broadcast %cst_223 : f32 to vector<32x1xf32>
    %459 = arith.addf %455, %458 : vector<32x1xf32>
    %460 = math.rsqrt %459 : vector<32x1xf32>
    %461 = vector.broadcast %460 : vector<32x1xf32> to vector<32x32xf32>
    %462 = arith.mulf %457, %461 : vector<32x32xf32>
    %463 = vector.broadcast %442 : vector<1x32xf32> to vector<32x32xf32>
    %464 = arith.mulf %462, %463 : vector<32x32xf32>
    %465 = vector.broadcast %444 : vector<1x32xf32> to vector<32x32xf32>
    %466 = arith.addf %464, %465 : vector<32x32xf32>
    %c2_224 = arith.constant 2 : index
    %c0_225 = arith.constant 0 : index
    %c0_226 = arith.constant 0 : index
    %467 = vector.load %arg5[%c2_224, %c0_225, %c0_226] : memref<4x32x96xf32, #tpu.memory_space<vmem>>, vector<1x32x96xf32>
    %468 = vector.shape_cast %467 : vector<1x32x96xf32> to vector<32x96xf32>
    %cst_227 = arith.constant dense<0.000000e+00> : vector<32x96xf32>
    %469 = tpu.matmul %466, %468, %cst_227 {dimension_numbers = #tpu.dot_dimension_numbers<[1], [0], [0], [1], [0, 0, 1, 1], [], []>} : vector<32x32xf32>, vector<32x96xf32>, vector<32x96xf32> -> vector<32x96xf32>
    %c2_228 = arith.constant 2 : index
    %c0_229 = arith.constant 0 : index
    %c0_230 = arith.constant 0 : index
    %470 = vector.load %arg6[%c2_228, %c0_229, %c0_230] : memref<4x1x96xf32, #tpu.memory_space<vmem>>, vector<1x1x96xf32>
    %471 = vector.shape_cast %470 : vector<1x1x96xf32> to vector<1x96xf32>
    %472 = vector.broadcast %471 : vector<1x96xf32> to vector<32x96xf32>
    %473 = arith.addf %469, %472 : vector<32x96xf32>
    %c2_231 = arith.constant 2 : index
    %c0_232 = arith.constant 0 : index
    %c0_233 = arith.constant 0 : index
    %474 = vector.load %arg7[%c2_231, %c0_232, %c0_233] : memref<4x32x32xf32, #tpu.memory_space<vmem>>, vector<1x32x32xf32>
    %475 = vector.shape_cast %474 : vector<1x32x32xf32> to vector<32x32xf32>
    %cst_234 = arith.constant 0.000000e+00 : f32
    %476 = vector.broadcast %cst_234 : f32 to vector<32x32xf32>
    %477 = vector.extract_strided_slice %473 {offsets = [0, 0], sizes = [32, 8], strides = [1, 1]} : vector<32x96xf32> to vector<32x8xf32>
    %cst_235 = arith.constant 0.353553385 : f32
    %478 = vector.broadcast %cst_235 : f32 to vector<32x8xf32>
    %479 = arith.mulf %477, %478 : vector<32x8xf32>
    %480 = vector.extract_strided_slice %473 {offsets = [0, 32], sizes = [32, 8], strides = [1, 1]} : vector<32x96xf32> to vector<32x8xf32>
    %481 = vector.extract_strided_slice %473 {offsets = [0, 64], sizes = [32, 8], strides = [1, 1]} : vector<32x96xf32> to vector<32x8xf32>
    %cst_236 = arith.constant dense<0.000000e+00> : vector<32x32xf32>
    %482 = tpu.matmul %479, %480, %cst_236 {dimension_numbers = #tpu.dot_dimension_numbers<[1], [1], [0], [0], [0, 0, 1, 0], [], []>} : vector<32x8xf32>, vector<32x8xf32>, vector<32x32xf32> -> vector<32x32xf32>
    %483 = arith.addf %482, %0 : vector<32x32xf32>
    %cst_237 = arith.constant dense<0xFF800000> : vector<32xf32>
    %484 = vector.multi_reduction <maximumf>, %483, %cst_237 [1] : vector<32x32xf32> to vector<32xf32>
    %485 = vector.shape_cast %484 : vector<32xf32> to vector<32x1xf32>
    %486 = vector.broadcast %485 : vector<32x1xf32> to vector<32x32xf32>
    %487 = arith.subf %483, %486 : vector<32x32xf32>
    %488 = math.exp %487 : vector<32x32xf32>
    %cst_238 = arith.constant dense<0.000000e+00> : vector<32xf32>
    %489 = vector.multi_reduction <add>, %488, %cst_238 [1] : vector<32x32xf32> to vector<32xf32>
    %490 = vector.shape_cast %489 : vector<32xf32> to vector<32x1xf32>
    %491 = tpu.reciprocal %490 {approx = true} : vector<32x1xf32> -> vector<32x1xf32>
    %492 = vector.broadcast %491 : vector<32x1xf32> to vector<32x32xf32>
    %493 = arith.mulf %488, %492 : vector<32x32xf32>
    %c2_239 = arith.constant 2 : index
    %c0_240 = arith.constant 0 : index
    %c0_241 = arith.constant 0 : index
    %c0_242 = arith.constant 0 : index
    %494 = vector.load %arg21[%c2_239, %c0_240, %c0_241, %c0_242] : memref<4x4x32x32xf32, #tpu.memory_space<vmem>>, vector<1x1x32x32xf32>
    %495 = vector.shape_cast %494 : vector<1x1x32x32xf32> to vector<32x32xf32>
    %496 = vector.shape_cast %493 : vector<32x32xf32> to vector<1x1x32x32xf32>
    tpu.vector_store %arg21[%c2_239, %c0_240, %c0_241, %c0_242], %496 {strides = array<i32>} : memref<4x4x32x32xf32, #tpu.memory_space<vmem>>, vector<1x1x32x32xf32>,
    %cst_243 = arith.constant dense<0.000000e+00> : vector<32x8xf32>
    %497 = tpu.matmul %493, %481, %cst_243 {dimension_numbers = #tpu.dot_dimension_numbers<[1], [0], [0], [1], [0, 0, 1, 1], [], []>} : vector<32x32xf32>, vector<32x8xf32>, vector<32x8xf32> -> vector<32x8xf32>
    %498 = vector.extract_strided_slice %475 {offsets = [0, 0], sizes = [8, 32], strides = [1, 1]} : vector<32x32xf32> to vector<8x32xf32>
    %cst_244 = arith.constant dense<0.000000e+00> : vector<32x32xf32>
    %499 = tpu.matmul %497, %498, %cst_244 {dimension_numbers = #tpu.dot_dimension_numbers<[1], [0], [0], [1], [0, 0, 1, 1], [], []>} : vector<32x8xf32>, vector<8x32xf32>, vector<32x32xf32> -> vector<32x32xf32>
    %500 = arith.addf %476, %499 : vector<32x32xf32>
    %501 = vector.extract_strided_slice %473 {offsets = [0, 8], sizes = [32, 8], strides = [1, 1]} : vector<32x96xf32> to vector<32x8xf32>
    %cst_245 = arith.constant 0.353553385 : f32
    %502 = vector.broadcast %cst_245 : f32 to vector<32x8xf32>
    %503 = arith.mulf %501, %502 : vector<32x8xf32>
    %504 = vector.extract_strided_slice %473 {offsets = [0, 40], sizes = [32, 8], strides = [1, 1]} : vector<32x96xf32> to vector<32x8xf32>
    %505 = vector.extract_strided_slice %473 {offsets = [0, 72], sizes = [32, 8], strides = [1, 1]} : vector<32x96xf32> to vector<32x8xf32>
    %cst_246 = arith.constant dense<0.000000e+00> : vector<32x32xf32>
    %506 = tpu.matmul %503, %504, %cst_246 {dimension_numbers = #tpu.dot_dimension_numbers<[1], [1], [0], [0], [0, 0, 1, 0], [], []>} : vector<32x8xf32>, vector<32x8xf32>, vector<32x32xf32> -> vector<32x32xf32>
    %507 = arith.addf %506, %0 : vector<32x32xf32>
    %cst_247 = arith.constant dense<0xFF800000> : vector<32xf32>
    %508 = vector.multi_reduction <maximumf>, %507, %cst_247 [1] : vector<32x32xf32> to vector<32xf32>
    %509 = vector.shape_cast %508 : vector<32xf32> to vector<32x1xf32>
    %510 = vector.broadcast %509 : vector<32x1xf32> to vector<32x32xf32>
    %511 = arith.subf %507, %510 : vector<32x32xf32>
    %512 = math.exp %511 : vector<32x32xf32>
    %cst_248 = arith.constant dense<0.000000e+00> : vector<32xf32>
    %513 = vector.multi_reduction <add>, %512, %cst_248 [1] : vector<32x32xf32> to vector<32xf32>
    %514 = vector.shape_cast %513 : vector<32xf32> to vector<32x1xf32>
    %515 = tpu.reciprocal %514 {approx = true} : vector<32x1xf32> -> vector<32x1xf32>
    %516 = vector.broadcast %515 : vector<32x1xf32> to vector<32x32xf32>
    %517 = arith.mulf %512, %516 : vector<32x32xf32>
    %c2_249 = arith.constant 2 : index
    %c1_250 = arith.constant 1 : index
    %c0_251 = arith.constant 0 : index
    %c0_252 = arith.constant 0 : index
    %518 = vector.load %arg21[%c2_249, %c1_250, %c0_251, %c0_252] : memref<4x4x32x32xf32, #tpu.memory_space<vmem>>, vector<1x1x32x32xf32>
    %519 = vector.shape_cast %518 : vector<1x1x32x32xf32> to vector<32x32xf32>
    %520 = vector.shape_cast %517 : vector<32x32xf32> to vector<1x1x32x32xf32>
    tpu.vector_store %arg21[%c2_249, %c1_250, %c0_251, %c0_252], %520 {strides = array<i32>} : memref<4x4x32x32xf32, #tpu.memory_space<vmem>>, vector<1x1x32x32xf32>,
    %cst_253 = arith.constant dense<0.000000e+00> : vector<32x8xf32>
    %521 = tpu.matmul %517, %505, %cst_253 {dimension_numbers = #tpu.dot_dimension_numbers<[1], [0], [0], [1], [0, 0, 1, 1], [], []>} : vector<32x32xf32>, vector<32x8xf32>, vector<32x8xf32> -> vector<32x8xf32>
    %522 = vector.extract_strided_slice %475 {offsets = [8, 0], sizes = [8, 32], strides = [1, 1]} : vector<32x32xf32> to vector<8x32xf32>
    %cst_254 = arith.constant dense<0.000000e+00> : vector<32x32xf32>
    %523 = tpu.matmul %521, %522, %cst_254 {dimension_numbers = #tpu.dot_dimension_numbers<[1], [0], [0], [1], [0, 0, 1, 1], [], []>} : vector<32x8xf32>, vector<8x32xf32>, vector<32x32xf32> -> vector<32x32xf32>
    %524 = arith.addf %500, %523 : vector<32x32xf32>
    %525 = vector.extract_strided_slice %473 {offsets = [0, 16], sizes = [32, 8], strides = [1, 1]} : vector<32x96xf32> to vector<32x8xf32>
    %cst_255 = arith.constant 0.353553385 : f32
    %526 = vector.broadcast %cst_255 : f32 to vector<32x8xf32>
    %527 = arith.mulf %525, %526 : vector<32x8xf32>
    %528 = vector.extract_strided_slice %473 {offsets = [0, 48], sizes = [32, 8], strides = [1, 1]} : vector<32x96xf32> to vector<32x8xf32>
    %529 = vector.extract_strided_slice %473 {offsets = [0, 80], sizes = [32, 8], strides = [1, 1]} : vector<32x96xf32> to vector<32x8xf32>
    %cst_256 = arith.constant dense<0.000000e+00> : vector<32x32xf32>
    %530 = tpu.matmul %527, %528, %cst_256 {dimension_numbers = #tpu.dot_dimension_numbers<[1], [1], [0], [0], [0, 0, 1, 0], [], []>} : vector<32x8xf32>, vector<32x8xf32>, vector<32x32xf32> -> vector<32x32xf32>
    %531 = arith.addf %530, %0 : vector<32x32xf32>
    %cst_257 = arith.constant dense<0xFF800000> : vector<32xf32>
    %532 = vector.multi_reduction <maximumf>, %531, %cst_257 [1] : vector<32x32xf32> to vector<32xf32>
    %533 = vector.shape_cast %532 : vector<32xf32> to vector<32x1xf32>
    %534 = vector.broadcast %533 : vector<32x1xf32> to vector<32x32xf32>
    %535 = arith.subf %531, %534 : vector<32x32xf32>
    %536 = math.exp %535 : vector<32x32xf32>
    %cst_258 = arith.constant dense<0.000000e+00> : vector<32xf32>
    %537 = vector.multi_reduction <add>, %536, %cst_258 [1] : vector<32x32xf32> to vector<32xf32>
    %538 = vector.shape_cast %537 : vector<32xf32> to vector<32x1xf32>
    %539 = tpu.reciprocal %538 {approx = true} : vector<32x1xf32> -> vector<32x1xf32>
    %540 = vector.broadcast %539 : vector<32x1xf32> to vector<32x32xf32>
    %541 = arith.mulf %536, %540 : vector<32x32xf32>
    %c2_259 = arith.constant 2 : index
    %c2_260 = arith.constant 2 : index
    %c0_261 = arith.constant 0 : index
    %c0_262 = arith.constant 0 : index
    %542 = vector.load %arg21[%c2_259, %c2_260, %c0_261, %c0_262] : memref<4x4x32x32xf32, #tpu.memory_space<vmem>>, vector<1x1x32x32xf32>
    %543 = vector.shape_cast %542 : vector<1x1x32x32xf32> to vector<32x32xf32>
    %544 = vector.shape_cast %541 : vector<32x32xf32> to vector<1x1x32x32xf32>
    tpu.vector_store %arg21[%c2_259, %c2_260, %c0_261, %c0_262], %544 {strides = array<i32>} : memref<4x4x32x32xf32, #tpu.memory_space<vmem>>, vector<1x1x32x32xf32>,
    %cst_263 = arith.constant dense<0.000000e+00> : vector<32x8xf32>
    %545 = tpu.matmul %541, %529, %cst_263 {dimension_numbers = #tpu.dot_dimension_numbers<[1], [0], [0], [1], [0, 0, 1, 1], [], []>} : vector<32x32xf32>, vector<32x8xf32>, vector<32x8xf32> -> vector<32x8xf32>
    %546 = vector.extract_strided_slice %475 {offsets = [16, 0], sizes = [8, 32], strides = [1, 1]} : vector<32x32xf32> to vector<8x32xf32>
    %cst_264 = arith.constant dense<0.000000e+00> : vector<32x32xf32>
    %547 = tpu.matmul %545, %546, %cst_264 {dimension_numbers = #tpu.dot_dimension_numbers<[1], [0], [0], [1], [0, 0, 1, 1], [], []>} : vector<32x8xf32>, vector<8x32xf32>, vector<32x32xf32> -> vector<32x32xf32>
    %548 = arith.addf %524, %547 : vector<32x32xf32>
    %549 = vector.extract_strided_slice %473 {offsets = [0, 24], sizes = [32, 8], strides = [1, 1]} : vector<32x96xf32> to vector<32x8xf32>
    %cst_265 = arith.constant 0.353553385 : f32
    %550 = vector.broadcast %cst_265 : f32 to vector<32x8xf32>
    %551 = arith.mulf %549, %550 : vector<32x8xf32>
    %552 = vector.extract_strided_slice %473 {offsets = [0, 56], sizes = [32, 8], strides = [1, 1]} : vector<32x96xf32> to vector<32x8xf32>
    %553 = vector.extract_strided_slice %473 {offsets = [0, 88], sizes = [32, 8], strides = [1, 1]} : vector<32x96xf32> to vector<32x8xf32>
    %cst_266 = arith.constant dense<0.000000e+00> : vector<32x32xf32>
    %554 = tpu.matmul %551, %552, %cst_266 {dimension_numbers = #tpu.dot_dimension_numbers<[1], [1], [0], [0], [0, 0, 1, 0], [], []>} : vector<32x8xf32>, vector<32x8xf32>, vector<32x32xf32> -> vector<32x32xf32>
    %555 = arith.addf %554, %0 : vector<32x32xf32>
    %cst_267 = arith.constant dense<0xFF800000> : vector<32xf32>
    %556 = vector.multi_reduction <maximumf>, %555, %cst_267 [1] : vector<32x32xf32> to vector<32xf32>
    %557 = vector.shape_cast %556 : vector<32xf32> to vector<32x1xf32>
    %558 = vector.broadcast %557 : vector<32x1xf32> to vector<32x32xf32>
    %559 = arith.subf %555, %558 : vector<32x32xf32>
    %560 = math.exp %559 : vector<32x32xf32>
    %cst_268 = arith.constant dense<0.000000e+00> : vector<32xf32>
    %561 = vector.multi_reduction <add>, %560, %cst_268 [1] : vector<32x32xf32> to vector<32xf32>
    %562 = vector.shape_cast %561 : vector<32xf32> to vector<32x1xf32>
    %563 = tpu.reciprocal %562 {approx = true} : vector<32x1xf32> -> vector<32x1xf32>
    %564 = vector.broadcast %563 : vector<32x1xf32> to vector<32x32xf32>
    %565 = arith.mulf %560, %564 : vector<32x32xf32>
    %c2_269 = arith.constant 2 : index
    %c3_270 = arith.constant 3 : index
    %c0_271 = arith.constant 0 : index
    %c0_272 = arith.constant 0 : index
    %566 = vector.load %arg21[%c2_269, %c3_270, %c0_271, %c0_272] : memref<4x4x32x32xf32, #tpu.memory_space<vmem>>, vector<1x1x32x32xf32>
    %567 = vector.shape_cast %566 : vector<1x1x32x32xf32> to vector<32x32xf32>
    %568 = vector.shape_cast %565 : vector<32x32xf32> to vector<1x1x32x32xf32>
    tpu.vector_store %arg21[%c2_269, %c3_270, %c0_271, %c0_272], %568 {strides = array<i32>} : memref<4x4x32x32xf32, #tpu.memory_space<vmem>>, vector<1x1x32x32xf32>,
    %cst_273 = arith.constant dense<0.000000e+00> : vector<32x8xf32>
    %569 = tpu.matmul %565, %553, %cst_273 {dimension_numbers = #tpu.dot_dimension_numbers<[1], [0], [0], [1], [0, 0, 1, 1], [], []>} : vector<32x32xf32>, vector<32x8xf32>, vector<32x8xf32> -> vector<32x8xf32>
    %570 = vector.extract_strided_slice %475 {offsets = [24, 0], sizes = [8, 32], strides = [1, 1]} : vector<32x32xf32> to vector<8x32xf32>
    %cst_274 = arith.constant dense<0.000000e+00> : vector<32x32xf32>
    %571 = tpu.matmul %569, %570, %cst_274 {dimension_numbers = #tpu.dot_dimension_numbers<[1], [0], [0], [1], [0, 0, 1, 1], [], []>} : vector<32x8xf32>, vector<8x32xf32>, vector<32x32xf32> -> vector<32x32xf32>
    %572 = arith.addf %548, %571 : vector<32x32xf32>
    %573 = arith.addf %440, %572 : vector<32x32xf32>
    %c2_275 = arith.constant 2 : index
    %c0_276 = arith.constant 0 : index
    %c0_277 = arith.constant 0 : index
    %574 = vector.load %arg8[%c2_275, %c0_276, %c0_277] : memref<4x1x32xf32, #tpu.memory_space<vmem>>, vector<1x1x32xf32>
    %575 = vector.shape_cast %574 : vector<1x1x32xf32> to vector<1x32xf32>
    %576 = vector.broadcast %575 : vector<1x32xf32> to vector<32x32xf32>
    %577 = arith.addf %573, %576 : vector<32x32xf32>
    %c2_278 = arith.constant 2 : index
    %c0_279 = arith.constant 0 : index
    %c0_280 = arith.constant 0 : index
    %578 = vector.load %arg9[%c2_278, %c0_279, %c0_280] : memref<4x1x32xf32, #tpu.memory_space<vmem>>, vector<1x1x32xf32>
    %579 = vector.shape_cast %578 : vector<1x1x32xf32> to vector<1x32xf32>
    %c2_281 = arith.constant 2 : index
    %c0_282 = arith.constant 0 : index
    %c0_283 = arith.constant 0 : index
    %580 = vector.load %arg10[%c2_281, %c0_282, %c0_283] : memref<4x1x32xf32, #tpu.memory_space<vmem>>, vector<1x1x32xf32>
    %581 = vector.shape_cast %580 : vector<1x1x32xf32> to vector<1x32xf32>
    %cst_284 = arith.constant dense<0.000000e+00> : vector<32xf32>
    %582 = vector.multi_reduction <add>, %577, %cst_284 [1] : vector<32x32xf32> to vector<32xf32>
    %583 = vector.shape_cast %582 : vector<32xf32> to vector<32x1xf32>
    %cst_285 = arith.constant 3.200000e+01 : f32
    %584 = vector.broadcast %cst_285 : f32 to vector<32x1xf32>
    %585 = arith.divf %583, %584 : vector<32x1xf32>
    %586 = vector.broadcast %585 : vector<32x1xf32> to vector<32x32xf32>
    %587 = arith.subf %577, %586 : vector<32x32xf32>
    %588 = arith.mulf %587, %587 : vector<32x32xf32>
    %cst_286 = arith.constant dense<0.000000e+00> : vector<32xf32>
    %589 = vector.multi_reduction <add>, %588, %cst_286 [1] : vector<32x32xf32> to vector<32xf32>
    %590 = vector.shape_cast %589 : vector<32xf32> to vector<32x1xf32>
    %cst_287 = arith.constant 3.200000e+01 : f32
    %591 = vector.broadcast %cst_287 : f32 to vector<32x1xf32>
    %592 = arith.divf %590, %591 : vector<32x1xf32>
    %593 = vector.broadcast %585 : vector<32x1xf32> to vector<32x32xf32>
    %594 = arith.subf %577, %593 : vector<32x32xf32>
    %cst_288 = arith.constant 9.99999974E-6 : f32
    %595 = vector.broadcast %cst_288 : f32 to vector<32x1xf32>
    %596 = arith.addf %592, %595 : vector<32x1xf32>
    %597 = math.rsqrt %596 : vector<32x1xf32>
    %598 = vector.broadcast %597 : vector<32x1xf32> to vector<32x32xf32>
    %599 = arith.mulf %594, %598 : vector<32x32xf32>
    %600 = vector.broadcast %579 : vector<1x32xf32> to vector<32x32xf32>
    %601 = arith.mulf %599, %600 : vector<32x32xf32>
    %602 = vector.broadcast %581 : vector<1x32xf32> to vector<32x32xf32>
    %603 = arith.addf %601, %602 : vector<32x32xf32>
    %c2_289 = arith.constant 2 : index
    %c0_290 = arith.constant 0 : index
    %c0_291 = arith.constant 0 : index
    %604 = vector.load %arg11[%c2_289, %c0_290, %c0_291] : memref<4x32x128xf32, #tpu.memory_space<vmem>>, vector<1x32x128xf32>
    %605 = vector.shape_cast %604 : vector<1x32x128xf32> to vector<32x128xf32>
    %cst_292 = arith.constant dense<0.000000e+00> : vector<32x128xf32>
    %606 = tpu.matmul %603, %605, %cst_292 {dimension_numbers = #tpu.dot_dimension_numbers<[1], [0], [0], [1], [0, 0, 1, 1], [], []>} : vector<32x32xf32>, vector<32x128xf32>, vector<32x128xf32> -> vector<32x128xf32>
    %c2_293 = arith.constant 2 : index
    %c0_294 = arith.constant 0 : index
    %c0_295 = arith.constant 0 : index
    %607 = vector.load %arg12[%c2_293, %c0_294, %c0_295] : memref<4x1x128xf32, #tpu.memory_space<vmem>>, vector<1x1x128xf32>
    %608 = vector.shape_cast %607 : vector<1x1x128xf32> to vector<1x128xf32>
    %609 = vector.broadcast %608 : vector<1x128xf32> to vector<32x128xf32>
    %610 = arith.addf %606, %609 : vector<32x128xf32>
    %cst_296 = arith.constant 5.000000e-01 : f32
    %611 = vector.broadcast %cst_296 : f32 to vector<32x128xf32>
    %612 = arith.mulf %611, %610 : vector<32x128xf32>
    %cst_297 = arith.constant 0.707106769 : f32
    %613 = vector.broadcast %cst_297 : f32 to vector<32x128xf32>
    %614 = arith.mulf %610, %613 : vector<32x128xf32>
    %cst_298 = arith.constant 0.000000e+00 : f32
    %615 = vector.broadcast %cst_298 : f32 to vector<32x128xf32>
    %616 = arith.cmpf oge, %614, %615 : vector<32x128xf32>
    %cst_299 = arith.constant 1.000000e+00 : f32
    %cst_300 = arith.constant -1.000000e+00 : f32
    %617 = vector.broadcast %cst_299 : f32 to vector<32x128xf32>
    %618 = vector.broadcast %cst_300 : f32 to vector<32x128xf32>
    %619 = arith.select %616, %617, %618 : vector<32x128xi1>, vector<32x128xf32>
    %620 = math.absf %614 : vector<32x128xf32>
    %cst_301 = arith.constant 0.327591091 : f32
    %621 = vector.broadcast %cst_301 : f32 to vector<32x128xf32>
    %622 = arith.mulf %621, %620 : vector<32x128xf32>
    %cst_302 = arith.constant 1.000000e+00 : f32
    %623 = vector.broadcast %cst_302 : f32 to vector<32x128xf32>
    %624 = arith.addf %623, %622 : vector<32x128xf32>
    %cst_303 = arith.constant 1.000000e+00 : f32
    %625 = vector.broadcast %cst_303 : f32 to vector<32x128xf32>
    %626 = arith.divf %625, %624 : vector<32x128xf32>
    %cst_304 = arith.constant 1.06140542 : f32
    %627 = vector.broadcast %cst_304 : f32 to vector<32x128xf32>
    %628 = arith.mulf %626, %627 : vector<32x128xf32>
    %cst_305 = arith.constant -1.45315206 : f32
    %629 = vector.broadcast %cst_305 : f32 to vector<32x128xf32>
    %630 = arith.addf %629, %628 : vector<32x128xf32>
    %631 = arith.mulf %626, %630 : vector<32x128xf32>
    %cst_306 = arith.constant 1.42141378 : f32
    %632 = vector.broadcast %cst_306 : f32 to vector<32x128xf32>
    %633 = arith.addf %632, %631 : vector<32x128xf32>
    %634 = arith.mulf %626, %633 : vector<32x128xf32>
    %cst_307 = arith.constant -0.284496725 : f32
    %635 = vector.broadcast %cst_307 : f32 to vector<32x128xf32>
    %636 = arith.addf %635, %634 : vector<32x128xf32>
    %637 = arith.mulf %626, %636 : vector<32x128xf32>
    %cst_308 = arith.constant 0.254829586 : f32
    %638 = vector.broadcast %cst_308 : f32 to vector<32x128xf32>
    %639 = arith.addf %638, %637 : vector<32x128xf32>
    %640 = arith.mulf %626, %639 : vector<32x128xf32>
    %cst_309 = arith.constant 0.000000e+00 : f32
    %641 = vector.broadcast %cst_309 : f32 to vector<32x128xf32>
    %642 = arith.subf %641, %620 : vector<32x128xf32>
    %643 = arith.mulf %642, %620 : vector<32x128xf32>
    %644 = math.exp %643 : vector<32x128xf32>
    %645 = arith.mulf %640, %644 : vector<32x128xf32>
    %cst_310 = arith.constant 1.000000e+00 : f32
    %646 = vector.broadcast %cst_310 : f32 to vector<32x128xf32>
    %647 = arith.subf %646, %645 : vector<32x128xf32>
    %648 = arith.mulf %619, %647 : vector<32x128xf32>
    %cst_311 = arith.constant 1.000000e+00 : f32
    %649 = vector.broadcast %cst_311 : f32 to vector<32x128xf32>
    %650 = arith.addf %649, %648 : vector<32x128xf32>
    %651 = arith.mulf %612, %650 : vector<32x128xf32>
    %c2_312 = arith.constant 2 : index
    %c0_313 = arith.constant 0 : index
    %c0_314 = arith.constant 0 : index
    %652 = vector.load %arg13[%c2_312, %c0_313, %c0_314] : memref<4x128x32xf32, #tpu.memory_space<vmem>>, vector<1x128x32xf32>
    %653 = vector.shape_cast %652 : vector<1x128x32xf32> to vector<128x32xf32>
    %cst_315 = arith.constant dense<0.000000e+00> : vector<32x32xf32>
    %654 = tpu.matmul %651, %653, %cst_315 {dimension_numbers = #tpu.dot_dimension_numbers<[1], [0], [0], [1], [0, 0, 1, 1], [], []>} : vector<32x128xf32>, vector<128x32xf32>, vector<32x32xf32> -> vector<32x32xf32>
    %655 = arith.addf %577, %654 : vector<32x32xf32>
    %c2_316 = arith.constant 2 : index
    %c0_317 = arith.constant 0 : index
    %c0_318 = arith.constant 0 : index
    %656 = vector.load %arg14[%c2_316, %c0_317, %c0_318] : memref<4x1x32xf32, #tpu.memory_space<vmem>>, vector<1x1x32xf32>
    %657 = vector.shape_cast %656 : vector<1x1x32xf32> to vector<1x32xf32>
    %658 = vector.broadcast %657 : vector<1x32xf32> to vector<32x32xf32>
    %659 = arith.addf %655, %658 : vector<32x32xf32>
    %c3_319 = arith.constant 3 : index
    %c0_320 = arith.constant 0 : index
    %c0_321 = arith.constant 0 : index
    %660 = vector.load %arg3[%c3_319, %c0_320, %c0_321] : memref<4x1x32xf32, #tpu.memory_space<vmem>>, vector<1x1x32xf32>
    %661 = vector.shape_cast %660 : vector<1x1x32xf32> to vector<1x32xf32>
    %c3_322 = arith.constant 3 : index
    %c0_323 = arith.constant 0 : index
    %c0_324 = arith.constant 0 : index
    %662 = vector.load %arg4[%c3_322, %c0_323, %c0_324] : memref<4x1x32xf32, #tpu.memory_space<vmem>>, vector<1x1x32xf32>
    %663 = vector.shape_cast %662 : vector<1x1x32xf32> to vector<1x32xf32>
    %cst_325 = arith.constant dense<0.000000e+00> : vector<32xf32>
    %664 = vector.multi_reduction <add>, %659, %cst_325 [1] : vector<32x32xf32> to vector<32xf32>
    %665 = vector.shape_cast %664 : vector<32xf32> to vector<32x1xf32>
    %cst_326 = arith.constant 3.200000e+01 : f32
    %666 = vector.broadcast %cst_326 : f32 to vector<32x1xf32>
    %667 = arith.divf %665, %666 : vector<32x1xf32>
    %668 = vector.broadcast %667 : vector<32x1xf32> to vector<32x32xf32>
    %669 = arith.subf %659, %668 : vector<32x32xf32>
    %670 = arith.mulf %669, %669 : vector<32x32xf32>
    %cst_327 = arith.constant dense<0.000000e+00> : vector<32xf32>
    %671 = vector.multi_reduction <add>, %670, %cst_327 [1] : vector<32x32xf32> to vector<32xf32>
    %672 = vector.shape_cast %671 : vector<32xf32> to vector<32x1xf32>
    %cst_328 = arith.constant 3.200000e+01 : f32
    %673 = vector.broadcast %cst_328 : f32 to vector<32x1xf32>
    %674 = arith.divf %672, %673 : vector<32x1xf32>
    %675 = vector.broadcast %667 : vector<32x1xf32> to vector<32x32xf32>
    %676 = arith.subf %659, %675 : vector<32x32xf32>
    %cst_329 = arith.constant 9.99999974E-6 : f32
    %677 = vector.broadcast %cst_329 : f32 to vector<32x1xf32>
    %678 = arith.addf %674, %677 : vector<32x1xf32>
    %679 = math.rsqrt %678 : vector<32x1xf32>
    %680 = vector.broadcast %679 : vector<32x1xf32> to vector<32x32xf32>
    %681 = arith.mulf %676, %680 : vector<32x32xf32>
    %682 = vector.broadcast %661 : vector<1x32xf32> to vector<32x32xf32>
    %683 = arith.mulf %681, %682 : vector<32x32xf32>
    %684 = vector.broadcast %663 : vector<1x32xf32> to vector<32x32xf32>
    %685 = arith.addf %683, %684 : vector<32x32xf32>
    %c3_330 = arith.constant 3 : index
    %c0_331 = arith.constant 0 : index
    %c0_332 = arith.constant 0 : index
    %686 = vector.load %arg5[%c3_330, %c0_331, %c0_332] : memref<4x32x96xf32, #tpu.memory_space<vmem>>, vector<1x32x96xf32>
    %687 = vector.shape_cast %686 : vector<1x32x96xf32> to vector<32x96xf32>
    %cst_333 = arith.constant dense<0.000000e+00> : vector<32x96xf32>
    %688 = tpu.matmul %685, %687, %cst_333 {dimension_numbers = #tpu.dot_dimension_numbers<[1], [0], [0], [1], [0, 0, 1, 1], [], []>} : vector<32x32xf32>, vector<32x96xf32>, vector<32x96xf32> -> vector<32x96xf32>
    %c3_334 = arith.constant 3 : index
    %c0_335 = arith.constant 0 : index
    %c0_336 = arith.constant 0 : index
    %689 = vector.load %arg6[%c3_334, %c0_335, %c0_336] : memref<4x1x96xf32, #tpu.memory_space<vmem>>, vector<1x1x96xf32>
    %690 = vector.shape_cast %689 : vector<1x1x96xf32> to vector<1x96xf32>
    %691 = vector.broadcast %690 : vector<1x96xf32> to vector<32x96xf32>
    %692 = arith.addf %688, %691 : vector<32x96xf32>
    %c3_337 = arith.constant 3 : index
    %c0_338 = arith.constant 0 : index
    %c0_339 = arith.constant 0 : index
    %693 = vector.load %arg7[%c3_337, %c0_338, %c0_339] : memref<4x32x32xf32, #tpu.memory_space<vmem>>, vector<1x32x32xf32>
    %694 = vector.shape_cast %693 : vector<1x32x32xf32> to vector<32x32xf32>
    %cst_340 = arith.constant 0.000000e+00 : f32
    %695 = vector.broadcast %cst_340 : f32 to vector<32x32xf32>
    %696 = vector.extract_strided_slice %692 {offsets = [0, 0], sizes = [32, 8], strides = [1, 1]} : vector<32x96xf32> to vector<32x8xf32>
    %cst_341 = arith.constant 0.353553385 : f32
    %697 = vector.broadcast %cst_341 : f32 to vector<32x8xf32>
    %698 = arith.mulf %696, %697 : vector<32x8xf32>
    %699 = vector.extract_strided_slice %692 {offsets = [0, 32], sizes = [32, 8], strides = [1, 1]} : vector<32x96xf32> to vector<32x8xf32>
    %700 = vector.extract_strided_slice %692 {offsets = [0, 64], sizes = [32, 8], strides = [1, 1]} : vector<32x96xf32> to vector<32x8xf32>
    %cst_342 = arith.constant dense<0.000000e+00> : vector<32x32xf32>
    %701 = tpu.matmul %698, %699, %cst_342 {dimension_numbers = #tpu.dot_dimension_numbers<[1], [1], [0], [0], [0, 0, 1, 0], [], []>} : vector<32x8xf32>, vector<32x8xf32>, vector<32x32xf32> -> vector<32x32xf32>
    %702 = arith.addf %701, %0 : vector<32x32xf32>
    %cst_343 = arith.constant dense<0xFF800000> : vector<32xf32>
    %703 = vector.multi_reduction <maximumf>, %702, %cst_343 [1] : vector<32x32xf32> to vector<32xf32>
    %704 = vector.shape_cast %703 : vector<32xf32> to vector<32x1xf32>
    %705 = vector.broadcast %704 : vector<32x1xf32> to vector<32x32xf32>
    %706 = arith.subf %702, %705 : vector<32x32xf32>
    %707 = math.exp %706 : vector<32x32xf32>
    %cst_344 = arith.constant dense<0.000000e+00> : vector<32xf32>
    %708 = vector.multi_reduction <add>, %707, %cst_344 [1] : vector<32x32xf32> to vector<32xf32>
    %709 = vector.shape_cast %708 : vector<32xf32> to vector<32x1xf32>
    %710 = tpu.reciprocal %709 {approx = true} : vector<32x1xf32> -> vector<32x1xf32>
    %711 = vector.broadcast %710 : vector<32x1xf32> to vector<32x32xf32>
    %712 = arith.mulf %707, %711 : vector<32x32xf32>
    %c3_345 = arith.constant 3 : index
    %c0_346 = arith.constant 0 : index
    %c0_347 = arith.constant 0 : index
    %c0_348 = arith.constant 0 : index
    %713 = vector.load %arg21[%c3_345, %c0_346, %c0_347, %c0_348] : memref<4x4x32x32xf32, #tpu.memory_space<vmem>>, vector<1x1x32x32xf32>
    %714 = vector.shape_cast %713 : vector<1x1x32x32xf32> to vector<32x32xf32>
    %715 = vector.shape_cast %712 : vector<32x32xf32> to vector<1x1x32x32xf32>
    tpu.vector_store %arg21[%c3_345, %c0_346, %c0_347, %c0_348], %715 {strides = array<i32>} : memref<4x4x32x32xf32, #tpu.memory_space<vmem>>, vector<1x1x32x32xf32>,
    %cst_349 = arith.constant dense<0.000000e+00> : vector<32x8xf32>
    %716 = tpu.matmul %712, %700, %cst_349 {dimension_numbers = #tpu.dot_dimension_numbers<[1], [0], [0], [1], [0, 0, 1, 1], [], []>} : vector<32x32xf32>, vector<32x8xf32>, vector<32x8xf32> -> vector<32x8xf32>
    %717 = vector.extract_strided_slice %694 {offsets = [0, 0], sizes = [8, 32], strides = [1, 1]} : vector<32x32xf32> to vector<8x32xf32>
    %cst_350 = arith.constant dense<0.000000e+00> : vector<32x32xf32>
    %718 = tpu.matmul %716, %717, %cst_350 {dimension_numbers = #tpu.dot_dimension_numbers<[1], [0], [0], [1], [0, 0, 1, 1], [], []>} : vector<32x8xf32>, vector<8x32xf32>, vector<32x32xf32> -> vector<32x32xf32>
    %719 = arith.addf %695, %718 : vector<32x32xf32>
    %720 = vector.extract_strided_slice %692 {offsets = [0, 8], sizes = [32, 8], strides = [1, 1]} : vector<32x96xf32> to vector<32x8xf32>
    %cst_351 = arith.constant 0.353553385 : f32
    %721 = vector.broadcast %cst_351 : f32 to vector<32x8xf32>
    %722 = arith.mulf %720, %721 : vector<32x8xf32>
    %723 = vector.extract_strided_slice %692 {offsets = [0, 40], sizes = [32, 8], strides = [1, 1]} : vector<32x96xf32> to vector<32x8xf32>
    %724 = vector.extract_strided_slice %692 {offsets = [0, 72], sizes = [32, 8], strides = [1, 1]} : vector<32x96xf32> to vector<32x8xf32>
    %cst_352 = arith.constant dense<0.000000e+00> : vector<32x32xf32>
    %725 = tpu.matmul %722, %723, %cst_352 {dimension_numbers = #tpu.dot_dimension_numbers<[1], [1], [0], [0], [0, 0, 1, 0], [], []>} : vector<32x8xf32>, vector<32x8xf32>, vector<32x32xf32> -> vector<32x32xf32>
    %726 = arith.addf %725, %0 : vector<32x32xf32>
    %cst_353 = arith.constant dense<0xFF800000> : vector<32xf32>
    %727 = vector.multi_reduction <maximumf>, %726, %cst_353 [1] : vector<32x32xf32> to vector<32xf32>
    %728 = vector.shape_cast %727 : vector<32xf32> to vector<32x1xf32>
    %729 = vector.broadcast %728 : vector<32x1xf32> to vector<32x32xf32>
    %730 = arith.subf %726, %729 : vector<32x32xf32>
    %731 = math.exp %730 : vector<32x32xf32>
    %cst_354 = arith.constant dense<0.000000e+00> : vector<32xf32>
    %732 = vector.multi_reduction <add>, %731, %cst_354 [1] : vector<32x32xf32> to vector<32xf32>
    %733 = vector.shape_cast %732 : vector<32xf32> to vector<32x1xf32>
    %734 = tpu.reciprocal %733 {approx = true} : vector<32x1xf32> -> vector<32x1xf32>
    %735 = vector.broadcast %734 : vector<32x1xf32> to vector<32x32xf32>
    %736 = arith.mulf %731, %735 : vector<32x32xf32>
    %c3_355 = arith.constant 3 : index
    %c1_356 = arith.constant 1 : index
    %c0_357 = arith.constant 0 : index
    %c0_358 = arith.constant 0 : index
    %737 = vector.load %arg21[%c3_355, %c1_356, %c0_357, %c0_358] : memref<4x4x32x32xf32, #tpu.memory_space<vmem>>, vector<1x1x32x32xf32>
    %738 = vector.shape_cast %737 : vector<1x1x32x32xf32> to vector<32x32xf32>
    %739 = vector.shape_cast %736 : vector<32x32xf32> to vector<1x1x32x32xf32>
    tpu.vector_store %arg21[%c3_355, %c1_356, %c0_357, %c0_358], %739 {strides = array<i32>} : memref<4x4x32x32xf32, #tpu.memory_space<vmem>>, vector<1x1x32x32xf32>,
    %cst_359 = arith.constant dense<0.000000e+00> : vector<32x8xf32>
    %740 = tpu.matmul %736, %724, %cst_359 {dimension_numbers = #tpu.dot_dimension_numbers<[1], [0], [0], [1], [0, 0, 1, 1], [], []>} : vector<32x32xf32>, vector<32x8xf32>, vector<32x8xf32> -> vector<32x8xf32>
    %741 = vector.extract_strided_slice %694 {offsets = [8, 0], sizes = [8, 32], strides = [1, 1]} : vector<32x32xf32> to vector<8x32xf32>
    %cst_360 = arith.constant dense<0.000000e+00> : vector<32x32xf32>
    %742 = tpu.matmul %740, %741, %cst_360 {dimension_numbers = #tpu.dot_dimension_numbers<[1], [0], [0], [1], [0, 0, 1, 1], [], []>} : vector<32x8xf32>, vector<8x32xf32>, vector<32x32xf32> -> vector<32x32xf32>
    %743 = arith.addf %719, %742 : vector<32x32xf32>
    %744 = vector.extract_strided_slice %692 {offsets = [0, 16], sizes = [32, 8], strides = [1, 1]} : vector<32x96xf32> to vector<32x8xf32>
    %cst_361 = arith.constant 0.353553385 : f32
    %745 = vector.broadcast %cst_361 : f32 to vector<32x8xf32>
    %746 = arith.mulf %744, %745 : vector<32x8xf32>
    %747 = vector.extract_strided_slice %692 {offsets = [0, 48], sizes = [32, 8], strides = [1, 1]} : vector<32x96xf32> to vector<32x8xf32>
    %748 = vector.extract_strided_slice %692 {offsets = [0, 80], sizes = [32, 8], strides = [1, 1]} : vector<32x96xf32> to vector<32x8xf32>
    %cst_362 = arith.constant dense<0.000000e+00> : vector<32x32xf32>
    %749 = tpu.matmul %746, %747, %cst_362 {dimension_numbers = #tpu.dot_dimension_numbers<[1], [1], [0], [0], [0, 0, 1, 0], [], []>} : vector<32x8xf32>, vector<32x8xf32>, vector<32x32xf32> -> vector<32x32xf32>
    %750 = arith.addf %749, %0 : vector<32x32xf32>
    %cst_363 = arith.constant dense<0xFF800000> : vector<32xf32>
    %751 = vector.multi_reduction <maximumf>, %750, %cst_363 [1] : vector<32x32xf32> to vector<32xf32>
    %752 = vector.shape_cast %751 : vector<32xf32> to vector<32x1xf32>
    %753 = vector.broadcast %752 : vector<32x1xf32> to vector<32x32xf32>
    %754 = arith.subf %750, %753 : vector<32x32xf32>
    %755 = math.exp %754 : vector<32x32xf32>
    %cst_364 = arith.constant dense<0.000000e+00> : vector<32xf32>
    %756 = vector.multi_reduction <add>, %755, %cst_364 [1] : vector<32x32xf32> to vector<32xf32>
    %757 = vector.shape_cast %756 : vector<32xf32> to vector<32x1xf32>
    %758 = tpu.reciprocal %757 {approx = true} : vector<32x1xf32> -> vector<32x1xf32>
    %759 = vector.broadcast %758 : vector<32x1xf32> to vector<32x32xf32>
    %760 = arith.mulf %755, %759 : vector<32x32xf32>
    %c3_365 = arith.constant 3 : index
    %c2_366 = arith.constant 2 : index
    %c0_367 = arith.constant 0 : index
    %c0_368 = arith.constant 0 : index
    %761 = vector.load %arg21[%c3_365, %c2_366, %c0_367, %c0_368] : memref<4x4x32x32xf32, #tpu.memory_space<vmem>>, vector<1x1x32x32xf32>
    %762 = vector.shape_cast %761 : vector<1x1x32x32xf32> to vector<32x32xf32>
    %763 = vector.shape_cast %760 : vector<32x32xf32> to vector<1x1x32x32xf32>
    tpu.vector_store %arg21[%c3_365, %c2_366, %c0_367, %c0_368], %763 {strides = array<i32>} : memref<4x4x32x32xf32, #tpu.memory_space<vmem>>, vector<1x1x32x32xf32>,
    %cst_369 = arith.constant dense<0.000000e+00> : vector<32x8xf32>
    %764 = tpu.matmul %760, %748, %cst_369 {dimension_numbers = #tpu.dot_dimension_numbers<[1], [0], [0], [1], [0, 0, 1, 1], [], []>} : vector<32x32xf32>, vector<32x8xf32>, vector<32x8xf32> -> vector<32x8xf32>
    %765 = vector.extract_strided_slice %694 {offsets = [16, 0], sizes = [8, 32], strides = [1, 1]} : vector<32x32xf32> to vector<8x32xf32>
    %cst_370 = arith.constant dense<0.000000e+00> : vector<32x32xf32>
    %766 = tpu.matmul %764, %765, %cst_370 {dimension_numbers = #tpu.dot_dimension_numbers<[1], [0], [0], [1], [0, 0, 1, 1], [], []>} : vector<32x8xf32>, vector<8x32xf32>, vector<32x32xf32> -> vector<32x32xf32>
    %767 = arith.addf %743, %766 : vector<32x32xf32>
    %768 = vector.extract_strided_slice %692 {offsets = [0, 24], sizes = [32, 8], strides = [1, 1]} : vector<32x96xf32> to vector<32x8xf32>
    %cst_371 = arith.constant 0.353553385 : f32
    %769 = vector.broadcast %cst_371 : f32 to vector<32x8xf32>
    %770 = arith.mulf %768, %769 : vector<32x8xf32>
    %771 = vector.extract_strided_slice %692 {offsets = [0, 56], sizes = [32, 8], strides = [1, 1]} : vector<32x96xf32> to vector<32x8xf32>
    %772 = vector.extract_strided_slice %692 {offsets = [0, 88], sizes = [32, 8], strides = [1, 1]} : vector<32x96xf32> to vector<32x8xf32>
    %cst_372 = arith.constant dense<0.000000e+00> : vector<32x32xf32>
    %773 = tpu.matmul %770, %771, %cst_372 {dimension_numbers = #tpu.dot_dimension_numbers<[1], [1], [0], [0], [0, 0, 1, 0], [], []>} : vector<32x8xf32>, vector<32x8xf32>, vector<32x32xf32> -> vector<32x32xf32>
    %774 = arith.addf %773, %0 : vector<32x32xf32>
    %cst_373 = arith.constant dense<0xFF800000> : vector<32xf32>
    %775 = vector.multi_reduction <maximumf>, %774, %cst_373 [1] : vector<32x32xf32> to vector<32xf32>
    %776 = vector.shape_cast %775 : vector<32xf32> to vector<32x1xf32>
    %777 = vector.broadcast %776 : vector<32x1xf32> to vector<32x32xf32>
    %778 = arith.subf %774, %777 : vector<32x32xf32>
    %779 = math.exp %778 : vector<32x32xf32>
    %cst_374 = arith.constant dense<0.000000e+00> : vector<32xf32>
    %780 = vector.multi_reduction <add>, %779, %cst_374 [1] : vector<32x32xf32> to vector<32xf32>
    %781 = vector.shape_cast %780 : vector<32xf32> to vector<32x1xf32>
    %782 = tpu.reciprocal %781 {approx = true} : vector<32x1xf32> -> vector<32x1xf32>
    %783 = vector.broadcast %782 : vector<32x1xf32> to vector<32x32xf32>
    %784 = arith.mulf %779, %783 : vector<32x32xf32>
    %c3_375 = arith.constant 3 : index
    %c3_376 = arith.constant 3 : index
    %c0_377 = arith.constant 0 : index
    %c0_378 = arith.constant 0 : index
    %785 = vector.load %arg21[%c3_375, %c3_376, %c0_377, %c0_378] : memref<4x4x32x32xf32, #tpu.memory_space<vmem>>, vector<1x1x32x32xf32>
    %786 = vector.shape_cast %785 : vector<1x1x32x32xf32> to vector<32x32xf32>
    %787 = vector.shape_cast %784 : vector<32x32xf32> to vector<1x1x32x32xf32>
    tpu.vector_store %arg21[%c3_375, %c3_376, %c0_377, %c0_378], %787 {strides = array<i32>} : memref<4x4x32x32xf32, #tpu.memory_space<vmem>>, vector<1x1x32x32xf32>,
    %cst_379 = arith.constant dense<0.000000e+00> : vector<32x8xf32>
    %788 = tpu.matmul %784, %772, %cst_379 {dimension_numbers = #tpu.dot_dimension_numbers<[1], [0], [0], [1], [0, 0, 1, 1], [], []>} : vector<32x32xf32>, vector<32x8xf32>, vector<32x8xf32> -> vector<32x8xf32>
    %789 = vector.extract_strided_slice %694 {offsets = [24, 0], sizes = [8, 32], strides = [1, 1]} : vector<32x32xf32> to vector<8x32xf32>
    %cst_380 = arith.constant dense<0.000000e+00> : vector<32x32xf32>
    %790 = tpu.matmul %788, %789, %cst_380 {dimension_numbers = #tpu.dot_dimension_numbers<[1], [0], [0], [1], [0, 0, 1, 1], [], []>} : vector<32x8xf32>, vector<8x32xf32>, vector<32x32xf32> -> vector<32x32xf32>
    %791 = arith.addf %767, %790 : vector<32x32xf32>
    %792 = arith.addf %659, %791 : vector<32x32xf32>
    %c3_381 = arith.constant 3 : index
    %c0_382 = arith.constant 0 : index
    %c0_383 = arith.constant 0 : index
    %793 = vector.load %arg8[%c3_381, %c0_382, %c0_383] : memref<4x1x32xf32, #tpu.memory_space<vmem>>, vector<1x1x32xf32>
    %794 = vector.shape_cast %793 : vector<1x1x32xf32> to vector<1x32xf32>
    %795 = vector.broadcast %794 : vector<1x32xf32> to vector<32x32xf32>
    %796 = arith.addf %792, %795 : vector<32x32xf32>
    %c3_384 = arith.constant 3 : index
    %c0_385 = arith.constant 0 : index
    %c0_386 = arith.constant 0 : index
    %797 = vector.load %arg9[%c3_384, %c0_385, %c0_386] : memref<4x1x32xf32, #tpu.memory_space<vmem>>, vector<1x1x32xf32>
    %798 = vector.shape_cast %797 : vector<1x1x32xf32> to vector<1x32xf32>
    %c3_387 = arith.constant 3 : index
    %c0_388 = arith.constant 0 : index
    %c0_389 = arith.constant 0 : index
    %799 = vector.load %arg10[%c3_387, %c0_388, %c0_389] : memref<4x1x32xf32, #tpu.memory_space<vmem>>, vector<1x1x32xf32>
    %800 = vector.shape_cast %799 : vector<1x1x32xf32> to vector<1x32xf32>
    %cst_390 = arith.constant dense<0.000000e+00> : vector<32xf32>
    %801 = vector.multi_reduction <add>, %796, %cst_390 [1] : vector<32x32xf32> to vector<32xf32>
    %802 = vector.shape_cast %801 : vector<32xf32> to vector<32x1xf32>
    %cst_391 = arith.constant 3.200000e+01 : f32
    %803 = vector.broadcast %cst_391 : f32 to vector<32x1xf32>
    %804 = arith.divf %802, %803 : vector<32x1xf32>
    %805 = vector.broadcast %804 : vector<32x1xf32> to vector<32x32xf32>
    %806 = arith.subf %796, %805 : vector<32x32xf32>
    %807 = arith.mulf %806, %806 : vector<32x32xf32>
    %cst_392 = arith.constant dense<0.000000e+00> : vector<32xf32>
    %808 = vector.multi_reduction <add>, %807, %cst_392 [1] : vector<32x32xf32> to vector<32xf32>
    %809 = vector.shape_cast %808 : vector<32xf32> to vector<32x1xf32>
    %cst_393 = arith.constant 3.200000e+01 : f32
    %810 = vector.broadcast %cst_393 : f32 to vector<32x1xf32>
    %811 = arith.divf %809, %810 : vector<32x1xf32>
    %812 = vector.broadcast %804 : vector<32x1xf32> to vector<32x32xf32>
    %813 = arith.subf %796, %812 : vector<32x32xf32>
    %cst_394 = arith.constant 9.99999974E-6 : f32
    %814 = vector.broadcast %cst_394 : f32 to vector<32x1xf32>
    %815 = arith.addf %811, %814 : vector<32x1xf32>
    %816 = math.rsqrt %815 : vector<32x1xf32>
    %817 = vector.broadcast %816 : vector<32x1xf32> to vector<32x32xf32>
    %818 = arith.mulf %813, %817 : vector<32x32xf32>
    %819 = vector.broadcast %798 : vector<1x32xf32> to vector<32x32xf32>
    %820 = arith.mulf %818, %819 : vector<32x32xf32>
    %821 = vector.broadcast %800 : vector<1x32xf32> to vector<32x32xf32>
    %822 = arith.addf %820, %821 : vector<32x32xf32>
    %c3_395 = arith.constant 3 : index
    %c0_396 = arith.constant 0 : index
    %c0_397 = arith.constant 0 : index
    %823 = vector.load %arg11[%c3_395, %c0_396, %c0_397] : memref<4x32x128xf32, #tpu.memory_space<vmem>>, vector<1x32x128xf32>
    %824 = vector.shape_cast %823 : vector<1x32x128xf32> to vector<32x128xf32>
    %cst_398 = arith.constant dense<0.000000e+00> : vector<32x128xf32>
    %825 = tpu.matmul %822, %824, %cst_398 {dimension_numbers = #tpu.dot_dimension_numbers<[1], [0], [0], [1], [0, 0, 1, 1], [], []>} : vector<32x32xf32>, vector<32x128xf32>, vector<32x128xf32> -> vector<32x128xf32>
    %c3_399 = arith.constant 3 : index
    %c0_400 = arith.constant 0 : index
    %c0_401 = arith.constant 0 : index
    %826 = vector.load %arg12[%c3_399, %c0_400, %c0_401] : memref<4x1x128xf32, #tpu.memory_space<vmem>>, vector<1x1x128xf32>
    %827 = vector.shape_cast %826 : vector<1x1x128xf32> to vector<1x128xf32>
    %828 = vector.broadcast %827 : vector<1x128xf32> to vector<32x128xf32>
    %829 = arith.addf %825, %828 : vector<32x128xf32>
    %cst_402 = arith.constant 5.000000e-01 : f32
    %830 = vector.broadcast %cst_402 : f32 to vector<32x128xf32>
    %831 = arith.mulf %830, %829 : vector<32x128xf32>
    %cst_403 = arith.constant 0.707106769 : f32
    %832 = vector.broadcast %cst_403 : f32 to vector<32x128xf32>
    %833 = arith.mulf %829, %832 : vector<32x128xf32>
    %cst_404 = arith.constant 0.000000e+00 : f32
    %834 = vector.broadcast %cst_404 : f32 to vector<32x128xf32>
    %835 = arith.cmpf oge, %833, %834 : vector<32x128xf32>
    %cst_405 = arith.constant 1.000000e+00 : f32
    %cst_406 = arith.constant -1.000000e+00 : f32
    %836 = vector.broadcast %cst_405 : f32 to vector<32x128xf32>
    %837 = vector.broadcast %cst_406 : f32 to vector<32x128xf32>
    %838 = arith.select %835, %836, %837 : vector<32x128xi1>, vector<32x128xf32>
    %839 = math.absf %833 : vector<32x128xf32>
    %cst_407 = arith.constant 0.327591091 : f32
    %840 = vector.broadcast %cst_407 : f32 to vector<32x128xf32>
    %841 = arith.mulf %840, %839 : vector<32x128xf32>
    %cst_408 = arith.constant 1.000000e+00 : f32
    %842 = vector.broadcast %cst_408 : f32 to vector<32x128xf32>
    %843 = arith.addf %842, %841 : vector<32x128xf32>
    %cst_409 = arith.constant 1.000000e+00 : f32
    %844 = vector.broadcast %cst_409 : f32 to vector<32x128xf32>
    %845 = arith.divf %844, %843 : vector<32x128xf32>
    %cst_410 = arith.constant 1.06140542 : f32
    %846 = vector.broadcast %cst_410 : f32 to vector<32x128xf32>
    %847 = arith.mulf %845, %846 : vector<32x128xf32>
    %cst_411 = arith.constant -1.45315206 : f32
    %848 = vector.broadcast %cst_411 : f32 to vector<32x128xf32>
    %849 = arith.addf %848, %847 : vector<32x128xf32>
    %850 = arith.mulf %845, %849 : vector<32x128xf32>
    %cst_412 = arith.constant 1.42141378 : f32
    %851 = vector.broadcast %cst_412 : f32 to vector<32x128xf32>
    %852 = arith.addf %851, %850 : vector<32x128xf32>
    %853 = arith.mulf %845, %852 : vector<32x128xf32>
    %cst_413 = arith.constant -0.284496725 : f32
    %854 = vector.broadcast %cst_413 : f32 to vector<32x128xf32>
    %855 = arith.addf %854, %853 : vector<32x128xf32>
    %856 = arith.mulf %845, %855 : vector<32x128xf32>
    %cst_414 = arith.constant 0.254829586 : f32
    %857 = vector.broadcast %cst_414 : f32 to vector<32x128xf32>
    %858 = arith.addf %857, %856 : vector<32x128xf32>
    %859 = arith.mulf %845, %858 : vector<32x128xf32>
    %cst_415 = arith.constant 0.000000e+00 : f32
    %860 = vector.broadcast %cst_415 : f32 to vector<32x128xf32>
    %861 = arith.subf %860, %839 : vector<32x128xf32>
    %862 = arith.mulf %861, %839 : vector<32x128xf32>
    %863 = math.exp %862 : vector<32x128xf32>
    %864 = arith.mulf %859, %863 : vector<32x128xf32>
    %cst_416 = arith.constant 1.000000e+00 : f32
    %865 = vector.broadcast %cst_416 : f32 to vector<32x128xf32>
    %866 = arith.subf %865, %864 : vector<32x128xf32>
    %867 = arith.mulf %838, %866 : vector<32x128xf32>
    %cst_417 = arith.constant 1.000000e+00 : f32
    %868 = vector.broadcast %cst_417 : f32 to vector<32x128xf32>
    %869 = arith.addf %868, %867 : vector<32x128xf32>
    %870 = arith.mulf %831, %869 : vector<32x128xf32>
    %c3_418 = arith.constant 3 : index
    %c0_419 = arith.constant 0 : index
    %c0_420 = arith.constant 0 : index
    %871 = vector.load %arg13[%c3_418, %c0_419, %c0_420] : memref<4x128x32xf32, #tpu.memory_space<vmem>>, vector<1x128x32xf32>
    %872 = vector.shape_cast %871 : vector<1x128x32xf32> to vector<128x32xf32>
    %cst_421 = arith.constant dense<0.000000e+00> : vector<32x32xf32>
    %873 = tpu.matmul %870, %872, %cst_421 {dimension_numbers = #tpu.dot_dimension_numbers<[1], [0], [0], [1], [0, 0, 1, 1], [], []>} : vector<32x128xf32>, vector<128x32xf32>, vector<32x32xf32> -> vector<32x32xf32>
    %874 = arith.addf %796, %873 : vector<32x32xf32>
    %c3_422 = arith.constant 3 : index
    %c0_423 = arith.constant 0 : index
    %c0_424 = arith.constant 0 : index
    %875 = vector.load %arg14[%c3_422, %c0_423, %c0_424] : memref<4x1x32xf32, #tpu.memory_space<vmem>>, vector<1x1x32xf32>
    %876 = vector.shape_cast %875 : vector<1x1x32xf32> to vector<1x32xf32>
    %877 = vector.broadcast %876 : vector<1x32xf32> to vector<32x32xf32>
    %878 = arith.addf %874, %877 : vector<32x32xf32>
    %c0_425 = arith.constant 0 : index
    %c0_426 = arith.constant 0 : index
    %879 = vector.load %arg15[%c0_425, %c0_426] : memref<64x32xf32, #tpu.memory_space<vmem>>, vector<64x32xf32>
    %880 = vector.extract_strided_slice %879 {offsets = [0, 0], sizes = [32, 32], strides = [1, 1]} : vector<64x32xf32> to vector<32x32xf32>
    %cst_427 = arith.constant dense<0.000000e+00> : vector<32x32xf32>
    %881 = tpu.matmul %439, %880, %cst_427 {dimension_numbers = #tpu.dot_dimension_numbers<[1], [0], [0], [1], [0, 0, 1, 1], [], []>} : vector<32x32xf32>, vector<32x32xf32>, vector<32x32xf32> -> vector<32x32xf32>
    %882 = vector.extract_strided_slice %879 {offsets = [32, 0], sizes = [32, 32], strides = [1, 1]} : vector<64x32xf32> to vector<32x32xf32>
    %cst_428 = arith.constant dense<0.000000e+00> : vector<32x32xf32>
    %883 = tpu.matmul %878, %882, %cst_428 {dimension_numbers = #tpu.dot_dimension_numbers<[1], [0], [0], [1], [0, 0, 1, 1], [], []>} : vector<32x32xf32>, vector<32x32xf32>, vector<32x32xf32> -> vector<32x32xf32>
    %884 = arith.addf %881, %883 : vector<32x32xf32>
    %c0_429 = arith.constant 0 : index
    %c0_430 = arith.constant 0 : index
    %885 = vector.load %arg16[%c0_429, %c0_430] : memref<1x32xf32, #tpu.memory_space<vmem>>, vector<1x32xf32>
    %886 = vector.broadcast %885 : vector<1x32xf32> to vector<32x32xf32>
    %887 = arith.addf %884, %886 : vector<32x32xf32>
    %c0_431 = arith.constant 0 : index
    %c0_432 = arith.constant 0 : index
    %888 = vector.load %arg17[%c0_431, %c0_432] : memref<1x32xf32, #tpu.memory_space<vmem>>, vector<1x32xf32>
    %c0_433 = arith.constant 0 : index
    %c0_434 = arith.constant 0 : index
    %889 = vector.load %arg18[%c0_433, %c0_434] : memref<1x32xf32, #tpu.memory_space<vmem>>, vector<1x32xf32>
    %cst_435 = arith.constant dense<0.000000e+00> : vector<32xf32>
    %890 = vector.multi_reduction <add>, %887, %cst_435 [1] : vector<32x32xf32> to vector<32xf32>
    %891 = vector.shape_cast %890 : vector<32xf32> to vector<32x1xf32>
    %cst_436 = arith.constant 3.200000e+01 : f32
    %892 = vector.broadcast %cst_436 : f32 to vector<32x1xf32>
    %893 = arith.divf %891, %892 : vector<32x1xf32>
    %894 = vector.broadcast %893 : vector<32x1xf32> to vector<32x32xf32>
    %895 = arith.subf %887, %894 : vector<32x32xf32>
    %896 = arith.mulf %895, %895 : vector<32x32xf32>
    %cst_437 = arith.constant dense<0.000000e+00> : vector<32xf32>
    %897 = vector.multi_reduction <add>, %896, %cst_437 [1] : vector<32x32xf32> to vector<32xf32>
    %898 = vector.shape_cast %897 : vector<32xf32> to vector<32x1xf32>
    %cst_438 = arith.constant 3.200000e+01 : f32
    %899 = vector.broadcast %cst_438 : f32 to vector<32x1xf32>
    %900 = arith.divf %898, %899 : vector<32x1xf32>
    %901 = vector.broadcast %893 : vector<32x1xf32> to vector<32x32xf32>
    %902 = arith.subf %887, %901 : vector<32x32xf32>
    %cst_439 = arith.constant 9.99999974E-6 : f32
    %903 = vector.broadcast %cst_439 : f32 to vector<32x1xf32>
    %904 = arith.addf %900, %903 : vector<32x1xf32>
    %905 = math.rsqrt %904 : vector<32x1xf32>
    %906 = vector.broadcast %905 : vector<32x1xf32> to vector<32x32xf32>
    %907 = arith.mulf %902, %906 : vector<32x32xf32>
    %908 = vector.broadcast %888 : vector<1x32xf32> to vector<32x32xf32>
    %909 = arith.mulf %907, %908 : vector<32x32xf32>
    %910 = vector.broadcast %889 : vector<1x32xf32> to vector<32x32xf32>
    %911 = arith.addf %909, %910 : vector<32x32xf32>
    %c0_440 = arith.constant 0 : index
    %c0_441 = arith.constant 0 : index
    %912 = vector.load %arg19[%c0_440, %c0_441] : memref<32x128xf32, #tpu.memory_space<vmem>>, vector<32x128xf32>
    %cst_442 = arith.constant dense<0.000000e+00> : vector<32x128xf32>
    %913 = tpu.matmul %911, %912, %cst_442 {dimension_numbers = #tpu.dot_dimension_numbers<[1], [0], [0], [1], [0, 0, 1, 1], [], []>} : vector<32x32xf32>, vector<32x128xf32>, vector<32x128xf32> -> vector<32x128xf32>
    %c0_443 = arith.constant 0 : index
    %c0_444 = arith.constant 0 : index
    %914 = vector.load %arg20[%c0_443, %c0_444] : memref<32x128xf32, #tpu.memory_space<vmem>>, vector<32x128xf32>
    tpu.vector_store %arg20[%c0_443, %c0_444], %913 {strides = array<i32>} : memref<32x128xf32, #tpu.memory_space<vmem>>, vector<32x128xf32>,
    return
  }
}

</mosaic_0001>

<llo_original>
// kernel: mattergpt_forward_pallas.1
$region0: #{mattergpt_forward_pallas.1}
  #allocation0 [shape = 'u32[]', space=smem, size = 0x4, offset = 0x4, fixed_abs, tag = 'smem constant byte address 0x4 - core index']
  #allocation1 [shape = 'u32[144,128]{1,0:T(1,128)}', space=vmem, size = 0x12000, scoped, tag = 'internal scratch']
  %s0 = inlined_call_operand.vmem [shape: f32[32,32], index: 0, kind: input, shape index: {}]
  %s1 = inlined_call_operand.vmem [shape: f32[32,32], index: 1, kind: input, shape index: {}]
  %s2 = inlined_call_operand.vmem [shape: f32[32,32], index: 2, kind: input, shape index: {}]
  %s3 = inlined_call_operand.vmem [shape: f32[4,1,32], index: 3, kind: input, shape index: {}]
  %s4 = inlined_call_operand.vmem [shape: f32[4,1,32], index: 4, kind: input, shape index: {}]
  %s5 = inlined_call_operand.vmem [shape: f32[4,32,96], index: 5, kind: input, shape index: {}]
  %s6 = inlined_call_operand.vmem [shape: f32[4,1,96], index: 6, kind: input, shape index: {}]
  %s7 = inlined_call_operand.vmem [shape: f32[4,32,32], index: 7, kind: input, shape index: {}]
  %s8 = inlined_call_operand.vmem [shape: f32[4,1,32], index: 8, kind: input, shape index: {}]
  %s9 = inlined_call_operand.vmem [shape: f32[4,1,32], index: 9, kind: input, shape index: {}]
  %s10 = inlined_call_operand.vmem [shape: f32[4,1,32], index: 10, kind: input, shape index: {}]
  %s11 = inlined_call_operand.vmem [shape: f32[4,32,128], index: 11, kind: input, shape index: {}]
  %s12 = inlined_call_operand.vmem [shape: f32[4,1,128], index: 12, kind: input, shape index: {}]
  %s13 = inlined_call_operand.vmem [shape: f32[4,128,32], index: 13, kind: input, shape index: {}]
  %s14 = inlined_call_operand.vmem [shape: f32[4,1,32], index: 14, kind: input, shape index: {}]
  %s15 = inlined_call_operand.vmem [shape: f32[64,32], index: 15, kind: input, shape index: {}]
  %s16 = inlined_call_operand.vmem [shape: f32[1,32], index: 16, kind: input, shape index: {}]
  %s17 = inlined_call_operand.vmem [shape: f32[1,32], index: 17, kind: input, shape index: {}]
  %s18 = inlined_call_operand.vmem [shape: f32[1,32], index: 18, kind: input, shape index: {}]
  %s19 = inlined_call_operand.vmem [shape: f32[32,128], index: 19, kind: input, shape index: {}]
  %s20 = inlined_call_operand.vmem [shape: f32[32,128], index: 20, kind: output, shape index: {0}]
  %s21 = inlined_call_operand.vmem [shape: f32[4,4,32,32], index: 21, kind: output, shape index: {1}]
  %22 = xla_tuple %s20, %s21
  %s23 = sld [smem:[#allocation0]]
  $region98: #{mattergpt_forward_pallas.1} parent=0
    _
  %s25 = ssub.s32 1, %s23
  %s26 = scalar_select 0, %s25, %s23
  // Predicated region
  $region2: #{mattergpt_forward_pallas.1} parent=0 // pred_check
    _
  $region3: #{mattergpt_forward_pallas.1} parent=0 // pred_check_branch
    %28 = sbr.rel (0) target = $region5
  $region4: #{mattergpt_forward_pallas.1} parent=0 // pred_region
    _
  $region5: #{mattergpt_forward_pallas.1} parent=0 // pred_fallthru
    _
  // Predicated region
  $region6: #{mattergpt_forward_pallas.1} parent=0 // pred_check
    _
  $region7: #{mattergpt_forward_pallas.1} parent=0 // pred_check_branch
    %30 = sbr.rel (0) target = $region9
  $region8: #{mattergpt_forward_pallas.1} parent=0 // pred_region
    _
  $region9: #{mattergpt_forward_pallas.1} parent=0 // pred_fallthru
    _
  // Predicated region
  $region10: #{mattergpt_forward_pallas.1} parent=0 // pred_check
    _
  $region11: #{mattergpt_forward_pallas.1} parent=0 // pred_check_branch
    %32 = sbr.rel (0) target = $region13
  $region12: #{mattergpt_forward_pallas.1} parent=0 // pred_region
    _
  $region13: #{mattergpt_forward_pallas.1} parent=0 // pred_fallthru
    _
  // Predicated region
  $region14: #{mattergpt_forward_pallas.1} parent=0 // pred_check
    _
  $region15: #{mattergpt_forward_pallas.1} parent=0 // pred_check_branch
    %34 = sbr.rel (0) target = $region17
  $region16: #{mattergpt_forward_pallas.1} parent=0 // pred_region
    _
  $region17: #{mattergpt_forward_pallas.1} parent=0 // pred_fallthru
    _
  // Predicated region
  $region18: #{mattergpt_forward_pallas.1} parent=0 // pred_check
    _
  $region19: #{mattergpt_forward_pallas.1} parent=0 // pred_check_branch
    %36 = sbr.rel (0) target = $region21
  $region20: #{mattergpt_forward_pallas.1} parent=0 // pred_region
    _
  $region21: #{mattergpt_forward_pallas.1} parent=0 // pred_fallthru
    _
  // Predicated region
  $region22: #{mattergpt_forward_pallas.1} parent=0 // pred_check
    _
  $region23: #{mattergpt_forward_pallas.1} parent=0 // pred_check_branch
    %38 = sbr.rel (0) target = $region25
  $region24: #{mattergpt_forward_pallas.1} parent=0 // pred_region
    _
  $region25: #{mattergpt_forward_pallas.1} parent=0 // pred_fallthru
    _
  // Predicated region
  $region26: #{mattergpt_forward_pallas.1} parent=0 // pred_check
    _
  $region27: #{mattergpt_forward_pallas.1} parent=0 // pred_check_branch
    %40 = sbr.rel (0) target = $region29
  $region28: #{mattergpt_forward_pallas.1} parent=0 // pred_region
    _
  $region29: #{mattergpt_forward_pallas.1} parent=0 // pred_fallthru
    _
  // Predicated region
  $region30: #{mattergpt_forward_pallas.1} parent=0 // pred_check
    _
  $region31: #{mattergpt_forward_pallas.1} parent=0 // pred_check_branch
    %42 = sbr.rel (0) target = $region33
  $region32: #{mattergpt_forward_pallas.1} parent=0 // pred_region
    _
  $region33: #{mattergpt_forward_pallas.1} parent=0 // pred_fallthru
    _
  // Predicated region
  $region34: #{mattergpt_forward_pallas.1} parent=0 // pred_check
    _
  $region35: #{mattergpt_forward_pallas.1} parent=0 // pred_check_branch
    %44 = sbr.rel (0) target = $region37
  $region36: #{mattergpt_forward_pallas.1} parent=0 // pred_region
    _
  $region37: #{mattergpt_forward_pallas.1} parent=0 // pred_fallthru
    _
  // Predicated region
  $region38: #{mattergpt_forward_pallas.1} parent=0 // pred_check
    _
  $region39: #{mattergpt_forward_pallas.1} parent=0 // pred_check_branch
    %46 = sbr.rel (0) target = $region41
  $region40: #{mattergpt_forward_pallas.1} parent=0 // pred_region
    _
  $region41: #{mattergpt_forward_pallas.1} parent=0 // pred_fallthru
    _
  // Predicated region
  $region42: #{mattergpt_forward_pallas.1} parent=0 // pred_check
    _
  $region43: #{mattergpt_forward_pallas.1} parent=0 // pred_check_branch
    %48 = sbr.rel (0) target = $region45
  $region44: #{mattergpt_forward_pallas.1} parent=0 // pred_region
    _
  $region45: #{mattergpt_forward_pallas.1} parent=0 // pred_fallthru
    _
  // Predicated region
  $region46: #{mattergpt_forward_pallas.1} parent=0 // pred_check
    _
  $region47: #{mattergpt_forward_pallas.1} parent=0 // pred_check_branch
    %50 = sbr.rel (0) target = $region49
  $region48: #{mattergpt_forward_pallas.1} parent=0 // pred_region
    _
  $region49: #{mattergpt_forward_pallas.1} parent=0 // pred_fallthru
    _
  // Predicated region
  $region50: #{mattergpt_forward_pallas.1} parent=0 // pred_check
    _
  $region51: #{mattergpt_forward_pallas.1} parent=0 // pred_check_branch
    %52 = sbr.rel (0) target = $region53
  $region52: #{mattergpt_forward_pallas.1} parent=0 // pred_region
    _
  $region53: #{mattergpt_forward_pallas.1} parent=0 // pred_fallthru
    _
  // Predicated region
  $region54: #{mattergpt_forward_pallas.1} parent=0 // pred_check
    _
  $region55: #{mattergpt_forward_pallas.1} parent=0 // pred_check_branch
    %54 = sbr.rel (0) target = $region57
  $region56: #{mattergpt_forward_pallas.1} parent=0 // pred_region
    _
  $region57: #{mattergpt_forward_pallas.1} parent=0 // pred_fallthru
    _
  // Predicated region
  $region58: #{mattergpt_forward_pallas.1} parent=0 // pred_check
    _
  $region59: #{mattergpt_forward_pallas.1} parent=0 // pred_check_branch
    %56 = sbr.rel (0) target = $region61
  $region60: #{mattergpt_forward_pallas.1} parent=0 // pred_region
    _
  $region61: #{mattergpt_forward_pallas.1} parent=0 // pred_fallthru
    _
  // Predicated region
  $region62: #{mattergpt_forward_pallas.1} parent=0 // pred_check
    _
  $region63: #{mattergpt_forward_pallas.1} parent=0 // pred_check_branch
    %58 = sbr.rel (0) target = $region65
  $region64: #{mattergpt_forward_pallas.1} parent=0 // pred_region
    _
  $region65: #{mattergpt_forward_pallas.1} parent=0 // pred_fallthru
    _
  // Predicated region
  $region66: #{mattergpt_forward_pallas.1} parent=0 // pred_check
    _
  $region67: #{mattergpt_forward_pallas.1} parent=0 // pred_check_branch
    %60 = sbr.rel (0) target = $region69
  $region68: #{mattergpt_forward_pallas.1} parent=0 // pred_region
    _
  $region69: #{mattergpt_forward_pallas.1} parent=0 // pred_fallthru
    _
  // Predicated region
  $region70: #{mattergpt_forward_pallas.1} parent=0 // pred_check
    _
  $region71: #{mattergpt_forward_pallas.1} parent=0 // pred_check_branch
    %62 = sbr.rel (0) target = $region73
  $region72: #{mattergpt_forward_pallas.1} parent=0 // pred_region
    _
  $region73: #{mattergpt_forward_pallas.1} parent=0 // pred_fallthru
    _
  // Predicated region
  $region74: #{mattergpt_forward_pallas.1} parent=0 // pred_check
    _
  $region75: #{mattergpt_forward_pallas.1} parent=0 // pred_check_branch
    %64 = sbr.rel (0) target = $region77
  $region76: #{mattergpt_forward_pallas.1} parent=0 // pred_region
    _
  $region77: #{mattergpt_forward_pallas.1} parent=0 // pred_fallthru
    _
  // Predicated region
  $region78: #{mattergpt_forward_pallas.1} parent=0 // pred_check
    _
  $region79: #{mattergpt_forward_pallas.1} parent=0 // pred_check_branch
    %66 = sbr.rel (0) target = $region81
  $region80: #{mattergpt_forward_pallas.1} parent=0 // pred_region
    _
  $region81: #{mattergpt_forward_pallas.1} parent=0 // pred_fallthru
    _
  %v67 = vld [vmem:[%s2] sm:$0xff]
  %v68 = vld [vmem:[%s2 + $0x8] sm:$0xff]
  %v69 = vld [vmem:[%s2 + $0x10] sm:$0xff]
  %v70 = vld [vmem:[%s2 + $0x18] sm:$0xff]
  %v71 = vld [vmem:[%s0] sm:$0xff]
  %v72 = vld [vmem:[%s0 + $0x8] sm:$0xff]
  %v73 = vld [vmem:[%s0 + $0x10] sm:$0xff]
  %v74 = vld [vmem:[%s0 + $0x18] sm:$0xff]
  %v75 = vld [vmem:[%s3] sm:$0x1]
  %v76 = vld [vmem:[%s4] sm:$0x1]
  %vm77 = vcmask 261120
  %v78 = vsel %vm77, %v71, 0.0
  %79 = vadd.xlane.f32.xlu0 %v78
  %v80 = vpop.xlane.xlu0 %79
  %v81 = vsel %vm77, %v72, 0.0
  %82 = vadd.xlane.f32.xlu0 %v81
  %v83 = vpop.xlane.xlu0 %82
  %v84 = vsel %vm77, %v73, 0.0
  %85 = vadd.xlane.f32.xlu0 %v84
  %v86 = vpop.xlane.xlu0 %85
  %v87 = vsel %vm77, %v74, 0.0
  %88 = vadd.xlane.f32.xlu0 %v87
  %v89 = vpop.xlane.xlu0 %88
  %v90 = vrcp.pop 32.0
  %v91 = vmul.f32 %v80, %v90
  %v92 = vmul.f32 %v83, %v90
  %v93 = vmul.f32 %v86, %v90
  %v94 = vmul.f32 %v89, %v90
  %v95 = vsub.f32 %v71, %v91
  %v96 = vsub.f32 %v72, %v92
  %v97 = vsub.f32 %v73, %v93
  %v98 = vsub.f32 %v74, %v94
  %v99 = vmul.f32 %v95, %v95
  %v100 = vmul.f32 %v96, %v96
  %v101 = vmul.f32 %v97, %v97
  %v102 = vmul.f32 %v98, %v98
  %v103 = vsel %vm77, %v99, 0.0
  %104 = vadd.xlane.f32.xlu0 %v103
  %v105 = vpop.xlane.xlu0 %104
  %v106 = vsel %vm77, %v100, 0.0
  %107 = vadd.xlane.f32.xlu0 %v106
  %v108 = vpop.xlane.xlu0 %107
  %v109 = vsel %vm77, %v101, 0.0
  %110 = vadd.xlane.f32.xlu0 %v109
  %v111 = vpop.xlane.xlu0 %110
  %v112 = vsel %vm77, %v102, 0.0
  %113 = vadd.xlane.f32.xlu0 %v112
  %v114 = vpop.xlane.xlu0 %113
  %v115 = vmul.f32 %v105, %v90
  %v116 = vmul.f32 %v108, %v90
  %v117 = vmul.f32 %v111, %v90
  %v118 = vmul.f32 %v114, %v90
  %v119 = vadd.f32 %v115, 1e-05
  %v120 = vadd.f32 %v116, 1e-05
  %v121 = vadd.f32 %v117, 1e-05
  %v122 = vadd.f32 %v118, 1e-05
  %v123 = vrsqrt.pop %v119
  %v124 = vrsqrt.pop %v120
  %v125 = vrsqrt.pop %v121
  %v126 = vrsqrt.pop %v122
  %v127 = vmul.f32 %v95, %v123
  %v128 = vmul.f32 %v96, %v124
  %v129 = vmul.f32 %v97, %v125
  %v130 = vmul.f32 %v98, %v126
  %v132 = vlaneseq
  %v133 = vshrl.u32 %v132, 7
  %v134 = vsub.s32 0, %v133
  %v135 = vrot.slane %v75, %v134
  %v137 = vmul.f32 %v127, %v135
  %v138 = vmul.f32 %v128, %v135
  %v139 = vmul.f32 %v129, %v135
  %v140 = vmul.f32 %v130, %v135
  %v142 = vlaneseq
  %v143 = vshrl.u32 %v142, 7
  %v144 = vsub.s32 0, %v143
  %v145 = vrot.slane %v76, %v144
  %v147 = vadd.f32 %v137, %v145
  %v148 = vadd.f32 %v138, %v145
  %v149 = vadd.f32 %v139, %v145
  %v150 = vadd.f32 %v140, %v145
  %v151 = vld [vmem:[%s5] sm:$0xff]
  %v152 = vld [vmem:[%s5 + $0x8] sm:$0xff]
  %v153 = vld [vmem:[%s5 + $0x10] sm:$0xff]
  %v154 = vld [vmem:[%s5 + $0x18] sm:$0xff]
  %v155 = vld [vmem:[%s6] sm:$0x1]
  %v157 = vlaneseq
  %v158 = vshrl.u32 %v157, 7
  %v159 = vsub.s32 0, %v158
  %v160 = vrot.slane %v155, %v159
  %v163 = vsel %vm77, %v147, 0
  %v166 = vsel %vm77, %v148, 0
  %v169 = vsel %vm77, %v149, 0
  %v172 = vsel %vm77, %v150, 0
  %174 = vmatprep.subr.mxu0 0.0
  %175 = vmatpush1.msra.mxu0 %v151
  %176 = vmatprep.subr.mxu0 0.0
  %177 = vmatpush1.msra.mxu0 %v152
  %178 = vmatprep.subr.mxu0 0.0
  %179 = vmatpush1.msra.mxu0 %v153
  %180 = vmatprep.subr.mxu0 0.0
  %181 = vmatpush1.msra.mxu0 %v154
  %182 = vmatprep.subr.mxu0 0.0
  %183 = vmatpush1.msra.mxu0 0.0
  %184 = vmatprep.subr.mxu0 0.0
  %185 = vmatpush1.msra.mxu0 0.0
  %186 = vmatprep.subr.mxu0 0.0
  %187 = vmatpush1.msra.mxu0 0.0
  %188 = vmatprep.subr.mxu0 0.0
  %189 = vmatpush1.msra.mxu0 0.0
  %190 = vmatprep.subr.mxu0 0.0
  %191 = vmatpush1.msra.mxu0 0.0
  %192 = vmatprep.subr.mxu0 0.0
  %193 = vmatpush1.msra.mxu0 0.0
  %194 = vmatprep.subr.mxu0 0.0
  %195 = vmatpush1.msra.mxu0 0.0
  %196 = vmatprep.subr.mxu0 0.0
  %197 = vmatpush1.msra.mxu0 0.0
  %198 = vmatprep.subr.mxu0 0.0
  %199 = vmatpush1.msra.mxu0 0.0
  %200 = vmatprep.subr.mxu0 0.0
  %201 = vmatpush1.msra.mxu0 0.0
  %202 = vmatprep.subr.mxu0 0.0
  %203 = vmatpush1.msra.mxu0 0.0
  %204 = vmatprep.subr.mxu0 0.0
  %205 = vmatpush1.msra.mxu0 0.0
  %206 = vmatprep.subr.mxu0 0.0
  %207 = vmatpush1.msra.mxu0 0.0
  %208 = vmatprep.subr.mxu0 0.0
  %209 = vmatpush1.msra.mxu0 0.0
  %210 = vmatprep.subr.mxu0 0.0
  %211 = vmatpush1.msra.mxu0 0.0
  %212 = vmatprep.subr.mxu0 0.0
  %213 = vmatpush1.msra.mxu0 0.0
  %214 = vmatprep.subr.mxu0 0.0
  %215 = vmatpush1.msra.mxu0 0.0
  %216 = vmatprep.subr.mxu0 0.0
  %217 = vmatpush1.msra.mxu0 0.0
  %218 = vmatprep.subr.mxu0 0.0
  %219 = vmatpush1.msra.mxu0 0.0
  %220 = vmatprep.subr.mxu0 0.0
  %221 = vmatpush1.msra.mxu0 0.0
  %222 = vmatprep.subr.mxu0 0.0
  %223 = vmatpush1.msra.mxu0 0.0
  %224 = vmatprep.subr.mxu0 0.0
  %225 = vmatpush1.msra.mxu0 0.0
  %226 = vmatprep.subr.mxu0 0.0
  %227 = vmatpush1.msra.mxu0 0.0
  %228 = vmatprep.subr.mxu0 0.0
  %229 = vmatpush1.msra.mxu0 0.0
  %230 = vmatprep.subr.mxu0 0.0
  %231 = vmatpush1.msra.mxu0 0.0
  %232 = vmatprep.subr.mxu0 0.0
  %233 = vmatpush1.msra.mxu0 0.0
  %234 = vmatprep.subr.mxu0 0.0
  %235 = vmatpush1.msra.mxu0 0.0
  %236 = vmatprep.subr.mxu0 0.0
  %237 = vmatpush1.msra.mxu0 0.0
  %238 = vmatprep.mubr.f32.mxu0 0.0
  %239 = vmatmul.mubr.f32.gmra.mrb[0].mxu0 %v163
  %v240 = vpop.f32.mrb[0].mxu0
  %v241 = vadd.f32 %v160, %v240
  %v242 = vpop.f32.mrb[0].mxu0
  %243 = vmatprep.mubr.f32.mxu0 0.0
  %244 = vmatmul.mubr.f32.gmra.mrb[0].mxu0 %v166
  %v245 = vpop.f32.mrb[0].mxu0
  %v246 = vadd.f32 %v160, %v245
  %v247 = vpop.f32.mrb[0].mxu0
  %248 = vmatprep.mubr.f32.mxu0 0.0
  %249 = vmatmul.mubr.f32.gmra.mrb[0].mxu0 %v169
  %v250 = vpop.f32.mrb[0].mxu0
  %v251 = vadd.f32 %v160, %v250
  %v252 = vpop.f32.mrb[0].mxu0
  %253 = vmatprep.mubr.f32.mxu0 0.0
  %254 = vmatmul.mubr.f32.gmra.mrb[0].mxu0 %v172
  %v255 = vpop.f32.mrb[0].mxu0
  %v256 = vadd.f32 %v160, %v255
  %v257 = vpop.f32.mrb[0].mxu0
  %258 = vdwg.mxu0
  %v259 = vld [vmem:[%s7] sm:$0xff]
  %v260 = vld [vmem:[%s7 + $0x8] sm:$0xff]
  %v261 = vld [vmem:[%s7 + $0x10] sm:$0xff]
  %v262 = vld [vmem:[%s7 + $0x18] sm:$0xff]
  %v263 = vmul.f32 %v241, 0.35355338
  %v264 = vmul.f32 %v246, 0.35355338
  %v265 = vmul.f32 %v251, 0.35355338
  %v266 = vmul.f32 %v256, 0.35355338
  %271 = vrot.lane.b32.xlu0 %v241, 96
  %v272 = vpop.permute.xlu0 %271
  %273 = vrot.lane.b32.xlu0 %v246, 96
  %v274 = vpop.permute.xlu0 %273
  %275 = vrot.lane.b32.xlu0 %v251, 96
  %v276 = vpop.permute.xlu0 %275
  %277 = vrot.lane.b32.xlu0 %v256, 96
  %v278 = vpop.permute.xlu0 %277
  %vm279 = vcmask 64512
  %v281 = vsel %vm279, %v263, 0
  %v284 = vsel %vm279, %v264, 0
  %v287 = vsel %vm279, %v265, 0
  %v290 = vsel %vm279, %v266, 0
  %v292 = vsel %vm279, %v272, 0
  %v294 = vsel %vm279, %v274, 0
  %v296 = vsel %vm279, %v276, 0
  %v298 = vsel %vm279, %v278, 0
  %300 = vmatprep.subr.mxu0 0.0
  %301 = vmatpush1.xpose.msra.mxu0 %v292
  %302 = vmatprep.subr.mxu0 0.0
  %303 = vmatpush1.xpose.msra.mxu0 %v294
  %304 = vmatprep.subr.mxu0 0.0
  %305 = vmatpush1.xpose.msra.mxu0 %v296
  %306 = vmatprep.subr.mxu0 0.0
  %307 = vmatpush1.xpose.msra.mxu0 %v298
  %308 = vmatprep.subr.mxu0 0.0
  %309 = vmatpush1.xpose.msra.mxu0 0.0
  %310 = vmatprep.subr.mxu0 0.0
  %311 = vmatpush1.xpose.msra.mxu0 0.0
  %312 = vmatprep.subr.mxu0 0.0
  %313 = vmatpush1.xpose.msra.mxu0 0.0
  %314 = vmatprep.subr.mxu0 0.0
  %315 = vmatpush1.xpose.msra.mxu0 0.0
  %316 = vmatprep.subr.mxu0 0.0
  %317 = vmatpush1.xpose.msra.mxu0 0.0
  %318 = vmatprep.subr.mxu0 0.0
  %319 = vmatpush1.xpose.msra.mxu0 0.0
  %320 = vmatprep.subr.mxu0 0.0
  %321 = vmatpush1.xpose.msra.mxu0 0.0
  %322 = vmatprep.subr.mxu0 0.0
  %323 = vmatpush1.xpose.msra.mxu0 0.0
  %324 = vmatprep.subr.mxu0 0.0
  %325 = vmatpush1.xpose.msra.mxu0 0.0
  %326 = vmatprep.subr.mxu0 0.0
  %327 = vmatpush1.xpose.msra.mxu0 0.0
  %328 = vmatprep.subr.mxu0 0.0
  %329 = vmatpush1.xpose.msra.mxu0 0.0
  %330 = vmatprep.subr.mxu0 0.0
  %331 = vmatpush1.xpose.msra.mxu0 0.0
  %332 = vmatprep.subr.mxu0 0.0
  %333 = vmatpush1.xpose.msra.mxu0 0.0
  %334 = vmatprep.subr.mxu0 0.0
  %335 = vmatpush1.xpose.msra.mxu0 0.0
  %336 = vmatprep.subr.mxu0 0.0
  %337 = vmatpush1.xpose.msra.mxu0 0.0
  %338 = vmatprep.subr.mxu0 0.0
  %339 = vmatpush1.xpose.msra.mxu0 0.0
  %340 = vmatprep.subr.mxu0 0.0
  %341 = vmatpush1.xpose.msra.mxu0 0.0
  %342 = vmatprep.subr.mxu0 0.0
  %343 = vmatpush1.xpose.msra.mxu0 0.0
  %344 = vmatprep.subr.mxu0 0.0
  %345 = vmatpush1.xpose.msra.mxu0 0.0
  %346 = vmatprep.subr.mxu0 0.0
  %347 = vmatpush1.xpose.msra.mxu0 0.0
  %348 = vmatprep.subr.mxu0 0.0
  %349 = vmatpush1.xpose.msra.mxu0 0.0
  %350 = vmatprep.subr.mxu0 0.0
  %351 = vmatpush1.xpose.msra.mxu0 0.0
  %352 = vmatprep.subr.mxu0 0.0
  %353 = vmatpush1.xpose.msra.mxu0 0.0
  %354 = vmatprep.subr.mxu0 0.0
  %355 = vmatpush1.xpose.msra.mxu0 0.0
  %356 = vmatprep.subr.mxu0 0.0
  %357 = vmatpush1.xpose.msra.mxu0 0.0
  %358 = vmatprep.subr.mxu0 0.0
  %359 = vmatpush1.xpose.msra.mxu0 0.0
  %360 = vmatprep.subr.mxu0 0.0
  %361 = vmatpush1.xpose.msra.mxu0 0.0
  %362 = vmatprep.subr.mxu0 0.0
  %363 = vmatpush1.xpose.msra.mxu0 0.0
  %364 = vmatprep.mubr.f32.mxu0 0.0
  %365 = vmatmul.mubr.f32.gmra.mrb[0].mxu0 %v281
  %v366 = vpop.f32.mrb[0].mxu0
  %v367 = vadd.f32 %v67, %v366
  %v368 = vpop.f32.mrb[0].mxu0
  %369 = vmatprep.mubr.f32.mxu0 0.0
  %370 = vmatmul.mubr.f32.gmra.mrb[0].mxu0 %v284
  %v371 = vpop.f32.mrb[0].mxu0
  %v372 = vadd.f32 %v68, %v371
  %v373 = vpop.f32.mrb[0].mxu0
  %374 = vmatprep.mubr.f32.mxu0 0.0
  %375 = vmatmul.mubr.f32.gmra.mrb[0].mxu0 %v287
  %v376 = vpop.f32.mrb[0].mxu0
  %v377 = vadd.f32 %v69, %v376
  %v378 = vpop.f32.mrb[0].mxu0
  %379 = vmatprep.mubr.f32.mxu0 0.0
  %380 = vmatmul.mubr.f32.gmra.mrb[0].mxu0 %v290
  %v381 = vpop.f32.mrb[0].mxu0
  %v382 = vadd.f32 %v70, %v381
  %v383 = vpop.f32.mrb[0].mxu0
  %384 = vdwg.mxu0
  %v385 = vsel %vm77, %v367, -inf
  %386 = vmax.xlane.f32.xlu0 %v385
  %v387 = vpop.xlane.xlu0 %386
  %v388 = vsel %vm77, %v372, -inf
  %389 = vmax.xlane.f32.xlu0 %v388
  %v390 = vpop.xlane.xlu0 %389
  %v391 = vsel %vm77, %v377, -inf
  %392 = vmax.xlane.f32.xlu0 %v391
  %v393 = vpop.xlane.xlu0 %392
  %v394 = vsel %vm77, %v382, -inf
  %395 = vmax.xlane.f32.xlu0 %v394
  %v396 = vpop.xlane.xlu0 %395
  %v397 = vsub.f32 %v367, %v387
  %v398 = vsub.f32 %v372, %v390
  %v399 = vsub.f32 %v377, %v393
  %v400 = vsub.f32 %v382, %v396
  %v401 = vmul.f32 %v397, 1.442695
  %v402 = vpow.pop %v401
  %v403 = vmul.f32 %v398, 1.442695
  %v404 = vpow.pop %v403
  %v405 = vmul.f32 %v399, 1.442695
  %v406 = vpow.pop %v405
  %v407 = vmul.f32 %v400, 1.442695
  %v408 = vpow.pop %v407
  %v409 = vsel %vm77, %v402, 0.0
  %410 = vadd.xlane.f32.xlu0 %v409
  %v411 = vpop.xlane.xlu0 %410
  %v412 = vsel %vm77, %v404, 0.0
  %413 = vadd.xlane.f32.xlu0 %v412
  %v414 = vpop.xlane.xlu0 %413
  %v415 = vsel %vm77, %v406, 0.0
  %416 = vadd.xlane.f32.xlu0 %v415
  %v417 = vpop.xlane.xlu0 %416
  %v418 = vsel %vm77, %v408, 0.0
  %419 = vadd.xlane.f32.xlu0 %v418
  %v420 = vpop.xlane.xlu0 %419
  %v421 = vrcp.pop %v411
  %v422 = vrcp.pop %v414
  %v423 = vrcp.pop %v417
  %v424 = vrcp.pop %v420
  %v425 = vmul.f32 %v402, %v421
  %v426 = vmul.f32 %v404, %v422
  %v427 = vmul.f32 %v406, %v423
  %v428 = vmul.f32 %v408, %v424
  %429 = vst.msk [vmem:[%s21] sm:$0xff] %vm77, %v425
  %430 = vst.msk [vmem:[%s21 + $0x8] sm:$0xff] %vm77, %v426
  %431 = vst.msk [vmem:[%s21 + $0x10] sm:$0xff] %vm77, %v427
  %432 = vst.msk [vmem:[%s21 + $0x18] sm:$0xff] %vm77, %v428
  %433 = vrot.lane.b32.xlu0 %v241, 64
  %v434 = vpop.permute.xlu0 %433
  %435 = vrot.lane.b32.xlu0 %v246, 64
  %v436 = vpop.permute.xlu0 %435
  %437 = vrot.lane.b32.xlu0 %v251, 64
  %v438 = vpop.permute.xlu0 %437
  %439 = vrot.lane.b32.xlu0 %v256, 64
  %v440 = vpop.permute.xlu0 %439
  %v446 = vsel %vm77, %v425, 0
  %v449 = vsel %vm77, %v426, 0
  %v452 = vsel %vm77, %v427, 0
  %v455 = vsel %vm77, %v428, 0
  %457 = vmatprep.subr.mxu0 0.0
  %458 = vmatpush1.msra.mxu0 %v434
  %459 = vmatprep.subr.mxu0 0.0
  %460 = vmatpush1.msra.mxu0 %v436
  %461 = vmatprep.subr.mxu0 0.0
  %462 = vmatpush1.msra.mxu0 %v438
  %463 = vmatprep.subr.mxu0 0.0
  %464 = vmatpush1.msra.mxu0 %v440
  %465 = vmatprep.subr.mxu0 0.0
  %466 = vmatpush1.msra.mxu0 0.0
  %467 = vmatprep.subr.mxu0 0.0
  %468 = vmatpush1.msra.mxu0 0.0
  %469 = vmatprep.subr.mxu0 0.0
  %470 = vmatpush1.msra.mxu0 0.0
  %471 = vmatprep.subr.mxu0 0.0
  %472 = vmatpush1.msra.mxu0 0.0
  %473 = vmatprep.subr.mxu0 0.0
  %474 = vmatpush1.msra.mxu0 0.0
  %475 = vmatprep.subr.mxu0 0.0
  %476 = vmatpush1.msra.mxu0 0.0
  %477 = vmatprep.subr.mxu0 0.0
  %478 = vmatpush1.msra.mxu0 0.0
  %479 = vmatprep.subr.mxu0 0.0
  %480 = vmatpush1.msra.mxu0 0.0
  %481 = vmatprep.subr.mxu0 0.0
  %482 = vmatpush1.msra.mxu0 0.0
  %483 = vmatprep.subr.mxu0 0.0
  %484 = vmatpush1.msra.mxu0 0.0
  %485 = vmatprep.subr.mxu0 0.0
  %486 = vmatpush1.msra.mxu0 0.0
  %487 = vmatprep.subr.mxu0 0.0
  %488 = vmatpush1.msra.mxu0 0.0
  %489 = vmatprep.subr.mxu0 0.0
  %490 = vmatpush1.msra.mxu0 0.0
  %491 = vmatprep.subr.mxu0 0.0
  %492 = vmatpush1.msra.mxu0 0.0
  %493 = vmatprep.subr.mxu0 0.0
  %494 = vmatpush1.msra.mxu0 0.0
  %495 = vmatprep.subr.mxu0 0.0
  %496 = vmatpush1.msra.mxu0 0.0
  %497 = vmatprep.subr.mxu0 0.0
  %498 = vmatpush1.msra.mxu0 0.0
  %499 = vmatprep.subr.mxu0 0.0
  %500 = vmatpush1.msra.mxu0 0.0
  %501 = vmatprep.subr.mxu0 0.0
  %502 = vmatpush1.msra.mxu0 0.0
  %503 = vmatprep.subr.mxu0 0.0
  %504 = vmatpush1.msra.mxu0 0.0
  %505 = vmatprep.subr.mxu0 0.0
  %506 = vmatpush1.msra.mxu0 0.0
  %507 = vmatprep.subr.mxu0 0.0
  %508 = vmatpush1.msra.mxu0 0.0
  %509 = vmatprep.subr.mxu0 0.0
  %510 = vmatpush1.msra.mxu0 0.0
  %511 = vmatprep.subr.mxu0 0.0
  %512 = vmatpush1.msra.mxu0 0.0
  %513 = vmatprep.subr.mxu0 0.0
  %514 = vmatpush1.msra.mxu0 0.0
  %515 = vmatprep.subr.mxu0 0.0
  %516 = vmatpush1.msra.mxu0 0.0
  %517 = vmatprep.subr.mxu0 0.0
  %518 = vmatpush1.msra.mxu0 0.0
  %519 = vmatprep.subr.mxu0 0.0
  %520 = vmatpush1.msra.mxu0 0.0
  %521 = vmatprep.mubr.f32.mxu0 0.0
  %522 = vmatmul.mubr.f32.gmra.mrb[0].mxu0 %v446
  %v523 = vpop.f32.mrb[0].mxu0
  %v524 = vadd.f32 0.0, %v523
  %v525 = vpop.f32.mrb[0].mxu0
  %526 = vmatprep.mubr.f32.mxu0 0.0
  %527 = vmatmul.mubr.f32.gmra.mrb[0].mxu0 %v449
  %v528 = vpop.f32.mrb[0].mxu0
  %v529 = vadd.f32 0.0, %v528
  %v530 = vpop.f32.mrb[0].mxu0
  %531 = vmatprep.mubr.f32.mxu0 0.0
  %532 = vmatmul.mubr.f32.gmra.mrb[0].mxu0 %v452
  %v533 = vpop.f32.mrb[0].mxu0
  %v534 = vadd.f32 0.0, %v533
  %v535 = vpop.f32.mrb[0].mxu0
  %536 = vmatprep.mubr.f32.mxu0 0.0
  %537 = vmatmul.mubr.f32.gmra.mrb[0].mxu0 %v455
  %v538 = vpop.f32.mrb[0].mxu0
  %v539 = vadd.f32 0.0, %v538
  %v540 = vpop.f32.mrb[0].mxu0
  %541 = vdwg.mxu0
  %542 = vrot.lane.b32.xlu0 %v263, 120
  %v543 = vpop.permute.xlu0 %542
  %544 = vrot.lane.b32.xlu0 %v264, 120
  %v545 = vpop.permute.xlu0 %544
  %546 = vrot.lane.b32.xlu0 %v265, 120
  %v547 = vpop.permute.xlu0 %546
  %548 = vrot.lane.b32.xlu0 %v266, 120
  %v549 = vpop.permute.xlu0 %548
  %550 = vrot.lane.b32.xlu0 %v241, 88
  %v551 = vpop.permute.xlu0 %550
  %552 = vrot.lane.b32.xlu0 %v246, 88
  %v553 = vpop.permute.xlu0 %552
  %554 = vrot.lane.b32.xlu0 %v251, 88
  %v555 = vpop.permute.xlu0 %554
  %556 = vrot.lane.b32.xlu0 %v256, 88
  %v557 = vpop.permute.xlu0 %556
  %v558 = vsel %vm279, %v543, 0
  %v560 = vsel %vm279, %v545, 0
  %v562 = vsel %vm279, %v547, 0
  %v564 = vsel %vm279, %v549, 0
  %v566 = vsel %vm279, %v551, 0
  %v568 = vsel %vm279, %v553, 0
  %v570 = vsel %vm279, %v555, 0
  %v572 = vsel %vm279, %v557, 0
  %574 = vmatprep.subr.mxu0 0.0
  %575 = vmatpush1.xpose.msra.mxu0 %v566
  %576 = vmatprep.subr.mxu0 0.0
  %577 = vmatpush1.xpose.msra.mxu0 %v568
  %578 = vmatprep.subr.mxu0 0.0
  %579 = vmatpush1.xpose.msra.mxu0 %v570
  %580 = vmatprep.subr.mxu0 0.0
  %581 = vmatpush1.xpose.msra.mxu0 %v572
  %582 = vmatprep.subr.mxu0 0.0
  %583 = vmatpush1.xpose.msra.mxu0 0.0
  %584 = vmatprep.subr.mxu0 0.0
  %585 = vmatpush1.xpose.msra.mxu0 0.0
  %586 = vmatprep.subr.mxu0 0.0
  %587 = vmatpush1.xpose.msra.mxu0 0.0
  %588 = vmatprep.subr.mxu0 0.0
  %589 = vmatpush1.xpose.msra.mxu0 0.0
  %590 = vmatprep.subr.mxu0 0.0
  %591 = vmatpush1.xpose.msra.mxu0 0.0
  %592 = vmatprep.subr.mxu0 0.0
  %593 = vmatpush1.xpose.msra.mxu0 0.0
  %594 = vmatprep.subr.mxu0 0.0
  %595 = vmatpush1.xpose.msra.mxu0 0.0
  %596 = vmatprep.subr.mxu0 0.0
  %597 = vmatpush1.xpose.msra.mxu0 0.0
  %598 = vmatprep.subr.mxu0 0.0
  %599 = vmatpush1.xpose.msra.mxu0 0.0
  %600 = vmatprep.subr.mxu0 0.0
  %601 = vmatpush1.xpose.msra.mxu0 0.0
  %602 = vmatprep.subr.mxu0 0.0
  %603 = vmatpush1.xpose.msra.mxu0 0.0
  %604 = vmatprep.subr.mxu0 0.0
  %605 = vmatpush1.xpose.msra.mxu0 0.0
  %606 = vmatprep.subr.mxu0 0.0
  %607 = vmatpush1.xpose.msra.mxu0 0.0
  %608 = vmatprep.subr.mxu0 0.0
  %609 = vmatpush1.xpose.msra.mxu0 0.0
  %610 = vmatprep.subr.mxu0 0.0
  %611 = vmatpush1.xpose.msra.mxu0 0.0
  %612 = vmatprep.subr.mxu0 0.0
  %613 = vmatpush1.xpose.msra.mxu0 0.0
  %614 = vmatprep.subr.mxu0 0.0
  %615 = vmatpush1.xpose.msra.mxu0 0.0
  %616 = vmatprep.subr.mxu0 0.0
  %617 = vmatpush1.xpose.msra.mxu0 0.0
  %618 = vmatprep.subr.mxu0 0.0
  %619 = vmatpush1.xpose.msra.mxu0 0.0
  %620 = vmatprep.subr.mxu0 0.0
  %621 = vmatpush1.xpose.msra.mxu0 0.0
  %622 = vmatprep.subr.mxu0 0.0
  %623 = vmatpush1.xpose.msra.mxu0 0.0
  %624 = vmatprep.subr.mxu0 0.0
  %625 = vmatpush1.xpose.msra.mxu0 0.0
  %626 = vmatprep.subr.mxu0 0.0
  %627 = vmatpush1.xpose.msra.mxu0 0.0
  %628 = vmatprep.subr.mxu0 0.0
  %629 = vmatpush1.xpose.msra.mxu0 0.0
  %630 = vmatprep.subr.mxu0 0.0
  %631 = vmatpush1.xpose.msra.mxu0 0.0
  %632 = vmatprep.subr.mxu0 0.0
  %633 = vmatpush1.xpose.msra.mxu0 0.0
  %634 = vmatprep.subr.mxu0 0.0
  %635 = vmatpush1.xpose.msra.mxu0 0.0
  %636 = vmatprep.subr.mxu0 0.0
  %637 = vmatpush1.xpose.msra.mxu0 0.0
  %638 = vmatprep.mubr.f32.mxu0 0.0
  %639 = vmatmul.mubr.f32.gmra.mrb[0].mxu0 %v558
  %v640 = vpop.f32.mrb[0].mxu0
  %v641 = vadd.f32 %v67, %v640
  %v642 = vpop.f32.mrb[0].mxu0
  %643 = vmatprep.mubr.f32.mxu0 0.0
  %644 = vmatmul.mubr.f32.gmra.mrb[0].mxu0 %v560
  %v645 = vpop.f32.mrb[0].mxu0
  %v646 = vadd.f32 %v68, %v645
  %v647 = vpop.f32.mrb[0].mxu0
  %648 = vmatprep.mubr.f32.mxu0 0.0
  %649 = vmatmul.mubr.f32.gmra.mrb[0].mxu0 %v562
  %v650 = vpop.f32.mrb[0].mxu0
  %v651 = vadd.f32 %v69, %v650
  %v652 = vpop.f32.mrb[0].mxu0
  %653 = vmatprep.mubr.f32.mxu0 0.0
  %654 = vmatmul.mubr.f32.gmra.mrb[0].mxu0 %v564
  %v655 = vpop.f32.mrb[0].mxu0
  %v656 = vadd.f32 %v70, %v655
  %v657 = vpop.f32.mrb[0].mxu0
  %658 = vdwg.mxu0
  %v659 = vsel %vm77, %v641, -inf
  %660 = vmax.xlane.f32.xlu0 %v659
  %v661 = vpop.xlane.xlu0 %660
  %v662 = vsel %vm77, %v646, -inf
  %663 = vmax.xlane.f32.xlu0 %v662
  %v664 = vpop.xlane.xlu0 %663
  %v665 = vsel %vm77, %v651, -inf
  %666 = vmax.xlane.f32.xlu0 %v665
  %v667 = vpop.xlane.xlu0 %666
  %v668 = vsel %vm77, %v656, -inf
  %669 = vmax.xlane.f32.xlu0 %v668
  %v670 = vpop.xlane.xlu0 %669
  %v671 = vsub.f32 %v641, %v661
  %v672 = vsub.f32 %v646, %v664
  %v673 = vsub.f32 %v651, %v667
  %v674 = vsub.f32 %v656, %v670
  %v675 = vmul.f32 %v671, 1.442695
  %v676 = vpow.pop %v675
  %v677 = vmul.f32 %v672, 1.442695
  %v678 = vpow.pop %v677
  %v679 = vmul.f32 %v673, 1.442695
  %v680 = vpow.pop %v679
  %v681 = vmul.f32 %v674, 1.442695
  %v682 = vpow.pop %v681
  %v683 = vsel %vm77, %v676, 0.0
  %684 = vadd.xlane.f32.xlu0 %v683
  %v685 = vpop.xlane.xlu0 %684
  %v686 = vsel %vm77, %v678, 0.0
  %687 = vadd.xlane.f32.xlu0 %v686
  %v688 = vpop.xlane.xlu0 %687
  %v689 = vsel %vm77, %v680, 0.0
  %690 = vadd.xlane.f32.xlu0 %v689
  %v691 = vpop.xlane.xlu0 %690
  %v692 = vsel %vm77, %v682, 0.0
  %693 = vadd.xlane.f32.xlu0 %v692
  %v694 = vpop.xlane.xlu0 %693
  %v695 = vrcp.pop %v685
  %v696 = vrcp.pop %v688
  %v697 = vrcp.pop %v691
  %v698 = vrcp.pop %v694
  %v699 = vmul.f32 %v676, %v695
  %v700 = vmul.f32 %v678, %v696
  %v701 = vmul.f32 %v680, %v697
  %v702 = vmul.f32 %v682, %v698
  %s703 = scalar_lea.vmem %s21, 32
  %704 = vst.msk [vmem:[%s703] sm:$0xff] %vm77, %v699
  %705 = vst.msk [vmem:[%s703 + $0x8] sm:$0xff] %vm77, %v700
  %706 = vst.msk [vmem:[%s703 + $0x10] sm:$0xff] %vm77, %v701
  %707 = vst.msk [vmem:[%s703 + $0x18] sm:$0xff] %vm77, %v702
  %708 = vrot.lane.b32.xlu0 %v241, 56
  %v709 = vpop.permute.xlu0 %708
  %710 = vrot.lane.b32.xlu0 %v246, 56
  %v711 = vpop.permute.xlu0 %710
  %712 = vrot.lane.b32.xlu0 %v251, 56
  %v713 = vpop.permute.xlu0 %712
  %714 = vrot.lane.b32.xlu0 %v256, 56
  %v715 = vpop.permute.xlu0 %714
  %v721 = vsel %vm77, %v699, 0
  %v724 = vsel %vm77, %v700, 0
  %v727 = vsel %vm77, %v701, 0
  %v730 = vsel %vm77, %v702, 0
  %732 = vmatprep.subr.mxu0 0.0
  %733 = vmatpush1.msra.mxu0 %v709
  %734 = vmatprep.subr.mxu0 0.0
  %735 = vmatpush1.msra.mxu0 %v711
  %736 = vmatprep.subr.mxu0 0.0
  %737 = vmatpush1.msra.mxu0 %v713
  %738 = vmatprep.subr.mxu0 0.0
  %739 = vmatpush1.msra.mxu0 %v715
  %740 = vmatprep.subr.mxu0 0.0
  %741 = vmatpush1.msra.mxu0 0.0
  %742 = vmatprep.subr.mxu0 0.0
  %743 = vmatpush1.msra.mxu0 0.0
  %744 = vmatprep.subr.mxu0 0.0
  %745 = vmatpush1.msra.mxu0 0.0
  %746 = vmatprep.subr.mxu0 0.0
  %747 = vmatpush1.msra.mxu0 0.0
  %748 = vmatprep.subr.mxu0 0.0
  %749 = vmatpush1.msra.mxu0 0.0
  %750 = vmatprep.subr.mxu0 0.0
  %751 = vmatpush1.msra.mxu0 0.0
  %752 = vmatprep.subr.mxu0 0.0
  %753 = vmatpush1.msra.mxu0 0.0
  %754 = vmatprep.subr.mxu0 0.0
  %755 = vmatpush1.msra.mxu0 0.0
  %756 = vmatprep.subr.mxu0 0.0
  %757 = vmatpush1.msra.mxu0 0.0
  %758 = vmatprep.subr.mxu0 0.0
  %759 = vmatpush1.msra.mxu0 0.0
  %760 = vmatprep.subr.mxu0 0.0
  %761 = vmatpush1.msra.mxu0 0.0
  %762 = vmatprep.subr.mxu0 0.0
  %763 = vmatpush1.msra.mxu0 0.0
  %764 = vmatprep.subr.mxu0 0.0
  %765 = vmatpush1.msra.mxu0 0.0
  %766 = vmatprep.subr.mxu0 0.0
  %767 = vmatpush1.msra.mxu0 0.0
  %768 = vmatprep.subr.mxu0 0.0
  %769 = vmatpush1.msra.mxu0 0.0
  %770 = vmatprep.subr.mxu0 0.0
  %771 = vmatpush1.msra.mxu0 0.0
  %772 = vmatprep.subr.mxu0 0.0
  %773 = vmatpush1.msra.mxu0 0.0
  %774 = vmatprep.subr.mxu0 0.0
  %775 = vmatpush1.msra.mxu0 0.0
  %776 = vmatprep.subr.mxu0 0.0
  %777 = vmatpush1.msra.mxu0 0.0
  %778 = vmatprep.subr.mxu0 0.0
  %779 = vmatpush1.msra.mxu0 0.0
  %780 = vmatprep.subr.mxu0 0.0
  %781 = vmatpush1.msra.mxu0 0.0
  %782 = vmatprep.subr.mxu0 0.0
  %783 = vmatpush1.msra.mxu0 0.0
  %784 = vmatprep.subr.mxu0 0.0
  %785 = vmatpush1.msra.mxu0 0.0
  %786 = vmatprep.subr.mxu0 0.0
  %787 = vmatpush1.msra.mxu0 0.0
  %788 = vmatprep.subr.mxu0 0.0
  %789 = vmatpush1.msra.mxu0 0.0
  %790 = vmatprep.subr.mxu0 0.0
  %791 = vmatpush1.msra.mxu0 0.0
  %792 = vmatprep.subr.mxu0 0.0
  %793 = vmatpush1.msra.mxu0 0.0
  %794 = vmatprep.subr.mxu0 0.0
  %795 = vmatpush1.msra.mxu0 0.0
  %796 = vmatprep.mubr.f32.mxu0 0.0
  %797 = vmatmul.mubr.f32.gmra.mrb[0].mxu0 %v721
  %v798 = vpop.f32.mrb[0].mxu0
  %v799 = vadd.f32 0.0, %v798
  %v800 = vpop.f32.mrb[0].mxu0
  %801 = vmatprep.mubr.f32.mxu0 0.0
  %802 = vmatmul.mubr.f32.gmra.mrb[0].mxu0 %v724
  %v803 = vpop.f32.mrb[0].mxu0
  %v804 = vadd.f32 0.0, %v803
  %v805 = vpop.f32.mrb[0].mxu0
  %806 = vmatprep.mubr.f32.mxu0 0.0
  %807 = vmatmul.mubr.f32.gmra.mrb[0].mxu0 %v727
  %v808 = vpop.f32.mrb[0].mxu0
  %v809 = vadd.f32 0.0, %v808
  %v810 = vpop.f32.mrb[0].mxu0
  %811 = vmatprep.mubr.f32.mxu0 0.0
  %812 = vmatmul.mubr.f32.gmra.mrb[0].mxu0 %v730
  %v813 = vpop.f32.mrb[0].mxu0
  %v814 = vadd.f32 0.0, %v813
  %v815 = vpop.f32.mrb[0].mxu0
  %816 = vdwg.mxu0
  %v818 = vsel %vm279, %v799, 0
  %v821 = vsel %vm279, %v804, 0
  %v824 = vsel %vm279, %v809, 0
  %v827 = vsel %vm279, %v814, 0
  %829 = vmatprep.subr.mxu0 0.0
  %830 = vmatpush1.msra.mxu0 %v260
  %831 = vmatprep.subr.mxu0 0.0
  %832 = vmatpush1.msra.mxu0 0.0
  %833 = vmatprep.subr.mxu0 0.0
  %834 = vmatpush1.msra.mxu0 0.0
  %835 = vmatprep.subr.mxu0 0.0
  %836 = vmatpush1.msra.mxu0 0.0
  %837 = vmatprep.subr.mxu0 0.0
  %838 = vmatpush1.msra.mxu0 0.0
  %839 = vmatprep.subr.mxu0 0.0
  %840 = vmatpush1.msra.mxu0 0.0
  %841 = vmatprep.subr.mxu0 0.0
  %842 = vmatpush1.msra.mxu0 0.0
  %843 = vmatprep.subr.mxu0 0.0
  %844 = vmatpush1.msra.mxu0 0.0
  %845 = vmatprep.subr.mxu0 0.0
  %846 = vmatpush1.msra.mxu0 0.0
  %847 = vmatprep.subr.mxu0 0.0
  %848 = vmatpush1.msra.mxu0 0.0
  %849 = vmatprep.subr.mxu0 0.0
  %850 = vmatpush1.msra.mxu0 0.0
  %851 = vmatprep.subr.mxu0 0.0
  %852 = vmatpush1.msra.mxu0 0.0
  %853 = vmatprep.subr.mxu0 0.0
  %854 = vmatpush1.msra.mxu0 0.0
  %855 = vmatprep.subr.mxu0 0.0
  %856 = vmatpush1.msra.mxu0 0.0
  %857 = vmatprep.subr.mxu0 0.0
  %858 = vmatpush1.msra.mxu0 0.0
  %859 = vmatprep.subr.mxu0 0.0
  %860 = vmatpush1.msra.mxu0 0.0
  %861 = vmatprep.subr.mxu0 0.0
  %862 = vmatpush1.msra.mxu0 0.0
  %863 = vmatprep.subr.mxu0 0.0
  %864 = vmatpush1.msra.mxu0 0.0
  %865 = vmatprep.subr.mxu0 0.0
  %866 = vmatpush1.msra.mxu0 0.0
  %867 = vmatprep.subr.mxu0 0.0
  %868 = vmatpush1.msra.mxu0 0.0
  %869 = vmatprep.subr.mxu0 0.0
  %870 = vmatpush1.msra.mxu0 0.0
  %871 = vmatprep.subr.mxu0 0.0
  %872 = vmatpush1.msra.mxu0 0.0
  %873 = vmatprep.subr.mxu0 0.0
  %874 = vmatpush1.msra.mxu0 0.0
  %875 = vmatprep.subr.mxu0 0.0
  %876 = vmatpush1.msra.mxu0 0.0
  %877 = vmatprep.subr.mxu0 0.0
  %878 = vmatpush1.msra.mxu0 0.0
  %879 = vmatprep.subr.mxu0 0.0
  %880 = vmatpush1.msra.mxu0 0.0
  %881 = vmatprep.subr.mxu0 0.0
  %882 = vmatpush1.msra.mxu0 0.0
  %883 = vmatprep.subr.mxu0 0.0
  %884 = vmatpush1.msra.mxu0 0.0
  %885 = vmatprep.subr.mxu0 0.0
  %886 = vmatpush1.msra.mxu0 0.0
  %887 = vmatprep.subr.mxu0 0.0
  %888 = vmatpush1.msra.mxu0 0.0
  %889 = vmatprep.subr.mxu0 0.0
  %890 = vmatpush1.msra.mxu0 0.0
  %891 = vmatprep.subr.mxu0 0.0
  %892 = vmatpush1.msra.mxu0 0.0
  %893 = vmatprep.mubr.f32.mxu0 0.0
  %894 = vmatmul.mubr.f32.gmra.mrb[0].mxu0 %v818
  %v895 = vpop.f32.mrb[0].mxu0
  %v896 = vadd.f32 0.0, %v895
  %v897 = vpop.f32.mrb[0].mxu0
  %898 = vmatprep.mubr.f32.mxu0 0.0
  %899 = vmatmul.mubr.f32.gmra.mrb[0].mxu0 %v821
  %v900 = vpop.f32.mrb[0].mxu0
  %v901 = vadd.f32 0.0, %v900
  %v902 = vpop.f32.mrb[0].mxu0
  %903 = vmatprep.mubr.f32.mxu0 0.0
  %904 = vmatmul.mubr.f32.gmra.mrb[0].mxu0 %v824
  %v905 = vpop.f32.mrb[0].mxu0
  %v906 = vadd.f32 0.0, %v905
  %v907 = vpop.f32.mrb[0].mxu0
  %908 = vmatprep.mubr.f32.mxu0 0.0
  %909 = vmatmul.mubr.f32.gmra.mrb[0].mxu0 %v827
  %v910 = vpop.f32.mrb[0].mxu0
  %v911 = vadd.f32 0.0, %v910
  %v912 = vpop.f32.mrb[0].mxu0
  %913 = vdwg.mxu0
  %v915 = vsel %vm279, %v524, 0
  %v918 = vsel %vm279, %v529, 0
  %v921 = vsel %vm279, %v534, 0
  %v924 = vsel %vm279, %v539, 0
  %926 = vmatprep.subr.mxu0 0.0
  %927 = vmatpush1.msra.mxu0 %v259
  %928 = vmatprep.subr.mxu0 0.0
  %929 = vmatpush1.msra.mxu0 0.0
  %930 = vmatprep.subr.mxu0 0.0
  %931 = vmatpush1.msra.mxu0 0.0
  %932 = vmatprep.subr.mxu0 0.0
  %933 = vmatpush1.msra.mxu0 0.0
  %934 = vmatprep.subr.mxu0 0.0
  %935 = vmatpush1.msra.mxu0 0.0
  %936 = vmatprep.subr.mxu0 0.0
  %937 = vmatpush1.msra.mxu0 0.0
  %938 = vmatprep.subr.mxu0 0.0
  %939 = vmatpush1.msra.mxu0 0.0
  %940 = vmatprep.subr.mxu0 0.0
  %941 = vmatpush1.msra.mxu0 0.0
  %942 = vmatprep.subr.mxu0 0.0
  %943 = vmatpush1.msra.mxu0 0.0
  %944 = vmatprep.subr.mxu0 0.0
  %945 = vmatpush1.msra.mxu0 0.0
  %946 = vmatprep.subr.mxu0 0.0
  %947 = vmatpush1.msra.mxu0 0.0
  %948 = vmatprep.subr.mxu0 0.0
  %949 = vmatpush1.msra.mxu0 0.0
  %950 = vmatprep.subr.mxu0 0.0
  %951 = vmatpush1.msra.mxu0 0.0
  %952 = vmatprep.subr.mxu0 0.0
  %953 = vmatpush1.msra.mxu0 0.0
  %954 = vmatprep.subr.mxu0 0.0
  %955 = vmatpush1.msra.mxu0 0.0
  %956 = vmatprep.subr.mxu0 0.0
  %957 = vmatpush1.msra.mxu0 0.0
  %958 = vmatprep.subr.mxu0 0.0
  %959 = vmatpush1.msra.mxu0 0.0
  %960 = vmatprep.subr.mxu0 0.0
  %961 = vmatpush1.msra.mxu0 0.0
  %962 = vmatprep.subr.mxu0 0.0
  %963 = vmatpush1.msra.mxu0 0.0
  %964 = vmatprep.subr.mxu0 0.0
  %965 = vmatpush1.msra.mxu0 0.0
  %966 = vmatprep.subr.mxu0 0.0
  %967 = vmatpush1.msra.mxu0 0.0
  %968 = vmatprep.subr.mxu0 0.0
  %969 = vmatpush1.msra.mxu0 0.0
  %970 = vmatprep.subr.mxu0 0.0
  %971 = vmatpush1.msra.mxu0 0.0
  %972 = vmatprep.subr.mxu0 0.0
  %973 = vmatpush1.msra.mxu0 0.0
  %974 = vmatprep.subr.mxu0 0.0
  %975 = vmatpush1.msra.mxu0 0.0
  %976 = vmatprep.subr.mxu0 0.0
  %977 = vmatpush1.msra.mxu0 0.0
  %978 = vmatprep.subr.mxu0 0.0
  %979 = vmatpush1.msra.mxu0 0.0
  %980 = vmatprep.subr.mxu0 0.0
  %981 = vmatpush1.msra.mxu0 0.0
  %982 = vmatprep.subr.mxu0 0.0
  %983 = vmatpush1.msra.mxu0 0.0
  %984 = vmatprep.subr.mxu0 0.0
  %985 = vmatpush1.msra.mxu0 0.0
  %986 = vmatprep.subr.mxu0 0.0
  %987 = vmatpush1.msra.mxu0 0.0
  %988 = vmatprep.subr.mxu0 0.0
  %989 = vmatpush1.msra.mxu0 0.0
  %990 = vmatprep.mubr.f32.mxu0 0.0
  %991 = vmatmul.mubr.f32.gmra.mrb[0].mxu0 %v915
  %v992 = vpop.f32.mrb[0].mxu0
  %v993 = vadd.f32 %v896, %v992
  %v994 = vpop.f32.mrb[0].mxu0
  %995 = vmatprep.mubr.f32.mxu0 0.0
  %996 = vmatmul.mubr.f32.gmra.mrb[0].mxu0 %v918
  %v997 = vpop.f32.mrb[0].mxu0
  %v998 = vadd.f32 %v901, %v997
  %v999 = vpop.f32.mrb[0].mxu0
  %1000 = vmatprep.mubr.f32.mxu0 0.0
  %1001 = vmatmul.mubr.f32.gmra.mrb[0].mxu0 %v921
  %v1002 = vpop.f32.mrb[0].mxu0
  %v1003 = vadd.f32 %v906, %v1002
  %v1004 = vpop.f32.mrb[0].mxu0
  %1005 = vmatprep.mubr.f32.mxu0 0.0
  %1006 = vmatmul.mubr.f32.gmra.mrb[0].mxu0 %v924
  %v1007 = vpop.f32.mrb[0].mxu0
  %v1008 = vadd.f32 %v911, %v1007
  %v1009 = vpop.f32.mrb[0].mxu0
  %1010 = vdwg.mxu0
  %1011 = vrot.lane.b32.xlu0 %v263, 112
  %v1012 = vpop.permute.xlu0 %1011
  %1013 = vrot.lane.b32.xlu0 %v264, 112
  %v1014 = vpop.permute.xlu0 %1013
  %1015 = vrot.lane.b32.xlu0 %v265, 112
  %v1016 = vpop.permute.xlu0 %1015
  %1017 = vrot.lane.b32.xlu0 %v266, 112
  %v1018 = vpop.permute.xlu0 %1017
  %1019 = vrot.lane.b32.xlu0 %v241, 80
  %v1020 = vpop.permute.xlu0 %1019
  %1021 = vrot.lane.b32.xlu0 %v246, 80
  %v1022 = vpop.permute.xlu0 %1021
  %1023 = vrot.lane.b32.xlu0 %v251, 80
  %v1024 = vpop.permute.xlu0 %1023
  %1025 = vrot.lane.b32.xlu0 %v256, 80
  %v1026 = vpop.permute.xlu0 %1025
  %v1027 = vsel %vm279, %v1012, 0
  %v1029 = vsel %vm279, %v1014, 0
  %v1031 = vsel %vm279, %v1016, 0
  %v1033 = vsel %vm279, %v1018, 0
  %v1035 = vsel %vm279, %v1020, 0
  %v1037 = vsel %vm279, %v1022, 0
  %v1039 = vsel %vm279, %v1024, 0
  %v1041 = vsel %vm279, %v1026, 0
  %1043 = vmatprep.subr.mxu0 0.0
  %1044 = vmatpush1.xpose.msra.mxu0 %v1035
  %1045 = vmatprep.subr.mxu0 0.0
  %1046 = vmatpush1.xpose.msra.mxu0 %v1037
  %1047 = vmatprep.subr.mxu0 0.0
  %1048 = vmatpush1.xpose.msra.mxu0 %v1039
  %1049 = vmatprep.subr.mxu0 0.0
  %1050 = vmatpush1.xpose.msra.mxu0 %v1041
  %1051 = vmatprep.subr.mxu0 0.0
  %1052 = vmatpush1.xpose.msra.mxu0 0.0
  %1053 = vmatprep.subr.mxu0 0.0
  %1054 = vmatpush1.xpose.msra.mxu0 0.0
  %1055 = vmatprep.subr.mxu0 0.0
  %1056 = vmatpush1.xpose.msra.mxu0 0.0
  %1057 = vmatprep.subr.mxu0 0.0
  %1058 = vmatpush1.xpose.msra.mxu0 0.0
  %1059 = vmatprep.subr.mxu0 0.0
  %1060 = vmatpush1.xpose.msra.mxu0 0.0
  %1061 = vmatprep.subr.mxu0 0.0
  %1062 = vmatpush1.xpose.msra.mxu0 0.0
  %1063 = vmatprep.subr.mxu0 0.0
  %1064 = vmatpush1.xpose.msra.mxu0 0.0
  %1065 = vmatprep.subr.mxu0 0.0
  %1066 = vmatpush1.xpose.msra.mxu0 0.0
  %1067 = vmatprep.subr.mxu0 0.0
  %1068 = vmatpush1.xpose.msra.mxu0 0.0
  %1069 = vmatprep.subr.mxu0 0.0
  %1070 = vmatpush1.xpose.msra.mxu0 0.0
  %1071 = vmatprep.subr.mxu0 0.0
  %1072 = vmatpush1.xpose.msra.mxu0 0.0
  %1073 = vmatprep.subr.mxu0 0.0
  %1074 = vmatpush1.xpose.msra.mxu0 0.0
  %1075 = vmatprep.subr.mxu0 0.0
  %1076 = vmatpush1.xpose.msra.mxu0 0.0
  %1077 = vmatprep.subr.mxu0 0.0
  %1078 = vmatpush1.xpose.msra.mxu0 0.0
  %1079 = vmatprep.subr.mxu0 0.0
  %1080 = vmatpush1.xpose.msra.mxu0 0.0
  %1081 = vmatprep.subr.mxu0 0.0
  %1082 = vmatpush1.xpose.msra.mxu0 0.0
  %1083 = vmatprep.subr.mxu0 0.0
  %1084 = vmatpush1.xpose.msra.mxu0 0.0
  %1085 = vmatprep.subr.mxu0 0.0
  %1086 = vmatpush1.xpose.msra.mxu0 0.0
  %1087 = vmatprep.subr.mxu0 0.0
  %1088 = vmatpush1.xpose.msra.mxu0 0.0
  %1089 = vmatprep.subr.mxu0 0.0
  %1090 = vmatpush1.xpose.msra.mxu0 0.0
  %1091 = vmatprep.subr.mxu0 0.0
  %1092 = vmatpush1.xpose.msra.mxu0 0.0
  %1093 = vmatprep.subr.mxu0 0.0
  %1094 = vmatpush1.xpose.msra.mxu0 0.0
  %1095 = vmatprep.subr.mxu0 0.0
  %1096 = vmatpush1.xpose.msra.mxu0 0.0
  %1097 = vmatprep.subr.mxu0 0.0
  %1098 = vmatpush1.xpose.msra.mxu0 0.0
  %1099 = vmatprep.subr.mxu0 0.0
  %1100 = vmatpush1.xpose.msra.mxu0 0.0
  %1101 = vmatprep.subr.mxu0 0.0
  %1102 = vmatpush1.xpose.msra.mxu0 0.0
  %1103 = vmatprep.subr.mxu0 0.0
  %1104 = vmatpush1.xpose.msra.mxu0 0.0
  %1105 = vmatprep.subr.mxu0 0.0
  %1106 = vmatpush1.xpose.msra.mxu0 0.0
  %1107 = vmatprep.mubr.f32.mxu0 0.0
  %1108 = vmatmul.mubr.f32.gmra.mrb[0].mxu0 %v1027
  %v1109 = vpop.f32.mrb[0].mxu0
  %v1110 = vadd.f32 %v67, %v1109
  %v1111 = vpop.f32.mrb[0].mxu0
  %1112 = vmatprep.mubr.f32.mxu0 0.0
  %1113 = vmatmul.mubr.f32.gmra.mrb[0].mxu0 %v1029
  %v1114 = vpop.f32.mrb[0].mxu0
  %v1115 = vadd.f32 %v68, %v1114
  %v1116 = vpop.f32.mrb[0].mxu0
  %1117 = vmatprep.mubr.f32.mxu0 0.0
  %1118 = vmatmul.mubr.f32.gmra.mrb[0].mxu0 %v1031
  %v1119 = vpop.f32.mrb[0].mxu0
  %v1120 = vadd.f32 %v69, %v1119
  %v1121 = vpop.f32.mrb[0].mxu0
  %1122 = vmatprep.mubr.f32.mxu0 0.0
  %1123 = vmatmul.mubr.f32.gmra.mrb[0].mxu0 %v1033
  %v1124 = vpop.f32.mrb[0].mxu0
  %v1125 = vadd.f32 %v70, %v1124
  %v1126 = vpop.f32.mrb[0].mxu0
  %1127 = vdwg.mxu0
  %v1128 = vsel %vm77, %v1110, -inf
  %1129 = vmax.xlane.f32.xlu0 %v1128
  %v1130 = vpop.xlane.xlu0 %1129
  %v1131 = vsel %vm77, %v1115, -inf
  %1132 = vmax.xlane.f32.xlu0 %v1131
  %v1133 = vpop.xlane.xlu0 %1132
  %v1134 = vsel %vm77, %v1120, -inf
  %1135 = vmax.xlane.f32.xlu0 %v1134
  %v1136 = vpop.xlane.xlu0 %1135
  %v1137 = vsel %vm77, %v1125, -inf
  %1138 = vmax.xlane.f32.xlu0 %v1137
  %v1139 = vpop.xlane.xlu0 %1138
  %v1140 = vsub.f32 %v1110, %v1130
  %v1141 = vsub.f32 %v1115, %v1133
  %v1142 = vsub.f32 %v1120, %v1136
  %v1143 = vsub.f32 %v1125, %v1139
  %v1144 = vmul.f32 %v1140, 1.442695
  %v1145 = vpow.pop %v1144
  %v1146 = vmul.f32 %v1141, 1.442695
  %v1147 = vpow.pop %v1146
  %v1148 = vmul.f32 %v1142, 1.442695
  %v1149 = vpow.pop %v1148
  %v1150 = vmul.f32 %v1143, 1.442695
  %v1151 = vpow.pop %v1150
  %v1152 = vsel %vm77, %v1145, 0.0
  %1153 = vadd.xlane.f32.xlu0 %v1152
  %v1154 = vpop.xlane.xlu0 %1153
  %v1155 = vsel %vm77, %v1147, 0.0
  %1156 = vadd.xlane.f32.xlu0 %v1155
  %v1157 = vpop.xlane.xlu0 %1156
  %v1158 = vsel %vm77, %v1149, 0.0
  %1159 = vadd.xlane.f32.xlu0 %v1158
  %v1160 = vpop.xlane.xlu0 %1159
  %v1161 = vsel %vm77, %v1151, 0.0
  %1162 = vadd.xlane.f32.xlu0 %v1161
  %v1163 = vpop.xlane.xlu0 %1162
  %v1164 = vrcp.pop %v1154
  %v1165 = vrcp.pop %v1157
  %v1166 = vrcp.pop %v1160
  %v1167 = vrcp.pop %v1163
  %v1168 = vmul.f32 %v1145, %v1164
  %v1169 = vmul.f32 %v1147, %v1165
  %v1170 = vmul.f32 %v1149, %v1166
  %v1171 = vmul.f32 %v1151, %v1167
  %s1172 = scalar_lea.vmem %s21, 64
  %1173 = vst.msk [vmem:[%s1172] sm:$0xff] %vm77, %v1168
  %1174 = vst.msk [vmem:[%s1172 + $0x8] sm:$0xff] %vm77, %v1169
  %1175 = vst.msk [vmem:[%s1172 + $0x10] sm:$0xff] %vm77, %v1170
  %1176 = vst.msk [vmem:[%s1172 + $0x18] sm:$0xff] %vm77, %v1171
  %1177 = vrot.lane.b32.xlu0 %v241, 48
  %v1178 = vpop.permute.xlu0 %1177
  %1179 = vrot.lane.b32.xlu0 %v246, 48
  %v1180 = vpop.permute.xlu0 %1179
  %1181 = vrot.lane.b32.xlu0 %v251, 48
  %v1182 = vpop.permute.xlu0 %1181
  %1183 = vrot.lane.b32.xlu0 %v256, 48
  %v1184 = vpop.permute.xlu0 %1183
  %v1190 = vsel %vm77, %v1168, 0
  %v1193 = vsel %vm77, %v1169, 0
  %v1196 = vsel %vm77, %v1170, 0
  %v1199 = vsel %vm77, %v1171, 0
  %1201 = vmatprep.subr.mxu0 0.0
  %1202 = vmatpush1.msra.mxu0 %v1178
  %1203 = vmatprep.subr.mxu0 0.0
  %1204 = vmatpush1.msra.mxu0 %v1180
  %1205 = vmatprep.subr.mxu0 0.0
  %1206 = vmatpush1.msra.mxu0 %v1182
  %1207 = vmatprep.subr.mxu0 0.0
  %1208 = vmatpush1.msra.mxu0 %v1184
  %1209 = vmatprep.subr.mxu0 0.0
  %1210 = vmatpush1.msra.mxu0 0.0
  %1211 = vmatprep.subr.mxu0 0.0
  %1212 = vmatpush1.msra.mxu0 0.0
  %1213 = vmatprep.subr.mxu0 0.0
  %1214 = vmatpush1.msra.mxu0 0.0
  %1215 = vmatprep.subr.mxu0 0.0
  %1216 = vmatpush1.msra.mxu0 0.0
  %1217 = vmatprep.subr.mxu0 0.0
  %1218 = vmatpush1.msra.mxu0 0.0
  %1219 = vmatprep.subr.mxu0 0.0
  %1220 = vmatpush1.msra.mxu0 0.0
  %1221 = vmatprep.subr.mxu0 0.0
  %1222 = vmatpush1.msra.mxu0 0.0
  %1223 = vmatprep.subr.mxu0 0.0
  %1224 = vmatpush1.msra.mxu0 0.0
  %1225 = vmatprep.subr.mxu0 0.0
  %1226 = vmatpush1.msra.mxu0 0.0
  %1227 = vmatprep.subr.mxu0 0.0
  %1228 = vmatpush1.msra.mxu0 0.0
  %1229 = vmatprep.subr.mxu0 0.0
  %1230 = vmatpush1.msra.mxu0 0.0
  %1231 = vmatprep.subr.mxu0 0.0
  %1232 = vmatpush1.msra.mxu0 0.0
  %1233 = vmatprep.subr.mxu0 0.0
  %1234 = vmatpush1.msra.mxu0 0.0
  %1235 = vmatprep.subr.mxu0 0.0
  %1236 = vmatpush1.msra.mxu0 0.0
  %1237 = vmatprep.subr.mxu0 0.0
  %1238 = vmatpush1.msra.mxu0 0.0
  %1239 = vmatprep.subr.mxu0 0.0
  %1240 = vmatpush1.msra.mxu0 0.0
  %1241 = vmatprep.subr.mxu0 0.0
  %1242 = vmatpush1.msra.mxu0 0.0
  %1243 = vmatprep.subr.mxu0 0.0
  %1244 = vmatpush1.msra.mxu0 0.0
  %1245 = vmatprep.subr.mxu0 0.0
  %1246 = vmatpush1.msra.mxu0 0.0
  %1247 = vmatprep.subr.mxu0 0.0
  %1248 = vmatpush1.msra.mxu0 0.0
  %1249 = vmatprep.subr.mxu0 0.0
  %1250 = vmatpush1.msra.mxu0 0.0
  %1251 = vmatprep.subr.mxu0 0.0
  %1252 = vmatpush1.msra.mxu0 0.0
  %1253 = vmatprep.subr.mxu0 0.0
  %1254 = vmatpush1.msra.mxu0 0.0
  %1255 = vmatprep.subr.mxu0 0.0
  %1256 = vmatpush1.msra.mxu0 0.0
  %1257 = vmatprep.subr.mxu0 0.0
  %1258 = vmatpush1.msra.mxu0 0.0
  %1259 = vmatprep.subr.mxu0 0.0
  %1260 = vmatpush1.msra.mxu0 0.0
  %1261 = vmatprep.subr.mxu0 0.0
  %1262 = vmatpush1.msra.mxu0 0.0
  %1263 = vmatprep.subr.mxu0 0.0
  %1264 = vmatpush1.msra.mxu0 0.0
  %1265 = vmatprep.mubr.f32.mxu0 0.0
  %1266 = vmatmul.mubr.f32.gmra.mrb[0].mxu0 %v1190
  %v1267 = vpop.f32.mrb[0].mxu0
  %v1268 = vadd.f32 0.0, %v1267
  %v1269 = vpop.f32.mrb[0].mxu0
  %1270 = vmatprep.mubr.f32.mxu0 0.0
  %1271 = vmatmul.mubr.f32.gmra.mrb[0].mxu0 %v1193
  %v1272 = vpop.f32.mrb[0].mxu0
  %v1273 = vadd.f32 0.0, %v1272
  %v1274 = vpop.f32.mrb[0].mxu0
  %1275 = vmatprep.mubr.f32.mxu0 0.0
  %1276 = vmatmul.mubr.f32.gmra.mrb[0].mxu0 %v1196
  %v1277 = vpop.f32.mrb[0].mxu0
  %v1278 = vadd.f32 0.0, %v1277
  %v1279 = vpop.f32.mrb[0].mxu0
  %1280 = vmatprep.mubr.f32.mxu0 0.0
  %1281 = vmatmul.mubr.f32.gmra.mrb[0].mxu0 %v1199
  %v1282 = vpop.f32.mrb[0].mxu0
  %v1283 = vadd.f32 0.0, %v1282
  %v1284 = vpop.f32.mrb[0].mxu0
  %1285 = vdwg.mxu0
  %v1287 = vsel %vm279, %v1268, 0
  %v1290 = vsel %vm279, %v1273, 0
  %v1293 = vsel %vm279, %v1278, 0
  %v1296 = vsel %vm279, %v1283, 0
  %1298 = vmatprep.subr.mxu0 0.0
  %1299 = vmatpush1.msra.mxu0 %v261
  %1300 = vmatprep.subr.mxu0 0.0
  %1301 = vmatpush1.msra.mxu0 0.0
  %1302 = vmatprep.subr.mxu0 0.0
  %1303 = vmatpush1.msra.mxu0 0.0
  %1304 = vmatprep.subr.mxu0 0.0
  %1305 = vmatpush1.msra.mxu0 0.0
  %1306 = vmatprep.subr.mxu0 0.0
  %1307 = vmatpush1.msra.mxu0 0.0
  %1308 = vmatprep.subr.mxu0 0.0
  %1309 = vmatpush1.msra.mxu0 0.0
  %1310 = vmatprep.subr.mxu0 0.0
  %1311 = vmatpush1.msra.mxu0 0.0
  %1312 = vmatprep.subr.mxu0 0.0
  %1313 = vmatpush1.msra.mxu0 0.0
  %1314 = vmatprep.subr.mxu0 0.0
  %1315 = vmatpush1.msra.mxu0 0.0
  %1316 = vmatprep.subr.mxu0 0.0
  %1317 = vmatpush1.msra.mxu0 0.0
  %1318 = vmatprep.subr.mxu0 0.0
  %1319 = vmatpush1.msra.mxu0 0.0
  %1320 = vmatprep.subr.mxu0 0.0
  %1321 = vmatpush1.msra.mxu0 0.0
  %1322 = vmatprep.subr.mxu0 0.0
  %1323 = vmatpush1.msra.mxu0 0.0
  %1324 = vmatprep.subr.mxu0 0.0
  %1325 = vmatpush1.msra.mxu0 0.0
  %1326 = vmatprep.subr.mxu0 0.0
  %1327 = vmatpush1.msra.mxu0 0.0
  %1328 = vmatprep.subr.mxu0 0.0
  %1329 = vmatpush1.msra.mxu0 0.0
  %1330 = vmatprep.subr.mxu0 0.0
  %1331 = vmatpush1.msra.mxu0 0.0
  %1332 = vmatprep.subr.mxu0 0.0
  %1333 = vmatpush1.msra.mxu0 0.0
  %1334 = vmatprep.subr.mxu0 0.0
  %1335 = vmatpush1.msra.mxu0 0.0
  %1336 = vmatprep.subr.mxu0 0.0
  %1337 = vmatpush1.msra.mxu0 0.0
  %1338 = vmatprep.subr.mxu0 0.0
  %1339 = vmatpush1.msra.mxu0 0.0
  %1340 = vmatprep.subr.mxu0 0.0
  %1341 = vmatpush1.msra.mxu0 0.0
  %1342 = vmatprep.subr.mxu0 0.0
  %1343 = vmatpush1.msra.mxu0 0.0
  %1344 = vmatprep.subr.mxu0 0.0
  %1345 = vmatpush1.msra.mxu0 0.0
  %1346 = vmatprep.subr.mxu0 0.0
  %1347 = vmatpush1.msra.mxu0 0.0
  %1348 = vmatprep.subr.mxu0 0.0
  %1349 = vmatpush1.msra.mxu0 0.0
  %1350 = vmatprep.subr.mxu0 0.0
  %1351 = vmatpush1.msra.mxu0 0.0
  %1352 = vmatprep.subr.mxu0 0.0
  %1353 = vmatpush1.msra.mxu0 0.0
  %1354 = vmatprep.subr.mxu0 0.0
  %1355 = vmatpush1.msra.mxu0 0.0
  %1356 = vmatprep.subr.mxu0 0.0
  %1357 = vmatpush1.msra.mxu0 0.0
  %1358 = vmatprep.subr.mxu0 0.0
  %1359 = vmatpush1.msra.mxu0 0.0
  %1360 = vmatprep.subr.mxu0 0.0
  %1361 = vmatpush1.msra.mxu0 0.0
  %1362 = vmatprep.mubr.f32.mxu0 0.0
  %1363 = vmatmul.mubr.f32.gmra.mrb[0].mxu0 %v1287
  %v1364 = vpop.f32.mrb[0].mxu0
  %v1365 = vadd.f32 0.0, %v1364
  %v1366 = vpop.f32.mrb[0].mxu0
  %1367 = vmatprep.mubr.f32.mxu0 0.0
  %1368 = vmatmul.mubr.f32.gmra.mrb[0].mxu0 %v1290
  %v1369 = vpop.f32.mrb[0].mxu0
  %v1370 = vadd.f32 0.0, %v1369
  %v1371 = vpop.f32.mrb[0].mxu0
  %1372 = vmatprep.mubr.f32.mxu0 0.0
  %1373 = vmatmul.mubr.f32.gmra.mrb[0].mxu0 %v1293
  %v1374 = vpop.f32.mrb[0].mxu0
  %v1375 = vadd.f32 0.0, %v1374
  %v1376 = vpop.f32.mrb[0].mxu0
  %1377 = vmatprep.mubr.f32.mxu0 0.0
  %1378 = vmatmul.mubr.f32.gmra.mrb[0].mxu0 %v1296
  %v1379 = vpop.f32.mrb[0].mxu0
  %v1380 = vadd.f32 0.0, %v1379
  %v1381 = vpop.f32.mrb[0].mxu0
  %1382 = vdwg.mxu0
  %v1383 = vadd.f32 %v993, %v1365
  %v1384 = vadd.f32 %v998, %v1370
  %v1385 = vadd.f32 %v1003, %v1375
  %v1386 = vadd.f32 %v1008, %v1380
  %1387 = vrot.lane.b32.xlu0 %v263, 104
  %v1388 = vpop.permute.xlu0 %1387
  %1389 = vrot.lane.b32.xlu0 %v264, 104
  %v1390 = vpop.permute.xlu0 %1389
  %1391 = vrot.lane.b32.xlu0 %v265, 104
  %v1392 = vpop.permute.xlu0 %1391
  %1393 = vrot.lane.b32.xlu0 %v266, 104
  %v1394 = vpop.permute.xlu0 %1393
  %1395 = vrot.lane.b32.xlu0 %v241, 72
  %v1396 = vpop.permute.xlu0 %1395
  %1397 = vrot.lane.b32.xlu0 %v246, 72
  %v1398 = vpop.permute.xlu0 %1397
  %1399 = vrot.lane.b32.xlu0 %v251, 72
  %v1400 = vpop.permute.xlu0 %1399
  %1401 = vrot.lane.b32.xlu0 %v256, 72
  %v1402 = vpop.permute.xlu0 %1401
  %v1403 = vsel %vm279, %v1388, 0
  %v1405 = vsel %vm279, %v1390, 0
  %v1407 = vsel %vm279, %v1392, 0
  %v1409 = vsel %vm279, %v1394, 0
  %v1411 = vsel %vm279, %v1396, 0
  %v1413 = vsel %vm279, %v1398, 0
  %v1415 = vsel %vm279, %v1400, 0
  %v1417 = vsel %vm279, %v1402, 0
  %1419 = vmatprep.subr.mxu0 0.0
  %1420 = vmatpush1.xpose.msra.mxu0 %v1411
  %1421 = vmatprep.subr.mxu0 0.0
  %1422 = vmatpush1.xpose.msra.mxu0 %v1413
  %1423 = vmatprep.subr.mxu0 0.0
  %1424 = vmatpush1.xpose.msra.mxu0 %v1415
  %1425 = vmatprep.subr.mxu0 0.0
  %1426 = vmatpush1.xpose.msra.mxu0 %v1417
  %1427 = vmatprep.subr.mxu0 0.0
  %1428 = vmatpush1.xpose.msra.mxu0 0.0
  %1429 = vmatprep.subr.mxu0 0.0
  %1430 = vmatpush1.xpose.msra.mxu0 0.0
  %1431 = vmatprep.subr.mxu0 0.0
  %1432 = vmatpush1.xpose.msra.mxu0 0.0
  %1433 = vmatprep.subr.mxu0 0.0
  %1434 = vmatpush1.xpose.msra.mxu0 0.0
  %1435 = vmatprep.subr.mxu0 0.0
  %1436 = vmatpush1.xpose.msra.mxu0 0.0
  %1437 = vmatprep.subr.mxu0 0.0
  %1438 = vmatpush1.xpose.msra.mxu0 0.0
  %1439 = vmatprep.subr.mxu0 0.0
  %1440 = vmatpush1.xpose.msra.mxu0 0.0
  %1441 = vmatprep.subr.mxu0 0.0
  %1442 = vmatpush1.xpose.msra.mxu0 0.0
  %1443 = vmatprep.subr.mxu0 0.0
  %1444 = vmatpush1.xpose.msra.mxu0 0.0
  %1445 = vmatprep.subr.mxu0 0.0
  %1446 = vmatpush1.xpose.msra.mxu0 0.0
  %1447 = vmatprep.subr.mxu0 0.0
  %1448 = vmatpush1.xpose.msra.mxu0 0.0
  %1449 = vmatprep.subr.mxu0 0.0
  %1450 = vmatpush1.xpose.msra.mxu0 0.0
  %1451 = vmatprep.subr.mxu0 0.0
  %1452 = vmatpush1.xpose.msra.mxu0 0.0
  %1453 = vmatprep.subr.mxu0 0.0
  %1454 = vmatpush1.xpose.msra.mxu0 0.0
  %1455 = vmatprep.subr.mxu0 0.0
  %1456 = vmatpush1.xpose.msra.mxu0 0.0
  %1457 = vmatprep.subr.mxu0 0.0
  %1458 = vmatpush1.xpose.msra.mxu0 0.0
  %1459 = vmatprep.subr.mxu0 0.0
  %1460 = vmatpush1.xpose.msra.mxu0 0.0
  %1461 = vmatprep.subr.mxu0 0.0
  %1462 = vmatpush1.xpose.msra.mxu0 0.0
  %1463 = vmatprep.subr.mxu0 0.0
  %1464 = vmatpush1.xpose.msra.mxu0 0.0
  %1465 = vmatprep.subr.mxu0 0.0
  %1466 = vmatpush1.xpose.msra.mxu0 0.0
  %1467 = vmatprep.subr.mxu0 0.0
  %1468 = vmatpush1.xpose.msra.mxu0 0.0
  %1469 = vmatprep.subr.mxu0 0.0
  %1470 = vmatpush1.xpose.msra.mxu0 0.0
  %1471 = vmatprep.subr.mxu0 0.0
  %1472 = vmatpush1.xpose.msra.mxu0 0.0
  %1473 = vmatprep.subr.mxu0 0.0
  %1474 = vmatpush1.xpose.msra.mxu0 0.0
  %1475 = vmatprep.subr.mxu0 0.0
  %1476 = vmatpush1.xpose.msra.mxu0 0.0
  %1477 = vmatprep.subr.mxu0 0.0
  %1478 = vmatpush1.xpose.msra.mxu0 0.0
  %1479 = vmatprep.subr.mxu0 0.0
  %1480 = vmatpush1.xpose.msra.mxu0 0.0
  %1481 = vmatprep.subr.mxu0 0.0
  %1482 = vmatpush1.xpose.msra.mxu0 0.0
  %1483 = vmatprep.mubr.f32.mxu0 0.0
  %1484 = vmatmul.mubr.f32.gmra.mrb[0].mxu0 %v1403
  %v1485 = vpop.f32.mrb[0].mxu0
  %v1486 = vadd.f32 %v67, %v1485
  %v1487 = vpop.f32.mrb[0].mxu0
  %1488 = vmatprep.mubr.f32.mxu0 0.0
  %1489 = vmatmul.mubr.f32.gmra.mrb[0].mxu0 %v1405
  %v1490 = vpop.f32.mrb[0].mxu0
  %v1491 = vadd.f32 %v68, %v1490
  %v1492 = vpop.f32.mrb[0].mxu0
  %1493 = vmatprep.mubr.f32.mxu0 0.0
  %1494 = vmatmul.mubr.f32.gmra.mrb[0].mxu0 %v1407
  %v1495 = vpop.f32.mrb[0].mxu0
  %v1496 = vadd.f32 %v69, %v1495
  %v1497 = vpop.f32.mrb[0].mxu0
  %1498 = vmatprep.mubr.f32.mxu0 0.0
  %1499 = vmatmul.mubr.f32.gmra.mrb[0].mxu0 %v1409
  %v1500 = vpop.f32.mrb[0].mxu0
  %v1501 = vadd.f32 %v70, %v1500
  %v1502 = vpop.f32.mrb[0].mxu0
  %1503 = vdwg.mxu0
  %v1504 = vsel %vm77, %v1486, -inf
  %1505 = vmax.xlane.f32.xlu0 %v1504
  %v1506 = vpop.xlane.xlu0 %1505
  %v1507 = vsel %vm77, %v1491, -inf
  %1508 = vmax.xlane.f32.xlu0 %v1507
  %v1509 = vpop.xlane.xlu0 %1508
  %v1510 = vsel %vm77, %v1496, -inf
  %1511 = vmax.xlane.f32.xlu0 %v1510
  %v1512 = vpop.xlane.xlu0 %1511
  %v1513 = vsel %vm77, %v1501, -inf
  %1514 = vmax.xlane.f32.xlu0 %v1513
  %v1515 = vpop.xlane.xlu0 %1514
  %v1516 = vsub.f32 %v1486, %v1506
  %v1517 = vsub.f32 %v1491, %v1509
  %v1518 = vsub.f32 %v1496, %v1512
  %v1519 = vsub.f32 %v1501, %v1515
  %v1520 = vmul.f32 %v1516, 1.442695
  %v1521 = vpow.pop %v1520
  %v1522 = vmul.f32 %v1517, 1.442695
  %v1523 = vpow.pop %v1522
  %v1524 = vmul.f32 %v1518, 1.442695
  %v1525 = vpow.pop %v1524
  %v1526 = vmul.f32 %v1519, 1.442695
  %v1527 = vpow.pop %v1526
  %v1528 = vsel %vm77, %v1521, 0.0
  %1529 = vadd.xlane.f32.xlu0 %v1528
  %v1530 = vpop.xlane.xlu0 %1529
  %v1531 = vsel %vm77, %v1523, 0.0
  %1532 = vadd.xlane.f32.xlu0 %v1531
  %v1533 = vpop.xlane.xlu0 %1532
  %v1534 = vsel %vm77, %v1525, 0.0
  %1535 = vadd.xlane.f32.xlu0 %v1534
  %v1536 = vpop.xlane.xlu0 %1535
  %v1537 = vsel %vm77, %v1527, 0.0
  %1538 = vadd.xlane.f32.xlu0 %v1537
  %v1539 = vpop.xlane.xlu0 %1538
  %v1540 = vrcp.pop %v1530
  %v1541 = vrcp.pop %v1533
  %v1542 = vrcp.pop %v1536
  %v1543 = vrcp.pop %v1539
  %v1544 = vmul.f32 %v1521, %v1540
  %v1545 = vmul.f32 %v1523, %v1541
  %v1546 = vmul.f32 %v1525, %v1542
  %v1547 = vmul.f32 %v1527, %v1543
  %s1548 = scalar_lea.vmem %s21, 96
  %1549 = vst.msk [vmem:[%s1548] sm:$0xff] %vm77, %v1544
  %1550 = vst.msk [vmem:[%s1548 + $0x8] sm:$0xff] %vm77, %v1545
  %1551 = vst.msk [vmem:[%s1548 + $0x10] sm:$0xff] %vm77, %v1546
  %1552 = vst.msk [vmem:[%s1548 + $0x18] sm:$0xff] %vm77, %v1547
  %1553 = vrot.lane.b32.xlu0 %v241, 40
  %v1554 = vpop.permute.xlu0 %1553
  %1555 = vrot.lane.b32.xlu0 %v246, 40
  %v1556 = vpop.permute.xlu0 %1555
  %1557 = vrot.lane.b32.xlu0 %v251, 40
  %v1558 = vpop.permute.xlu0 %1557
  %1559 = vrot.lane.b32.xlu0 %v256, 40
  %v1560 = vpop.permute.xlu0 %1559
  %v1566 = vsel %vm77, %v1544, 0
  %v1569 = vsel %vm77, %v1545, 0
  %v1572 = vsel %vm77, %v1546, 0
  %v1575 = vsel %vm77, %v1547, 0
  %1577 = vmatprep.subr.mxu0 0.0
  %1578 = vmatpush1.msra.mxu0 %v1554
  %1579 = vmatprep.subr.mxu0 0.0
  %1580 = vmatpush1.msra.mxu0 %v1556
  %1581 = vmatprep.subr.mxu0 0.0
  %1582 = vmatpush1.msra.mxu0 %v1558
  %1583 = vmatprep.subr.mxu0 0.0
  %1584 = vmatpush1.msra.mxu0 %v1560
  %1585 = vmatprep.subr.mxu0 0.0
  %1586 = vmatpush1.msra.mxu0 0.0
  %1587 = vmatprep.subr.mxu0 0.0
  %1588 = vmatpush1.msra.mxu0 0.0
  %1589 = vmatprep.subr.mxu0 0.0
  %1590 = vmatpush1.msra.mxu0 0.0
  %1591 = vmatprep.subr.mxu0 0.0
  %1592 = vmatpush1.msra.mxu0 0.0
  %1593 = vmatprep.subr.mxu0 0.0
  %1594 = vmatpush1.msra.mxu0 0.0
  %1595 = vmatprep.subr.mxu0 0.0
  %1596 = vmatpush1.msra.mxu0 0.0
  %1597 = vmatprep.subr.mxu0 0.0
  %1598 = vmatpush1.msra.mxu0 0.0
  %1599 = vmatprep.subr.mxu0 0.0
  %1600 = vmatpush1.msra.mxu0 0.0
  %1601 = vmatprep.subr.mxu0 0.0
  %1602 = vmatpush1.msra.mxu0 0.0
  %1603 = vmatprep.subr.mxu0 0.0
  %1604 = vmatpush1.msra.mxu0 0.0
  %1605 = vmatprep.subr.mxu0 0.0
  %1606 = vmatpush1.msra.mxu0 0.0
  %1607 = vmatprep.subr.mxu0 0.0
  %1608 = vmatpush1.msra.mxu0 0.0
  %1609 = vmatprep.subr.mxu0 0.0
  %1610 = vmatpush1.msra.mxu0 0.0
  %1611 = vmatprep.subr.mxu0 0.0
  %1612 = vmatpush1.msra.mxu0 0.0
  %1613 = vmatprep.subr.mxu0 0.0
  %1614 = vmatpush1.msra.mxu0 0.0
  %1615 = vmatprep.subr.mxu0 0.0
  %1616 = vmatpush1.msra.mxu0 0.0
  %1617 = vmatprep.subr.mxu0 0.0
  %1618 = vmatpush1.msra.mxu0 0.0
  %1619 = vmatprep.subr.mxu0 0.0
  %1620 = vmatpush1.msra.mxu0 0.0
  %1621 = vmatprep.subr.mxu0 0.0
  %1622 = vmatpush1.msra.mxu0 0.0
  %1623 = vmatprep.subr.mxu0 0.0
  %1624 = vmatpush1.msra.mxu0 0.0
  %1625 = vmatprep.subr.mxu0 0.0
  %1626 = vmatpush1.msra.mxu0 0.0
  %1627 = vmatprep.subr.mxu0 0.0
  %1628 = vmatpush1.msra.mxu0 0.0
  %1629 = vmatprep.subr.mxu0 0.0
  %1630 = vmatpush1.msra.mxu0 0.0
  %1631 = vmatprep.subr.mxu0 0.0
  %1632 = vmatpush1.msra.mxu0 0.0
  %1633 = vmatprep.subr.mxu0 0.0
  %1634 = vmatpush1.msra.mxu0 0.0
  %1635 = vmatprep.subr.mxu0 0.0
  %1636 = vmatpush1.msra.mxu0 0.0
  %1637 = vmatprep.subr.mxu0 0.0
  %1638 = vmatpush1.msra.mxu0 0.0
  %1639 = vmatprep.subr.mxu0 0.0
  %1640 = vmatpush1.msra.mxu0 0.0
  %1641 = vmatprep.mubr.f32.mxu0 0.0
  %1642 = vmatmul.mubr.f32.gmra.mrb[0].mxu0 %v1566
  %v1643 = vpop.f32.mrb[0].mxu0
  %v1644 = vadd.f32 0.0, %v1643
  %v1645 = vpop.f32.mrb[0].mxu0
  %1646 = vmatprep.mubr.f32.mxu0 0.0
  %1647 = vmatmul.mubr.f32.gmra.mrb[0].mxu0 %v1569
  %v1648 = vpop.f32.mrb[0].mxu0
  %v1649 = vadd.f32 0.0, %v1648
  %v1650 = vpop.f32.mrb[0].mxu0
  %1651 = vmatprep.mubr.f32.mxu0 0.0
  %1652 = vmatmul.mubr.f32.gmra.mrb[0].mxu0 %v1572
  %v1653 = vpop.f32.mrb[0].mxu0
  %v1654 = vadd.f32 0.0, %v1653
  %v1655 = vpop.f32.mrb[0].mxu0
  %1656 = vmatprep.mubr.f32.mxu0 0.0
  %1657 = vmatmul.mubr.f32.gmra.mrb[0].mxu0 %v1575
  %v1658 = vpop.f32.mrb[0].mxu0
  %v1659 = vadd.f32 0.0, %v1658
  %v1660 = vpop.f32.mrb[0].mxu0
  %1661 = vdwg.mxu0
  %v1663 = vsel %vm279, %v1644, 0
  %v1666 = vsel %vm279, %v1649, 0
  %v1669 = vsel %vm279, %v1654, 0
  %v1672 = vsel %vm279, %v1659, 0
  %1674 = vmatprep.subr.mxu0 0.0
  %1675 = vmatpush1.msra.mxu0 %v262
  %1676 = vmatprep.subr.mxu0 0.0
  %1677 = vmatpush1.msra.mxu0 0.0
  %1678 = vmatprep.subr.mxu0 0.0
  %1679 = vmatpush1.msra.mxu0 0.0
  %1680 = vmatprep.subr.mxu0 0.0
  %1681 = vmatpush1.msra.mxu0 0.0
  %1682 = vmatprep.subr.mxu0 0.0
  %1683 = vmatpush1.msra.mxu0 0.0
  %1684 = vmatprep.subr.mxu0 0.0
  %1685 = vmatpush1.msra.mxu0 0.0
  %1686 = vmatprep.subr.mxu0 0.0
  %1687 = vmatpush1.msra.mxu0 0.0
  %1688 = vmatprep.subr.mxu0 0.0
  %1689 = vmatpush1.msra.mxu0 0.0
  %1690 = vmatprep.subr.mxu0 0.0
  %1691 = vmatpush1.msra.mxu0 0.0
  %1692 = vmatprep.subr.mxu0 0.0
  %1693 = vmatpush1.msra.mxu0 0.0
  %1694 = vmatprep.subr.mxu0 0.0
  %1695 = vmatpush1.msra.mxu0 0.0
  %1696 = vmatprep.subr.mxu0 0.0
  %1697 = vmatpush1.msra.mxu0 0.0
  %1698 = vmatprep.subr.mxu0 0.0
  %1699 = vmatpush1.msra.mxu0 0.0
  %1700 = vmatprep.subr.mxu0 0.0
  %1701 = vmatpush1.msra.mxu0 0.0
  %1702 = vmatprep.subr.mxu0 0.0
  %1703 = vmatpush1.msra.mxu0 0.0
  %1704 = vmatprep.subr.mxu0 0.0
  %1705 = vmatpush1.msra.mxu0 0.0
  %1706 = vmatprep.subr.mxu0 0.0
  %1707 = vmatpush1.msra.mxu0 0.0
  %1708 = vmatprep.subr.mxu0 0.0
  %1709 = vmatpush1.msra.mxu0 0.0
  %1710 = vmatprep.subr.mxu0 0.0
  %1711 = vmatpush1.msra.mxu0 0.0
  %1712 = vmatprep.subr.mxu0 0.0
  %1713 = vmatpush1.msra.mxu0 0.0
  %1714 = vmatprep.subr.mxu0 0.0
  %1715 = vmatpush1.msra.mxu0 0.0
  %1716 = vmatprep.subr.mxu0 0.0
  %1717 = vmatpush1.msra.mxu0 0.0
  %1718 = vmatprep.subr.mxu0 0.0
  %1719 = vmatpush1.msra.mxu0 0.0
  %1720 = vmatprep.subr.mxu0 0.0
  %1721 = vmatpush1.msra.mxu0 0.0
  %1722 = vmatprep.subr.mxu0 0.0
  %1723 = vmatpush1.msra.mxu0 0.0
  %1724 = vmatprep.subr.mxu0 0.0
  %1725 = vmatpush1.msra.mxu0 0.0
  %1726 = vmatprep.subr.mxu0 0.0
  %1727 = vmatpush1.msra.mxu0 0.0
  %1728 = vmatprep.subr.mxu0 0.0
  %1729 = vmatpush1.msra.mxu0 0.0
  %1730 = vmatprep.subr.mxu0 0.0
  %1731 = vmatpush1.msra.mxu0 0.0
  %1732 = vmatprep.subr.mxu0 0.0
  %1733 = vmatpush1.msra.mxu0 0.0
  %1734 = vmatprep.subr.mxu0 0.0
  %1735 = vmatpush1.msra.mxu0 0.0
  %1736 = vmatprep.subr.mxu0 0.0
  %1737 = vmatpush1.msra.mxu0 0.0
  %1738 = vmatprep.mubr.f32.mxu0 0.0
  %1739 = vmatmul.mubr.f32.gmra.mrb[0].mxu0 %v1663
  %v1740 = vpop.f32.mrb[0].mxu0
  %v1741 = vadd.f32 0.0, %v1740
  %v1742 = vpop.f32.mrb[0].mxu0
  %1743 = vmatprep.mubr.f32.mxu0 0.0
  %1744 = vmatmul.mubr.f32.gmra.mrb[0].mxu0 %v1666
  %v1745 = vpop.f32.mrb[0].mxu0
  %v1746 = vadd.f32 0.0, %v1745
  %v1747 = vpop.f32.mrb[0].mxu0
  %1748 = vmatprep.mubr.f32.mxu0 0.0
  %1749 = vmatmul.mubr.f32.gmra.mrb[0].mxu0 %v1669
  %v1750 = vpop.f32.mrb[0].mxu0
  %v1751 = vadd.f32 0.0, %v1750
  %v1752 = vpop.f32.mrb[0].mxu0
  %1753 = vmatprep.mubr.f32.mxu0 0.0
  %1754 = vmatmul.mubr.f32.gmra.mrb[0].mxu0 %v1672
  %v1755 = vpop.f32.mrb[0].mxu0
  %v1756 = vadd.f32 0.0, %v1755
  %v1757 = vpop.f32.mrb[0].mxu0
  %1758 = vdwg.mxu0
  %v1759 = vadd.f32 %v1383, %v1741
  %v1760 = vadd.f32 %v1384, %v1746
  %v1761 = vadd.f32 %v1385, %v1751
  %v1762 = vadd.f32 %v1386, %v1756
  %v1763 = vadd.f32 %v71, %v1759
  %v1764 = vadd.f32 %v72, %v1760
  %v1765 = vadd.f32 %v73, %v1761
  %v1766 = vadd.f32 %v74, %v1762
  %v1767 = vld [vmem:[%s8] sm:$0x1]
  %v1769 = vlaneseq
  %v1770 = vshrl.u32 %v1769, 7
  %v1771 = vsub.s32 0, %v1770
  %v1772 = vrot.slane %v1767, %v1771
  %v1774 = vadd.f32 %v1763, %v1772
  %v1775 = vadd.f32 %v1764, %v1772
  %v1776 = vadd.f32 %v1765, %v1772
  %v1777 = vadd.f32 %v1766, %v1772
  %v1778 = vld [vmem:[%s9] sm:$0x1]
  %v1779 = vld [vmem:[%s10] sm:$0x1]
  %v1780 = vsel %vm77, %v1774, 0.0
  %1781 = vadd.xlane.f32.xlu0 %v1780
  %v1782 = vpop.xlane.xlu0 %1781
  %v1783 = vsel %vm77, %v1775, 0.0
  %1784 = vadd.xlane.f32.xlu0 %v1783
  %v1785 = vpop.xlane.xlu0 %1784
  %v1786 = vsel %vm77, %v1776, 0.0
  %1787 = vadd.xlane.f32.xlu0 %v1786
  %v1788 = vpop.xlane.xlu0 %1787
  %v1789 = vsel %vm77, %v1777, 0.0
  %1790 = vadd.xlane.f32.xlu0 %v1789
  %v1791 = vpop.xlane.xlu0 %1790
  %v1792 = vmul.f32 %v1782, %v90
  %v1793 = vmul.f32 %v1785, %v90
  %v1794 = vmul.f32 %v1788, %v90
  %v1795 = vmul.f32 %v1791, %v90
  %v1796 = vsub.f32 %v1774, %v1792
  %v1797 = vsub.f32 %v1775, %v1793
  %v1798 = vsub.f32 %v1776, %v1794
  %v1799 = vsub.f32 %v1777, %v1795
  %v1800 = vmul.f32 %v1796, %v1796
  %v1801 = vmul.f32 %v1797, %v1797
  %v1802 = vmul.f32 %v1798, %v1798
  %v1803 = vmul.f32 %v1799, %v1799
  %v1804 = vsel %vm77, %v1800, 0.0
  %1805 = vadd.xlane.f32.xlu0 %v1804
  %v1806 = vpop.xlane.xlu0 %1805
  %v1807 = vsel %vm77, %v1801, 0.0
  %1808 = vadd.xlane.f32.xlu0 %v1807
  %v1809 = vpop.xlane.xlu0 %1808
  %v1810 = vsel %vm77, %v1802, 0.0
  %1811 = vadd.xlane.f32.xlu0 %v1810
  %v1812 = vpop.xlane.xlu0 %1811
  %v1813 = vsel %vm77, %v1803, 0.0
  %1814 = vadd.xlane.f32.xlu0 %v1813
  %v1815 = vpop.xlane.xlu0 %1814
  %v1816 = vmul.f32 %v1806, %v90
  %v1817 = vmul.f32 %v1809, %v90
  %v1818 = vmul.f32 %v1812, %v90
  %v1819 = vmul.f32 %v1815, %v90
  %v1820 = vadd.f32 %v1816, 1e-05
  %v1821 = vadd.f32 %v1817, 1e-05
  %v1822 = vadd.f32 %v1818, 1e-05
  %v1823 = vadd.f32 %v1819, 1e-05
  %v1824 = vrsqrt.pop %v1820
  %v1825 = vrsqrt.pop %v1821
  %v1826 = vrsqrt.pop %v1822
  %v1827 = vrsqrt.pop %v1823
  %v1828 = vmul.f32 %v1796, %v1824
  %v1829 = vmul.f32 %v1797, %v1825
  %v1830 = vmul.f32 %v1798, %v1826
  %v1831 = vmul.f32 %v1799, %v1827
  %v1833 = vlaneseq
  %v1834 = vshrl.u32 %v1833, 7
  %v1835 = vsub.s32 0, %v1834
  %v1836 = vrot.slane %v1778, %v1835
  %v1838 = vmul.f32 %v1828, %v1836
  %v1839 = vmul.f32 %v1829, %v1836
  %v1840 = vmul.f32 %v1830, %v1836
  %v1841 = vmul.f32 %v1831, %v1836
  %v1843 = vlaneseq
  %v1844 = vshrl.u32 %v1843, 7
  %v1845 = vsub.s32 0, %v1844
  %v1846 = vrot.slane %v1779, %v1845
  %v1848 = vadd.f32 %v1838, %v1846
  %v1849 = vadd.f32 %v1839, %v1846
  %v1850 = vadd.f32 %v1840, %v1846
  %v1851 = vadd.f32 %v1841, %v1846
  %v1852 = vld [vmem:[%s11] sm:$0xff]
  %v1853 = vld [vmem:[%s11 + $0x8] sm:$0xff]
  %v1854 = vld [vmem:[%s11 + $0x10] sm:$0xff]
  %v1855 = vld [vmem:[%s11 + $0x18] sm:$0xff]
  %v1856 = vld [vmem:[%s12] sm:$0x1]
  %v1858 = vlaneseq
  %v1859 = vshrl.u32 %v1858, 7
  %v1860 = vsub.s32 0, %v1859
  %v1861 = vrot.slane %v1856, %v1860
  %v1864 = vsel %vm77, %v1848, 0
  %v1867 = vsel %vm77, %v1849, 0
  %v1870 = vsel %vm77, %v1850, 0
  %v1873 = vsel %vm77, %v1851, 0
  %1875 = vmatprep.subr.mxu0 0.0
  %1876 = vmatpush1.msra.mxu0 %v1852
  %1877 = vmatprep.subr.mxu0 0.0
  %1878 = vmatpush1.msra.mxu0 %v1853
  %1879 = vmatprep.subr.mxu0 0.0
  %1880 = vmatpush1.msra.mxu0 %v1854
  %1881 = vmatprep.subr.mxu0 0.0
  %1882 = vmatpush1.msra.mxu0 %v1855
  %1883 = vmatprep.subr.mxu0 0.0
  %1884 = vmatpush1.msra.mxu0 0.0
  %1885 = vmatprep.subr.mxu0 0.0
  %1886 = vmatpush1.msra.mxu0 0.0
  %1887 = vmatprep.subr.mxu0 0.0
  %1888 = vmatpush1.msra.mxu0 0.0
  %1889 = vmatprep.subr.mxu0 0.0
  %1890 = vmatpush1.msra.mxu0 0.0
  %1891 = vmatprep.subr.mxu0 0.0
  %1892 = vmatpush1.msra.mxu0 0.0
  %1893 = vmatprep.subr.mxu0 0.0
  %1894 = vmatpush1.msra.mxu0 0.0
  %1895 = vmatprep.subr.mxu0 0.0
  %1896 = vmatpush1.msra.mxu0 0.0
  %1897 = vmatprep.subr.mxu0 0.0
  %1898 = vmatpush1.msra.mxu0 0.0
  %1899 = vmatprep.subr.mxu0 0.0
  %1900 = vmatpush1.msra.mxu0 0.0
  %1901 = vmatprep.subr.mxu0 0.0
  %1902 = vmatpush1.msra.mxu0 0.0
  %1903 = vmatprep.subr.mxu0 0.0
  %1904 = vmatpush1.msra.mxu0 0.0
  %1905 = vmatprep.subr.mxu0 0.0
  %1906 = vmatpush1.msra.mxu0 0.0
  %1907 = vmatprep.subr.mxu0 0.0
  %1908 = vmatpush1.msra.mxu0 0.0
  %1909 = vmatprep.subr.mxu0 0.0
  %1910 = vmatpush1.msra.mxu0 0.0
  %1911 = vmatprep.subr.mxu0 0.0
  %1912 = vmatpush1.msra.mxu0 0.0
  %1913 = vmatprep.subr.mxu0 0.0
  %1914 = vmatpush1.msra.mxu0 0.0
  %1915 = vmatprep.subr.mxu0 0.0
  %1916 = vmatpush1.msra.mxu0 0.0
  %1917 = vmatprep.subr.mxu0 0.0
  %1918 = vmatpush1.msra.mxu0 0.0
  %1919 = vmatprep.subr.mxu0 0.0
  %1920 = vmatpush1.msra.mxu0 0.0
  %1921 = vmatprep.subr.mxu0 0.0
  %1922 = vmatpush1.msra.mxu0 0.0
  %1923 = vmatprep.subr.mxu0 0.0
  %1924 = vmatpush1.msra.mxu0 0.0
  %1925 = vmatprep.subr.mxu0 0.0
  %1926 = vmatpush1.msra.mxu0 0.0
  %1927 = vmatprep.subr.mxu0 0.0
  %1928 = vmatpush1.msra.mxu0 0.0
  %1929 = vmatprep.subr.mxu0 0.0
  %1930 = vmatpush1.msra.mxu0 0.0
  %1931 = vmatprep.subr.mxu0 0.0
  %1932 = vmatpush1.msra.mxu0 0.0
  %1933 = vmatprep.subr.mxu0 0.0
  %1934 = vmatpush1.msra.mxu0 0.0
  %1935 = vmatprep.subr.mxu0 0.0
  %1936 = vmatpush1.msra.mxu0 0.0
  %1937 = vmatprep.subr.mxu0 0.0
  %1938 = vmatpush1.msra.mxu0 0.0
  %1939 = vmatprep.mubr.f32.mxu0 0.0
  %1940 = vmatmul.mubr.f32.gmra.mrb[0].mxu0 %v1864
  %v1941 = vpop.f32.mrb[0].mxu0
  %v1942 = vadd.f32 %v1861, %v1941
  %v1943 = vpop.f32.mrb[0].mxu0
  %1944 = vmatprep.mubr.f32.mxu0 0.0
  %1945 = vmatmul.mubr.f32.gmra.mrb[0].mxu0 %v1867
  %v1946 = vpop.f32.mrb[0].mxu0
  %v1947 = vadd.f32 %v1861, %v1946
  %v1948 = vpop.f32.mrb[0].mxu0
  %1949 = vmatprep.mubr.f32.mxu0 0.0
  %1950 = vmatmul.mubr.f32.gmra.mrb[0].mxu0 %v1870
  %v1951 = vpop.f32.mrb[0].mxu0
  %v1952 = vadd.f32 %v1861, %v1951
  %v1953 = vpop.f32.mrb[0].mxu0
  %1954 = vmatprep.mubr.f32.mxu0 0.0
  %1955 = vmatmul.mubr.f32.gmra.mrb[0].mxu0 %v1873
  %v1956 = vpop.f32.mrb[0].mxu0
  %v1957 = vadd.f32 %v1861, %v1956
  %v1958 = vpop.f32.mrb[0].mxu0
  %1959 = vdwg.mxu0
  %v1960 = vmul.f32 %v1942, 0.5
  %v1961 = vmul.f32 %v1947, 0.5
  %v1962 = vmul.f32 %v1952, 0.5
  %v1963 = vmul.f32 %v1957, 0.5
  %v1964 = vmul.f32 %v1942, 0.70710677
  %v1965 = vmul.f32 %v1947, 0.70710677
  %v1966 = vmul.f32 %v1952, 0.70710677
  %v1967 = vmul.f32 %v1957, 0.70710677
  %vm1968 = vcmp.ge.f32.partialorder %v1964, 0.0
  %vm1969 = vcmp.ge.f32.partialorder %v1965, 0.0
  %vm1970 = vcmp.ge.f32.partialorder %v1966, 0.0
  %vm1971 = vcmp.ge.f32.partialorder %v1967, 0.0
  %v1972 = vsel %vm1968, 1.0, -1.0
  %v1973 = vsel %vm1969, 1.0, -1.0
  %v1974 = vsel %vm1970, 1.0, -1.0
  %v1975 = vsel %vm1971, 1.0, -1.0
  %v1976 = vand.u32 2147483647, %v1964
  %v1977 = vand.u32 2147483647, %v1965
  %v1978 = vand.u32 2147483647, %v1966
  %v1979 = vand.u32 2147483647, %v1967
  %v1980 = vmul.f32 %v1976, 0.3275911
  %v1981 = vmul.f32 %v1977, 0.3275911
  %v1982 = vmul.f32 %v1978, 0.3275911
  %v1983 = vmul.f32 %v1979, 0.3275911
  %v1984 = vadd.f32 %v1980, 1.0
  %v1985 = vadd.f32 %v1981, 1.0
  %v1986 = vadd.f32 %v1982, 1.0
  %v1987 = vadd.f32 %v1983, 1.0
  %v1988 = vrcp.pop %v1984
  %v1989 = vmul.f32 1.0, %v1988
  %v1990 = vrcp.pop %v1985
  %v1991 = vmul.f32 1.0, %v1990
  %v1992 = vrcp.pop %v1986
  %v1993 = vmul.f32 1.0, %v1992
  %v1994 = vrcp.pop %v1987
  %v1995 = vmul.f32 1.0, %v1994
  %v1996 = vmul.f32 %v1989, 1.0614054
  %v1997 = vmul.f32 %v1991, 1.0614054
  %v1998 = vmul.f32 %v1993, 1.0614054
  %v1999 = vmul.f32 %v1995, 1.0614054
  %v2000 = vadd.f32 %v1996, -1.4531521
  %v2001 = vadd.f32 %v1997, -1.4531521
  %v2002 = vadd.f32 %v1998, -1.4531521
  %v2003 = vadd.f32 %v1999, -1.4531521
  %v2004 = vmul.f32 %v1989, %v2000
  %v2005 = vmul.f32 %v1991, %v2001
  %v2006 = vmul.f32 %v1993, %v2002
  %v2007 = vmul.f32 %v1995, %v2003
  %v2008 = vadd.f32 %v2004, 1.4214138
  %v2009 = vadd.f32 %v2005, 1.4214138
  %v2010 = vadd.f32 %v2006, 1.4214138
  %v2011 = vadd.f32 %v2007, 1.4214138
  %v2012 = vmul.f32 %v1989, %v2008
  %v2013 = vmul.f32 %v1991, %v2009
  %v2014 = vmul.f32 %v1993, %v2010
  %v2015 = vmul.f32 %v1995, %v2011
  %v2016 = vadd.f32 %v2012, -0.28449672
  %v2017 = vadd.f32 %v2013, -0.28449672
  %v2018 = vadd.f32 %v2014, -0.28449672
  %v2019 = vadd.f32 %v2015, -0.28449672
  %v2020 = vmul.f32 %v1989, %v2016
  %v2021 = vmul.f32 %v1991, %v2017
  %v2022 = vmul.f32 %v1993, %v2018
  %v2023 = vmul.f32 %v1995, %v2019
  %v2024 = vadd.f32 %v2020, 0.2548296
  %v2025 = vadd.f32 %v2021, 0.2548296
  %v2026 = vadd.f32 %v2022, 0.2548296
  %v2027 = vadd.f32 %v2023, 0.2548296
  %v2028 = vmul.f32 %v1989, %v2024
  %v2029 = vmul.f32 %v1991, %v2025
  %v2030 = vmul.f32 %v1993, %v2026
  %v2031 = vmul.f32 %v1995, %v2027
  %v2032 = vsub.f32 0.0, %v1976
  %v2033 = vsub.f32 0.0, %v1977
  %v2034 = vsub.f32 0.0, %v1978
  %v2035 = vsub.f32 0.0, %v1979
  %v2036 = vmul.f32 %v2032, %v1976
  %v2037 = vmul.f32 %v2033, %v1977
  %v2038 = vmul.f32 %v2034, %v1978
  %v2039 = vmul.f32 %v2035, %v1979
  %v2040 = vmul.f32 %v2036, 1.442695
  %v2041 = vpow.pop %v2040
  %v2042 = vmul.f32 %v2037, 1.442695
  %v2043 = vpow.pop %v2042
  %v2044 = vmul.f32 %v2038, 1.442695
  %v2045 = vpow.pop %v2044
  %v2046 = vmul.f32 %v2039, 1.442695
  %v2047 = vpow.pop %v2046
  %v2048 = vmul.f32 %v2028, %v2041
  %v2049 = vmul.f32 %v2029, %v2043
  %v2050 = vmul.f32 %v2030, %v2045
  %v2051 = vmul.f32 %v2031, %v2047
  %v2052 = vsub.f32 1.0, %v2048
  %v2053 = vsub.f32 1.0, %v2049
  %v2054 = vsub.f32 1.0, %v2050
  %v2055 = vsub.f32 1.0, %v2051
  %v2056 = vmul.f32 %v1972, %v2052
  %v2057 = vmul.f32 %v1973, %v2053
  %v2058 = vmul.f32 %v1974, %v2054
  %v2059 = vmul.f32 %v1975, %v2055
  %v2060 = vadd.f32 %v2056, 1.0
  %v2061 = vadd.f32 %v2057, 1.0
  %v2062 = vadd.f32 %v2058, 1.0
  %v2063 = vadd.f32 %v2059, 1.0
  %v2064 = vmul.f32 %v1960, %v2060
  %v2065 = vmul.f32 %v1961, %v2061
  %v2066 = vmul.f32 %v1962, %v2062
  %v2067 = vmul.f32 %v1963, %v2063
  %v2068 = vld [vmem:[%s13] sm:$0xff]
  %v2069 = vld [vmem:[%s13 + $0x8] sm:$0xff]
  %v2070 = vld [vmem:[%s13 + $0x10] sm:$0xff]
  %v2071 = vld [vmem:[%s13 + $0x18] sm:$0xff]
  %v2072 = vld [vmem:[%s13 + $0x20] sm:$0xff]
  %v2073 = vld [vmem:[%s13 + $0x28] sm:$0xff]
  %v2074 = vld [vmem:[%s13 + $0x30] sm:$0xff]
  %v2075 = vld [vmem:[%s13 + $0x38] sm:$0xff]
  %v2076 = vld [vmem:[%s13 + $0x40] sm:$0xff]
  %v2077 = vld [vmem:[%s13 + $0x48] sm:$0xff]
  %v2078 = vld [vmem:[%s13 + $0x50] sm:$0xff]
  %v2079 = vld [vmem:[%s13 + $0x58] sm:$0xff]
  %v2080 = vld [vmem:[%s13 + $0x60] sm:$0xff]
  %v2081 = vld [vmem:[%s13 + $0x68] sm:$0xff]
  %v2082 = vld [vmem:[%s13 + $0x70] sm:$0xff]
  %v2083 = vld [vmem:[%s13 + $0x78] sm:$0xff]
  %2084 = vmatprep.subr.mxu0 0.0
  %2085 = vmatpush1.msra.mxu0 %v2068
  %2086 = vmatprep.subr.mxu0 0.0
  %2087 = vmatpush1.msra.mxu0 %v2069
  %2088 = vmatprep.subr.mxu0 0.0
  %2089 = vmatpush1.msra.mxu0 %v2070
  %2090 = vmatprep.subr.mxu0 0.0
  %2091 = vmatpush1.msra.mxu0 %v2071
  %2092 = vmatprep.subr.mxu0 0.0
  %2093 = vmatpush1.msra.mxu0 %v2072
  %2094 = vmatprep.subr.mxu0 0.0
  %2095 = vmatpush1.msra.mxu0 %v2073
  %2096 = vmatprep.subr.mxu0 0.0
  %2097 = vmatpush1.msra.mxu0 %v2074
  %2098 = vmatprep.subr.mxu0 0.0
  %2099 = vmatpush1.msra.mxu0 %v2075
  %2100 = vmatprep.subr.mxu0 0.0
  %2101 = vmatpush1.msra.mxu0 %v2076
  %2102 = vmatprep.subr.mxu0 0.0
  %2103 = vmatpush1.msra.mxu0 %v2077
  %2104 = vmatprep.subr.mxu0 0.0
  %2105 = vmatpush1.msra.mxu0 %v2078
  %2106 = vmatprep.subr.mxu0 0.0
  %2107 = vmatpush1.msra.mxu0 %v2079
  %2108 = vmatprep.subr.mxu0 0.0
  %2109 = vmatpush1.msra.mxu0 %v2080
  %2110 = vmatprep.subr.mxu0 0.0
  %2111 = vmatpush1.msra.mxu0 %v2081
  %2112 = vmatprep.subr.mxu0 0.0
  %2113 = vmatpush1.msra.mxu0 %v2082
  %2114 = vmatprep.subr.mxu0 0.0
  %2115 = vmatpush1.msra.mxu0 %v2083
  %2116 = vmatprep.subr.mxu0 0.0
  %2117 = vmatpush1.msra.mxu0 0.0
  %2118 = vmatprep.subr.mxu0 0.0
  %2119 = vmatpush1.msra.mxu0 0.0
  %2120 = vmatprep.subr.mxu0 0.0
  %2121 = vmatpush1.msra.mxu0 0.0
  %2122 = vmatprep.subr.mxu0 0.0
  %2123 = vmatpush1.msra.mxu0 0.0
  %2124 = vmatprep.subr.mxu0 0.0
  %2125 = vmatpush1.msra.mxu0 0.0
  %2126 = vmatprep.subr.mxu0 0.0
  %2127 = vmatpush1.msra.mxu0 0.0
  %2128 = vmatprep.subr.mxu0 0.0
  %2129 = vmatpush1.msra.mxu0 0.0
  %2130 = vmatprep.subr.mxu0 0.0
  %2131 = vmatpush1.msra.mxu0 0.0
  %2132 = vmatprep.subr.mxu0 0.0
  %2133 = vmatpush1.msra.mxu0 0.0
  %2134 = vmatprep.subr.mxu0 0.0
  %2135 = vmatpush1.msra.mxu0 0.0
  %2136 = vmatprep.subr.mxu0 0.0
  %2137 = vmatpush1.msra.mxu0 0.0
  %2138 = vmatprep.subr.mxu0 0.0
  %2139 = vmatpush1.msra.mxu0 0.0
  %2140 = vmatprep.subr.mxu0 0.0
  %2141 = vmatpush1.msra.mxu0 0.0
  %2142 = vmatprep.subr.mxu0 0.0
  %2143 = vmatpush1.msra.mxu0 0.0
  %2144 = vmatprep.subr.mxu0 0.0
  %2145 = vmatpush1.msra.mxu0 0.0
  %2146 = vmatprep.subr.mxu0 0.0
  %2147 = vmatpush1.msra.mxu0 0.0
  %2148 = vmatprep.mubr.f32.mxu0 0.0
  %2149 = vmatmul.mubr.f32.gmra.mrb[0].mxu0 %v2064
  %v2150 = vpop.f32.mrb[0].mxu0
  %v2151 = vadd.f32 0.0, %v2150
  %v2152 = vpop.f32.mrb[0].mxu0
  %2153 = vmatprep.mubr.f32.mxu0 0.0
  %2154 = vmatmul.mubr.f32.gmra.mrb[0].mxu0 %v2065
  %v2155 = vpop.f32.mrb[0].mxu0
  %v2156 = vadd.f32 0.0, %v2155
  %v2157 = vpop.f32.mrb[0].mxu0
  %2158 = vmatprep.mubr.f32.mxu0 0.0
  %2159 = vmatmul.mubr.f32.gmra.mrb[0].mxu0 %v2066
  %v2160 = vpop.f32.mrb[0].mxu0
  %v2161 = vadd.f32 0.0, %v2160
  %v2162 = vpop.f32.mrb[0].mxu0
  %2163 = vmatprep.mubr.f32.mxu0 0.0
  %2164 = vmatmul.mubr.f32.gmra.mrb[0].mxu0 %v2067
  %v2165 = vpop.f32.mrb[0].mxu0
  %v2166 = vadd.f32 0.0, %v2165
  %v2167 = vpop.f32.mrb[0].mxu0
  %2168 = vdwg.mxu0
  %v2169 = vadd.f32 %v1774, %v2151
  %v2170 = vadd.f32 %v1775, %v2156
  %v2171 = vadd.f32 %v1776, %v2161
  %v2172 = vadd.f32 %v1777, %v2166
  %v2173 = vld [vmem:[%s14] sm:$0x1]
  %v2175 = vlaneseq
  %v2176 = vshrl.u32 %v2175, 7
  %v2177 = vsub.s32 0, %v2176
  %v2178 = vrot.slane %v2173, %v2177
  %v2180 = vadd.f32 %v2169, %v2178
  %v2181 = vadd.f32 %v2170, %v2178
  %v2182 = vadd.f32 %v2171, %v2178
  %v2183 = vadd.f32 %v2172, %v2178
  %s2184 = scalar_lea.vmem %s3, 1
  %v2185 = vld [vmem:[%s2184] sm:$0x1]
  %s2186 = scalar_lea.vmem %s4, 1
  %v2187 = vld [vmem:[%s2186] sm:$0x1]
  %v2188 = vsel %vm77, %v2180, 0.0
  %2189 = vadd.xlane.f32.xlu0 %v2188
  %v2190 = vpop.xlane.xlu0 %2189
  %v2191 = vsel %vm77, %v2181, 0.0
  %2192 = vadd.xlane.f32.xlu0 %v2191
  %v2193 = vpop.xlane.xlu0 %2192
  %v2194 = vsel %vm77, %v2182, 0.0
  %2195 = vadd.xlane.f32.xlu0 %v2194
  %v2196 = vpop.xlane.xlu0 %2195
  %v2197 = vsel %vm77, %v2183, 0.0
  %2198 = vadd.xlane.f32.xlu0 %v2197
  %v2199 = vpop.xlane.xlu0 %2198
  %v2200 = vmul.f32 %v2190, %v90
  %v2201 = vmul.f32 %v2193, %v90
  %v2202 = vmul.f32 %v2196, %v90
  %v2203 = vmul.f32 %v2199, %v90
  %v2204 = vsub.f32 %v2180, %v2200
  %v2205 = vsub.f32 %v2181, %v2201
  %v2206 = vsub.f32 %v2182, %v2202
  %v2207 = vsub.f32 %v2183, %v2203
  %v2208 = vmul.f32 %v2204, %v2204
  %v2209 = vmul.f32 %v2205, %v2205
  %v2210 = vmul.f32 %v2206, %v2206
  %v2211 = vmul.f32 %v2207, %v2207
  %v2212 = vsel %vm77, %v2208, 0.0
  %2213 = vadd.xlane.f32.xlu0 %v2212
  %v2214 = vpop.xlane.xlu0 %2213
  %v2215 = vsel %vm77, %v2209, 0.0
  %2216 = vadd.xlane.f32.xlu0 %v2215
  %v2217 = vpop.xlane.xlu0 %2216
  %v2218 = vsel %vm77, %v2210, 0.0
  %2219 = vadd.xlane.f32.xlu0 %v2218
  %v2220 = vpop.xlane.xlu0 %2219
  %v2221 = vsel %vm77, %v2211, 0.0
  %2222 = vadd.xlane.f32.xlu0 %v2221
  %v2223 = vpop.xlane.xlu0 %2222
  %v2224 = vmul.f32 %v2214, %v90
  %v2225 = vmul.f32 %v2217, %v90
  %v2226 = vmul.f32 %v2220, %v90
  %v2227 = vmul.f32 %v2223, %v90
  %v2228 = vadd.f32 %v2224, 1e-05
  %v2229 = vadd.f32 %v2225, 1e-05
  %v2230 = vadd.f32 %v2226, 1e-05
  %v2231 = vadd.f32 %v2227, 1e-05
  %v2232 = vrsqrt.pop %v2228
  %v2233 = vrsqrt.pop %v2229
  %v2234 = vrsqrt.pop %v2230
  %v2235 = vrsqrt.pop %v2231
  %v2236 = vmul.f32 %v2204, %v2232
  %v2237 = vmul.f32 %v2205, %v2233
  %v2238 = vmul.f32 %v2206, %v2234
  %v2239 = vmul.f32 %v2207, %v2235
  %v2241 = vlaneseq
  %v2242 = vshrl.u32 %v2241, 7
  %v2243 = vsub.s32 0, %v2242
  %v2244 = vrot.slane %v2185, %v2243
  %v2246 = vmul.f32 %v2236, %v2244
  %v2247 = vmul.f32 %v2237, %v2244
  %v2248 = vmul.f32 %v2238, %v2244
  %v2249 = vmul.f32 %v2239, %v2244
  %v2251 = vlaneseq
  %v2252 = vshrl.u32 %v2251, 7
  %v2253 = vsub.s32 0, %v2252
  %v2254 = vrot.slane %v2187, %v2253
  %v2256 = vadd.f32 %v2246, %v2254
  %v2257 = vadd.f32 %v2247, %v2254
  %v2258 = vadd.f32 %v2248, %v2254
  %v2259 = vadd.f32 %v2249, %v2254
  %s2260 = scalar_lea.vmem %s5, 32
  %v2261 = vld [vmem:[%s2260] sm:$0xff]
  %v2262 = vld [vmem:[%s2260 + $0x8] sm:$0xff]
  %v2263 = vld [vmem:[%s2260 + $0x10] sm:$0xff]
  %v2264 = vld [vmem:[%s2260 + $0x18] sm:$0xff]
  %s2265 = scalar_lea.vmem %s6, 1
  %v2266 = vld [vmem:[%s2265] sm:$0x1]
  %v2268 = vlaneseq
  %v2269 = vshrl.u32 %v2268, 7
  %v2270 = vsub.s32 0, %v2269
  %v2271 = vrot.slane %v2266, %v2270
  %v2274 = vsel %vm77, %v2256, 0
  %v2277 = vsel %vm77, %v2257, 0
  %v2280 = vsel %vm77, %v2258, 0
  %v2283 = vsel %vm77, %v2259, 0
  %2285 = vmatprep.subr.mxu0 0.0
  %2286 = vmatpush1.msra.mxu0 %v2261
  %2287 = vmatprep.subr.mxu0 0.0
  %2288 = vmatpush1.msra.mxu0 %v2262
  %2289 = vmatprep.subr.mxu0 0.0
  %2290 = vmatpush1.msra.mxu0 %v2263
  %2291 = vmatprep.subr.mxu0 0.0
  %2292 = vmatpush1.msra.mxu0 %v2264
  %2293 = vmatprep.subr.mxu0 0.0
  %2294 = vmatpush1.msra.mxu0 0.0
  %2295 = vmatprep.subr.mxu0 0.0
  %2296 = vmatpush1.msra.mxu0 0.0
  %2297 = vmatprep.subr.mxu0 0.0
  %2298 = vmatpush1.msra.mxu0 0.0
  %2299 = vmatprep.subr.mxu0 0.0
  %2300 = vmatpush1.msra.mxu0 0.0
  %2301 = vmatprep.subr.mxu0 0.0
  %2302 = vmatpush1.msra.mxu0 0.0
  %2303 = vmatprep.subr.mxu0 0.0
  %2304 = vmatpush1.msra.mxu0 0.0
  %2305 = vmatprep.subr.mxu0 0.0
  %2306 = vmatpush1.msra.mxu0 0.0
  %2307 = vmatprep.subr.mxu0 0.0
  %2308 = vmatpush1.msra.mxu0 0.0
  %2309 = vmatprep.subr.mxu0 0.0
  %2310 = vmatpush1.msra.mxu0 0.0
  %2311 = vmatprep.subr.mxu0 0.0
  %2312 = vmatpush1.msra.mxu0 0.0
  %2313 = vmatprep.subr.mxu0 0.0
  %2314 = vmatpush1.msra.mxu0 0.0
  %2315 = vmatprep.subr.mxu0 0.0
  %2316 = vmatpush1.msra.mxu0 0.0
  %2317 = vmatprep.subr.mxu0 0.0
  %2318 = vmatpush1.msra.mxu0 0.0
  %2319 = vmatprep.subr.mxu0 0.0
  %2320 = vmatpush1.msra.mxu0 0.0
  %2321 = vmatprep.subr.mxu0 0.0
  %2322 = vmatpush1.msra.mxu0 0.0
  %2323 = vmatprep.subr.mxu0 0.0
  %2324 = vmatpush1.msra.mxu0 0.0
  %2325 = vmatprep.subr.mxu0 0.0
  %2326 = vmatpush1.msra.mxu0 0.0
  %2327 = vmatprep.subr.mxu0 0.0
  %2328 = vmatpush1.msra.mxu0 0.0
  %2329 = vmatprep.subr.mxu0 0.0
  %2330 = vmatpush1.msra.mxu0 0.0
  %2331 = vmatprep.subr.mxu0 0.0
  %2332 = vmatpush1.msra.mxu0 0.0
  %2333 = vmatprep.subr.mxu0 0.0
  %2334 = vmatpush1.msra.mxu0 0.0
  %2335 = vmatprep.subr.mxu0 0.0
  %2336 = vmatpush1.msra.mxu0 0.0
  %2337 = vmatprep.subr.mxu0 0.0
  %2338 = vmatpush1.msra.mxu0 0.0
  %2339 = vmatprep.subr.mxu0 0.0
  %2340 = vmatpush1.msra.mxu0 0.0
  %2341 = vmatprep.subr.mxu0 0.0
  %2342 = vmatpush1.msra.mxu0 0.0
  %2343 = vmatprep.subr.mxu0 0.0
  %2344 = vmatpush1.msra.mxu0 0.0
  %2345 = vmatprep.subr.mxu0 0.0
  %2346 = vmatpush1.msra.mxu0 0.0
  %2347 = vmatprep.subr.mxu0 0.0
  %2348 = vmatpush1.msra.mxu0 0.0
  %2349 = vmatprep.mubr.f32.mxu0 0.0
  %2350 = vmatmul.mubr.f32.gmra.mrb[0].mxu0 %v2274
  %v2351 = vpop.f32.mrb[0].mxu0
  %v2352 = vadd.f32 %v2271, %v2351
  %v2353 = vpop.f32.mrb[0].mxu0
  %2354 = vmatprep.mubr.f32.mxu0 0.0
  %2355 = vmatmul.mubr.f32.gmra.mrb[0].mxu0 %v2277
  %v2356 = vpop.f32.mrb[0].mxu0
  %v2357 = vadd.f32 %v2271, %v2356
  %v2358 = vpop.f32.mrb[0].mxu0
  %2359 = vmatprep.mubr.f32.mxu0 0.0
  %2360 = vmatmul.mubr.f32.gmra.mrb[0].mxu0 %v2280
  %v2361 = vpop.f32.mrb[0].mxu0
  %v2362 = vadd.f32 %v2271, %v2361
  %v2363 = vpop.f32.mrb[0].mxu0
  %2364 = vmatprep.mubr.f32.mxu0 0.0
  %2365 = vmatmul.mubr.f32.gmra.mrb[0].mxu0 %v2283
  %v2366 = vpop.f32.mrb[0].mxu0
  %v2367 = vadd.f32 %v2271, %v2366
  %v2368 = vpop.f32.mrb[0].mxu0
  %2369 = vdwg.mxu0
  %s2370 = scalar_lea.vmem %s7, 32
  %v2371 = vld [vmem:[%s2370] sm:$0xff]
  %v2372 = vld [vmem:[%s2370 + $0x8] sm:$0xff]
  %v2373 = vld [vmem:[%s2370 + $0x10] sm:$0xff]
  %v2374 = vld [vmem:[%s2370 + $0x18] sm:$0xff]
  %v2375 = vmul.f32 %v2352, 0.35355338
  %v2376 = vmul.f32 %v2357, 0.35355338
  %v2377 = vmul.f32 %v2362, 0.35355338
  %v2378 = vmul.f32 %v2367, 0.35355338
  %2383 = vrot.lane.b32.xlu0 %v2352, 96
  %v2384 = vpop.permute.xlu0 %2383
  %2385 = vrot.lane.b32.xlu0 %v2357, 96
  %v2386 = vpop.permute.xlu0 %2385
  %2387 = vrot.lane.b32.xlu0 %v2362, 96
  %v2388 = vpop.permute.xlu0 %2387
  %2389 = vrot.lane.b32.xlu0 %v2367, 96
  %v2390 = vpop.permute.xlu0 %2389
  %v2392 = vsel %vm279, %v2375, 0
  %v2395 = vsel %vm279, %v2376, 0
  %v2398 = vsel %vm279, %v2377, 0
  %v2401 = vsel %vm279, %v2378, 0
  %v2403 = vsel %vm279, %v2384, 0
  %v2405 = vsel %vm279, %v2386, 0
  %v2407 = vsel %vm279, %v2388, 0
  %v2409 = vsel %vm279, %v2390, 0
  %2411 = vmatprep.subr.mxu0 0.0
  %2412 = vmatpush1.xpose.msra.mxu0 %v2403
  %2413 = vmatprep.subr.mxu0 0.0
  %2414 = vmatpush1.xpose.msra.mxu0 %v2405
  %2415 = vmatprep.subr.mxu0 0.0
  %2416 = vmatpush1.xpose.msra.mxu0 %v2407
  %2417 = vmatprep.subr.mxu0 0.0
  %2418 = vmatpush1.xpose.msra.mxu0 %v2409
  %2419 = vmatprep.subr.mxu0 0.0
  %2420 = vmatpush1.xpose.msra.mxu0 0.0
  %2421 = vmatprep.subr.mxu0 0.0
  %2422 = vmatpush1.xpose.msra.mxu0 0.0
  %2423 = vmatprep.subr.mxu0 0.0
  %2424 = vmatpush1.xpose.msra.mxu0 0.0
  %2425 = vmatprep.subr.mxu0 0.0
  %2426 = vmatpush1.xpose.msra.mxu0 0.0
  %2427 = vmatprep.subr.mxu0 0.0
  %2428 = vmatpush1.xpose.msra.mxu0 0.0
  %2429 = vmatprep.subr.mxu0 0.0
  %2430 = vmatpush1.xpose.msra.mxu0 0.0
  %2431 = vmatprep.subr.mxu0 0.0
  %2432 = vmatpush1.xpose.msra.mxu0 0.0
  %2433 = vmatprep.subr.mxu0 0.0
  %2434 = vmatpush1.xpose.msra.mxu0 0.0
  %2435 = vmatprep.subr.mxu0 0.0
  %2436 = vmatpush1.xpose.msra.mxu0 0.0
  %2437 = vmatprep.subr.mxu0 0.0
  %2438 = vmatpush1.xpose.msra.mxu0 0.0
  %2439 = vmatprep.subr.mxu0 0.0
  %2440 = vmatpush1.xpose.msra.mxu0 0.0
  %2441 = vmatprep.subr.mxu0 0.0
  %2442 = vmatpush1.xpose.msra.mxu0 0.0
  %2443 = vmatprep.subr.mxu0 0.0
  %2444 = vmatpush1.xpose.msra.mxu0 0.0
  %2445 = vmatprep.subr.mxu0 0.0
  %2446 = vmatpush1.xpose.msra.mxu0 0.0
  %2447 = vmatprep.subr.mxu0 0.0
  %2448 = vmatpush1.xpose.msra.mxu0 0.0
  %2449 = vmatprep.subr.mxu0 0.0
  %2450 = vmatpush1.xpose.msra.mxu0 0.0
  %2451 = vmatprep.subr.mxu0 0.0
  %2452 = vmatpush1.xpose.msra.mxu0 0.0
  %2453 = vmatprep.subr.mxu0 0.0
  %2454 = vmatpush1.xpose.msra.mxu0 0.0
  %2455 = vmatprep.subr.mxu0 0.0
  %2456 = vmatpush1.xpose.msra.mxu0 0.0
  %2457 = vmatprep.subr.mxu0 0.0
  %2458 = vmatpush1.xpose.msra.mxu0 0.0
  %2459 = vmatprep.subr.mxu0 0.0
  %2460 = vmatpush1.xpose.msra.mxu0 0.0
  %2461 = vmatprep.subr.mxu0 0.0
  %2462 = vmatpush1.xpose.msra.mxu0 0.0
  %2463 = vmatprep.subr.mxu0 0.0
  %2464 = vmatpush1.xpose.msra.mxu0 0.0
  %2465 = vmatprep.subr.mxu0 0.0
  %2466 = vmatpush1.xpose.msra.mxu0 0.0
  %2467 = vmatprep.subr.mxu0 0.0
  %2468 = vmatpush1.xpose.msra.mxu0 0.0
  %2469 = vmatprep.subr.mxu0 0.0
  %2470 = vmatpush1.xpose.msra.mxu0 0.0
  %2471 = vmatprep.subr.mxu0 0.0
  %2472 = vmatpush1.xpose.msra.mxu0 0.0
  %2473 = vmatprep.subr.mxu0 0.0
  %2474 = vmatpush1.xpose.msra.mxu0 0.0
  %2475 = vmatprep.mubr.f32.mxu0 0.0
  %2476 = vmatmul.mubr.f32.gmra.mrb[0].mxu0 %v2392
  %v2477 = vpop.f32.mrb[0].mxu0
  %v2478 = vadd.f32 %v67, %v2477
  %v2479 = vpop.f32.mrb[0].mxu0
  %2480 = vmatprep.mubr.f32.mxu0 0.0
  %2481 = vmatmul.mubr.f32.gmra.mrb[0].mxu0 %v2395
  %v2482 = vpop.f32.mrb[0].mxu0
  %v2483 = vadd.f32 %v68, %v2482
  %v2484 = vpop.f32.mrb[0].mxu0
  %2485 = vmatprep.mubr.f32.mxu0 0.0
  %2486 = vmatmul.mubr.f32.gmra.mrb[0].mxu0 %v2398
  %v2487 = vpop.f32.mrb[0].mxu0
  %v2488 = vadd.f32 %v69, %v2487
  %v2489 = vpop.f32.mrb[0].mxu0
  %2490 = vmatprep.mubr.f32.mxu0 0.0
  %2491 = vmatmul.mubr.f32.gmra.mrb[0].mxu0 %v2401
  %v2492 = vpop.f32.mrb[0].mxu0
  %v2493 = vadd.f32 %v70, %v2492
  %v2494 = vpop.f32.mrb[0].mxu0
  %2495 = vdwg.mxu0
  %v2496 = vsel %vm77, %v2478, -inf
  %2497 = vmax.xlane.f32.xlu0 %v2496
  %v2498 = vpop.xlane.xlu0 %2497
  %v2499 = vsel %vm77, %v2483, -inf
  %2500 = vmax.xlane.f32.xlu0 %v2499
  %v2501 = vpop.xlane.xlu0 %2500
  %v2502 = vsel %vm77, %v2488, -inf
  %2503 = vmax.xlane.f32.xlu0 %v2502
  %v2504 = vpop.xlane.xlu0 %2503
  %v2505 = vsel %vm77, %v2493, -inf
  %2506 = vmax.xlane.f32.xlu0 %v2505
  %v2507 = vpop.xlane.xlu0 %2506
  %v2508 = vsub.f32 %v2478, %v2498
  %v2509 = vsub.f32 %v2483, %v2501
  %v2510 = vsub.f32 %v2488, %v2504
  %v2511 = vsub.f32 %v2493, %v2507
  %v2512 = vmul.f32 %v2508, 1.442695
  %v2513 = vpow.pop %v2512
  %v2514 = vmul.f32 %v2509, 1.442695
  %v2515 = vpow.pop %v2514
  %v2516 = vmul.f32 %v2510, 1.442695
  %v2517 = vpow.pop %v2516
  %v2518 = vmul.f32 %v2511, 1.442695
  %v2519 = vpow.pop %v2518
  %v2520 = vsel %vm77, %v2513, 0.0
  %2521 = vadd.xlane.f32.xlu0 %v2520
  %v2522 = vpop.xlane.xlu0 %2521
  %v2523 = vsel %vm77, %v2515, 0.0
  %2524 = vadd.xlane.f32.xlu0 %v2523
  %v2525 = vpop.xlane.xlu0 %2524
  %v2526 = vsel %vm77, %v2517, 0.0
  %2527 = vadd.xlane.f32.xlu0 %v2526
  %v2528 = vpop.xlane.xlu0 %2527
  %v2529 = vsel %vm77, %v2519, 0.0
  %2530 = vadd.xlane.f32.xlu0 %v2529
  %v2531 = vpop.xlane.xlu0 %2530
  %v2532 = vrcp.pop %v2522
  %v2533 = vrcp.pop %v2525
  %v2534 = vrcp.pop %v2528
  %v2535 = vrcp.pop %v2531
  %v2536 = vmul.f32 %v2513, %v2532
  %v2537 = vmul.f32 %v2515, %v2533
  %v2538 = vmul.f32 %v2517, %v2534
  %v2539 = vmul.f32 %v2519, %v2535
  %s2540 = scalar_lea.vmem %s21, 128
  %2541 = vst.msk [vmem:[%s2540] sm:$0xff] %vm77, %v2536
  %2542 = vst.msk [vmem:[%s2540 + $0x8] sm:$0xff] %vm77, %v2537
  %2543 = vst.msk [vmem:[%s2540 + $0x10] sm:$0xff] %vm77, %v2538
  %2544 = vst.msk [vmem:[%s2540 + $0x18] sm:$0xff] %vm77, %v2539
  %2545 = vrot.lane.b32.xlu0 %v2352, 64
  %v2546 = vpop.permute.xlu0 %2545
  %2547 = vrot.lane.b32.xlu0 %v2357, 64
  %v2548 = vpop.permute.xlu0 %2547
  %2549 = vrot.lane.b32.xlu0 %v2362, 64
  %v2550 = vpop.permute.xlu0 %2549
  %2551 = vrot.lane.b32.xlu0 %v2367, 64
  %v2552 = vpop.permute.xlu0 %2551
  %v2558 = vsel %vm77, %v2536, 0
  %v2561 = vsel %vm77, %v2537, 0
  %v2564 = vsel %vm77, %v2538, 0
  %v2567 = vsel %vm77, %v2539, 0
  %2569 = vmatprep.subr.mxu0 0.0
  %2570 = vmatpush1.msra.mxu0 %v2546
  %2571 = vmatprep.subr.mxu0 0.0
  %2572 = vmatpush1.msra.mxu0 %v2548
  %2573 = vmatprep.subr.mxu0 0.0
  %2574 = vmatpush1.msra.mxu0 %v2550
  %2575 = vmatprep.subr.mxu0 0.0
  %2576 = vmatpush1.msra.mxu0 %v2552
  %2577 = vmatprep.subr.mxu0 0.0
  %2578 = vmatpush1.msra.mxu0 0.0
  %2579 = vmatprep.subr.mxu0 0.0
  %2580 = vmatpush1.msra.mxu0 0.0
  %2581 = vmatprep.subr.mxu0 0.0
  %2582 = vmatpush1.msra.mxu0 0.0
  %2583 = vmatprep.subr.mxu0 0.0
  %2584 = vmatpush1.msra.mxu0 0.0
  %2585 = vmatprep.subr.mxu0 0.0
  %2586 = vmatpush1.msra.mxu0 0.0
  %2587 = vmatprep.subr.mxu0 0.0
  %2588 = vmatpush1.msra.mxu0 0.0
  %2589 = vmatprep.subr.mxu0 0.0
  %2590 = vmatpush1.msra.mxu0 0.0
  %2591 = vmatprep.subr.mxu0 0.0
  %2592 = vmatpush1.msra.mxu0 0.0
  %2593 = vmatprep.subr.mxu0 0.0
  %2594 = vmatpush1.msra.mxu0 0.0
  %2595 = vmatprep.subr.mxu0 0.0
  %2596 = vmatpush1.msra.mxu0 0.0
  %2597 = vmatprep.subr.mxu0 0.0
  %2598 = vmatpush1.msra.mxu0 0.0
  %2599 = vmatprep.subr.mxu0 0.0
  %2600 = vmatpush1.msra.mxu0 0.0
  %2601 = vmatprep.subr.mxu0 0.0
  %2602 = vmatpush1.msra.mxu0 0.0
  %2603 = vmatprep.subr.mxu0 0.0
  %2604 = vmatpush1.msra.mxu0 0.0
  %2605 = vmatprep.subr.mxu0 0.0
  %2606 = vmatpush1.msra.mxu0 0.0
  %2607 = vmatprep.subr.mxu0 0.0
  %2608 = vmatpush1.msra.mxu0 0.0
  %2609 = vmatprep.subr.mxu0 0.0
  %2610 = vmatpush1.msra.mxu0 0.0
  %2611 = vmatprep.subr.mxu0 0.0
  %2612 = vmatpush1.msra.mxu0 0.0
  %2613 = vmatprep.subr.mxu0 0.0
  %2614 = vmatpush1.msra.mxu0 0.0
  %2615 = vmatprep.subr.mxu0 0.0
  %2616 = vmatpush1.msra.mxu0 0.0
  %2617 = vmatprep.subr.mxu0 0.0
  %2618 = vmatpush1.msra.mxu0 0.0
  %2619 = vmatprep.subr.mxu0 0.0
  %2620 = vmatpush1.msra.mxu0 0.0
  %2621 = vmatprep.subr.mxu0 0.0
  %2622 = vmatpush1.msra.mxu0 0.0
  %2623 = vmatprep.subr.mxu0 0.0
  %2624 = vmatpush1.msra.mxu0 0.0
  %2625 = vmatprep.subr.mxu0 0.0
  %2626 = vmatpush1.msra.mxu0 0.0
  %2627 = vmatprep.subr.mxu0 0.0
  %2628 = vmatpush1.msra.mxu0 0.0
  %2629 = vmatprep.subr.mxu0 0.0
  %2630 = vmatpush1.msra.mxu0 0.0
  %2631 = vmatprep.subr.mxu0 0.0
  %2632 = vmatpush1.msra.mxu0 0.0
  %2633 = vmatprep.mubr.f32.mxu0 0.0
  %2634 = vmatmul.mubr.f32.gmra.mrb[0].mxu0 %v2558
  %v2635 = vpop.f32.mrb[0].mxu0
  %v2636 = vadd.f32 0.0, %v2635
  %v2637 = vpop.f32.mrb[0].mxu0
  %2638 = vmatprep.mubr.f32.mxu0 0.0
  %2639 = vmatmul.mubr.f32.gmra.mrb[0].mxu0 %v2561
  %v2640 = vpop.f32.mrb[0].mxu0
  %v2641 = vadd.f32 0.0, %v2640
  %v2642 = vpop.f32.mrb[0].mxu0
  %2643 = vmatprep.mubr.f32.mxu0 0.0
  %2644 = vmatmul.mubr.f32.gmra.mrb[0].mxu0 %v2564
  %v2645 = vpop.f32.mrb[0].mxu0
  %v2646 = vadd.f32 0.0, %v2645
  %v2647 = vpop.f32.mrb[0].mxu0
  %2648 = vmatprep.mubr.f32.mxu0 0.0
  %2649 = vmatmul.mubr.f32.gmra.mrb[0].mxu0 %v2567
  %v2650 = vpop.f32.mrb[0].mxu0
  %v2651 = vadd.f32 0.0, %v2650
  %v2652 = vpop.f32.mrb[0].mxu0
  %2653 = vdwg.mxu0
  %2654 = vrot.lane.b32.xlu0 %v2375, 120
  %v2655 = vpop.permute.xlu0 %2654
  %2656 = vrot.lane.b32.xlu0 %v2376, 120
  %v2657 = vpop.permute.xlu0 %2656
  %2658 = vrot.lane.b32.xlu0 %v2377, 120
  %v2659 = vpop.permute.xlu0 %2658
  %2660 = vrot.lane.b32.xlu0 %v2378, 120
  %v2661 = vpop.permute.xlu0 %2660
  %2662 = vrot.lane.b32.xlu0 %v2352, 88
  %v2663 = vpop.permute.xlu0 %2662
  %2664 = vrot.lane.b32.xlu0 %v2357, 88
  %v2665 = vpop.permute.xlu0 %2664
  %2666 = vrot.lane.b32.xlu0 %v2362, 88
  %v2667 = vpop.permute.xlu0 %2666
  %2668 = vrot.lane.b32.xlu0 %v2367, 88
  %v2669 = vpop.permute.xlu0 %2668
  %v2670 = vsel %vm279, %v2655, 0
  %v2672 = vsel %vm279, %v2657, 0
  %v2674 = vsel %vm279, %v2659, 0
  %v2676 = vsel %vm279, %v2661, 0
  %v2678 = vsel %vm279, %v2663, 0
  %v2680 = vsel %vm279, %v2665, 0
  %v2682 = vsel %vm279, %v2667, 0
  %v2684 = vsel %vm279, %v2669, 0
  %2686 = vmatprep.subr.mxu0 0.0
  %2687 = vmatpush1.xpose.msra.mxu0 %v2678
  %2688 = vmatprep.subr.mxu0 0.0
  %2689 = vmatpush1.xpose.msra.mxu0 %v2680
  %2690 = vmatprep.subr.mxu0 0.0
  %2691 = vmatpush1.xpose.msra.mxu0 %v2682
  %2692 = vmatprep.subr.mxu0 0.0
  %2693 = vmatpush1.xpose.msra.mxu0 %v2684
  %2694 = vmatprep.subr.mxu0 0.0
  %2695 = vmatpush1.xpose.msra.mxu0 0.0
  %2696 = vmatprep.subr.mxu0 0.0
  %2697 = vmatpush1.xpose.msra.mxu0 0.0
  %2698 = vmatprep.subr.mxu0 0.0
  %2699 = vmatpush1.xpose.msra.mxu0 0.0
  %2700 = vmatprep.subr.mxu0 0.0
  %2701 = vmatpush1.xpose.msra.mxu0 0.0
  %2702 = vmatprep.subr.mxu0 0.0
  %2703 = vmatpush1.xpose.msra.mxu0 0.0
  %2704 = vmatprep.subr.mxu0 0.0
  %2705 = vmatpush1.xpose.msra.mxu0 0.0
  %2706 = vmatprep.subr.mxu0 0.0
  %2707 = vmatpush1.xpose.msra.mxu0 0.0
  %2708 = vmatprep.subr.mxu0 0.0
  %2709 = vmatpush1.xpose.msra.mxu0 0.0
  %2710 = vmatprep.subr.mxu0 0.0
  %2711 = vmatpush1.xpose.msra.mxu0 0.0
  %2712 = vmatprep.subr.mxu0 0.0
  %2713 = vmatpush1.xpose.msra.mxu0 0.0
  %2714 = vmatprep.subr.mxu0 0.0
  %2715 = vmatpush1.xpose.msra.mxu0 0.0
  %2716 = vmatprep.subr.mxu0 0.0
  %2717 = vmatpush1.xpose.msra.mxu0 0.0
  %2718 = vmatprep.subr.mxu0 0.0
  %2719 = vmatpush1.xpose.msra.mxu0 0.0
  %2720 = vmatprep.subr.mxu0 0.0
  %2721 = vmatpush1.xpose.msra.mxu0 0.0
  %2722 = vmatprep.subr.mxu0 0.0
  %2723 = vmatpush1.xpose.msra.mxu0 0.0
  %2724 = vmatprep.subr.mxu0 0.0
  %2725 = vmatpush1.xpose.msra.mxu0 0.0
  %2726 = vmatprep.subr.mxu0 0.0
  %2727 = vmatpush1.xpose.msra.mxu0 0.0
  %2728 = vmatprep.subr.mxu0 0.0
  %2729 = vmatpush1.xpose.msra.mxu0 0.0
  %2730 = vmatprep.subr.mxu0 0.0
  %2731 = vmatpush1.xpose.msra.mxu0 0.0
  %2732 = vmatprep.subr.mxu0 0.0
  %2733 = vmatpush1.xpose.msra.mxu0 0.0
  %2734 = vmatprep.subr.mxu0 0.0
  %2735 = vmatpush1.xpose.msra.mxu0 0.0
  %2736 = vmatprep.subr.mxu0 0.0
  %2737 = vmatpush1.xpose.msra.mxu0 0.0
  %2738 = vmatprep.subr.mxu0 0.0
  %2739 = vmatpush1.xpose.msra.mxu0 0.0
  %2740 = vmatprep.subr.mxu0 0.0
  %2741 = vmatpush1.xpose.msra.mxu0 0.0
  %2742 = vmatprep.subr.mxu0 0.0
  %2743 = vmatpush1.xpose.msra.mxu0 0.0
  %2744 = vmatprep.subr.mxu0 0.0
  %2745 = vmatpush1.xpose.msra.mxu0 0.0
  %2746 = vmatprep.subr.mxu0 0.0
  %2747 = vmatpush1.xpose.msra.mxu0 0.0
  %2748 = vmatprep.subr.mxu0 0.0
  %2749 = vmatpush1.xpose.msra.mxu0 0.0
  %2750 = vmatprep.mubr.f32.mxu0 0.0
  %2751 = vmatmul.mubr.f32.gmra.mrb[0].mxu0 %v2670
  %v2752 = vpop.f32.mrb[0].mxu0
  %v2753 = vadd.f32 %v67, %v2752
  %v2754 = vpop.f32.mrb[0].mxu0
  %2755 = vmatprep.mubr.f32.mxu0 0.0
  %2756 = vmatmul.mubr.f32.gmra.mrb[0].mxu0 %v2672
  %v2757 = vpop.f32.mrb[0].mxu0
  %v2758 = vadd.f32 %v68, %v2757
  %v2759 = vpop.f32.mrb[0].mxu0
  %2760 = vmatprep.mubr.f32.mxu0 0.0
  %2761 = vmatmul.mubr.f32.gmra.mrb[0].mxu0 %v2674
  %v2762 = vpop.f32.mrb[0].mxu0
  %v2763 = vadd.f32 %v69, %v2762
  %v2764 = vpop.f32.mrb[0].mxu0
  %2765 = vmatprep.mubr.f32.mxu0 0.0
  %2766 = vmatmul.mubr.f32.gmra.mrb[0].mxu0 %v2676
  %v2767 = vpop.f32.mrb[0].mxu0
  %v2768 = vadd.f32 %v70, %v2767
  %v2769 = vpop.f32.mrb[0].mxu0
  %2770 = vdwg.mxu0
  %v2771 = vsel %vm77, %v2753, -inf
  %2772 = vmax.xlane.f32.xlu0 %v2771
  %v2773 = vpop.xlane.xlu0 %2772
  %v2774 = vsel %vm77, %v2758, -inf
  %2775 = vmax.xlane.f32.xlu0 %v2774
  %v2776 = vpop.xlane.xlu0 %2775
  %v2777 = vsel %vm77, %v2763, -inf
  %2778 = vmax.xlane.f32.xlu0 %v2777
  %v2779 = vpop.xlane.xlu0 %2778
  %v2780 = vsel %vm77, %v2768, -inf
  %2781 = vmax.xlane.f32.xlu0 %v2780
  %v2782 = vpop.xlane.xlu0 %2781
  %v2783 = vsub.f32 %v2753, %v2773
  %v2784 = vsub.f32 %v2758, %v2776
  %v2785 = vsub.f32 %v2763, %v2779
  %v2786 = vsub.f32 %v2768, %v2782
  %v2787 = vmul.f32 %v2783, 1.442695
  %v2788 = vpow.pop %v2787
  %v2789 = vmul.f32 %v2784, 1.442695
  %v2790 = vpow.pop %v2789
  %v2791 = vmul.f32 %v2785, 1.442695
  %v2792 = vpow.pop %v2791
  %v2793 = vmul.f32 %v2786, 1.442695
  %v2794 = vpow.pop %v2793
  %v2795 = vsel %vm77, %v2788, 0.0
  %2796 = vadd.xlane.f32.xlu0 %v2795
  %v2797 = vpop.xlane.xlu0 %2796
  %v2798 = vsel %vm77, %v2790, 0.0
  %2799 = vadd.xlane.f32.xlu0 %v2798
  %v2800 = vpop.xlane.xlu0 %2799
  %v2801 = vsel %vm77, %v2792, 0.0
  %2802 = vadd.xlane.f32.xlu0 %v2801
  %v2803 = vpop.xlane.xlu0 %2802
  %v2804 = vsel %vm77, %v2794, 0.0
  %2805 = vadd.xlane.f32.xlu0 %v2804
  %v2806 = vpop.xlane.xlu0 %2805
  %v2807 = vrcp.pop %v2797
  %v2808 = vrcp.pop %v2800
  %v2809 = vrcp.pop %v2803
  %v2810 = vrcp.pop %v2806
  %v2811 = vmul.f32 %v2788, %v2807
  %v2812 = vmul.f32 %v2790, %v2808
  %v2813 = vmul.f32 %v2792, %v2809
  %v2814 = vmul.f32 %v2794, %v2810
  %s2815 = scalar_lea.vmem %s21, 160
  %2816 = vst.msk [vmem:[%s2815] sm:$0xff] %vm77, %v2811
  %2817 = vst.msk [vmem:[%s2815 + $0x8] sm:$0xff] %vm77, %v2812
  %2818 = vst.msk [vmem:[%s2815 + $0x10] sm:$0xff] %vm77, %v2813
  %2819 = vst.msk [vmem:[%s2815 + $0x18] sm:$0xff] %vm77, %v2814
  %2820 = vrot.lane.b32.xlu0 %v2352, 56
  %v2821 = vpop.permute.xlu0 %2820
  %2822 = vrot.lane.b32.xlu0 %v2357, 56
  %v2823 = vpop.permute.xlu0 %2822
  %2824 = vrot.lane.b32.xlu0 %v2362, 56
  %v2825 = vpop.permute.xlu0 %2824
  %2826 = vrot.lane.b32.xlu0 %v2367, 56
  %v2827 = vpop.permute.xlu0 %2826
  %v2833 = vsel %vm77, %v2811, 0
  %v2836 = vsel %vm77, %v2812, 0
  %v2839 = vsel %vm77, %v2813, 0
  %v2842 = vsel %vm77, %v2814, 0
  %2844 = vmatprep.subr.mxu0 0.0
  %2845 = vmatpush1.msra.mxu0 %v2821
  %2846 = vmatprep.subr.mxu0 0.0
  %2847 = vmatpush1.msra.mxu0 %v2823
  %2848 = vmatprep.subr.mxu0 0.0
  %2849 = vmatpush1.msra.mxu0 %v2825
  %2850 = vmatprep.subr.mxu0 0.0
  %2851 = vmatpush1.msra.mxu0 %v2827
  %2852 = vmatprep.subr.mxu0 0.0
  %2853 = vmatpush1.msra.mxu0 0.0
  %2854 = vmatprep.subr.mxu0 0.0
  %2855 = vmatpush1.msra.mxu0 0.0
  %2856 = vmatprep.subr.mxu0 0.0
  %2857 = vmatpush1.msra.mxu0 0.0
  %2858 = vmatprep.subr.mxu0 0.0
  %2859 = vmatpush1.msra.mxu0 0.0
  %2860 = vmatprep.subr.mxu0 0.0
  %2861 = vmatpush1.msra.mxu0 0.0
  %2862 = vmatprep.subr.mxu0 0.0
  %2863 = vmatpush1.msra.mxu0 0.0
  %2864 = vmatprep.subr.mxu0 0.0
  %2865 = vmatpush1.msra.mxu0 0.0
  %2866 = vmatprep.subr.mxu0 0.0
  %2867 = vmatpush1.msra.mxu0 0.0
  %2868 = vmatprep.subr.mxu0 0.0
  %2869 = vmatpush1.msra.mxu0 0.0
  %2870 = vmatprep.subr.mxu0 0.0
  %2871 = vmatpush1.msra.mxu0 0.0
  %2872 = vmatprep.subr.mxu0 0.0
  %2873 = vmatpush1.msra.mxu0 0.0
  %2874 = vmatprep.subr.mxu0 0.0
  %2875 = vmatpush1.msra.mxu0 0.0
  %2876 = vmatprep.subr.mxu0 0.0
  %2877 = vmatpush1.msra.mxu0 0.0
  %2878 = vmatprep.subr.mxu0 0.0
  %2879 = vmatpush1.msra.mxu0 0.0
  %2880 = vmatprep.subr.mxu0 0.0
  %2881 = vmatpush1.msra.mxu0 0.0
  %2882 = vmatprep.subr.mxu0 0.0
  %2883 = vmatpush1.msra.mxu0 0.0
  %2884 = vmatprep.subr.mxu0 0.0
  %2885 = vmatpush1.msra.mxu0 0.0
  %2886 = vmatprep.subr.mxu0 0.0
  %2887 = vmatpush1.msra.mxu0 0.0
  %2888 = vmatprep.subr.mxu0 0.0
  %2889 = vmatpush1.msra.mxu0 0.0
  %2890 = vmatprep.subr.mxu0 0.0
  %2891 = vmatpush1.msra.mxu0 0.0
  %2892 = vmatprep.subr.mxu0 0.0
  %2893 = vmatpush1.msra.mxu0 0.0
  %2894 = vmatprep.subr.mxu0 0.0
  %2895 = vmatpush1.msra.mxu0 0.0
  %2896 = vmatprep.subr.mxu0 0.0
  %2897 = vmatpush1.msra.mxu0 0.0
  %2898 = vmatprep.subr.mxu0 0.0
  %2899 = vmatpush1.msra.mxu0 0.0
  %2900 = vmatprep.subr.mxu0 0.0
  %2901 = vmatpush1.msra.mxu0 0.0
  %2902 = vmatprep.subr.mxu0 0.0
  %2903 = vmatpush1.msra.mxu0 0.0
  %2904 = vmatprep.subr.mxu0 0.0
  %2905 = vmatpush1.msra.mxu0 0.0
  %2906 = vmatprep.subr.mxu0 0.0
  %2907 = vmatpush1.msra.mxu0 0.0
  %2908 = vmatprep.mubr.f32.mxu0 0.0
  %2909 = vmatmul.mubr.f32.gmra.mrb[0].mxu0 %v2833
  %v2910 = vpop.f32.mrb[0].mxu0
  %v2911 = vadd.f32 0.0, %v2910
  %v2912 = vpop.f32.mrb[0].mxu0
  %2913 = vmatprep.mubr.f32.mxu0 0.0
  %2914 = vmatmul.mubr.f32.gmra.mrb[0].mxu0 %v2836
  %v2915 = vpop.f32.mrb[0].mxu0
  %v2916 = vadd.f32 0.0, %v2915
  %v2917 = vpop.f32.mrb[0].mxu0
  %2918 = vmatprep.mubr.f32.mxu0 0.0
  %2919 = vmatmul.mubr.f32.gmra.mrb[0].mxu0 %v2839
  %v2920 = vpop.f32.mrb[0].mxu0
  %v2921 = vadd.f32 0.0, %v2920
  %v2922 = vpop.f32.mrb[0].mxu0
  %2923 = vmatprep.mubr.f32.mxu0 0.0
  %2924 = vmatmul.mubr.f32.gmra.mrb[0].mxu0 %v2842
  %v2925 = vpop.f32.mrb[0].mxu0
  %v2926 = vadd.f32 0.0, %v2925
  %v2927 = vpop.f32.mrb[0].mxu0
  %2928 = vdwg.mxu0
  %v2930 = vsel %vm279, %v2911, 0
  %v2933 = vsel %vm279, %v2916, 0
  %v2936 = vsel %vm279, %v2921, 0
  %v2939 = vsel %vm279, %v2926, 0
  %2941 = vmatprep.subr.mxu0 0.0
  %2942 = vmatpush1.msra.mxu0 %v2372
  %2943 = vmatprep.subr.mxu0 0.0
  %2944 = vmatpush1.msra.mxu0 0.0
  %2945 = vmatprep.subr.mxu0 0.0
  %2946 = vmatpush1.msra.mxu0 0.0
  %2947 = vmatprep.subr.mxu0 0.0
  %2948 = vmatpush1.msra.mxu0 0.0
  %2949 = vmatprep.subr.mxu0 0.0
  %2950 = vmatpush1.msra.mxu0 0.0
  %2951 = vmatprep.subr.mxu0 0.0
  %2952 = vmatpush1.msra.mxu0 0.0
  %2953 = vmatprep.subr.mxu0 0.0
  %2954 = vmatpush1.msra.mxu0 0.0
  %2955 = vmatprep.subr.mxu0 0.0
  %2956 = vmatpush1.msra.mxu0 0.0
  %2957 = vmatprep.subr.mxu0 0.0
  %2958 = vmatpush1.msra.mxu0 0.0
  %2959 = vmatprep.subr.mxu0 0.0
  %2960 = vmatpush1.msra.mxu0 0.0
  %2961 = vmatprep.subr.mxu0 0.0
  %2962 = vmatpush1.msra.mxu0 0.0
  %2963 = vmatprep.subr.mxu0 0.0
  %2964 = vmatpush1.msra.mxu0 0.0
  %2965 = vmatprep.subr.mxu0 0.0
  %2966 = vmatpush1.msra.mxu0 0.0
  %2967 = vmatprep.subr.mxu0 0.0
  %2968 = vmatpush1.msra.mxu0 0.0
  %2969 = vmatprep.subr.mxu0 0.0
  %2970 = vmatpush1.msra.mxu0 0.0
  %2971 = vmatprep.subr.mxu0 0.0
  %2972 = vmatpush1.msra.mxu0 0.0
  %2973 = vmatprep.subr.mxu0 0.0
  %2974 = vmatpush1.msra.mxu0 0.0
  %2975 = vmatprep.subr.mxu0 0.0
  %2976 = vmatpush1.msra.mxu0 0.0
  %2977 = vmatprep.subr.mxu0 0.0
  %2978 = vmatpush1.msra.mxu0 0.0
  %2979 = vmatprep.subr.mxu0 0.0
  %2980 = vmatpush1.msra.mxu0 0.0
  %2981 = vmatprep.subr.mxu0 0.0
  %2982 = vmatpush1.msra.mxu0 0.0
  %2983 = vmatprep.subr.mxu0 0.0
  %2984 = vmatpush1.msra.mxu0 0.0
  %2985 = vmatprep.subr.mxu0 0.0
  %2986 = vmatpush1.msra.mxu0 0.0
  %2987 = vmatprep.subr.mxu0 0.0
  %2988 = vmatpush1.msra.mxu0 0.0
  %2989 = vmatprep.subr.mxu0 0.0
  %2990 = vmatpush1.msra.mxu0 0.0
  %2991 = vmatprep.subr.mxu0 0.0
  %2992 = vmatpush1.msra.mxu0 0.0
  %2993 = vmatprep.subr.mxu0 0.0
  %2994 = vmatpush1.msra.mxu0 0.0
  %2995 = vmatprep.subr.mxu0 0.0
  %2996 = vmatpush1.msra.mxu0 0.0
  %2997 = vmatprep.subr.mxu0 0.0
  %2998 = vmatpush1.msra.mxu0 0.0
  %2999 = vmatprep.subr.mxu0 0.0
  %3000 = vmatpush1.msra.mxu0 0.0
  %3001 = vmatprep.subr.mxu0 0.0
  %3002 = vmatpush1.msra.mxu0 0.0
  %3003 = vmatprep.subr.mxu0 0.0
  %3004 = vmatpush1.msra.mxu0 0.0
  %3005 = vmatprep.mubr.f32.mxu0 0.0
  %3006 = vmatmul.mubr.f32.gmra.mrb[0].mxu0 %v2930
  %v3007 = vpop.f32.mrb[0].mxu0
  %v3008 = vadd.f32 0.0, %v3007
  %v3009 = vpop.f32.mrb[0].mxu0
  %3010 = vmatprep.mubr.f32.mxu0 0.0
  %3011 = vmatmul.mubr.f32.gmra.mrb[0].mxu0 %v2933
  %v3012 = vpop.f32.mrb[0].mxu0
  %v3013 = vadd.f32 0.0, %v3012
  %v3014 = vpop.f32.mrb[0].mxu0
  %3015 = vmatprep.mubr.f32.mxu0 0.0
  %3016 = vmatmul.mubr.f32.gmra.mrb[0].mxu0 %v2936
  %v3017 = vpop.f32.mrb[0].mxu0
  %v3018 = vadd.f32 0.0, %v3017
  %v3019 = vpop.f32.mrb[0].mxu0
  %3020 = vmatprep.mubr.f32.mxu0 0.0
  %3021 = vmatmul.mubr.f32.gmra.mrb[0].mxu0 %v2939
  %v3022 = vpop.f32.mrb[0].mxu0
  %v3023 = vadd.f32 0.0, %v3022
  %v3024 = vpop.f32.mrb[0].mxu0
  %3025 = vdwg.mxu0
  %v3027 = vsel %vm279, %v2636, 0
  %v3030 = vsel %vm279, %v2641, 0
  %v3033 = vsel %vm279, %v2646, 0
  %v3036 = vsel %vm279, %v2651, 0
  %3038 = vmatprep.subr.mxu0 0.0
  %3039 = vmatpush1.msra.mxu0 %v2371
  %3040 = vmatprep.subr.mxu0 0.0
  %3041 = vmatpush1.msra.mxu0 0.0
  %3042 = vmatprep.subr.mxu0 0.0
  %3043 = vmatpush1.msra.mxu0 0.0
  %3044 = vmatprep.subr.mxu0 0.0
  %3045 = vmatpush1.msra.mxu0 0.0
  %3046 = vmatprep.subr.mxu0 0.0
  %3047 = vmatpush1.msra.mxu0 0.0
  %3048 = vmatprep.subr.mxu0 0.0
  %3049 = vmatpush1.msra.mxu0 0.0
  %3050 = vmatprep.subr.mxu0 0.0
  %3051 = vmatpush1.msra.mxu0 0.0
  %3052 = vmatprep.subr.mxu0 0.0
  %3053 = vmatpush1.msra.mxu0 0.0
  %3054 = vmatprep.subr.mxu0 0.0
  %3055 = vmatpush1.msra.mxu0 0.0
  %3056 = vmatprep.subr.mxu0 0.0
  %3057 = vmatpush1.msra.mxu0 0.0
  %3058 = vmatprep.subr.mxu0 0.0
  %3059 = vmatpush1.msra.mxu0 0.0
  %3060 = vmatprep.subr.mxu0 0.0
  %3061 = vmatpush1.msra.mxu0 0.0
  %3062 = vmatprep.subr.mxu0 0.0
  %3063 = vmatpush1.msra.mxu0 0.0
  %3064 = vmatprep.subr.mxu0 0.0
  %3065 = vmatpush1.msra.mxu0 0.0
  %3066 = vmatprep.subr.mxu0 0.0
  %3067 = vmatpush1.msra.mxu0 0.0
  %3068 = vmatprep.subr.mxu0 0.0
  %3069 = vmatpush1.msra.mxu0 0.0
  %3070 = vmatprep.subr.mxu0 0.0
  %3071 = vmatpush1.msra.mxu0 0.0
  %3072 = vmatprep.subr.mxu0 0.0
  %3073 = vmatpush1.msra.mxu0 0.0
  %3074 = vmatprep.subr.mxu0 0.0
  %3075 = vmatpush1.msra.mxu0 0.0
  %3076 = vmatprep.subr.mxu0 0.0
  %3077 = vmatpush1.msra.mxu0 0.0
  %3078 = vmatprep.subr.mxu0 0.0
  %3079 = vmatpush1.msra.mxu0 0.0
  %3080 = vmatprep.subr.mxu0 0.0
  %3081 = vmatpush1.msra.mxu0 0.0
  %3082 = vmatprep.subr.mxu0 0.0
  %3083 = vmatpush1.msra.mxu0 0.0
  %3084 = vmatprep.subr.mxu0 0.0
  %3085 = vmatpush1.msra.mxu0 0.0
  %3086 = vmatprep.subr.mxu0 0.0
  %3087 = vmatpush1.msra.mxu0 0.0
  %3088 = vmatprep.subr.mxu0 0.0
  %3089 = vmatpush1.msra.mxu0 0.0
  %3090 = vmatprep.subr.mxu0 0.0
  %3091 = vmatpush1.msra.mxu0 0.0
  %3092 = vmatprep.subr.mxu0 0.0
  %3093 = vmatpush1.msra.mxu0 0.0
  %3094 = vmatprep.subr.mxu0 0.0
  %3095 = vmatpush1.msra.mxu0 0.0
  %3096 = vmatprep.subr.mxu0 0.0
  %3097 = vmatpush1.msra.mxu0 0.0
  %3098 = vmatprep.subr.mxu0 0.0
  %3099 = vmatpush1.msra.mxu0 0.0
  %3100 = vmatprep.subr.mxu0 0.0
  %3101 = vmatpush1.msra.mxu0 0.0
  %3102 = vmatprep.mubr.f32.mxu0 0.0
  %3103 = vmatmul.mubr.f32.gmra.mrb[0].mxu0 %v3027
  %v3104 = vpop.f32.mrb[0].mxu0
  %v3105 = vadd.f32 %v3008, %v3104
  %v3106 = vpop.f32.mrb[0].mxu0
  %3107 = vmatprep.mubr.f32.mxu0 0.0
  %3108 = vmatmul.mubr.f32.gmra.mrb[0].mxu0 %v3030
  %v3109 = vpop.f32.mrb[0].mxu0
  %v3110 = vadd.f32 %v3013, %v3109
  %v3111 = vpop.f32.mrb[0].mxu0
  %3112 = vmatprep.mubr.f32.mxu0 0.0
  %3113 = vmatmul.mubr.f32.gmra.mrb[0].mxu0 %v3033
  %v3114 = vpop.f32.mrb[0].mxu0
  %v3115 = vadd.f32 %v3018, %v3114
  %v3116 = vpop.f32.mrb[0].mxu0
  %3117 = vmatprep.mubr.f32.mxu0 0.0
  %3118 = vmatmul.mubr.f32.gmra.mrb[0].mxu0 %v3036
  %v3119 = vpop.f32.mrb[0].mxu0
  %v3120 = vadd.f32 %v3023, %v3119
  %v3121 = vpop.f32.mrb[0].mxu0
  %3122 = vdwg.mxu0
  %3123 = vrot.lane.b32.xlu0 %v2375, 112
  %v3124 = vpop.permute.xlu0 %3123
  %3125 = vrot.lane.b32.xlu0 %v2376, 112
  %v3126 = vpop.permute.xlu0 %3125
  %3127 = vrot.lane.b32.xlu0 %v2377, 112
  %v3128 = vpop.permute.xlu0 %3127
  %3129 = vrot.lane.b32.xlu0 %v2378, 112
  %v3130 = vpop.permute.xlu0 %3129
  %3131 = vrot.lane.b32.xlu0 %v2352, 80
  %v3132 = vpop.permute.xlu0 %3131
  %3133 = vrot.lane.b32.xlu0 %v2357, 80
  %v3134 = vpop.permute.xlu0 %3133
  %3135 = vrot.lane.b32.xlu0 %v2362, 80
  %v3136 = vpop.permute.xlu0 %3135
  %3137 = vrot.lane.b32.xlu0 %v2367, 80
  %v3138 = vpop.permute.xlu0 %3137
  %v3139 = vsel %vm279, %v3124, 0
  %v3141 = vsel %vm279, %v3126, 0
  %v3143 = vsel %vm279, %v3128, 0
  %v3145 = vsel %vm279, %v3130, 0
  %v3147 = vsel %vm279, %v3132, 0
  %v3149 = vsel %vm279, %v3134, 0
  %v3151 = vsel %vm279, %v3136, 0
  %v3153 = vsel %vm279, %v3138, 0
  %3155 = vmatprep.subr.mxu0 0.0
  %3156 = vmatpush1.xpose.msra.mxu0 %v3147
  %3157 = vmatprep.subr.mxu0 0.0
  %3158 = vmatpush1.xpose.msra.mxu0 %v3149
  %3159 = vmatprep.subr.mxu0 0.0
  %3160 = vmatpush1.xpose.msra.mxu0 %v3151
  %3161 = vmatprep.subr.mxu0 0.0
  %3162 = vmatpush1.xpose.msra.mxu0 %v3153
  %3163 = vmatprep.subr.mxu0 0.0
  %3164 = vmatpush1.xpose.msra.mxu0 0.0
  %3165 = vmatprep.subr.mxu0 0.0
  %3166 = vmatpush1.xpose.msra.mxu0 0.0
  %3167 = vmatprep.subr.mxu0 0.0
  %3168 = vmatpush1.xpose.msra.mxu0 0.0
  %3169 = vmatprep.subr.mxu0 0.0
  %3170 = vmatpush1.xpose.msra.mxu0 0.0
  %3171 = vmatprep.subr.mxu0 0.0
  %3172 = vmatpush1.xpose.msra.mxu0 0.0
  %3173 = vmatprep.subr.mxu0 0.0
  %3174 = vmatpush1.xpose.msra.mxu0 0.0
  %3175 = vmatprep.subr.mxu0 0.0
  %3176 = vmatpush1.xpose.msra.mxu0 0.0
  %3177 = vmatprep.subr.mxu0 0.0
  %3178 = vmatpush1.xpose.msra.mxu0 0.0
  %3179 = vmatprep.subr.mxu0 0.0
  %3180 = vmatpush1.xpose.msra.mxu0 0.0
  %3181 = vmatprep.subr.mxu0 0.0
  %3182 = vmatpush1.xpose.msra.mxu0 0.0
  %3183 = vmatprep.subr.mxu0 0.0
  %3184 = vmatpush1.xpose.msra.mxu0 0.0
  %3185 = vmatprep.subr.mxu0 0.0
  %3186 = vmatpush1.xpose.msra.mxu0 0.0
  %3187 = vmatprep.subr.mxu0 0.0
  %3188 = vmatpush1.xpose.msra.mxu0 0.0
  %3189 = vmatprep.subr.mxu0 0.0
  %3190 = vmatpush1.xpose.msra.mxu0 0.0
  %3191 = vmatprep.subr.mxu0 0.0
  %3192 = vmatpush1.xpose.msra.mxu0 0.0
  %3193 = vmatprep.subr.mxu0 0.0
  %3194 = vmatpush1.xpose.msra.mxu0 0.0
  %3195 = vmatprep.subr.mxu0 0.0
  %3196 = vmatpush1.xpose.msra.mxu0 0.0
  %3197 = vmatprep.subr.mxu0 0.0
  %3198 = vmatpush1.xpose.msra.mxu0 0.0
  %3199 = vmatprep.subr.mxu0 0.0
  %3200 = vmatpush1.xpose.msra.mxu0 0.0
  %3201 = vmatprep.subr.mxu0 0.0
  %3202 = vmatpush1.xpose.msra.mxu0 0.0
  %3203 = vmatprep.subr.mxu0 0.0
  %3204 = vmatpush1.xpose.msra.mxu0 0.0
  %3205 = vmatprep.subr.mxu0 0.0
  %3206 = vmatpush1.xpose.msra.mxu0 0.0
  %3207 = vmatprep.subr.mxu0 0.0
  %3208 = vmatpush1.xpose.msra.mxu0 0.0
  %3209 = vmatprep.subr.mxu0 0.0
  %3210 = vmatpush1.xpose.msra.mxu0 0.0
  %3211 = vmatprep.subr.mxu0 0.0
  %3212 = vmatpush1.xpose.msra.mxu0 0.0
  %3213 = vmatprep.subr.mxu0 0.0
  %3214 = vmatpush1.xpose.msra.mxu0 0.0
  %3215 = vmatprep.subr.mxu0 0.0
  %3216 = vmatpush1.xpose.msra.mxu0 0.0
  %3217 = vmatprep.subr.mxu0 0.0
  %3218 = vmatpush1.xpose.msra.mxu0 0.0
  %3219 = vmatprep.mubr.f32.mxu0 0.0
  %3220 = vmatmul.mubr.f32.gmra.mrb[0].mxu0 %v3139
  %v3221 = vpop.f32.mrb[0].mxu0
  %v3222 = vadd.f32 %v67, %v3221
  %v3223 = vpop.f32.mrb[0].mxu0
  %3224 = vmatprep.mubr.f32.mxu0 0.0
  %3225 = vmatmul.mubr.f32.gmra.mrb[0].mxu0 %v3141
  %v3226 = vpop.f32.mrb[0].mxu0
  %v3227 = vadd.f32 %v68, %v3226
  %v3228 = vpop.f32.mrb[0].mxu0
  %3229 = vmatprep.mubr.f32.mxu0 0.0
  %3230 = vmatmul.mubr.f32.gmra.mrb[0].mxu0 %v3143
  %v3231 = vpop.f32.mrb[0].mxu0
  %v3232 = vadd.f32 %v69, %v3231
  %v3233 = vpop.f32.mrb[0].mxu0
  %3234 = vmatprep.mubr.f32.mxu0 0.0
  %3235 = vmatmul.mubr.f32.gmra.mrb[0].mxu0 %v3145
  %v3236 = vpop.f32.mrb[0].mxu0
  %v3237 = vadd.f32 %v70, %v3236
  %v3238 = vpop.f32.mrb[0].mxu0
  %3239 = vdwg.mxu0
  %v3240 = vsel %vm77, %v3222, -inf
  %3241 = vmax.xlane.f32.xlu0 %v3240
  %v3242 = vpop.xlane.xlu0 %3241
  %v3243 = vsel %vm77, %v3227, -inf
  %3244 = vmax.xlane.f32.xlu0 %v3243
  %v3245 = vpop.xlane.xlu0 %3244
  %v3246 = vsel %vm77, %v3232, -inf
  %3247 = vmax.xlane.f32.xlu0 %v3246
  %v3248 = vpop.xlane.xlu0 %3247
  %v3249 = vsel %vm77, %v3237, -inf
  %3250 = vmax.xlane.f32.xlu0 %v3249
  %v3251 = vpop.xlane.xlu0 %3250
  %v3252 = vsub.f32 %v3222, %v3242
  %v3253 = vsub.f32 %v3227, %v3245
  %v3254 = vsub.f32 %v3232, %v3248
  %v3255 = vsub.f32 %v3237, %v3251
  %v3256 = vmul.f32 %v3252, 1.442695
  %v3257 = vpow.pop %v3256
  %v3258 = vmul.f32 %v3253, 1.442695
  %v3259 = vpow.pop %v3258
  %v3260 = vmul.f32 %v3254, 1.442695
  %v3261 = vpow.pop %v3260
  %v3262 = vmul.f32 %v3255, 1.442695
  %v3263 = vpow.pop %v3262
  %v3264 = vsel %vm77, %v3257, 0.0
  %3265 = vadd.xlane.f32.xlu0 %v3264
  %v3266 = vpop.xlane.xlu0 %3265
  %v3267 = vsel %vm77, %v3259, 0.0
  %3268 = vadd.xlane.f32.xlu0 %v3267
  %v3269 = vpop.xlane.xlu0 %3268
  %v3270 = vsel %vm77, %v3261, 0.0
  %3271 = vadd.xlane.f32.xlu0 %v3270
  %v3272 = vpop.xlane.xlu0 %3271
  %v3273 = vsel %vm77, %v3263, 0.0
  %3274 = vadd.xlane.f32.xlu0 %v3273
  %v3275 = vpop.xlane.xlu0 %3274
  %v3276 = vrcp.pop %v3266
  %v3277 = vrcp.pop %v3269
  %v3278 = vrcp.pop %v3272
  %v3279 = vrcp.pop %v3275
  %v3280 = vmul.f32 %v3257, %v3276
  %v3281 = vmul.f32 %v3259, %v3277
  %v3282 = vmul.f32 %v3261, %v3278
  %v3283 = vmul.f32 %v3263, %v3279
  %s3284 = scalar_lea.vmem %s21, 192
  %3285 = vst.msk [vmem:[%s3284] sm:$0xff] %vm77, %v3280
  %3286 = vst.msk [vmem:[%s3284 + $0x8] sm:$0xff] %vm77, %v3281
  %3287 = vst.msk [vmem:[%s3284 + $0x10] sm:$0xff] %vm77, %v3282
  %3288 = vst.msk [vmem:[%s3284 + $0x18] sm:$0xff] %vm77, %v3283
  %3289 = vrot.lane.b32.xlu0 %v2352, 48
  %v3290 = vpop.permute.xlu0 %3289
  %3291 = vrot.lane.b32.xlu0 %v2357, 48
  %v3292 = vpop.permute.xlu0 %3291
  %3293 = vrot.lane.b32.xlu0 %v2362, 48
  %v3294 = vpop.permute.xlu0 %3293
  %3295 = vrot.lane.b32.xlu0 %v2367, 48
  %v3296 = vpop.permute.xlu0 %3295
  %v3302 = vsel %vm77, %v3280, 0
  %v3305 = vsel %vm77, %v3281, 0
  %v3308 = vsel %vm77, %v3282, 0
  %v3311 = vsel %vm77, %v3283, 0
  %3313 = vmatprep.subr.mxu0 0.0
  %3314 = vmatpush1.msra.mxu0 %v3290
  %3315 = vmatprep.subr.mxu0 0.0
  %3316 = vmatpush1.msra.mxu0 %v3292
  %3317 = vmatprep.subr.mxu0 0.0
  %3318 = vmatpush1.msra.mxu0 %v3294
  %3319 = vmatprep.subr.mxu0 0.0
  %3320 = vmatpush1.msra.mxu0 %v3296
  %3321 = vmatprep.subr.mxu0 0.0
  %3322 = vmatpush1.msra.mxu0 0.0
  %3323 = vmatprep.subr.mxu0 0.0
  %3324 = vmatpush1.msra.mxu0 0.0
  %3325 = vmatprep.subr.mxu0 0.0
  %3326 = vmatpush1.msra.mxu0 0.0
  %3327 = vmatprep.subr.mxu0 0.0
  %3328 = vmatpush1.msra.mxu0 0.0
  %3329 = vmatprep.subr.mxu0 0.0
  %3330 = vmatpush1.msra.mxu0 0.0
  %3331 = vmatprep.subr.mxu0 0.0
  %3332 = vmatpush1.msra.mxu0 0.0
  %3333 = vmatprep.subr.mxu0 0.0
  %3334 = vmatpush1.msra.mxu0 0.0
  %3335 = vmatprep.subr.mxu0 0.0
  %3336 = vmatpush1.msra.mxu0 0.0
  %3337 = vmatprep.subr.mxu0 0.0
  %3338 = vmatpush1.msra.mxu0 0.0
  %3339 = vmatprep.subr.mxu0 0.0
  %3340 = vmatpush1.msra.mxu0 0.0
  %3341 = vmatprep.subr.mxu0 0.0
  %3342 = vmatpush1.msra.mxu0 0.0
  %3343 = vmatprep.subr.mxu0 0.0
  %3344 = vmatpush1.msra.mxu0 0.0
  %3345 = vmatprep.subr.mxu0 0.0
  %3346 = vmatpush1.msra.mxu0 0.0
  %3347 = vmatprep.subr.mxu0 0.0
  %3348 = vmatpush1.msra.mxu0 0.0
  %3349 = vmatprep.subr.mxu0 0.0
  %3350 = vmatpush1.msra.mxu0 0.0
  %3351 = vmatprep.subr.mxu0 0.0
  %3352 = vmatpush1.msra.mxu0 0.0
  %3353 = vmatprep.subr.mxu0 0.0
  %3354 = vmatpush1.msra.mxu0 0.0
  %3355 = vmatprep.subr.mxu0 0.0
  %3356 = vmatpush1.msra.mxu0 0.0
  %3357 = vmatprep.subr.mxu0 0.0
  %3358 = vmatpush1.msra.mxu0 0.0
  %3359 = vmatprep.subr.mxu0 0.0
  %3360 = vmatpush1.msra.mxu0 0.0
  %3361 = vmatprep.subr.mxu0 0.0
  %3362 = vmatpush1.msra.mxu0 0.0
  %3363 = vmatprep.subr.mxu0 0.0
  %3364 = vmatpush1.msra.mxu0 0.0
  %3365 = vmatprep.subr.mxu0 0.0
  %3366 = vmatpush1.msra.mxu0 0.0
  %3367 = vmatprep.subr.mxu0 0.0
  %3368 = vmatpush1.msra.mxu0 0.0
  %3369 = vmatprep.subr.mxu0 0.0
  %3370 = vmatpush1.msra.mxu0 0.0
  %3371 = vmatprep.subr.mxu0 0.0
  %3372 = vmatpush1.msra.mxu0 0.0
  %3373 = vmatprep.subr.mxu0 0.0
  %3374 = vmatpush1.msra.mxu0 0.0
  %3375 = vmatprep.subr.mxu0 0.0
  %3376 = vmatpush1.msra.mxu0 0.0
  %3377 = vmatprep.mubr.f32.mxu0 0.0
  %3378 = vmatmul.mubr.f32.gmra.mrb[0].mxu0 %v3302
  %v3379 = vpop.f32.mrb[0].mxu0
  %v3380 = vadd.f32 0.0, %v3379
  %v3381 = vpop.f32.mrb[0].mxu0
  %3382 = vmatprep.mubr.f32.mxu0 0.0
  %3383 = vmatmul.mubr.f32.gmra.mrb[0].mxu0 %v3305
  %v3384 = vpop.f32.mrb[0].mxu0
  %v3385 = vadd.f32 0.0, %v3384
  %v3386 = vpop.f32.mrb[0].mxu0
  %3387 = vmatprep.mubr.f32.mxu0 0.0
  %3388 = vmatmul.mubr.f32.gmra.mrb[0].mxu0 %v3308
  %v3389 = vpop.f32.mrb[0].mxu0
  %v3390 = vadd.f32 0.0, %v3389
  %v3391 = vpop.f32.mrb[0].mxu0
  %3392 = vmatprep.mubr.f32.mxu0 0.0
  %3393 = vmatmul.mubr.f32.gmra.mrb[0].mxu0 %v3311
  %v3394 = vpop.f32.mrb[0].mxu0
  %v3395 = vadd.f32 0.0, %v3394
  %v3396 = vpop.f32.mrb[0].mxu0
  %3397 = vdwg.mxu0
  %v3399 = vsel %vm279, %v3380, 0
  %v3402 = vsel %vm279, %v3385, 0
  %v3405 = vsel %vm279, %v3390, 0
  %v3408 = vsel %vm279, %v3395, 0
  %3410 = vmatprep.subr.mxu0 0.0
  %3411 = vmatpush1.msra.mxu0 %v2373
  %3412 = vmatprep.subr.mxu0 0.0
  %3413 = vmatpush1.msra.mxu0 0.0
  %3414 = vmatprep.subr.mxu0 0.0
  %3415 = vmatpush1.msra.mxu0 0.0
  %3416 = vmatprep.subr.mxu0 0.0
  %3417 = vmatpush1.msra.mxu0 0.0
  %3418 = vmatprep.subr.mxu0 0.0
  %3419 = vmatpush1.msra.mxu0 0.0
  %3420 = vmatprep.subr.mxu0 0.0
  %3421 = vmatpush1.msra.mxu0 0.0
  %3422 = vmatprep.subr.mxu0 0.0
  %3423 = vmatpush1.msra.mxu0 0.0
  %3424 = vmatprep.subr.mxu0 0.0
  %3425 = vmatpush1.msra.mxu0 0.0
  %3426 = vmatprep.subr.mxu0 0.0
  %3427 = vmatpush1.msra.mxu0 0.0
  %3428 = vmatprep.subr.mxu0 0.0
  %3429 = vmatpush1.msra.mxu0 0.0
  %3430 = vmatprep.subr.mxu0 0.0
  %3431 = vmatpush1.msra.mxu0 0.0
  %3432 = vmatprep.subr.mxu0 0.0
  %3433 = vmatpush1.msra.mxu0 0.0
  %3434 = vmatprep.subr.mxu0 0.0
  %3435 = vmatpush1.msra.mxu0 0.0
  %3436 = vmatprep.subr.mxu0 0.0
  %3437 = vmatpush1.msra.mxu0 0.0
  %3438 = vmatprep.subr.mxu0 0.0
  %3439 = vmatpush1.msra.mxu0 0.0
  %3440 = vmatprep.subr.mxu0 0.0
  %3441 = vmatpush1.msra.mxu0 0.0
  %3442 = vmatprep.subr.mxu0 0.0
  %3443 = vmatpush1.msra.mxu0 0.0
  %3444 = vmatprep.subr.mxu0 0.0
  %3445 = vmatpush1.msra.mxu0 0.0
  %3446 = vmatprep.subr.mxu0 0.0
  %3447 = vmatpush1.msra.mxu0 0.0
  %3448 = vmatprep.subr.mxu0 0.0
  %3449 = vmatpush1.msra.mxu0 0.0
  %3450 = vmatprep.subr.mxu0 0.0
  %3451 = vmatpush1.msra.mxu0 0.0
  %3452 = vmatprep.subr.mxu0 0.0
  %3453 = vmatpush1.msra.mxu0 0.0
  %3454 = vmatprep.subr.mxu0 0.0
  %3455 = vmatpush1.msra.mxu0 0.0
  %3456 = vmatprep.subr.mxu0 0.0
  %3457 = vmatpush1.msra.mxu0 0.0
  %3458 = vmatprep.subr.mxu0 0.0
  %3459 = vmatpush1.msra.mxu0 0.0
  %3460 = vmatprep.subr.mxu0 0.0
  %3461 = vmatpush1.msra.mxu0 0.0
  %3462 = vmatprep.subr.mxu0 0.0
  %3463 = vmatpush1.msra.mxu0 0.0
  %3464 = vmatprep.subr.mxu0 0.0
  %3465 = vmatpush1.msra.mxu0 0.0
  %3466 = vmatprep.subr.mxu0 0.0
  %3467 = vmatpush1.msra.mxu0 0.0
  %3468 = vmatprep.subr.mxu0 0.0
  %3469 = vmatpush1.msra.mxu0 0.0
  %3470 = vmatprep.subr.mxu0 0.0
  %3471 = vmatpush1.msra.mxu0 0.0
  %3472 = vmatprep.subr.mxu0 0.0
  %3473 = vmatpush1.msra.mxu0 0.0
  %3474 = vmatprep.mubr.f32.mxu0 0.0
  %3475 = vmatmul.mubr.f32.gmra.mrb[0].mxu0 %v3399
  %v3476 = vpop.f32.mrb[0].mxu0
  %v3477 = vadd.f32 0.0, %v3476
  %v3478 = vpop.f32.mrb[0].mxu0
  %3479 = vmatprep.mubr.f32.mxu0 0.0
  %3480 = vmatmul.mubr.f32.gmra.mrb[0].mxu0 %v3402
  %v3481 = vpop.f32.mrb[0].mxu0
  %v3482 = vadd.f32 0.0, %v3481
  %v3483 = vpop.f32.mrb[0].mxu0
  %3484 = vmatprep.mubr.f32.mxu0 0.0
  %3485 = vmatmul.mubr.f32.gmra.mrb[0].mxu0 %v3405
  %v3486 = vpop.f32.mrb[0].mxu0
  %v3487 = vadd.f32 0.0, %v3486
  %v3488 = vpop.f32.mrb[0].mxu0
  %3489 = vmatprep.mubr.f32.mxu0 0.0
  %3490 = vmatmul.mubr.f32.gmra.mrb[0].mxu0 %v3408
  %v3491 = vpop.f32.mrb[0].mxu0
  %v3492 = vadd.f32 0.0, %v3491
  %v3493 = vpop.f32.mrb[0].mxu0
  %3494 = vdwg.mxu0
  %v3495 = vadd.f32 %v3105, %v3477
  %v3496 = vadd.f32 %v3110, %v3482
  %v3497 = vadd.f32 %v3115, %v3487
  %v3498 = vadd.f32 %v3120, %v3492
  %3499 = vrot.lane.b32.xlu0 %v2375, 104
  %v3500 = vpop.permute.xlu0 %3499
  %3501 = vrot.lane.b32.xlu0 %v2376, 104
  %v3502 = vpop.permute.xlu0 %3501
  %3503 = vrot.lane.b32.xlu0 %v2377, 104
  %v3504 = vpop.permute.xlu0 %3503
  %3505 = vrot.lane.b32.xlu0 %v2378, 104
  %v3506 = vpop.permute.xlu0 %3505
  %3507 = vrot.lane.b32.xlu0 %v2352, 72
  %v3508 = vpop.permute.xlu0 %3507
  %3509 = vrot.lane.b32.xlu0 %v2357, 72
  %v3510 = vpop.permute.xlu0 %3509
  %3511 = vrot.lane.b32.xlu0 %v2362, 72
  %v3512 = vpop.permute.xlu0 %3511
  %3513 = vrot.lane.b32.xlu0 %v2367, 72
  %v3514 = vpop.permute.xlu0 %3513
  %v3515 = vsel %vm279, %v3500, 0
  %v3517 = vsel %vm279, %v3502, 0
  %v3519 = vsel %vm279, %v3504, 0
  %v3521 = vsel %vm279, %v3506, 0
  %v3523 = vsel %vm279, %v3508, 0
  %v3525 = vsel %vm279, %v3510, 0
  %v3527 = vsel %vm279, %v3512, 0
  %v3529 = vsel %vm279, %v3514, 0
  %3531 = vmatprep.subr.mxu0 0.0
  %3532 = vmatpush1.xpose.msra.mxu0 %v3523
  %3533 = vmatprep.subr.mxu0 0.0
  %3534 = vmatpush1.xpose.msra.mxu0 %v3525
  %3535 = vmatprep.subr.mxu0 0.0
  %3536 = vmatpush1.xpose.msra.mxu0 %v3527
  %3537 = vmatprep.subr.mxu0 0.0
  %3538 = vmatpush1.xpose.msra.mxu0 %v3529
  %3539 = vmatprep.subr.mxu0 0.0
  %3540 = vmatpush1.xpose.msra.mxu0 0.0
  %3541 = vmatprep.subr.mxu0 0.0
  %3542 = vmatpush1.xpose.msra.mxu0 0.0
  %3543 = vmatprep.subr.mxu0 0.0
  %3544 = vmatpush1.xpose.msra.mxu0 0.0
  %3545 = vmatprep.subr.mxu0 0.0
  %3546 = vmatpush1.xpose.msra.mxu0 0.0
  %3547 = vmatprep.subr.mxu0 0.0
  %3548 = vmatpush1.xpose.msra.mxu0 0.0
  %3549 = vmatprep.subr.mxu0 0.0
  %3550 = vmatpush1.xpose.msra.mxu0 0.0
  %3551 = vmatprep.subr.mxu0 0.0
  %3552 = vmatpush1.xpose.msra.mxu0 0.0
  %3553 = vmatprep.subr.mxu0 0.0
  %3554 = vmatpush1.xpose.msra.mxu0 0.0
  %3555 = vmatprep.subr.mxu0 0.0
  %3556 = vmatpush1.xpose.msra.mxu0 0.0
  %3557 = vmatprep.subr.mxu0 0.0
  %3558 = vmatpush1.xpose.msra.mxu0 0.0
  %3559 = vmatprep.subr.mxu0 0.0
  %3560 = vmatpush1.xpose.msra.mxu0 0.0
  %3561 = vmatprep.subr.mxu0 0.0
  %3562 = vmatpush1.xpose.msra.mxu0 0.0
  %3563 = vmatprep.subr.mxu0 0.0
  %3564 = vmatpush1.xpose.msra.mxu0 0.0
  %3565 = vmatprep.subr.mxu0 0.0
  %3566 = vmatpush1.xpose.msra.mxu0 0.0
  %3567 = vmatprep.subr.mxu0 0.0
  %3568 = vmatpush1.xpose.msra.mxu0 0.0
  %3569 = vmatprep.subr.mxu0 0.0
  %3570 = vmatpush1.xpose.msra.mxu0 0.0
  %3571 = vmatprep.subr.mxu0 0.0
  %3572 = vmatpush1.xpose.msra.mxu0 0.0
  %3573 = vmatprep.subr.mxu0 0.0
  %3574 = vmatpush1.xpose.msra.mxu0 0.0
  %3575 = vmatprep.subr.mxu0 0.0
  %3576 = vmatpush1.xpose.msra.mxu0 0.0
  %3577 = vmatprep.subr.mxu0 0.0
  %3578 = vmatpush1.xpose.msra.mxu0 0.0
  %3579 = vmatprep.subr.mxu0 0.0
  %3580 = vmatpush1.xpose.msra.mxu0 0.0
  %3581 = vmatprep.subr.mxu0 0.0
  %3582 = vmatpush1.xpose.msra.mxu0 0.0
  %3583 = vmatprep.subr.mxu0 0.0
  %3584 = vmatpush1.xpose.msra.mxu0 0.0
  %3585 = vmatprep.subr.mxu0 0.0
  %3586 = vmatpush1.xpose.msra.mxu0 0.0
  %3587 = vmatprep.subr.mxu0 0.0
  %3588 = vmatpush1.xpose.msra.mxu0 0.0
  %3589 = vmatprep.subr.mxu0 0.0
  %3590 = vmatpush1.xpose.msra.mxu0 0.0
  %3591 = vmatprep.subr.mxu0 0.0
  %3592 = vmatpush1.xpose.msra.mxu0 0.0
  %3593 = vmatprep.subr.mxu0 0.0
  %3594 = vmatpush1.xpose.msra.mxu0 0.0
  %3595 = vmatprep.mubr.f32.mxu0 0.0
  %3596 = vmatmul.mubr.f32.gmra.mrb[0].mxu0 %v3515
  %v3597 = vpop.f32.mrb[0].mxu0
  %v3598 = vadd.f32 %v67, %v3597
  %v3599 = vpop.f32.mrb[0].mxu0
  %3600 = vmatprep.mubr.f32.mxu0 0.0
  %3601 = vmatmul.mubr.f32.gmra.mrb[0].mxu0 %v3517
  %v3602 = vpop.f32.mrb[0].mxu0
  %v3603 = vadd.f32 %v68, %v3602
  %v3604 = vpop.f32.mrb[0].mxu0
  %3605 = vmatprep.mubr.f32.mxu0 0.0
  %3606 = vmatmul.mubr.f32.gmra.mrb[0].mxu0 %v3519
  %v3607 = vpop.f32.mrb[0].mxu0
  %v3608 = vadd.f32 %v69, %v3607
  %v3609 = vpop.f32.mrb[0].mxu0
  %3610 = vmatprep.mubr.f32.mxu0 0.0
  %3611 = vmatmul.mubr.f32.gmra.mrb[0].mxu0 %v3521
  %v3612 = vpop.f32.mrb[0].mxu0
  %v3613 = vadd.f32 %v70, %v3612
  %v3614 = vpop.f32.mrb[0].mxu0
  %3615 = vdwg.mxu0
  %v3616 = vsel %vm77, %v3598, -inf
  %3617 = vmax.xlane.f32.xlu0 %v3616
  %v3618 = vpop.xlane.xlu0 %3617
  %v3619 = vsel %vm77, %v3603, -inf
  %3620 = vmax.xlane.f32.xlu0 %v3619
  %v3621 = vpop.xlane.xlu0 %3620
  %v3622 = vsel %vm77, %v3608, -inf
  %3623 = vmax.xlane.f32.xlu0 %v3622
  %v3624 = vpop.xlane.xlu0 %3623
  %v3625 = vsel %vm77, %v3613, -inf
  %3626 = vmax.xlane.f32.xlu0 %v3625
  %v3627 = vpop.xlane.xlu0 %3626
  %v3628 = vsub.f32 %v3598, %v3618
  %v3629 = vsub.f32 %v3603, %v3621
  %v3630 = vsub.f32 %v3608, %v3624
  %v3631 = vsub.f32 %v3613, %v3627
  %v3632 = vmul.f32 %v3628, 1.442695
  %v3633 = vpow.pop %v3632
  %v3634 = vmul.f32 %v3629, 1.442695
  %v3635 = vpow.pop %v3634
  %v3636 = vmul.f32 %v3630, 1.442695
  %v3637 = vpow.pop %v3636
  %v3638 = vmul.f32 %v3631, 1.442695
  %v3639 = vpow.pop %v3638
  %v3640 = vsel %vm77, %v3633, 0.0
  %3641 = vadd.xlane.f32.xlu0 %v3640
  %v3642 = vpop.xlane.xlu0 %3641
  %v3643 = vsel %vm77, %v3635, 0.0
  %3644 = vadd.xlane.f32.xlu0 %v3643
  %v3645 = vpop.xlane.xlu0 %3644
  %v3646 = vsel %vm77, %v3637, 0.0
  %3647 = vadd.xlane.f32.xlu0 %v3646
  %v3648 = vpop.xlane.xlu0 %3647
  %v3649 = vsel %vm77, %v3639, 0.0
  %3650 = vadd.xlane.f32.xlu0 %v3649
  %v3651 = vpop.xlane.xlu0 %3650
  %v3652 = vrcp.pop %v3642
  %v3653 = vrcp.pop %v3645
  %v3654 = vrcp.pop %v3648
  %v3655 = vrcp.pop %v3651
  %v3656 = vmul.f32 %v3633, %v3652
  %v3657 = vmul.f32 %v3635, %v3653
  %v3658 = vmul.f32 %v3637, %v3654
  %v3659 = vmul.f32 %v3639, %v3655
  %s3660 = scalar_lea.vmem %s21, 224
  %3661 = vst.msk [vmem:[%s3660] sm:$0xff] %vm77, %v3656
  %3662 = vst.msk [vmem:[%s3660 + $0x8] sm:$0xff] %vm77, %v3657
  %3663 = vst.msk [vmem:[%s3660 + $0x10] sm:$0xff] %vm77, %v3658
  %3664 = vst.msk [vmem:[%s3660 + $0x18] sm:$0xff] %vm77, %v3659
  %3665 = vrot.lane.b32.xlu0 %v2352, 40
  %v3666 = vpop.permute.xlu0 %3665
  %3667 = vrot.lane.b32.xlu0 %v2357, 40
  %v3668 = vpop.permute.xlu0 %3667
  %3669 = vrot.lane.b32.xlu0 %v2362, 40
  %v3670 = vpop.permute.xlu0 %3669
  %3671 = vrot.lane.b32.xlu0 %v2367, 40
  %v3672 = vpop.permute.xlu0 %3671
  %v3678 = vsel %vm77, %v3656, 0
  %v3681 = vsel %vm77, %v3657, 0
  %v3684 = vsel %vm77, %v3658, 0
  %v3687 = vsel %vm77, %v3659, 0
  %3689 = vmatprep.subr.mxu0 0.0
  %3690 = vmatpush1.msra.mxu0 %v3666
  %3691 = vmatprep.subr.mxu0 0.0
  %3692 = vmatpush1.msra.mxu0 %v3668
  %3693 = vmatprep.subr.mxu0 0.0
  %3694 = vmatpush1.msra.mxu0 %v3670
  %3695 = vmatprep.subr.mxu0 0.0
  %3696 = vmatpush1.msra.mxu0 %v3672
  %3697 = vmatprep.subr.mxu0 0.0
  %3698 = vmatpush1.msra.mxu0 0.0
  %3699 = vmatprep.subr.mxu0 0.0
  %3700 = vmatpush1.msra.mxu0 0.0
  %3701 = vmatprep.subr.mxu0 0.0
  %3702 = vmatpush1.msra.mxu0 0.0
  %3703 = vmatprep.subr.mxu0 0.0
  %3704 = vmatpush1.msra.mxu0 0.0
  %3705 = vmatprep.subr.mxu0 0.0
  %3706 = vmatpush1.msra.mxu0 0.0
  %3707 = vmatprep.subr.mxu0 0.0
  %3708 = vmatpush1.msra.mxu0 0.0
  %3709 = vmatprep.subr.mxu0 0.0
  %3710 = vmatpush1.msra.mxu0 0.0
  %3711 = vmatprep.subr.mxu0 0.0
  %3712 = vmatpush1.msra.mxu0 0.0
  %3713 = vmatprep.subr.mxu0 0.0
  %3714 = vmatpush1.msra.mxu0 0.0
  %3715 = vmatprep.subr.mxu0 0.0
  %3716 = vmatpush1.msra.mxu0 0.0
  %3717 = vmatprep.subr.mxu0 0.0
  %3718 = vmatpush1.msra.mxu0 0.0
  %3719 = vmatprep.subr.mxu0 0.0
  %3720 = vmatpush1.msra.mxu0 0.0
  %3721 = vmatprep.subr.mxu0 0.0
  %3722 = vmatpush1.msra.mxu0 0.0
  %3723 = vmatprep.subr.mxu0 0.0
  %3724 = vmatpush1.msra.mxu0 0.0
  %3725 = vmatprep.subr.mxu0 0.0
  %3726 = vmatpush1.msra.mxu0 0.0
  %3727 = vmatprep.subr.mxu0 0.0
  %3728 = vmatpush1.msra.mxu0 0.0
  %3729 = vmatprep.subr.mxu0 0.0
  %3730 = vmatpush1.msra.mxu0 0.0
  %3731 = vmatprep.subr.mxu0 0.0
  %3732 = vmatpush1.msra.mxu0 0.0
  %3733 = vmatprep.subr.mxu0 0.0
  %3734 = vmatpush1.msra.mxu0 0.0
  %3735 = vmatprep.subr.mxu0 0.0
  %3736 = vmatpush1.msra.mxu0 0.0
  %3737 = vmatprep.subr.mxu0 0.0
  %3738 = vmatpush1.msra.mxu0 0.0
  %3739 = vmatprep.subr.mxu0 0.0
  %3740 = vmatpush1.msra.mxu0 0.0
  %3741 = vmatprep.subr.mxu0 0.0
  %3742 = vmatpush1.msra.mxu0 0.0
  %3743 = vmatprep.subr.mxu0 0.0
  %3744 = vmatpush1.msra.mxu0 0.0
  %3745 = vmatprep.subr.mxu0 0.0
  %3746 = vmatpush1.msra.mxu0 0.0
  %3747 = vmatprep.subr.mxu0 0.0
  %3748 = vmatpush1.msra.mxu0 0.0
  %3749 = vmatprep.subr.mxu0 0.0
  %3750 = vmatpush1.msra.mxu0 0.0
  %3751 = vmatprep.subr.mxu0 0.0
  %3752 = vmatpush1.msra.mxu0 0.0
  %3753 = vmatprep.mubr.f32.mxu0 0.0
  %3754 = vmatmul.mubr.f32.gmra.mrb[0].mxu0 %v3678
  %v3755 = vpop.f32.mrb[0].mxu0
  %v3756 = vadd.f32 0.0, %v3755
  %v3757 = vpop.f32.mrb[0].mxu0
  %3758 = vmatprep.mubr.f32.mxu0 0.0
  %3759 = vmatmul.mubr.f32.gmra.mrb[0].mxu0 %v3681
  %v3760 = vpop.f32.mrb[0].mxu0
  %v3761 = vadd.f32 0.0, %v3760
  %v3762 = vpop.f32.mrb[0].mxu0
  %3763 = vmatprep.mubr.f32.mxu0 0.0
  %3764 = vmatmul.mubr.f32.gmra.mrb[0].mxu0 %v3684
  %v3765 = vpop.f32.mrb[0].mxu0
  %v3766 = vadd.f32 0.0, %v3765
  %v3767 = vpop.f32.mrb[0].mxu0
  %3768 = vmatprep.mubr.f32.mxu0 0.0
  %3769 = vmatmul.mubr.f32.gmra.mrb[0].mxu0 %v3687
  %v3770 = vpop.f32.mrb[0].mxu0
  %v3771 = vadd.f32 0.0, %v3770
  %v3772 = vpop.f32.mrb[0].mxu0
  %3773 = vdwg.mxu0
  %v3775 = vsel %vm279, %v3756, 0
  %v3778 = vsel %vm279, %v3761, 0
  %v3781 = vsel %vm279, %v3766, 0
  %v3784 = vsel %vm279, %v3771, 0
  %3786 = vmatprep.subr.mxu0 0.0
  %3787 = vmatpush1.msra.mxu0 %v2374
  %3788 = vmatprep.subr.mxu0 0.0
  %3789 = vmatpush1.msra.mxu0 0.0
  %3790 = vmatprep.subr.mxu0 0.0
  %3791 = vmatpush1.msra.mxu0 0.0
  %3792 = vmatprep.subr.mxu0 0.0
  %3793 = vmatpush1.msra.mxu0 0.0
  %3794 = vmatprep.subr.mxu0 0.0
  %3795 = vmatpush1.msra.mxu0 0.0
  %3796 = vmatprep.subr.mxu0 0.0
  %3797 = vmatpush1.msra.mxu0 0.0
  %3798 = vmatprep.subr.mxu0 0.0
  %3799 = vmatpush1.msra.mxu0 0.0
  %3800 = vmatprep.subr.mxu0 0.0
  %3801 = vmatpush1.msra.mxu0 0.0
  %3802 = vmatprep.subr.mxu0 0.0
  %3803 = vmatpush1.msra.mxu0 0.0
  %3804 = vmatprep.subr.mxu0 0.0
  %3805 = vmatpush1.msra.mxu0 0.0
  %3806 = vmatprep.subr.mxu0 0.0
  %3807 = vmatpush1.msra.mxu0 0.0
  %3808 = vmatprep.subr.mxu0 0.0
  %3809 = vmatpush1.msra.mxu0 0.0
  %3810 = vmatprep.subr.mxu0 0.0
  %3811 = vmatpush1.msra.mxu0 0.0
  %3812 = vmatprep.subr.mxu0 0.0
  %3813 = vmatpush1.msra.mxu0 0.0
  %3814 = vmatprep.subr.mxu0 0.0
  %3815 = vmatpush1.msra.mxu0 0.0
  %3816 = vmatprep.subr.mxu0 0.0
  %3817 = vmatpush1.msra.mxu0 0.0
  %3818 = vmatprep.subr.mxu0 0.0
  %3819 = vmatpush1.msra.mxu0 0.0
  %3820 = vmatprep.subr.mxu0 0.0
  %3821 = vmatpush1.msra.mxu0 0.0
  %3822 = vmatprep.subr.mxu0 0.0
  %3823 = vmatpush1.msra.mxu0 0.0
  %3824 = vmatprep.subr.mxu0 0.0
  %3825 = vmatpush1.msra.mxu0 0.0
  %3826 = vmatprep.subr.mxu0 0.0
  %3827 = vmatpush1.msra.mxu0 0.0
  %3828 = vmatprep.subr.mxu0 0.0
  %3829 = vmatpush1.msra.mxu0 0.0
  %3830 = vmatprep.subr.mxu0 0.0
  %3831 = vmatpush1.msra.mxu0 0.0
  %3832 = vmatprep.subr.mxu0 0.0
  %3833 = vmatpush1.msra.mxu0 0.0
  %3834 = vmatprep.subr.mxu0 0.0
  %3835 = vmatpush1.msra.mxu0 0.0
  %3836 = vmatprep.subr.mxu0 0.0
  %3837 = vmatpush1.msra.mxu0 0.0
  %3838 = vmatprep.subr.mxu0 0.0
  %3839 = vmatpush1.msra.mxu0 0.0
  %3840 = vmatprep.subr.mxu0 0.0
  %3841 = vmatpush1.msra.mxu0 0.0
  %3842 = vmatprep.subr.mxu0 0.0
  %3843 = vmatpush1.msra.mxu0 0.0
  %3844 = vmatprep.subr.mxu0 0.0
  %3845 = vmatpush1.msra.mxu0 0.0
  %3846 = vmatprep.subr.mxu0 0.0
  %3847 = vmatpush1.msra.mxu0 0.0
  %3848 = vmatprep.subr.mxu0 0.0
  %3849 = vmatpush1.msra.mxu0 0.0
  %3850 = vmatprep.mubr.f32.mxu0 0.0
  %3851 = vmatmul.mubr.f32.gmra.mrb[0].mxu0 %v3775
  %v3852 = vpop.f32.mrb[0].mxu0
  %v3853 = vadd.f32 0.0, %v3852
  %v3854 = vpop.f32.mrb[0].mxu0
  %3855 = vmatprep.mubr.f32.mxu0 0.0
  %3856 = vmatmul.mubr.f32.gmra.mrb[0].mxu0 %v3778
  %v3857 = vpop.f32.mrb[0].mxu0
  %v3858 = vadd.f32 0.0, %v3857
  %v3859 = vpop.f32.mrb[0].mxu0
  %3860 = vmatprep.mubr.f32.mxu0 0.0
  %3861 = vmatmul.mubr.f32.gmra.mrb[0].mxu0 %v3781
  %v3862 = vpop.f32.mrb[0].mxu0
  %v3863 = vadd.f32 0.0, %v3862
  %v3864 = vpop.f32.mrb[0].mxu0
  %3865 = vmatprep.mubr.f32.mxu0 0.0
  %3866 = vmatmul.mubr.f32.gmra.mrb[0].mxu0 %v3784
  %v3867 = vpop.f32.mrb[0].mxu0
  %v3868 = vadd.f32 0.0, %v3867
  %v3869 = vpop.f32.mrb[0].mxu0
  %3870 = vdwg.mxu0
  %v3871 = vadd.f32 %v3495, %v3853
  %v3872 = vadd.f32 %v3496, %v3858
  %v3873 = vadd.f32 %v3497, %v3863
  %v3874 = vadd.f32 %v3498, %v3868
  %v3875 = vadd.f32 %v2180, %v3871
  %v3876 = vadd.f32 %v2181, %v3872
  %v3877 = vadd.f32 %v2182, %v3873
  %v3878 = vadd.f32 %v2183, %v3874
  %s3879 = scalar_lea.vmem %s8, 1
  %v3880 = vld [vmem:[%s3879] sm:$0x1]
  %v3882 = vlaneseq
  %v3883 = vshrl.u32 %v3882, 7
  %v3884 = vsub.s32 0, %v3883
  %v3885 = vrot.slane %v3880, %v3884
  %v3887 = vadd.f32 %v3875, %v3885
  %v3888 = vadd.f32 %v3876, %v3885
  %v3889 = vadd.f32 %v3877, %v3885
  %v3890 = vadd.f32 %v3878, %v3885
  %s3891 = scalar_lea.vmem %s9, 1
  %v3892 = vld [vmem:[%s3891] sm:$0x1]
  %s3893 = scalar_lea.vmem %s10, 1
  %v3894 = vld [vmem:[%s3893] sm:$0x1]
  %v3895 = vsel %vm77, %v3887, 0.0
  %3896 = vadd.xlane.f32.xlu0 %v3895
  %v3897 = vpop.xlane.xlu0 %3896
  %v3898 = vsel %vm77, %v3888, 0.0
  %3899 = vadd.xlane.f32.xlu0 %v3898
  %v3900 = vpop.xlane.xlu0 %3899
  %v3901 = vsel %vm77, %v3889, 0.0
  %3902 = vadd.xlane.f32.xlu0 %v3901
  %v3903 = vpop.xlane.xlu0 %3902
  %v3904 = vsel %vm77, %v3890, 0.0
  %3905 = vadd.xlane.f32.xlu0 %v3904
  %v3906 = vpop.xlane.xlu0 %3905
  %v3907 = vmul.f32 %v3897, %v90
  %v3908 = vmul.f32 %v3900, %v90
  %v3909 = vmul.f32 %v3903, %v90
  %v3910 = vmul.f32 %v3906, %v90
  %v3911 = vsub.f32 %v3887, %v3907
  %v3912 = vsub.f32 %v3888, %v3908
  %v3913 = vsub.f32 %v3889, %v3909
  %v3914 = vsub.f32 %v3890, %v3910
  %v3915 = vmul.f32 %v3911, %v3911
  %v3916 = vmul.f32 %v3912, %v3912
  %v3917 = vmul.f32 %v3913, %v3913
  %v3918 = vmul.f32 %v3914, %v3914
  %v3919 = vsel %vm77, %v3915, 0.0
  %3920 = vadd.xlane.f32.xlu0 %v3919
  %v3921 = vpop.xlane.xlu0 %3920
  %v3922 = vsel %vm77, %v3916, 0.0
  %3923 = vadd.xlane.f32.xlu0 %v3922
  %v3924 = vpop.xlane.xlu0 %3923
  %v3925 = vsel %vm77, %v3917, 0.0
  %3926 = vadd.xlane.f32.xlu0 %v3925
  %v3927 = vpop.xlane.xlu0 %3926
  %v3928 = vsel %vm77, %v3918, 0.0
  %3929 = vadd.xlane.f32.xlu0 %v3928
  %v3930 = vpop.xlane.xlu0 %3929
  %v3931 = vmul.f32 %v3921, %v90
  %v3932 = vmul.f32 %v3924, %v90
  %v3933 = vmul.f32 %v3927, %v90
  %v3934 = vmul.f32 %v3930, %v90
  %v3935 = vadd.f32 %v3931, 1e-05
  %v3936 = vadd.f32 %v3932, 1e-05
  %v3937 = vadd.f32 %v3933, 1e-05
  %v3938 = vadd.f32 %v3934, 1e-05
  %v3939 = vrsqrt.pop %v3935
  %v3940 = vrsqrt.pop %v3936
  %v3941 = vrsqrt.pop %v3937
  %v3942 = vrsqrt.pop %v3938
  %v3943 = vmul.f32 %v3911, %v3939
  %v3944 = vmul.f32 %v3912, %v3940
  %v3945 = vmul.f32 %v3913, %v3941
  %v3946 = vmul.f32 %v3914, %v3942
  %v3948 = vlaneseq
  %v3949 = vshrl.u32 %v3948, 7
  %v3950 = vsub.s32 0, %v3949
  %v3951 = vrot.slane %v3892, %v3950
  %v3953 = vmul.f32 %v3943, %v3951
  %v3954 = vmul.f32 %v3944, %v3951
  %v3955 = vmul.f32 %v3945, %v3951
  %v3956 = vmul.f32 %v3946, %v3951
  %v3958 = vlaneseq
  %v3959 = vshrl.u32 %v3958, 7
  %v3960 = vsub.s32 0, %v3959
  %v3961 = vrot.slane %v3894, %v3960
  %v3963 = vadd.f32 %v3953, %v3961
  %v3964 = vadd.f32 %v3954, %v3961
  %v3965 = vadd.f32 %v3955, %v3961
  %v3966 = vadd.f32 %v3956, %v3961
  %s3967 = scalar_lea.vmem %s11, 32
  %v3968 = vld [vmem:[%s3967] sm:$0xff]
  %v3969 = vld [vmem:[%s3967 + $0x8] sm:$0xff]
  %v3970 = vld [vmem:[%s3967 + $0x10] sm:$0xff]
  %v3971 = vld [vmem:[%s3967 + $0x18] sm:$0xff]
  %s3972 = scalar_lea.vmem %s12, 1
  %v3973 = vld [vmem:[%s3972] sm:$0x1]
  %v3975 = vlaneseq
  %v3976 = vshrl.u32 %v3975, 7
  %v3977 = vsub.s32 0, %v3976
  %v3978 = vrot.slane %v3973, %v3977
  %v3981 = vsel %vm77, %v3963, 0
  %v3984 = vsel %vm77, %v3964, 0
  %v3987 = vsel %vm77, %v3965, 0
  %v3990 = vsel %vm77, %v3966, 0
  %3992 = vmatprep.subr.mxu0 0.0
  %3993 = vmatpush1.msra.mxu0 %v3968
  %3994 = vmatprep.subr.mxu0 0.0
  %3995 = vmatpush1.msra.mxu0 %v3969
  %3996 = vmatprep.subr.mxu0 0.0
  %3997 = vmatpush1.msra.mxu0 %v3970
  %3998 = vmatprep.subr.mxu0 0.0
  %3999 = vmatpush1.msra.mxu0 %v3971
  %4000 = vmatprep.subr.mxu0 0.0
  %4001 = vmatpush1.msra.mxu0 0.0
  %4002 = vmatprep.subr.mxu0 0.0
  %4003 = vmatpush1.msra.mxu0 0.0
  %4004 = vmatprep.subr.mxu0 0.0
  %4005 = vmatpush1.msra.mxu0 0.0
  %4006 = vmatprep.subr.mxu0 0.0
  %4007 = vmatpush1.msra.mxu0 0.0
  %4008 = vmatprep.subr.mxu0 0.0
  %4009 = vmatpush1.msra.mxu0 0.0
  %4010 = vmatprep.subr.mxu0 0.0
  %4011 = vmatpush1.msra.mxu0 0.0
  %4012 = vmatprep.subr.mxu0 0.0
  %4013 = vmatpush1.msra.mxu0 0.0
  %4014 = vmatprep.subr.mxu0 0.0
  %4015 = vmatpush1.msra.mxu0 0.0
  %4016 = vmatprep.subr.mxu0 0.0
  %4017 = vmatpush1.msra.mxu0 0.0
  %4018 = vmatprep.subr.mxu0 0.0
  %4019 = vmatpush1.msra.mxu0 0.0
  %4020 = vmatprep.subr.mxu0 0.0
  %4021 = vmatpush1.msra.mxu0 0.0
  %4022 = vmatprep.subr.mxu0 0.0
  %4023 = vmatpush1.msra.mxu0 0.0
  %4024 = vmatprep.subr.mxu0 0.0
  %4025 = vmatpush1.msra.mxu0 0.0
  %4026 = vmatprep.subr.mxu0 0.0
  %4027 = vmatpush1.msra.mxu0 0.0
  %4028 = vmatprep.subr.mxu0 0.0
  %4029 = vmatpush1.msra.mxu0 0.0
  %4030 = vmatprep.subr.mxu0 0.0
  %4031 = vmatpush1.msra.mxu0 0.0
  %4032 = vmatprep.subr.mxu0 0.0
  %4033 = vmatpush1.msra.mxu0 0.0
  %4034 = vmatprep.subr.mxu0 0.0
  %4035 = vmatpush1.msra.mxu0 0.0
  %4036 = vmatprep.subr.mxu0 0.0
  %4037 = vmatpush1.msra.mxu0 0.0
  %4038 = vmatprep.subr.mxu0 0.0
  %4039 = vmatpush1.msra.mxu0 0.0
  %4040 = vmatprep.subr.mxu0 0.0
  %4041 = vmatpush1.msra.mxu0 0.0
  %4042 = vmatprep.subr.mxu0 0.0
  %4043 = vmatpush1.msra.mxu0 0.0
  %4044 = vmatprep.subr.mxu0 0.0
  %4045 = vmatpush1.msra.mxu0 0.0
  %4046 = vmatprep.subr.mxu0 0.0
  %4047 = vmatpush1.msra.mxu0 0.0
  %4048 = vmatprep.subr.mxu0 0.0
  %4049 = vmatpush1.msra.mxu0 0.0
  %4050 = vmatprep.subr.mxu0 0.0
  %4051 = vmatpush1.msra.mxu0 0.0
  %4052 = vmatprep.subr.mxu0 0.0
  %4053 = vmatpush1.msra.mxu0 0.0
  %4054 = vmatprep.subr.mxu0 0.0
  %4055 = vmatpush1.msra.mxu0 0.0
  %4056 = vmatprep.mubr.f32.mxu0 0.0
  %4057 = vmatmul.mubr.f32.gmra.mrb[0].mxu0 %v3981
  %v4058 = vpop.f32.mrb[0].mxu0
  %v4059 = vadd.f32 %v3978, %v4058
  %v4060 = vpop.f32.mrb[0].mxu0
  %4061 = vmatprep.mubr.f32.mxu0 0.0
  %4062 = vmatmul.mubr.f32.gmra.mrb[0].mxu0 %v3984
  %v4063 = vpop.f32.mrb[0].mxu0
  %v4064 = vadd.f32 %v3978, %v4063
  %v4065 = vpop.f32.mrb[0].mxu0
  %4066 = vmatprep.mubr.f32.mxu0 0.0
  %4067 = vmatmul.mubr.f32.gmra.mrb[0].mxu0 %v3987
  %v4068 = vpop.f32.mrb[0].mxu0
  %v4069 = vadd.f32 %v3978, %v4068
  %v4070 = vpop.f32.mrb[0].mxu0
  %4071 = vmatprep.mubr.f32.mxu0 0.0
  %4072 = vmatmul.mubr.f32.gmra.mrb[0].mxu0 %v3990
  %v4073 = vpop.f32.mrb[0].mxu0
  %v4074 = vadd.f32 %v3978, %v4073
  %v4075 = vpop.f32.mrb[0].mxu0
  %4076 = vdwg.mxu0
  %v4077 = vmul.f32 %v4059, 0.5
  %v4078 = vmul.f32 %v4064, 0.5
  %v4079 = vmul.f32 %v4069, 0.5
  %v4080 = vmul.f32 %v4074, 0.5
  %v4081 = vmul.f32 %v4059, 0.70710677
  %v4082 = vmul.f32 %v4064, 0.70710677
  %v4083 = vmul.f32 %v4069, 0.70710677
  %v4084 = vmul.f32 %v4074, 0.70710677
  %vm4085 = vcmp.ge.f32.partialorder %v4081, 0.0
  %vm4086 = vcmp.ge.f32.partialorder %v4082, 0.0
  %vm4087 = vcmp.ge.f32.partialorder %v4083, 0.0
  %vm4088 = vcmp.ge.f32.partialorder %v4084, 0.0
  %v4089 = vsel %vm4085, 1.0, -1.0
  %v4090 = vsel %vm4086, 1.0, -1.0
  %v4091 = vsel %vm4087, 1.0, -1.0
  %v4092 = vsel %vm4088, 1.0, -1.0
  %v4093 = vand.u32 2147483647, %v4081
  %v4094 = vand.u32 2147483647, %v4082
  %v4095 = vand.u32 2147483647, %v4083
  %v4096 = vand.u32 2147483647, %v4084
  %v4097 = vmul.f32 %v4093, 0.3275911
  %v4098 = vmul.f32 %v4094, 0.3275911
  %v4099 = vmul.f32 %v4095, 0.3275911
  %v4100 = vmul.f32 %v4096, 0.3275911
  %v4101 = vadd.f32 %v4097, 1.0
  %v4102 = vadd.f32 %v4098, 1.0
  %v4103 = vadd.f32 %v4099, 1.0
  %v4104 = vadd.f32 %v4100, 1.0
  %v4105 = vrcp.pop %v4101
  %v4106 = vmul.f32 1.0, %v4105
  %v4107 = vrcp.pop %v4102
  %v4108 = vmul.f32 1.0, %v4107
  %v4109 = vrcp.pop %v4103
  %v4110 = vmul.f32 1.0, %v4109
  %v4111 = vrcp.pop %v4104
  %v4112 = vmul.f32 1.0, %v4111
  %v4113 = vmul.f32 %v4106, 1.0614054
  %v4114 = vmul.f32 %v4108, 1.0614054
  %v4115 = vmul.f32 %v4110, 1.0614054
  %v4116 = vmul.f32 %v4112, 1.0614054
  %v4117 = vadd.f32 %v4113, -1.4531521
  %v4118 = vadd.f32 %v4114, -1.4531521
  %v4119 = vadd.f32 %v4115, -1.4531521
  %v4120 = vadd.f32 %v4116, -1.4531521
  %v4121 = vmul.f32 %v4106, %v4117
  %v4122 = vmul.f32 %v4108, %v4118
  %v4123 = vmul.f32 %v4110, %v4119
  %v4124 = vmul.f32 %v4112, %v4120
  %v4125 = vadd.f32 %v4121, 1.4214138
  %v4126 = vadd.f32 %v4122, 1.4214138
  %v4127 = vadd.f32 %v4123, 1.4214138
  %v4128 = vadd.f32 %v4124, 1.4214138
  %v4129 = vmul.f32 %v4106, %v4125
  %v4130 = vmul.f32 %v4108, %v4126
  %v4131 = vmul.f32 %v4110, %v4127
  %v4132 = vmul.f32 %v4112, %v4128
  %v4133 = vadd.f32 %v4129, -0.28449672
  %v4134 = vadd.f32 %v4130, -0.28449672
  %v4135 = vadd.f32 %v4131, -0.28449672
  %v4136 = vadd.f32 %v4132, -0.28449672
  %v4137 = vmul.f32 %v4106, %v4133
  %v4138 = vmul.f32 %v4108, %v4134
  %v4139 = vmul.f32 %v4110, %v4135
  %v4140 = vmul.f32 %v4112, %v4136
  %v4141 = vadd.f32 %v4137, 0.2548296
  %v4142 = vadd.f32 %v4138, 0.2548296
  %v4143 = vadd.f32 %v4139, 0.2548296
  %v4144 = vadd.f32 %v4140, 0.2548296
  %v4145 = vmul.f32 %v4106, %v4141
  %v4146 = vmul.f32 %v4108, %v4142
  %v4147 = vmul.f32 %v4110, %v4143
  %v4148 = vmul.f32 %v4112, %v4144
  %v4149 = vsub.f32 0.0, %v4093
  %v4150 = vsub.f32 0.0, %v4094
  %v4151 = vsub.f32 0.0, %v4095
  %v4152 = vsub.f32 0.0, %v4096
  %v4153 = vmul.f32 %v4149, %v4093
  %v4154 = vmul.f32 %v4150, %v4094
  %v4155 = vmul.f32 %v4151, %v4095
  %v4156 = vmul.f32 %v4152, %v4096
  %v4157 = vmul.f32 %v4153, 1.442695
  %v4158 = vpow.pop %v4157
  %v4159 = vmul.f32 %v4154, 1.442695
  %v4160 = vpow.pop %v4159
  %v4161 = vmul.f32 %v4155, 1.442695
  %v4162 = vpow.pop %v4161
  %v4163 = vmul.f32 %v4156, 1.442695
  %v4164 = vpow.pop %v4163
  %v4165 = vmul.f32 %v4145, %v4158
  %v4166 = vmul.f32 %v4146, %v4160
  %v4167 = vmul.f32 %v4147, %v4162
  %v4168 = vmul.f32 %v4148, %v4164
  %v4169 = vsub.f32 1.0, %v4165
  %v4170 = vsub.f32 1.0, %v4166
  %v4171 = vsub.f32 1.0, %v4167
  %v4172 = vsub.f32 1.0, %v4168
  %v4173 = vmul.f32 %v4089, %v4169
  %v4174 = vmul.f32 %v4090, %v4170
  %v4175 = vmul.f32 %v4091, %v4171
  %v4176 = vmul.f32 %v4092, %v4172
  %v4177 = vadd.f32 %v4173, 1.0
  %v4178 = vadd.f32 %v4174, 1.0
  %v4179 = vadd.f32 %v4175, 1.0
  %v4180 = vadd.f32 %v4176, 1.0
  %v4181 = vmul.f32 %v4077, %v4177
  %v4182 = vmul.f32 %v4078, %v4178
  %v4183 = vmul.f32 %v4079, %v4179
  %v4184 = vmul.f32 %v4080, %v4180
  %s4185 = scalar_lea.vmem %s13, 128
  %v4186 = vld [vmem:[%s4185] sm:$0xff]
  %v4187 = vld [vmem:[%s4185 + $0x8] sm:$0xff]
  %v4188 = vld [vmem:[%s4185 + $0x10] sm:$0xff]
  %v4189 = vld [vmem:[%s4185 + $0x18] sm:$0xff]
  %v4190 = vld [vmem:[%s4185 + $0x20] sm:$0xff]
  %v4191 = vld [vmem:[%s4185 + $0x28] sm:$0xff]
  %v4192 = vld [vmem:[%s4185 + $0x30] sm:$0xff]
  %v4193 = vld [vmem:[%s4185 + $0x38] sm:$0xff]
  %v4194 = vld [vmem:[%s4185 + $0x40] sm:$0xff]
  %v4195 = vld [vmem:[%s4185 + $0x48] sm:$0xff]
  %v4196 = vld [vmem:[%s4185 + $0x50] sm:$0xff]
  %v4197 = vld [vmem:[%s4185 + $0x58] sm:$0xff]
  %v4198 = vld [vmem:[%s4185 + $0x60] sm:$0xff]
  %v4199 = vld [vmem:[%s4185 + $0x68] sm:$0xff]
  %v4200 = vld [vmem:[%s4185 + $0x70] sm:$0xff]
  %v4201 = vld [vmem:[%s4185 + $0x78] sm:$0xff]
  %4202 = vmatprep.subr.mxu0 0.0
  %4203 = vmatpush1.msra.mxu0 %v4186
  %4204 = vmatprep.subr.mxu0 0.0
  %4205 = vmatpush1.msra.mxu0 %v4187
  %4206 = vmatprep.subr.mxu0 0.0
  %4207 = vmatpush1.msra.mxu0 %v4188
  %4208 = vmatprep.subr.mxu0 0.0
  %4209 = vmatpush1.msra.mxu0 %v4189
  %4210 = vmatprep.subr.mxu0 0.0
  %4211 = vmatpush1.msra.mxu0 %v4190
  %4212 = vmatprep.subr.mxu0 0.0
  %4213 = vmatpush1.msra.mxu0 %v4191
  %4214 = vmatprep.subr.mxu0 0.0
  %4215 = vmatpush1.msra.mxu0 %v4192
  %4216 = vmatprep.subr.mxu0 0.0
  %4217 = vmatpush1.msra.mxu0 %v4193
  %4218 = vmatprep.subr.mxu0 0.0
  %4219 = vmatpush1.msra.mxu0 %v4194
  %4220 = vmatprep.subr.mxu0 0.0
  %4221 = vmatpush1.msra.mxu0 %v4195
  %4222 = vmatprep.subr.mxu0 0.0
  %4223 = vmatpush1.msra.mxu0 %v4196
  %4224 = vmatprep.subr.mxu0 0.0
  %4225 = vmatpush1.msra.mxu0 %v4197
  %4226 = vmatprep.subr.mxu0 0.0
  %4227 = vmatpush1.msra.mxu0 %v4198
  %4228 = vmatprep.subr.mxu0 0.0
  %4229 = vmatpush1.msra.mxu0 %v4199
  %4230 = vmatprep.subr.mxu0 0.0
  %4231 = vmatpush1.msra.mxu0 %v4200
  %4232 = vmatprep.subr.mxu0 0.0
  %4233 = vmatpush1.msra.mxu0 %v4201
  %4234 = vmatprep.subr.mxu0 0.0
  %4235 = vmatpush1.msra.mxu0 0.0
  %4236 = vmatprep.subr.mxu0 0.0
  %4237 = vmatpush1.msra.mxu0 0.0
  %4238 = vmatprep.subr.mxu0 0.0
  %4239 = vmatpush1.msra.mxu0 0.0
  %4240 = vmatprep.subr.mxu0 0.0
  %4241 = vmatpush1.msra.mxu0 0.0
  %4242 = vmatprep.subr.mxu0 0.0
  %4243 = vmatpush1.msra.mxu0 0.0
  %4244 = vmatprep.subr.mxu0 0.0
  %4245 = vmatpush1.msra.mxu0 0.0
  %4246 = vmatprep.subr.mxu0 0.0
  %4247 = vmatpush1.msra.mxu0 0.0
  %4248 = vmatprep.subr.mxu0 0.0
  %4249 = vmatpush1.msra.mxu0 0.0
  %4250 = vmatprep.subr.mxu0 0.0
  %4251 = vmatpush1.msra.mxu0 0.0
  %4252 = vmatprep.subr.mxu0 0.0
  %4253 = vmatpush1.msra.mxu0 0.0
  %4254 = vmatprep.subr.mxu0 0.0
  %4255 = vmatpush1.msra.mxu0 0.0
  %4256 = vmatprep.subr.mxu0 0.0
  %4257 = vmatpush1.msra.mxu0 0.0
  %4258 = vmatprep.subr.mxu0 0.0
  %4259 = vmatpush1.msra.mxu0 0.0
  %4260 = vmatprep.subr.mxu0 0.0
  %4261 = vmatpush1.msra.mxu0 0.0
  %4262 = vmatprep.subr.mxu0 0.0
  %4263 = vmatpush1.msra.mxu0 0.0
  %4264 = vmatprep.subr.mxu0 0.0
  %4265 = vmatpush1.msra.mxu0 0.0
  %4266 = vmatprep.mubr.f32.mxu0 0.0
  %4267 = vmatmul.mubr.f32.gmra.mrb[0].mxu0 %v4181
  %v4268 = vpop.f32.mrb[0].mxu0
  %v4269 = vadd.f32 0.0, %v4268
  %v4270 = vpop.f32.mrb[0].mxu0
  %4271 = vmatprep.mubr.f32.mxu0 0.0
  %4272 = vmatmul.mubr.f32.gmra.mrb[0].mxu0 %v4182
  %v4273 = vpop.f32.mrb[0].mxu0
  %v4274 = vadd.f32 0.0, %v4273
  %v4275 = vpop.f32.mrb[0].mxu0
  %4276 = vmatprep.mubr.f32.mxu0 0.0
  %4277 = vmatmul.mubr.f32.gmra.mrb[0].mxu0 %v4183
  %v4278 = vpop.f32.mrb[0].mxu0
  %v4279 = vadd.f32 0.0, %v4278
  %v4280 = vpop.f32.mrb[0].mxu0
  %4281 = vmatprep.mubr.f32.mxu0 0.0
  %4282 = vmatmul.mubr.f32.gmra.mrb[0].mxu0 %v4184
  %v4283 = vpop.f32.mrb[0].mxu0
  %v4284 = vadd.f32 0.0, %v4283
  %v4285 = vpop.f32.mrb[0].mxu0
  %4286 = vdwg.mxu0
  %v4287 = vadd.f32 %v3887, %v4269
  %v4288 = vadd.f32 %v3888, %v4274
  %v4289 = vadd.f32 %v3889, %v4279
  %v4290 = vadd.f32 %v3890, %v4284
  %s4291 = scalar_lea.vmem %s14, 1
  %v4292 = vld [vmem:[%s4291] sm:$0x1]
  %v4294 = vlaneseq
  %v4295 = vshrl.u32 %v4294, 7
  %v4296 = vsub.s32 0, %v4295
  %v4297 = vrot.slane %v4292, %v4296
  %v4299 = vadd.f32 %v4287, %v4297
  %v4300 = vadd.f32 %v4288, %v4297
  %v4301 = vadd.f32 %v4289, %v4297
  %v4302 = vadd.f32 %v4290, %v4297
  %v4303 = vld [vmem:[%s1] sm:$0xff]
  %v4304 = vld [vmem:[%s1 + $0x8] sm:$0xff]
  %v4305 = vld [vmem:[%s1 + $0x10] sm:$0xff]
  %v4306 = vld [vmem:[%s1 + $0x18] sm:$0xff]
  %s4307 = scalar_lea.vmem %s3, 2
  %v4308 = vld [vmem:[%s4307] sm:$0x1]
  %s4309 = scalar_lea.vmem %s4, 2
  %v4310 = vld [vmem:[%s4309] sm:$0x1]
  %v4311 = vsel %vm77, %v4303, 0.0
  %4312 = vadd.xlane.f32.xlu0 %v4311
  %v4313 = vpop.xlane.xlu0 %4312
  %v4314 = vsel %vm77, %v4304, 0.0
  %4315 = vadd.xlane.f32.xlu0 %v4314
  %v4316 = vpop.xlane.xlu0 %4315
  %v4317 = vsel %vm77, %v4305, 0.0
  %4318 = vadd.xlane.f32.xlu0 %v4317
  %v4319 = vpop.xlane.xlu0 %4318
  %v4320 = vsel %vm77, %v4306, 0.0
  %4321 = vadd.xlane.f32.xlu0 %v4320
  %v4322 = vpop.xlane.xlu0 %4321
  %v4323 = vmul.f32 %v4313, %v90
  %v4324 = vmul.f32 %v4316, %v90
  %v4325 = vmul.f32 %v4319, %v90
  %v4326 = vmul.f32 %v4322, %v90
  %v4327 = vsub.f32 %v4303, %v4323
  %v4328 = vsub.f32 %v4304, %v4324
  %v4329 = vsub.f32 %v4305, %v4325
  %v4330 = vsub.f32 %v4306, %v4326
  %v4331 = vmul.f32 %v4327, %v4327
  %v4332 = vmul.f32 %v4328, %v4328
  %v4333 = vmul.f32 %v4329, %v4329
  %v4334 = vmul.f32 %v4330, %v4330
  %v4335 = vsel %vm77, %v4331, 0.0
  %4336 = vadd.xlane.f32.xlu0 %v4335
  %v4337 = vpop.xlane.xlu0 %4336
  %v4338 = vsel %vm77, %v4332, 0.0
  %4339 = vadd.xlane.f32.xlu0 %v4338
  %v4340 = vpop.xlane.xlu0 %4339
  %v4341 = vsel %vm77, %v4333, 0.0
  %4342 = vadd.xlane.f32.xlu0 %v4341
  %v4343 = vpop.xlane.xlu0 %4342
  %v4344 = vsel %vm77, %v4334, 0.0
  %4345 = vadd.xlane.f32.xlu0 %v4344
  %v4346 = vpop.xlane.xlu0 %4345
  %v4347 = vmul.f32 %v4337, %v90
  %v4348 = vmul.f32 %v4340, %v90
  %v4349 = vmul.f32 %v4343, %v90
  %v4350 = vmul.f32 %v4346, %v90
  %v4351 = vadd.f32 %v4347, 1e-05
  %v4352 = vadd.f32 %v4348, 1e-05
  %v4353 = vadd.f32 %v4349, 1e-05
  %v4354 = vadd.f32 %v4350, 1e-05
  %v4355 = vrsqrt.pop %v4351
  %v4356 = vrsqrt.pop %v4352
  %v4357 = vrsqrt.pop %v4353
  %v4358 = vrsqrt.pop %v4354
  %v4359 = vmul.f32 %v4327, %v4355
  %v4360 = vmul.f32 %v4328, %v4356
  %v4361 = vmul.f32 %v4329, %v4357
  %v4362 = vmul.f32 %v4330, %v4358
  %v4364 = vlaneseq
  %v4365 = vshrl.u32 %v4364, 7
  %v4366 = vsub.s32 0, %v4365
  %v4367 = vrot.slane %v4308, %v4366
  %v4369 = vmul.f32 %v4359, %v4367
  %v4370 = vmul.f32 %v4360, %v4367
  %v4371 = vmul.f32 %v4361, %v4367
  %v4372 = vmul.f32 %v4362, %v4367
  %v4374 = vlaneseq
  %v4375 = vshrl.u32 %v4374, 7
  %v4376 = vsub.s32 0, %v4375
  %v4377 = vrot.slane %v4310, %v4376
  %v4379 = vadd.f32 %v4369, %v4377
  %v4380 = vadd.f32 %v4370, %v4377
  %v4381 = vadd.f32 %v4371, %v4377
  %v4382 = vadd.f32 %v4372, %v4377
  %s4383 = scalar_lea.vmem %s5, 64
  %v4384 = vld [vmem:[%s4383] sm:$0xff]
  %v4385 = vld [vmem:[%s4383 + $0x8] sm:$0xff]
  %v4386 = vld [vmem:[%s4383 + $0x10] sm:$0xff]
  %v4387 = vld [vmem:[%s4383 + $0x18] sm:$0xff]
  %s4388 = scalar_lea.vmem %s6, 2
  %v4389 = vld [vmem:[%s4388] sm:$0x1]
  %v4391 = vlaneseq
  %v4392 = vshrl.u32 %v4391, 7
  %v4393 = vsub.s32 0, %v4392
  %v4394 = vrot.slane %v4389, %v4393
  %v4397 = vsel %vm77, %v4379, 0
  %v4400 = vsel %vm77, %v4380, 0
  %v4403 = vsel %vm77, %v4381, 0
  %v4406 = vsel %vm77, %v4382, 0
  %4408 = vmatprep.subr.mxu0 0.0
  %4409 = vmatpush1.msra.mxu0 %v4384
  %4410 = vmatprep.subr.mxu0 0.0
  %4411 = vmatpush1.msra.mxu0 %v4385
  %4412 = vmatprep.subr.mxu0 0.0
  %4413 = vmatpush1.msra.mxu0 %v4386
  %4414 = vmatprep.subr.mxu0 0.0
  %4415 = vmatpush1.msra.mxu0 %v4387
  %4416 = vmatprep.subr.mxu0 0.0
  %4417 = vmatpush1.msra.mxu0 0.0
  %4418 = vmatprep.subr.mxu0 0.0
  %4419 = vmatpush1.msra.mxu0 0.0
  %4420 = vmatprep.subr.mxu0 0.0
  %4421 = vmatpush1.msra.mxu0 0.0
  %4422 = vmatprep.subr.mxu0 0.0
  %4423 = vmatpush1.msra.mxu0 0.0
  %4424 = vmatprep.subr.mxu0 0.0
  %4425 = vmatpush1.msra.mxu0 0.0
  %4426 = vmatprep.subr.mxu0 0.0
  %4427 = vmatpush1.msra.mxu0 0.0
  %4428 = vmatprep.subr.mxu0 0.0
  %4429 = vmatpush1.msra.mxu0 0.0
  %4430 = vmatprep.subr.mxu0 0.0
  %4431 = vmatpush1.msra.mxu0 0.0
  %4432 = vmatprep.subr.mxu0 0.0
  %4433 = vmatpush1.msra.mxu0 0.0
  %4434 = vmatprep.subr.mxu0 0.0
  %4435 = vmatpush1.msra.mxu0 0.0
  %4436 = vmatprep.subr.mxu0 0.0
  %4437 = vmatpush1.msra.mxu0 0.0
  %4438 = vmatprep.subr.mxu0 0.0
  %4439 = vmatpush1.msra.mxu0 0.0
  %4440 = vmatprep.subr.mxu0 0.0
  %4441 = vmatpush1.msra.mxu0 0.0
  %4442 = vmatprep.subr.mxu0 0.0
  %4443 = vmatpush1.msra.mxu0 0.0
  %4444 = vmatprep.subr.mxu0 0.0
  %4445 = vmatpush1.msra.mxu0 0.0
  %4446 = vmatprep.subr.mxu0 0.0
  %4447 = vmatpush1.msra.mxu0 0.0
  %4448 = vmatprep.subr.mxu0 0.0
  %4449 = vmatpush1.msra.mxu0 0.0
  %4450 = vmatprep.subr.mxu0 0.0
  %4451 = vmatpush1.msra.mxu0 0.0
  %4452 = vmatprep.subr.mxu0 0.0
  %4453 = vmatpush1.msra.mxu0 0.0
  %4454 = vmatprep.subr.mxu0 0.0
  %4455 = vmatpush1.msra.mxu0 0.0
  %4456 = vmatprep.subr.mxu0 0.0
  %4457 = vmatpush1.msra.mxu0 0.0
  %4458 = vmatprep.subr.mxu0 0.0
  %4459 = vmatpush1.msra.mxu0 0.0
  %4460 = vmatprep.subr.mxu0 0.0
  %4461 = vmatpush1.msra.mxu0 0.0
  %4462 = vmatprep.subr.mxu0 0.0
  %4463 = vmatpush1.msra.mxu0 0.0
  %4464 = vmatprep.subr.mxu0 0.0
  %4465 = vmatpush1.msra.mxu0 0.0
  %4466 = vmatprep.subr.mxu0 0.0
  %4467 = vmatpush1.msra.mxu0 0.0
  %4468 = vmatprep.subr.mxu0 0.0
  %4469 = vmatpush1.msra.mxu0 0.0
  %4470 = vmatprep.subr.mxu0 0.0
  %4471 = vmatpush1.msra.mxu0 0.0
  %4472 = vmatprep.mubr.f32.mxu0 0.0
  %4473 = vmatmul.mubr.f32.gmra.mrb[0].mxu0 %v4397
  %v4474 = vpop.f32.mrb[0].mxu0
  %v4475 = vadd.f32 %v4394, %v4474
  %v4476 = vpop.f32.mrb[0].mxu0
  %4477 = vmatprep.mubr.f32.mxu0 0.0
  %4478 = vmatmul.mubr.f32.gmra.mrb[0].mxu0 %v4400
  %v4479 = vpop.f32.mrb[0].mxu0
  %v4480 = vadd.f32 %v4394, %v4479
  %v4481 = vpop.f32.mrb[0].mxu0
  %4482 = vmatprep.mubr.f32.mxu0 0.0
  %4483 = vmatmul.mubr.f32.gmra.mrb[0].mxu0 %v4403
  %v4484 = vpop.f32.mrb[0].mxu0
  %v4485 = vadd.f32 %v4394, %v4484
  %v4486 = vpop.f32.mrb[0].mxu0
  %4487 = vmatprep.mubr.f32.mxu0 0.0
  %4488 = vmatmul.mubr.f32.gmra.mrb[0].mxu0 %v4406
  %v4489 = vpop.f32.mrb[0].mxu0
  %v4490 = vadd.f32 %v4394, %v4489
  %v4491 = vpop.f32.mrb[0].mxu0
  %4492 = vdwg.mxu0
  %s4493 = scalar_lea.vmem %s7, 64
  %v4494 = vld [vmem:[%s4493] sm:$0xff]
  %v4495 = vld [vmem:[%s4493 + $0x8] sm:$0xff]
  %v4496 = vld [vmem:[%s4493 + $0x10] sm:$0xff]
  %v4497 = vld [vmem:[%s4493 + $0x18] sm:$0xff]
  %v4498 = vmul.f32 %v4475, 0.35355338
  %v4499 = vmul.f32 %v4480, 0.35355338
  %v4500 = vmul.f32 %v4485, 0.35355338
  %v4501 = vmul.f32 %v4490, 0.35355338
  %4506 = vrot.lane.b32.xlu0 %v4475, 96
  %v4507 = vpop.permute.xlu0 %4506
  %4508 = vrot.lane.b32.xlu0 %v4480, 96
  %v4509 = vpop.permute.xlu0 %4508
  %4510 = vrot.lane.b32.xlu0 %v4485, 96
  %v4511 = vpop.permute.xlu0 %4510
  %4512 = vrot.lane.b32.xlu0 %v4490, 96
  %v4513 = vpop.permute.xlu0 %4512
  %v4515 = vsel %vm279, %v4498, 0
  %v4518 = vsel %vm279, %v4499, 0
  %v4521 = vsel %vm279, %v4500, 0
  %v4524 = vsel %vm279, %v4501, 0
  %v4526 = vsel %vm279, %v4507, 0
  %v4528 = vsel %vm279, %v4509, 0
  %v4530 = vsel %vm279, %v4511, 0
  %v4532 = vsel %vm279, %v4513, 0
  %4534 = vmatprep.subr.mxu0 0.0
  %4535 = vmatpush1.xpose.msra.mxu0 %v4526
  %4536 = vmatprep.subr.mxu0 0.0
  %4537 = vmatpush1.xpose.msra.mxu0 %v4528
  %4538 = vmatprep.subr.mxu0 0.0
  %4539 = vmatpush1.xpose.msra.mxu0 %v4530
  %4540 = vmatprep.subr.mxu0 0.0
  %4541 = vmatpush1.xpose.msra.mxu0 %v4532
  %4542 = vmatprep.subr.mxu0 0.0
  %4543 = vmatpush1.xpose.msra.mxu0 0.0
  %4544 = vmatprep.subr.mxu0 0.0
  %4545 = vmatpush1.xpose.msra.mxu0 0.0
  %4546 = vmatprep.subr.mxu0 0.0
  %4547 = vmatpush1.xpose.msra.mxu0 0.0
  %4548 = vmatprep.subr.mxu0 0.0
  %4549 = vmatpush1.xpose.msra.mxu0 0.0
  %4550 = vmatprep.subr.mxu0 0.0
  %4551 = vmatpush1.xpose.msra.mxu0 0.0
  %4552 = vmatprep.subr.mxu0 0.0
  %4553 = vmatpush1.xpose.msra.mxu0 0.0
  %4554 = vmatprep.subr.mxu0 0.0
  %4555 = vmatpush1.xpose.msra.mxu0 0.0
  %4556 = vmatprep.subr.mxu0 0.0
  %4557 = vmatpush1.xpose.msra.mxu0 0.0
  %4558 = vmatprep.subr.mxu0 0.0
  %4559 = vmatpush1.xpose.msra.mxu0 0.0
  %4560 = vmatprep.subr.mxu0 0.0
  %4561 = vmatpush1.xpose.msra.mxu0 0.0
  %4562 = vmatprep.subr.mxu0 0.0
  %4563 = vmatpush1.xpose.msra.mxu0 0.0
  %4564 = vmatprep.subr.mxu0 0.0
  %4565 = vmatpush1.xpose.msra.mxu0 0.0
  %4566 = vmatprep.subr.mxu0 0.0
  %4567 = vmatpush1.xpose.msra.mxu0 0.0
  %4568 = vmatprep.subr.mxu0 0.0
  %4569 = vmatpush1.xpose.msra.mxu0 0.0
  %4570 = vmatprep.subr.mxu0 0.0
  %4571 = vmatpush1.xpose.msra.mxu0 0.0
  %4572 = vmatprep.subr.mxu0 0.0
  %4573 = vmatpush1.xpose.msra.mxu0 0.0
  %4574 = vmatprep.subr.mxu0 0.0
  %4575 = vmatpush1.xpose.msra.mxu0 0.0
  %4576 = vmatprep.subr.mxu0 0.0
  %4577 = vmatpush1.xpose.msra.mxu0 0.0
  %4578 = vmatprep.subr.mxu0 0.0
  %4579 = vmatpush1.xpose.msra.mxu0 0.0
  %4580 = vmatprep.subr.mxu0 0.0
  %4581 = vmatpush1.xpose.msra.mxu0 0.0
  %4582 = vmatprep.subr.mxu0 0.0
  %4583 = vmatpush1.xpose.msra.mxu0 0.0
  %4584 = vmatprep.subr.mxu0 0.0
  %4585 = vmatpush1.xpose.msra.mxu0 0.0
  %4586 = vmatprep.subr.mxu0 0.0
  %4587 = vmatpush1.xpose.msra.mxu0 0.0
  %4588 = vmatprep.subr.mxu0 0.0
  %4589 = vmatpush1.xpose.msra.mxu0 0.0
  %4590 = vmatprep.subr.mxu0 0.0
  %4591 = vmatpush1.xpose.msra.mxu0 0.0
  %4592 = vmatprep.subr.mxu0 0.0
  %4593 = vmatpush1.xpose.msra.mxu0 0.0
  %4594 = vmatprep.subr.mxu0 0.0
  %4595 = vmatpush1.xpose.msra.mxu0 0.0
  %4596 = vmatprep.subr.mxu0 0.0
  %4597 = vmatpush1.xpose.msra.mxu0 0.0
  %4598 = vmatprep.mubr.f32.mxu0 0.0
  %4599 = vmatmul.mubr.f32.gmra.mrb[0].mxu0 %v4515
  %v4600 = vpop.f32.mrb[0].mxu0
  %v4601 = vadd.f32 %v67, %v4600
  %v4602 = vpop.f32.mrb[0].mxu0
  %4603 = vmatprep.mubr.f32.mxu0 0.0
  %4604 = vmatmul.mubr.f32.gmra.mrb[0].mxu0 %v4518
  %v4605 = vpop.f32.mrb[0].mxu0
  %v4606 = vadd.f32 %v68, %v4605
  %v4607 = vpop.f32.mrb[0].mxu0
  %4608 = vmatprep.mubr.f32.mxu0 0.0
  %4609 = vmatmul.mubr.f32.gmra.mrb[0].mxu0 %v4521
  %v4610 = vpop.f32.mrb[0].mxu0
  %v4611 = vadd.f32 %v69, %v4610
  %v4612 = vpop.f32.mrb[0].mxu0
  %4613 = vmatprep.mubr.f32.mxu0 0.0
  %4614 = vmatmul.mubr.f32.gmra.mrb[0].mxu0 %v4524
  %v4615 = vpop.f32.mrb[0].mxu0
  %v4616 = vadd.f32 %v70, %v4615
  %v4617 = vpop.f32.mrb[0].mxu0
  %4618 = vdwg.mxu0
  %v4619 = vsel %vm77, %v4601, -inf
  %4620 = vmax.xlane.f32.xlu0 %v4619
  %v4621 = vpop.xlane.xlu0 %4620
  %v4622 = vsel %vm77, %v4606, -inf
  %4623 = vmax.xlane.f32.xlu0 %v4622
  %v4624 = vpop.xlane.xlu0 %4623
  %v4625 = vsel %vm77, %v4611, -inf
  %4626 = vmax.xlane.f32.xlu0 %v4625
  %v4627 = vpop.xlane.xlu0 %4626
  %v4628 = vsel %vm77, %v4616, -inf
  %4629 = vmax.xlane.f32.xlu0 %v4628
  %v4630 = vpop.xlane.xlu0 %4629
  %v4631 = vsub.f32 %v4601, %v4621
  %v4632 = vsub.f32 %v4606, %v4624
  %v4633 = vsub.f32 %v4611, %v4627
  %v4634 = vsub.f32 %v4616, %v4630
  %v4635 = vmul.f32 %v4631, 1.442695
  %v4636 = vpow.pop %v4635
  %v4637 = vmul.f32 %v4632, 1.442695
  %v4638 = vpow.pop %v4637
  %v4639 = vmul.f32 %v4633, 1.442695
  %v4640 = vpow.pop %v4639
  %v4641 = vmul.f32 %v4634, 1.442695
  %v4642 = vpow.pop %v4641
  %v4643 = vsel %vm77, %v4636, 0.0
  %4644 = vadd.xlane.f32.xlu0 %v4643
  %v4645 = vpop.xlane.xlu0 %4644
  %v4646 = vsel %vm77, %v4638, 0.0
  %4647 = vadd.xlane.f32.xlu0 %v4646
  %v4648 = vpop.xlane.xlu0 %4647
  %v4649 = vsel %vm77, %v4640, 0.0
  %4650 = vadd.xlane.f32.xlu0 %v4649
  %v4651 = vpop.xlane.xlu0 %4650
  %v4652 = vsel %vm77, %v4642, 0.0
  %4653 = vadd.xlane.f32.xlu0 %v4652
  %v4654 = vpop.xlane.xlu0 %4653
  %v4655 = vrcp.pop %v4645
  %v4656 = vrcp.pop %v4648
  %v4657 = vrcp.pop %v4651
  %v4658 = vrcp.pop %v4654
  %v4659 = vmul.f32 %v4636, %v4655
  %v4660 = vmul.f32 %v4638, %v4656
  %v4661 = vmul.f32 %v4640, %v4657
  %v4662 = vmul.f32 %v4642, %v4658
  %s4663 = scalar_lea.vmem %s21, 256
  %4664 = vst.msk [vmem:[%s4663] sm:$0xff] %vm77, %v4659
  %4665 = vst.msk [vmem:[%s4663 + $0x8] sm:$0xff] %vm77, %v4660
  %4666 = vst.msk [vmem:[%s4663 + $0x10] sm:$0xff] %vm77, %v4661
  %4667 = vst.msk [vmem:[%s4663 + $0x18] sm:$0xff] %vm77, %v4662
  %4668 = vrot.lane.b32.xlu0 %v4475, 64
  %v4669 = vpop.permute.xlu0 %4668
  %4670 = vrot.lane.b32.xlu0 %v4480, 64
  %v4671 = vpop.permute.xlu0 %4670
  %4672 = vrot.lane.b32.xlu0 %v4485, 64
  %v4673 = vpop.permute.xlu0 %4672
  %4674 = vrot.lane.b32.xlu0 %v4490, 64
  %v4675 = vpop.permute.xlu0 %4674
  %v4681 = vsel %vm77, %v4659, 0
  %v4684 = vsel %vm77, %v4660, 0
  %v4687 = vsel %vm77, %v4661, 0
  %v4690 = vsel %vm77, %v4662, 0
  %4692 = vmatprep.subr.mxu0 0.0
  %4693 = vmatpush1.msra.mxu0 %v4669
  %4694 = vmatprep.subr.mxu0 0.0
  %4695 = vmatpush1.msra.mxu0 %v4671
  %4696 = vmatprep.subr.mxu0 0.0
  %4697 = vmatpush1.msra.mxu0 %v4673
  %4698 = vmatprep.subr.mxu0 0.0
  %4699 = vmatpush1.msra.mxu0 %v4675
  %4700 = vmatprep.subr.mxu0 0.0
  %4701 = vmatpush1.msra.mxu0 0.0
  %4702 = vmatprep.subr.mxu0 0.0
  %4703 = vmatpush1.msra.mxu0 0.0
  %4704 = vmatprep.subr.mxu0 0.0
  %4705 = vmatpush1.msra.mxu0 0.0
  %4706 = vmatprep.subr.mxu0 0.0
  %4707 = vmatpush1.msra.mxu0 0.0
  %4708 = vmatprep.subr.mxu0 0.0
  %4709 = vmatpush1.msra.mxu0 0.0
  %4710 = vmatprep.subr.mxu0 0.0
  %4711 = vmatpush1.msra.mxu0 0.0
  %4712 = vmatprep.subr.mxu0 0.0
  %4713 = vmatpush1.msra.mxu0 0.0
  %4714 = vmatprep.subr.mxu0 0.0
  %4715 = vmatpush1.msra.mxu0 0.0
  %4716 = vmatprep.subr.mxu0 0.0
  %4717 = vmatpush1.msra.mxu0 0.0
  %4718 = vmatprep.subr.mxu0 0.0
  %4719 = vmatpush1.msra.mxu0 0.0
  %4720 = vmatprep.subr.mxu0 0.0
  %4721 = vmatpush1.msra.mxu0 0.0
  %4722 = vmatprep.subr.mxu0 0.0
  %4723 = vmatpush1.msra.mxu0 0.0
  %4724 = vmatprep.subr.mxu0 0.0
  %4725 = vmatpush1.msra.mxu0 0.0
  %4726 = vmatprep.subr.mxu0 0.0
  %4727 = vmatpush1.msra.mxu0 0.0
  %4728 = vmatprep.subr.mxu0 0.0
  %4729 = vmatpush1.msra.mxu0 0.0
  %4730 = vmatprep.subr.mxu0 0.0
  %4731 = vmatpush1.msra.mxu0 0.0
  %4732 = vmatprep.subr.mxu0 0.0
  %4733 = vmatpush1.msra.mxu0 0.0
  %4734 = vmatprep.subr.mxu0 0.0
  %4735 = vmatpush1.msra.mxu0 0.0
  %4736 = vmatprep.subr.mxu0 0.0
  %4737 = vmatpush1.msra.mxu0 0.0
  %4738 = vmatprep.subr.mxu0 0.0
  %4739 = vmatpush1.msra.mxu0 0.0
  %4740 = vmatprep.subr.mxu0 0.0
  %4741 = vmatpush1.msra.mxu0 0.0
  %4742 = vmatprep.subr.mxu0 0.0
  %4743 = vmatpush1.msra.mxu0 0.0
  %4744 = vmatprep.subr.mxu0 0.0
  %4745 = vmatpush1.msra.mxu0 0.0
  %4746 = vmatprep.subr.mxu0 0.0
  %4747 = vmatpush1.msra.mxu0 0.0
  %4748 = vmatprep.subr.mxu0 0.0
  %4749 = vmatpush1.msra.mxu0 0.0
  %4750 = vmatprep.subr.mxu0 0.0
  %4751 = vmatpush1.msra.mxu0 0.0
  %4752 = vmatprep.subr.mxu0 0.0
  %4753 = vmatpush1.msra.mxu0 0.0
  %4754 = vmatprep.subr.mxu0 0.0
  %4755 = vmatpush1.msra.mxu0 0.0
  %4756 = vmatprep.mubr.f32.mxu0 0.0
  %4757 = vmatmul.mubr.f32.gmra.mrb[0].mxu0 %v4681
  %v4758 = vpop.f32.mrb[0].mxu0
  %v4759 = vadd.f32 0.0, %v4758
  %v4760 = vpop.f32.mrb[0].mxu0
  %4761 = vmatprep.mubr.f32.mxu0 0.0
  %4762 = vmatmul.mubr.f32.gmra.mrb[0].mxu0 %v4684
  %v4763 = vpop.f32.mrb[0].mxu0
  %v4764 = vadd.f32 0.0, %v4763
  %v4765 = vpop.f32.mrb[0].mxu0
  %4766 = vmatprep.mubr.f32.mxu0 0.0
  %4767 = vmatmul.mubr.f32.gmra.mrb[0].mxu0 %v4687
  %v4768 = vpop.f32.mrb[0].mxu0
  %v4769 = vadd.f32 0.0, %v4768
  %v4770 = vpop.f32.mrb[0].mxu0
  %4771 = vmatprep.mubr.f32.mxu0 0.0
  %4772 = vmatmul.mubr.f32.gmra.mrb[0].mxu0 %v4690
  %v4773 = vpop.f32.mrb[0].mxu0
  %v4774 = vadd.f32 0.0, %v4773
  %v4775 = vpop.f32.mrb[0].mxu0
  %4776 = vdwg.mxu0
  %4777 = vrot.lane.b32.xlu0 %v4498, 120
  %v4778 = vpop.permute.xlu0 %4777
  %4779 = vrot.lane.b32.xlu0 %v4499, 120
  %v4780 = vpop.permute.xlu0 %4779
  %4781 = vrot.lane.b32.xlu0 %v4500, 120
  %v4782 = vpop.permute.xlu0 %4781
  %4783 = vrot.lane.b32.xlu0 %v4501, 120
  %v4784 = vpop.permute.xlu0 %4783
  %4785 = vrot.lane.b32.xlu0 %v4475, 88
  %v4786 = vpop.permute.xlu0 %4785
  %4787 = vrot.lane.b32.xlu0 %v4480, 88
  %v4788 = vpop.permute.xlu0 %4787
  %4789 = vrot.lane.b32.xlu0 %v4485, 88
  %v4790 = vpop.permute.xlu0 %4789
  %4791 = vrot.lane.b32.xlu0 %v4490, 88
  %v4792 = vpop.permute.xlu0 %4791
  %v4793 = vsel %vm279, %v4778, 0
  %v4795 = vsel %vm279, %v4780, 0
  %v4797 = vsel %vm279, %v4782, 0
  %v4799 = vsel %vm279, %v4784, 0
  %v4801 = vsel %vm279, %v4786, 0
  %v4803 = vsel %vm279, %v4788, 0
  %v4805 = vsel %vm279, %v4790, 0
  %v4807 = vsel %vm279, %v4792, 0
  %4809 = vmatprep.subr.mxu0 0.0
  %4810 = vmatpush1.xpose.msra.mxu0 %v4801
  %4811 = vmatprep.subr.mxu0 0.0
  %4812 = vmatpush1.xpose.msra.mxu0 %v4803
  %4813 = vmatprep.subr.mxu0 0.0
  %4814 = vmatpush1.xpose.msra.mxu0 %v4805
  %4815 = vmatprep.subr.mxu0 0.0
  %4816 = vmatpush1.xpose.msra.mxu0 %v4807
  %4817 = vmatprep.subr.mxu0 0.0
  %4818 = vmatpush1.xpose.msra.mxu0 0.0
  %4819 = vmatprep.subr.mxu0 0.0
  %4820 = vmatpush1.xpose.msra.mxu0 0.0
  %4821 = vmatprep.subr.mxu0 0.0
  %4822 = vmatpush1.xpose.msra.mxu0 0.0
  %4823 = vmatprep.subr.mxu0 0.0
  %4824 = vmatpush1.xpose.msra.mxu0 0.0
  %4825 = vmatprep.subr.mxu0 0.0
  %4826 = vmatpush1.xpose.msra.mxu0 0.0
  %4827 = vmatprep.subr.mxu0 0.0
  %4828 = vmatpush1.xpose.msra.mxu0 0.0
  %4829 = vmatprep.subr.mxu0 0.0
  %4830 = vmatpush1.xpose.msra.mxu0 0.0
  %4831 = vmatprep.subr.mxu0 0.0
  %4832 = vmatpush1.xpose.msra.mxu0 0.0
  %4833 = vmatprep.subr.mxu0 0.0
  %4834 = vmatpush1.xpose.msra.mxu0 0.0
  %4835 = vmatprep.subr.mxu0 0.0
  %4836 = vmatpush1.xpose.msra.mxu0 0.0
  %4837 = vmatprep.subr.mxu0 0.0
  %4838 = vmatpush1.xpose.msra.mxu0 0.0
  %4839 = vmatprep.subr.mxu0 0.0
  %4840 = vmatpush1.xpose.msra.mxu0 0.0
  %4841 = vmatprep.subr.mxu0 0.0
  %4842 = vmatpush1.xpose.msra.mxu0 0.0
  %4843 = vmatprep.subr.mxu0 0.0
  %4844 = vmatpush1.xpose.msra.mxu0 0.0
  %4845 = vmatprep.subr.mxu0 0.0
  %4846 = vmatpush1.xpose.msra.mxu0 0.0
  %4847 = vmatprep.subr.mxu0 0.0
  %4848 = vmatpush1.xpose.msra.mxu0 0.0
  %4849 = vmatprep.subr.mxu0 0.0
  %4850 = vmatpush1.xpose.msra.mxu0 0.0
  %4851 = vmatprep.subr.mxu0 0.0
  %4852 = vmatpush1.xpose.msra.mxu0 0.0
  %4853 = vmatprep.subr.mxu0 0.0
  %4854 = vmatpush1.xpose.msra.mxu0 0.0
  %4855 = vmatprep.subr.mxu0 0.0
  %4856 = vmatpush1.xpose.msra.mxu0 0.0
  %4857 = vmatprep.subr.mxu0 0.0
  %4858 = vmatpush1.xpose.msra.mxu0 0.0
  %4859 = vmatprep.subr.mxu0 0.0
  %4860 = vmatpush1.xpose.msra.mxu0 0.0
  %4861 = vmatprep.subr.mxu0 0.0
  %4862 = vmatpush1.xpose.msra.mxu0 0.0
  %4863 = vmatprep.subr.mxu0 0.0
  %4864 = vmatpush1.xpose.msra.mxu0 0.0
  %4865 = vmatprep.subr.mxu0 0.0
  %4866 = vmatpush1.xpose.msra.mxu0 0.0
  %4867 = vmatprep.subr.mxu0 0.0
  %4868 = vmatpush1.xpose.msra.mxu0 0.0
  %4869 = vmatprep.subr.mxu0 0.0
  %4870 = vmatpush1.xpose.msra.mxu0 0.0
  %4871 = vmatprep.subr.mxu0 0.0
  %4872 = vmatpush1.xpose.msra.mxu0 0.0
  %4873 = vmatprep.mubr.f32.mxu0 0.0
  %4874 = vmatmul.mubr.f32.gmra.mrb[0].mxu0 %v4793
  %v4875 = vpop.f32.mrb[0].mxu0
  %v4876 = vadd.f32 %v67, %v4875
  %v4877 = vpop.f32.mrb[0].mxu0
  %4878 = vmatprep.mubr.f32.mxu0 0.0
  %4879 = vmatmul.mubr.f32.gmra.mrb[0].mxu0 %v4795
  %v4880 = vpop.f32.mrb[0].mxu0
  %v4881 = vadd.f32 %v68, %v4880
  %v4882 = vpop.f32.mrb[0].mxu0
  %4883 = vmatprep.mubr.f32.mxu0 0.0
  %4884 = vmatmul.mubr.f32.gmra.mrb[0].mxu0 %v4797
  %v4885 = vpop.f32.mrb[0].mxu0
  %v4886 = vadd.f32 %v69, %v4885
  %v4887 = vpop.f32.mrb[0].mxu0
  %4888 = vmatprep.mubr.f32.mxu0 0.0
  %4889 = vmatmul.mubr.f32.gmra.mrb[0].mxu0 %v4799
  %v4890 = vpop.f32.mrb[0].mxu0
  %v4891 = vadd.f32 %v70, %v4890
  %v4892 = vpop.f32.mrb[0].mxu0
  %4893 = vdwg.mxu0
  %v4894 = vsel %vm77, %v4876, -inf
  %4895 = vmax.xlane.f32.xlu0 %v4894
  %v4896 = vpop.xlane.xlu0 %4895
  %v4897 = vsel %vm77, %v4881, -inf
  %4898 = vmax.xlane.f32.xlu0 %v4897
  %v4899 = vpop.xlane.xlu0 %4898
  %v4900 = vsel %vm77, %v4886, -inf
  %4901 = vmax.xlane.f32.xlu0 %v4900
  %v4902 = vpop.xlane.xlu0 %4901
  %v4903 = vsel %vm77, %v4891, -inf
  %4904 = vmax.xlane.f32.xlu0 %v4903
  %v4905 = vpop.xlane.xlu0 %4904
  %v4906 = vsub.f32 %v4876, %v4896
  %v4907 = vsub.f32 %v4881, %v4899
  %v4908 = vsub.f32 %v4886, %v4902
  %v4909 = vsub.f32 %v4891, %v4905
  %v4910 = vmul.f32 %v4906, 1.442695
  %v4911 = vpow.pop %v4910
  %v4912 = vmul.f32 %v4907, 1.442695
  %v4913 = vpow.pop %v4912
  %v4914 = vmul.f32 %v4908, 1.442695
  %v4915 = vpow.pop %v4914
  %v4916 = vmul.f32 %v4909, 1.442695
  %v4917 = vpow.pop %v4916
  %v4918 = vsel %vm77, %v4911, 0.0
  %4919 = vadd.xlane.f32.xlu0 %v4918
  %v4920 = vpop.xlane.xlu0 %4919
  %v4921 = vsel %vm77, %v4913, 0.0
  %4922 = vadd.xlane.f32.xlu0 %v4921
  %v4923 = vpop.xlane.xlu0 %4922
  %v4924 = vsel %vm77, %v4915, 0.0
  %4925 = vadd.xlane.f32.xlu0 %v4924
  %v4926 = vpop.xlane.xlu0 %4925
  %v4927 = vsel %vm77, %v4917, 0.0
  %4928 = vadd.xlane.f32.xlu0 %v4927
  %v4929 = vpop.xlane.xlu0 %4928
  %v4930 = vrcp.pop %v4920
  %v4931 = vrcp.pop %v4923
  %v4932 = vrcp.pop %v4926
  %v4933 = vrcp.pop %v4929
  %v4934 = vmul.f32 %v4911, %v4930
  %v4935 = vmul.f32 %v4913, %v4931
  %v4936 = vmul.f32 %v4915, %v4932
  %v4937 = vmul.f32 %v4917, %v4933
  %s4938 = scalar_lea.vmem %s21, 288
  %4939 = vst.msk [vmem:[%s4938] sm:$0xff] %vm77, %v4934
  %4940 = vst.msk [vmem:[%s4938 + $0x8] sm:$0xff] %vm77, %v4935
  %4941 = vst.msk [vmem:[%s4938 + $0x10] sm:$0xff] %vm77, %v4936
  %4942 = vst.msk [vmem:[%s4938 + $0x18] sm:$0xff] %vm77, %v4937
  %4943 = vrot.lane.b32.xlu0 %v4475, 56
  %v4944 = vpop.permute.xlu0 %4943
  %4945 = vrot.lane.b32.xlu0 %v4480, 56
  %v4946 = vpop.permute.xlu0 %4945
  %4947 = vrot.lane.b32.xlu0 %v4485, 56
  %v4948 = vpop.permute.xlu0 %4947
  %4949 = vrot.lane.b32.xlu0 %v4490, 56
  %v4950 = vpop.permute.xlu0 %4949
  %v4956 = vsel %vm77, %v4934, 0
  %v4959 = vsel %vm77, %v4935, 0
  %v4962 = vsel %vm77, %v4936, 0
  %v4965 = vsel %vm77, %v4937, 0
  %4967 = vmatprep.subr.mxu0 0.0
  %4968 = vmatpush1.msra.mxu0 %v4944
  %4969 = vmatprep.subr.mxu0 0.0
  %4970 = vmatpush1.msra.mxu0 %v4946
  %4971 = vmatprep.subr.mxu0 0.0
  %4972 = vmatpush1.msra.mxu0 %v4948
  %4973 = vmatprep.subr.mxu0 0.0
  %4974 = vmatpush1.msra.mxu0 %v4950
  %4975 = vmatprep.subr.mxu0 0.0
  %4976 = vmatpush1.msra.mxu0 0.0
  %4977 = vmatprep.subr.mxu0 0.0
  %4978 = vmatpush1.msra.mxu0 0.0
  %4979 = vmatprep.subr.mxu0 0.0
  %4980 = vmatpush1.msra.mxu0 0.0
  %4981 = vmatprep.subr.mxu0 0.0
  %4982 = vmatpush1.msra.mxu0 0.0
  %4983 = vmatprep.subr.mxu0 0.0
  %4984 = vmatpush1.msra.mxu0 0.0
  %4985 = vmatprep.subr.mxu0 0.0
  %4986 = vmatpush1.msra.mxu0 0.0
  %4987 = vmatprep.subr.mxu0 0.0
  %4988 = vmatpush1.msra.mxu0 0.0
  %4989 = vmatprep.subr.mxu0 0.0
  %4990 = vmatpush1.msra.mxu0 0.0
  %4991 = vmatprep.subr.mxu0 0.0
  %4992 = vmatpush1.msra.mxu0 0.0
  %4993 = vmatprep.subr.mxu0 0.0
  %4994 = vmatpush1.msra.mxu0 0.0
  %4995 = vmatprep.subr.mxu0 0.0
  %4996 = vmatpush1.msra.mxu0 0.0
  %4997 = vmatprep.subr.mxu0 0.0
  %4998 = vmatpush1.msra.mxu0 0.0
  %4999 = vmatprep.subr.mxu0 0.0
  %5000 = vmatpush1.msra.mxu0 0.0
  %5001 = vmatprep.subr.mxu0 0.0
  %5002 = vmatpush1.msra.mxu0 0.0
  %5003 = vmatprep.subr.mxu0 0.0
  %5004 = vmatpush1.msra.mxu0 0.0
  %5005 = vmatprep.subr.mxu0 0.0
  %5006 = vmatpush1.msra.mxu0 0.0
  %5007 = vmatprep.subr.mxu0 0.0
  %5008 = vmatpush1.msra.mxu0 0.0
  %5009 = vmatprep.subr.mxu0 0.0
  %5010 = vmatpush1.msra.mxu0 0.0
  %5011 = vmatprep.subr.mxu0 0.0
  %5012 = vmatpush1.msra.mxu0 0.0
  %5013 = vmatprep.subr.mxu0 0.0
  %5014 = vmatpush1.msra.mxu0 0.0
  %5015 = vmatprep.subr.mxu0 0.0
  %5016 = vmatpush1.msra.mxu0 0.0
  %5017 = vmatprep.subr.mxu0 0.0
  %5018 = vmatpush1.msra.mxu0 0.0
  %5019 = vmatprep.subr.mxu0 0.0
  %5020 = vmatpush1.msra.mxu0 0.0
  %5021 = vmatprep.subr.mxu0 0.0
  %5022 = vmatpush1.msra.mxu0 0.0
  %5023 = vmatprep.subr.mxu0 0.0
  %5024 = vmatpush1.msra.mxu0 0.0
  %5025 = vmatprep.subr.mxu0 0.0
  %5026 = vmatpush1.msra.mxu0 0.0
  %5027 = vmatprep.subr.mxu0 0.0
  %5028 = vmatpush1.msra.mxu0 0.0
  %5029 = vmatprep.subr.mxu0 0.0
  %5030 = vmatpush1.msra.mxu0 0.0
  %5031 = vmatprep.mubr.f32.mxu0 0.0
  %5032 = vmatmul.mubr.f32.gmra.mrb[0].mxu0 %v4956
  %v5033 = vpop.f32.mrb[0].mxu0
  %v5034 = vadd.f32 0.0, %v5033
  %v5035 = vpop.f32.mrb[0].mxu0
  %5036 = vmatprep.mubr.f32.mxu0 0.0
  %5037 = vmatmul.mubr.f32.gmra.mrb[0].mxu0 %v4959
  %v5038 = vpop.f32.mrb[0].mxu0
  %v5039 = vadd.f32 0.0, %v5038
  %v5040 = vpop.f32.mrb[0].mxu0
  %5041 = vmatprep.mubr.f32.mxu0 0.0
  %5042 = vmatmul.mubr.f32.gmra.mrb[0].mxu0 %v4962
  %v5043 = vpop.f32.mrb[0].mxu0
  %v5044 = vadd.f32 0.0, %v5043
  %v5045 = vpop.f32.mrb[0].mxu0
  %5046 = vmatprep.mubr.f32.mxu0 0.0
  %5047 = vmatmul.mubr.f32.gmra.mrb[0].mxu0 %v4965
  %v5048 = vpop.f32.mrb[0].mxu0
  %v5049 = vadd.f32 0.0, %v5048
  %v5050 = vpop.f32.mrb[0].mxu0
  %5051 = vdwg.mxu0
  %v5053 = vsel %vm279, %v5034, 0
  %v5056 = vsel %vm279, %v5039, 0
  %v5059 = vsel %vm279, %v5044, 0
  %v5062 = vsel %vm279, %v5049, 0
  %5064 = vmatprep.subr.mxu0 0.0
  %5065 = vmatpush1.msra.mxu0 %v4495
  %5066 = vmatprep.subr.mxu0 0.0
  %5067 = vmatpush1.msra.mxu0 0.0
  %5068 = vmatprep.subr.mxu0 0.0
  %5069 = vmatpush1.msra.mxu0 0.0
  %5070 = vmatprep.subr.mxu0 0.0
  %5071 = vmatpush1.msra.mxu0 0.0
  %5072 = vmatprep.subr.mxu0 0.0
  %5073 = vmatpush1.msra.mxu0 0.0
  %5074 = vmatprep.subr.mxu0 0.0
  %5075 = vmatpush1.msra.mxu0 0.0
  %5076 = vmatprep.subr.mxu0 0.0
  %5077 = vmatpush1.msra.mxu0 0.0
  %5078 = vmatprep.subr.mxu0 0.0
  %5079 = vmatpush1.msra.mxu0 0.0
  %5080 = vmatprep.subr.mxu0 0.0
  %5081 = vmatpush1.msra.mxu0 0.0
  %5082 = vmatprep.subr.mxu0 0.0
  %5083 = vmatpush1.msra.mxu0 0.0
  %5084 = vmatprep.subr.mxu0 0.0
  %5085 = vmatpush1.msra.mxu0 0.0
  %5086 = vmatprep.subr.mxu0 0.0
  %5087 = vmatpush1.msra.mxu0 0.0
  %5088 = vmatprep.subr.mxu0 0.0
  %5089 = vmatpush1.msra.mxu0 0.0
  %5090 = vmatprep.subr.mxu0 0.0
  %5091 = vmatpush1.msra.mxu0 0.0
  %5092 = vmatprep.subr.mxu0 0.0
  %5093 = vmatpush1.msra.mxu0 0.0
  %5094 = vmatprep.subr.mxu0 0.0
  %5095 = vmatpush1.msra.mxu0 0.0
  %5096 = vmatprep.subr.mxu0 0.0
  %5097 = vmatpush1.msra.mxu0 0.0
  %5098 = vmatprep.subr.mxu0 0.0
  %5099 = vmatpush1.msra.mxu0 0.0
  %5100 = vmatprep.subr.mxu0 0.0
  %5101 = vmatpush1.msra.mxu0 0.0
  %5102 = vmatprep.subr.mxu0 0.0
  %5103 = vmatpush1.msra.mxu0 0.0
  %5104 = vmatprep.subr.mxu0 0.0
  %5105 = vmatpush1.msra.mxu0 0.0
  %5106 = vmatprep.subr.mxu0 0.0
  %5107 = vmatpush1.msra.mxu0 0.0
  %5108 = vmatprep.subr.mxu0 0.0
  %5109 = vmatpush1.msra.mxu0 0.0
  %5110 = vmatprep.subr.mxu0 0.0
  %5111 = vmatpush1.msra.mxu0 0.0
  %5112 = vmatprep.subr.mxu0 0.0
  %5113 = vmatpush1.msra.mxu0 0.0
  %5114 = vmatprep.subr.mxu0 0.0
  %5115 = vmatpush1.msra.mxu0 0.0
  %5116 = vmatprep.subr.mxu0 0.0
  %5117 = vmatpush1.msra.mxu0 0.0
  %5118 = vmatprep.subr.mxu0 0.0
  %5119 = vmatpush1.msra.mxu0 0.0
  %5120 = vmatprep.subr.mxu0 0.0
  %5121 = vmatpush1.msra.mxu0 0.0
  %5122 = vmatprep.subr.mxu0 0.0
  %5123 = vmatpush1.msra.mxu0 0.0
  %5124 = vmatprep.subr.mxu0 0.0
  %5125 = vmatpush1.msra.mxu0 0.0
  %5126 = vmatprep.subr.mxu0 0.0
  %5127 = vmatpush1.msra.mxu0 0.0
  %5128 = vmatprep.mubr.f32.mxu0 0.0
  %5129 = vmatmul.mubr.f32.gmra.mrb[0].mxu0 %v5053
  %v5130 = vpop.f32.mrb[0].mxu0
  %v5131 = vadd.f32 0.0, %v5130
  %v5132 = vpop.f32.mrb[0].mxu0
  %5133 = vmatprep.mubr.f32.mxu0 0.0
  %5134 = vmatmul.mubr.f32.gmra.mrb[0].mxu0 %v5056
  %v5135 = vpop.f32.mrb[0].mxu0
  %v5136 = vadd.f32 0.0, %v5135
  %v5137 = vpop.f32.mrb[0].mxu0
  %5138 = vmatprep.mubr.f32.mxu0 0.0
  %5139 = vmatmul.mubr.f32.gmra.mrb[0].mxu0 %v5059
  %v5140 = vpop.f32.mrb[0].mxu0
  %v5141 = vadd.f32 0.0, %v5140
  %v5142 = vpop.f32.mrb[0].mxu0
  %5143 = vmatprep.mubr.f32.mxu0 0.0
  %5144 = vmatmul.mubr.f32.gmra.mrb[0].mxu0 %v5062
  %v5145 = vpop.f32.mrb[0].mxu0
  %v5146 = vadd.f32 0.0, %v5145
  %v5147 = vpop.f32.mrb[0].mxu0
  %5148 = vdwg.mxu0
  %v5150 = vsel %vm279, %v4759, 0
  %v5153 = vsel %vm279, %v4764, 0
  %v5156 = vsel %vm279, %v4769, 0
  %v5159 = vsel %vm279, %v4774, 0
  %5161 = vmatprep.subr.mxu0 0.0
  %5162 = vmatpush1.msra.mxu0 %v4494
  %5163 = vmatprep.subr.mxu0 0.0
  %5164 = vmatpush1.msra.mxu0 0.0
  %5165 = vmatprep.subr.mxu0 0.0
  %5166 = vmatpush1.msra.mxu0 0.0
  %5167 = vmatprep.subr.mxu0 0.0
  %5168 = vmatpush1.msra.mxu0 0.0
  %5169 = vmatprep.subr.mxu0 0.0
  %5170 = vmatpush1.msra.mxu0 0.0
  %5171 = vmatprep.subr.mxu0 0.0
  %5172 = vmatpush1.msra.mxu0 0.0
  %5173 = vmatprep.subr.mxu0 0.0
  %5174 = vmatpush1.msra.mxu0 0.0
  %5175 = vmatprep.subr.mxu0 0.0
  %5176 = vmatpush1.msra.mxu0 0.0
  %5177 = vmatprep.subr.mxu0 0.0
  %5178 = vmatpush1.msra.mxu0 0.0
  %5179 = vmatprep.subr.mxu0 0.0
  %5180 = vmatpush1.msra.mxu0 0.0
  %5181 = vmatprep.subr.mxu0 0.0
  %5182 = vmatpush1.msra.mxu0 0.0
  %5183 = vmatprep.subr.mxu0 0.0
  %5184 = vmatpush1.msra.mxu0 0.0
  %5185 = vmatprep.subr.mxu0 0.0
  %5186 = vmatpush1.msra.mxu0 0.0
  %5187 = vmatprep.subr.mxu0 0.0
  %5188 = vmatpush1.msra.mxu0 0.0
  %5189 = vmatprep.subr.mxu0 0.0
  %5190 = vmatpush1.msra.mxu0 0.0
  %5191 = vmatprep.subr.mxu0 0.0
  %5192 = vmatpush1.msra.mxu0 0.0
  %5193 = vmatprep.subr.mxu0 0.0
  %5194 = vmatpush1.msra.mxu0 0.0
  %5195 = vmatprep.subr.mxu0 0.0
  %5196 = vmatpush1.msra.mxu0 0.0
  %5197 = vmatprep.subr.mxu0 0.0
  %5198 = vmatpush1.msra.mxu0 0.0
  %5199 = vmatprep.subr.mxu0 0.0
  %5200 = vmatpush1.msra.mxu0 0.0
  %5201 = vmatprep.subr.mxu0 0.0
  %5202 = vmatpush1.msra.mxu0 0.0
  %5203 = vmatprep.subr.mxu0 0.0
  %5204 = vmatpush1.msra.mxu0 0.0
  %5205 = vmatprep.subr.mxu0 0.0
  %5206 = vmatpush1.msra.mxu0 0.0
  %5207 = vmatprep.subr.mxu0 0.0
  %5208 = vmatpush1.msra.mxu0 0.0
  %5209 = vmatprep.subr.mxu0 0.0
  %5210 = vmatpush1.msra.mxu0 0.0
  %5211 = vmatprep.subr.mxu0 0.0
  %5212 = vmatpush1.msra.mxu0 0.0
  %5213 = vmatprep.subr.mxu0 0.0
  %5214 = vmatpush1.msra.mxu0 0.0
  %5215 = vmatprep.subr.mxu0 0.0
  %5216 = vmatpush1.msra.mxu0 0.0
  %5217 = vmatprep.subr.mxu0 0.0
  %5218 = vmatpush1.msra.mxu0 0.0
  %5219 = vmatprep.subr.mxu0 0.0
  %5220 = vmatpush1.msra.mxu0 0.0
  %5221 = vmatprep.subr.mxu0 0.0
  %5222 = vmatpush1.msra.mxu0 0.0
  %5223 = vmatprep.subr.mxu0 0.0
  %5224 = vmatpush1.msra.mxu0 0.0
  %5225 = vmatprep.mubr.f32.mxu0 0.0
  %5226 = vmatmul.mubr.f32.gmra.mrb[0].mxu0 %v5150
  %v5227 = vpop.f32.mrb[0].mxu0
  %v5228 = vadd.f32 %v5131, %v5227
  %v5229 = vpop.f32.mrb[0].mxu0
  %5230 = vmatprep.mubr.f32.mxu0 0.0
  %5231 = vmatmul.mubr.f32.gmra.mrb[0].mxu0 %v5153
  %v5232 = vpop.f32.mrb[0].mxu0
  %v5233 = vadd.f32 %v5136, %v5232
  %v5234 = vpop.f32.mrb[0].mxu0
  %5235 = vmatprep.mubr.f32.mxu0 0.0
  %5236 = vmatmul.mubr.f32.gmra.mrb[0].mxu0 %v5156
  %v5237 = vpop.f32.mrb[0].mxu0
  %v5238 = vadd.f32 %v5141, %v5237
  %v5239 = vpop.f32.mrb[0].mxu0
  %5240 = vmatprep.mubr.f32.mxu0 0.0
  %5241 = vmatmul.mubr.f32.gmra.mrb[0].mxu0 %v5159
  %v5242 = vpop.f32.mrb[0].mxu0
  %v5243 = vadd.f32 %v5146, %v5242
  %v5244 = vpop.f32.mrb[0].mxu0
  %5245 = vdwg.mxu0
  %5246 = vrot.lane.b32.xlu0 %v4498, 112
  %v5247 = vpop.permute.xlu0 %5246
  %5248 = vrot.lane.b32.xlu0 %v4499, 112
  %v5249 = vpop.permute.xlu0 %5248
  %5250 = vrot.lane.b32.xlu0 %v4500, 112
  %v5251 = vpop.permute.xlu0 %5250
  %5252 = vrot.lane.b32.xlu0 %v4501, 112
  %v5253 = vpop.permute.xlu0 %5252
  %5254 = vrot.lane.b32.xlu0 %v4475, 80
  %v5255 = vpop.permute.xlu0 %5254
  %5256 = vrot.lane.b32.xlu0 %v4480, 80
  %v5257 = vpop.permute.xlu0 %5256
  %5258 = vrot.lane.b32.xlu0 %v4485, 80
  %v5259 = vpop.permute.xlu0 %5258
  %5260 = vrot.lane.b32.xlu0 %v4490, 80
  %v5261 = vpop.permute.xlu0 %5260
  %v5262 = vsel %vm279, %v5247, 0
  %v5264 = vsel %vm279, %v5249, 0
  %v5266 = vsel %vm279, %v5251, 0
  %v5268 = vsel %vm279, %v5253, 0
  %v5270 = vsel %vm279, %v5255, 0
  %v5272 = vsel %vm279, %v5257, 0
  %v5274 = vsel %vm279, %v5259, 0
  %v5276 = vsel %vm279, %v5261, 0
  %5278 = vmatprep.subr.mxu0 0.0
  %5279 = vmatpush1.xpose.msra.mxu0 %v5270
  %5280 = vmatprep.subr.mxu0 0.0
  %5281 = vmatpush1.xpose.msra.mxu0 %v5272
  %5282 = vmatprep.subr.mxu0 0.0
  %5283 = vmatpush1.xpose.msra.mxu0 %v5274
  %5284 = vmatprep.subr.mxu0 0.0
  %5285 = vmatpush1.xpose.msra.mxu0 %v5276
  %5286 = vmatprep.subr.mxu0 0.0
  %5287 = vmatpush1.xpose.msra.mxu0 0.0
  %5288 = vmatprep.subr.mxu0 0.0
  %5289 = vmatpush1.xpose.msra.mxu0 0.0
  %5290 = vmatprep.subr.mxu0 0.0
  %5291 = vmatpush1.xpose.msra.mxu0 0.0
  %5292 = vmatprep.subr.mxu0 0.0
  %5293 = vmatpush1.xpose.msra.mxu0 0.0
  %5294 = vmatprep.subr.mxu0 0.0
  %5295 = vmatpush1.xpose.msra.mxu0 0.0
  %5296 = vmatprep.subr.mxu0 0.0
  %5297 = vmatpush1.xpose.msra.mxu0 0.0
  %5298 = vmatprep.subr.mxu0 0.0
  %5299 = vmatpush1.xpose.msra.mxu0 0.0
  %5300 = vmatprep.subr.mxu0 0.0
  %5301 = vmatpush1.xpose.msra.mxu0 0.0
  %5302 = vmatprep.subr.mxu0 0.0
  %5303 = vmatpush1.xpose.msra.mxu0 0.0
  %5304 = vmatprep.subr.mxu0 0.0
  %5305 = vmatpush1.xpose.msra.mxu0 0.0
  %5306 = vmatprep.subr.mxu0 0.0
  %5307 = vmatpush1.xpose.msra.mxu0 0.0
  %5308 = vmatprep.subr.mxu0 0.0
  %5309 = vmatpush1.xpose.msra.mxu0 0.0
  %5310 = vmatprep.subr.mxu0 0.0
  %5311 = vmatpush1.xpose.msra.mxu0 0.0
  %5312 = vmatprep.subr.mxu0 0.0
  %5313 = vmatpush1.xpose.msra.mxu0 0.0
  %5314 = vmatprep.subr.mxu0 0.0
  %5315 = vmatpush1.xpose.msra.mxu0 0.0
  %5316 = vmatprep.subr.mxu0 0.0
  %5317 = vmatpush1.xpose.msra.mxu0 0.0
  %5318 = vmatprep.subr.mxu0 0.0
  %5319 = vmatpush1.xpose.msra.mxu0 0.0
  %5320 = vmatprep.subr.mxu0 0.0
  %5321 = vmatpush1.xpose.msra.mxu0 0.0
  %5322 = vmatprep.subr.mxu0 0.0
  %5323 = vmatpush1.xpose.msra.mxu0 0.0
  %5324 = vmatprep.subr.mxu0 0.0
  %5325 = vmatpush1.xpose.msra.mxu0 0.0
  %5326 = vmatprep.subr.mxu0 0.0
  %5327 = vmatpush1.xpose.msra.mxu0 0.0
  %5328 = vmatprep.subr.mxu0 0.0
  %5329 = vmatpush1.xpose.msra.mxu0 0.0
  %5330 = vmatprep.subr.mxu0 0.0
  %5331 = vmatpush1.xpose.msra.mxu0 0.0
  %5332 = vmatprep.subr.mxu0 0.0
  %5333 = vmatpush1.xpose.msra.mxu0 0.0
  %5334 = vmatprep.subr.mxu0 0.0
  %5335 = vmatpush1.xpose.msra.mxu0 0.0
  %5336 = vmatprep.subr.mxu0 0.0
  %5337 = vmatpush1.xpose.msra.mxu0 0.0
  %5338 = vmatprep.subr.mxu0 0.0
  %5339 = vmatpush1.xpose.msra.mxu0 0.0
  %5340 = vmatprep.subr.mxu0 0.0
  %5341 = vmatpush1.xpose.msra.mxu0 0.0
  %5342 = vmatprep.mubr.f32.mxu0 0.0
  %5343 = vmatmul.mubr.f32.gmra.mrb[0].mxu0 %v5262
  %v5344 = vpop.f32.mrb[0].mxu0
  %v5345 = vadd.f32 %v67, %v5344
  %v5346 = vpop.f32.mrb[0].mxu0
  %5347 = vmatprep.mubr.f32.mxu0 0.0
  %5348 = vmatmul.mubr.f32.gmra.mrb[0].mxu0 %v5264
  %v5349 = vpop.f32.mrb[0].mxu0
  %v5350 = vadd.f32 %v68, %v5349
  %v5351 = vpop.f32.mrb[0].mxu0
  %5352 = vmatprep.mubr.f32.mxu0 0.0
  %5353 = vmatmul.mubr.f32.gmra.mrb[0].mxu0 %v5266
  %v5354 = vpop.f32.mrb[0].mxu0
  %v5355 = vadd.f32 %v69, %v5354
  %v5356 = vpop.f32.mrb[0].mxu0
  %5357 = vmatprep.mubr.f32.mxu0 0.0
  %5358 = vmatmul.mubr.f32.gmra.mrb[0].mxu0 %v5268
  %v5359 = vpop.f32.mrb[0].mxu0
  %v5360 = vadd.f32 %v70, %v5359
  %v5361 = vpop.f32.mrb[0].mxu0
  %5362 = vdwg.mxu0
  %v5363 = vsel %vm77, %v5345, -inf
  %5364 = vmax.xlane.f32.xlu0 %v5363
  %v5365 = vpop.xlane.xlu0 %5364
  %v5366 = vsel %vm77, %v5350, -inf
  %5367 = vmax.xlane.f32.xlu0 %v5366
  %v5368 = vpop.xlane.xlu0 %5367
  %v5369 = vsel %vm77, %v5355, -inf
  %5370 = vmax.xlane.f32.xlu0 %v5369
  %v5371 = vpop.xlane.xlu0 %5370
  %v5372 = vsel %vm77, %v5360, -inf
  %5373 = vmax.xlane.f32.xlu0 %v5372
  %v5374 = vpop.xlane.xlu0 %5373
  %v5375 = vsub.f32 %v5345, %v5365
  %v5376 = vsub.f32 %v5350, %v5368
  %v5377 = vsub.f32 %v5355, %v5371
  %v5378 = vsub.f32 %v5360, %v5374
  %v5379 = vmul.f32 %v5375, 1.442695
  %v5380 = vpow.pop %v5379
  %v5381 = vmul.f32 %v5376, 1.442695
  %v5382 = vpow.pop %v5381
  %v5383 = vmul.f32 %v5377, 1.442695
  %v5384 = vpow.pop %v5383
  %v5385 = vmul.f32 %v5378, 1.442695
  %v5386 = vpow.pop %v5385
  %v5387 = vsel %vm77, %v5380, 0.0
  %5388 = vadd.xlane.f32.xlu0 %v5387
  %v5389 = vpop.xlane.xlu0 %5388
  %v5390 = vsel %vm77, %v5382, 0.0
  %5391 = vadd.xlane.f32.xlu0 %v5390
  %v5392 = vpop.xlane.xlu0 %5391
  %v5393 = vsel %vm77, %v5384, 0.0
  %5394 = vadd.xlane.f32.xlu0 %v5393
  %v5395 = vpop.xlane.xlu0 %5394
  %v5396 = vsel %vm77, %v5386, 0.0
  %5397 = vadd.xlane.f32.xlu0 %v5396
  %v5398 = vpop.xlane.xlu0 %5397
  %v5399 = vrcp.pop %v5389
  %v5400 = vrcp.pop %v5392
  %v5401 = vrcp.pop %v5395
  %v5402 = vrcp.pop %v5398
  %v5403 = vmul.f32 %v5380, %v5399
  %v5404 = vmul.f32 %v5382, %v5400
  %v5405 = vmul.f32 %v5384, %v5401
  %v5406 = vmul.f32 %v5386, %v5402
  %s5407 = scalar_lea.vmem %s21, 320
  %5408 = vst.msk [vmem:[%s5407] sm:$0xff] %vm77, %v5403
  %5409 = vst.msk [vmem:[%s5407 + $0x8] sm:$0xff] %vm77, %v5404
  %5410 = vst.msk [vmem:[%s5407 + $0x10] sm:$0xff] %vm77, %v5405
  %5411 = vst.msk [vmem:[%s5407 + $0x18] sm:$0xff] %vm77, %v5406
  %5412 = vrot.lane.b32.xlu0 %v4475, 48
  %v5413 = vpop.permute.xlu0 %5412
  %5414 = vrot.lane.b32.xlu0 %v4480, 48
  %v5415 = vpop.permute.xlu0 %5414
  %5416 = vrot.lane.b32.xlu0 %v4485, 48
  %v5417 = vpop.permute.xlu0 %5416
  %5418 = vrot.lane.b32.xlu0 %v4490, 48
  %v5419 = vpop.permute.xlu0 %5418
  %v5425 = vsel %vm77, %v5403, 0
  %v5428 = vsel %vm77, %v5404, 0
  %v5431 = vsel %vm77, %v5405, 0
  %v5434 = vsel %vm77, %v5406, 0
  %5436 = vmatprep.subr.mxu0 0.0
  %5437 = vmatpush1.msra.mxu0 %v5413
  %5438 = vmatprep.subr.mxu0 0.0
  %5439 = vmatpush1.msra.mxu0 %v5415
  %5440 = vmatprep.subr.mxu0 0.0
  %5441 = vmatpush1.msra.mxu0 %v5417
  %5442 = vmatprep.subr.mxu0 0.0
  %5443 = vmatpush1.msra.mxu0 %v5419
  %5444 = vmatprep.subr.mxu0 0.0
  %5445 = vmatpush1.msra.mxu0 0.0
  %5446 = vmatprep.subr.mxu0 0.0
  %5447 = vmatpush1.msra.mxu0 0.0
  %5448 = vmatprep.subr.mxu0 0.0
  %5449 = vmatpush1.msra.mxu0 0.0
  %5450 = vmatprep.subr.mxu0 0.0
  %5451 = vmatpush1.msra.mxu0 0.0
  %5452 = vmatprep.subr.mxu0 0.0
  %5453 = vmatpush1.msra.mxu0 0.0
  %5454 = vmatprep.subr.mxu0 0.0
  %5455 = vmatpush1.msra.mxu0 0.0
  %5456 = vmatprep.subr.mxu0 0.0
  %5457 = vmatpush1.msra.mxu0 0.0
  %5458 = vmatprep.subr.mxu0 0.0
  %5459 = vmatpush1.msra.mxu0 0.0
  %5460 = vmatprep.subr.mxu0 0.0
  %5461 = vmatpush1.msra.mxu0 0.0
  %5462 = vmatprep.subr.mxu0 0.0
  %5463 = vmatpush1.msra.mxu0 0.0
  %5464 = vmatprep.subr.mxu0 0.0
  %5465 = vmatpush1.msra.mxu0 0.0
  %5466 = vmatprep.subr.mxu0 0.0
  %5467 = vmatpush1.msra.mxu0 0.0
  %5468 = vmatprep.subr.mxu0 0.0
  %5469 = vmatpush1.msra.mxu0 0.0
  %5470 = vmatprep.subr.mxu0 0.0
  %5471 = vmatpush1.msra.mxu0 0.0
  %5472 = vmatprep.subr.mxu0 0.0
  %5473 = vmatpush1.msra.mxu0 0.0
  %5474 = vmatprep.subr.mxu0 0.0
  %5475 = vmatpush1.msra.mxu0 0.0
  %5476 = vmatprep.subr.mxu0 0.0
  %5477 = vmatpush1.msra.mxu0 0.0
  %5478 = vmatprep.subr.mxu0 0.0
  %5479 = vmatpush1.msra.mxu0 0.0
  %5480 = vmatprep.subr.mxu0 0.0
  %5481 = vmatpush1.msra.mxu0 0.0
  %5482 = vmatprep.subr.mxu0 0.0
  %5483 = vmatpush1.msra.mxu0 0.0
  %5484 = vmatprep.subr.mxu0 0.0
  %5485 = vmatpush1.msra.mxu0 0.0
  %5486 = vmatprep.subr.mxu0 0.0
  %5487 = vmatpush1.msra.mxu0 0.0
  %5488 = vmatprep.subr.mxu0 0.0
  %5489 = vmatpush1.msra.mxu0 0.0
  %5490 = vmatprep.subr.mxu0 0.0
  %5491 = vmatpush1.msra.mxu0 0.0
  %5492 = vmatprep.subr.mxu0 0.0
  %5493 = vmatpush1.msra.mxu0 0.0
  %5494 = vmatprep.subr.mxu0 0.0
  %5495 = vmatpush1.msra.mxu0 0.0
  %5496 = vmatprep.subr.mxu0 0.0
  %5497 = vmatpush1.msra.mxu0 0.0
  %5498 = vmatprep.subr.mxu0 0.0
  %5499 = vmatpush1.msra.mxu0 0.0
  %5500 = vmatprep.mubr.f32.mxu0 0.0
  %5501 = vmatmul.mubr.f32.gmra.mrb[0].mxu0 %v5425
  %v5502 = vpop.f32.mrb[0].mxu0
  %v5503 = vadd.f32 0.0, %v5502
  %v5504 = vpop.f32.mrb[0].mxu0
  %5505 = vmatprep.mubr.f32.mxu0 0.0
  %5506 = vmatmul.mubr.f32.gmra.mrb[0].mxu0 %v5428
  %v5507 = vpop.f32.mrb[0].mxu0
  %v5508 = vadd.f32 0.0, %v5507
  %v5509 = vpop.f32.mrb[0].mxu0
  %5510 = vmatprep.mubr.f32.mxu0 0.0
  %5511 = vmatmul.mubr.f32.gmra.mrb[0].mxu0 %v5431
  %v5512 = vpop.f32.mrb[0].mxu0
  %v5513 = vadd.f32 0.0, %v5512
  %v5514 = vpop.f32.mrb[0].mxu0
  %5515 = vmatprep.mubr.f32.mxu0 0.0
  %5516 = vmatmul.mubr.f32.gmra.mrb[0].mxu0 %v5434
  %v5517 = vpop.f32.mrb[0].mxu0
  %v5518 = vadd.f32 0.0, %v5517
  %v5519 = vpop.f32.mrb[0].mxu0
  %5520 = vdwg.mxu0
  %v5522 = vsel %vm279, %v5503, 0
  %v5525 = vsel %vm279, %v5508, 0
  %v5528 = vsel %vm279, %v5513, 0
  %v5531 = vsel %vm279, %v5518, 0
  %5533 = vmatprep.subr.mxu0 0.0
  %5534 = vmatpush1.msra.mxu0 %v4496
  %5535 = vmatprep.subr.mxu0 0.0
  %5536 = vmatpush1.msra.mxu0 0.0
  %5537 = vmatprep.subr.mxu0 0.0
  %5538 = vmatpush1.msra.mxu0 0.0
  %5539 = vmatprep.subr.mxu0 0.0
  %5540 = vmatpush1.msra.mxu0 0.0
  %5541 = vmatprep.subr.mxu0 0.0
  %5542 = vmatpush1.msra.mxu0 0.0
  %5543 = vmatprep.subr.mxu0 0.0
  %5544 = vmatpush1.msra.mxu0 0.0
  %5545 = vmatprep.subr.mxu0 0.0
  %5546 = vmatpush1.msra.mxu0 0.0
  %5547 = vmatprep.subr.mxu0 0.0
  %5548 = vmatpush1.msra.mxu0 0.0
  %5549 = vmatprep.subr.mxu0 0.0
  %5550 = vmatpush1.msra.mxu0 0.0
  %5551 = vmatprep.subr.mxu0 0.0
  %5552 = vmatpush1.msra.mxu0 0.0
  %5553 = vmatprep.subr.mxu0 0.0
  %5554 = vmatpush1.msra.mxu0 0.0
  %5555 = vmatprep.subr.mxu0 0.0
  %5556 = vmatpush1.msra.mxu0 0.0
  %5557 = vmatprep.subr.mxu0 0.0
  %5558 = vmatpush1.msra.mxu0 0.0
  %5559 = vmatprep.subr.mxu0 0.0
  %5560 = vmatpush1.msra.mxu0 0.0
  %5561 = vmatprep.subr.mxu0 0.0
  %5562 = vmatpush1.msra.mxu0 0.0
  %5563 = vmatprep.subr.mxu0 0.0
  %5564 = vmatpush1.msra.mxu0 0.0
  %5565 = vmatprep.subr.mxu0 0.0
  %5566 = vmatpush1.msra.mxu0 0.0
  %5567 = vmatprep.subr.mxu0 0.0
  %5568 = vmatpush1.msra.mxu0 0.0
  %5569 = vmatprep.subr.mxu0 0.0
  %5570 = vmatpush1.msra.mxu0 0.0
  %5571 = vmatprep.subr.mxu0 0.0
  %5572 = vmatpush1.msra.mxu0 0.0
  %5573 = vmatprep.subr.mxu0 0.0
  %5574 = vmatpush1.msra.mxu0 0.0
  %5575 = vmatprep.subr.mxu0 0.0
  %5576 = vmatpush1.msra.mxu0 0.0
  %5577 = vmatprep.subr.mxu0 0.0
  %5578 = vmatpush1.msra.mxu0 0.0
  %5579 = vmatprep.subr.mxu0 0.0
  %5580 = vmatpush1.msra.mxu0 0.0
  %5581 = vmatprep.subr.mxu0 0.0
  %5582 = vmatpush1.msra.mxu0 0.0
  %5583 = vmatprep.subr.mxu0 0.0
  %5584 = vmatpush1.msra.mxu0 0.0
  %5585 = vmatprep.subr.mxu0 0.0
  %5586 = vmatpush1.msra.mxu0 0.0
  %5587 = vmatprep.subr.mxu0 0.0
  %5588 = vmatpush1.msra.mxu0 0.0
  %5589 = vmatprep.subr.mxu0 0.0
  %5590 = vmatpush1.msra.mxu0 0.0
  %5591 = vmatprep.subr.mxu0 0.0
  %5592 = vmatpush1.msra.mxu0 0.0
  %5593 = vmatprep.subr.mxu0 0.0
  %5594 = vmatpush1.msra.mxu0 0.0
  %5595 = vmatprep.subr.mxu0 0.0
  %5596 = vmatpush1.msra.mxu0 0.0
  %5597 = vmatprep.mubr.f32.mxu0 0.0
  %5598 = vmatmul.mubr.f32.gmra.mrb[0].mxu0 %v5522
  %v5599 = vpop.f32.mrb[0].mxu0
  %v5600 = vadd.f32 0.0, %v5599
  %v5601 = vpop.f32.mrb[0].mxu0
  %5602 = vmatprep.mubr.f32.mxu0 0.0
  %5603 = vmatmul.mubr.f32.gmra.mrb[0].mxu0 %v5525
  %v5604 = vpop.f32.mrb[0].mxu0
  %v5605 = vadd.f32 0.0, %v5604
  %v5606 = vpop.f32.mrb[0].mxu0
  %5607 = vmatprep.mubr.f32.mxu0 0.0
  %5608 = vmatmul.mubr.f32.gmra.mrb[0].mxu0 %v5528
  %v5609 = vpop.f32.mrb[0].mxu0
  %v5610 = vadd.f32 0.0, %v5609
  %v5611 = vpop.f32.mrb[0].mxu0
  %5612 = vmatprep.mubr.f32.mxu0 0.0
  %5613 = vmatmul.mubr.f32.gmra.mrb[0].mxu0 %v5531
  %v5614 = vpop.f32.mrb[0].mxu0
  %v5615 = vadd.f32 0.0, %v5614
  %v5616 = vpop.f32.mrb[0].mxu0
  %5617 = vdwg.mxu0
  %v5618 = vadd.f32 %v5228, %v5600
  %v5619 = vadd.f32 %v5233, %v5605
  %v5620 = vadd.f32 %v5238, %v5610
  %v5621 = vadd.f32 %v5243, %v5615
  %5622 = vrot.lane.b32.xlu0 %v4498, 104
  %v5623 = vpop.permute.xlu0 %5622
  %5624 = vrot.lane.b32.xlu0 %v4499, 104
  %v5625 = vpop.permute.xlu0 %5624
  %5626 = vrot.lane.b32.xlu0 %v4500, 104
  %v5627 = vpop.permute.xlu0 %5626
  %5628 = vrot.lane.b32.xlu0 %v4501, 104
  %v5629 = vpop.permute.xlu0 %5628
  %5630 = vrot.lane.b32.xlu0 %v4475, 72
  %v5631 = vpop.permute.xlu0 %5630
  %5632 = vrot.lane.b32.xlu0 %v4480, 72
  %v5633 = vpop.permute.xlu0 %5632
  %5634 = vrot.lane.b32.xlu0 %v4485, 72
  %v5635 = vpop.permute.xlu0 %5634
  %5636 = vrot.lane.b32.xlu0 %v4490, 72
  %v5637 = vpop.permute.xlu0 %5636
  %v5638 = vsel %vm279, %v5623, 0
  %v5640 = vsel %vm279, %v5625, 0
  %v5642 = vsel %vm279, %v5627, 0
  %v5644 = vsel %vm279, %v5629, 0
  %v5646 = vsel %vm279, %v5631, 0
  %v5648 = vsel %vm279, %v5633, 0
  %v5650 = vsel %vm279, %v5635, 0
  %v5652 = vsel %vm279, %v5637, 0
  %5654 = vmatprep.subr.mxu0 0.0
  %5655 = vmatpush1.xpose.msra.mxu0 %v5646
  %5656 = vmatprep.subr.mxu0 0.0
  %5657 = vmatpush1.xpose.msra.mxu0 %v5648
  %5658 = vmatprep.subr.mxu0 0.0
  %5659 = vmatpush1.xpose.msra.mxu0 %v5650
  %5660 = vmatprep.subr.mxu0 0.0
  %5661 = vmatpush1.xpose.msra.mxu0 %v5652
  %5662 = vmatprep.subr.mxu0 0.0
  %5663 = vmatpush1.xpose.msra.mxu0 0.0
  %5664 = vmatprep.subr.mxu0 0.0
  %5665 = vmatpush1.xpose.msra.mxu0 0.0
  %5666 = vmatprep.subr.mxu0 0.0
  %5667 = vmatpush1.xpose.msra.mxu0 0.0
  %5668 = vmatprep.subr.mxu0 0.0
  %5669 = vmatpush1.xpose.msra.mxu0 0.0
  %5670 = vmatprep.subr.mxu0 0.0
  %5671 = vmatpush1.xpose.msra.mxu0 0.0
  %5672 = vmatprep.subr.mxu0 0.0
  %5673 = vmatpush1.xpose.msra.mxu0 0.0
  %5674 = vmatprep.subr.mxu0 0.0
  %5675 = vmatpush1.xpose.msra.mxu0 0.0
  %5676 = vmatprep.subr.mxu0 0.0
  %5677 = vmatpush1.xpose.msra.mxu0 0.0
  %5678 = vmatprep.subr.mxu0 0.0
  %5679 = vmatpush1.xpose.msra.mxu0 0.0
  %5680 = vmatprep.subr.mxu0 0.0
  %5681 = vmatpush1.xpose.msra.mxu0 0.0
  %5682 = vmatprep.subr.mxu0 0.0
  %5683 = vmatpush1.xpose.msra.mxu0 0.0
  %5684 = vmatprep.subr.mxu0 0.0
  %5685 = vmatpush1.xpose.msra.mxu0 0.0
  %5686 = vmatprep.subr.mxu0 0.0
  %5687 = vmatpush1.xpose.msra.mxu0 0.0
  %5688 = vmatprep.subr.mxu0 0.0
  %5689 = vmatpush1.xpose.msra.mxu0 0.0
  %5690 = vmatprep.subr.mxu0 0.0
  %5691 = vmatpush1.xpose.msra.mxu0 0.0
  %5692 = vmatprep.subr.mxu0 0.0
  %5693 = vmatpush1.xpose.msra.mxu0 0.0
  %5694 = vmatprep.subr.mxu0 0.0
  %5695 = vmatpush1.xpose.msra.mxu0 0.0
  %5696 = vmatprep.subr.mxu0 0.0
  %5697 = vmatpush1.xpose.msra.mxu0 0.0
  %5698 = vmatprep.subr.mxu0 0.0
  %5699 = vmatpush1.xpose.msra.mxu0 0.0
  %5700 = vmatprep.subr.mxu0 0.0
  %5701 = vmatpush1.xpose.msra.mxu0 0.0
  %5702 = vmatprep.subr.mxu0 0.0
  %5703 = vmatpush1.xpose.msra.mxu0 0.0
  %5704 = vmatprep.subr.mxu0 0.0
  %5705 = vmatpush1.xpose.msra.mxu0 0.0
  %5706 = vmatprep.subr.mxu0 0.0
  %5707 = vmatpush1.xpose.msra.mxu0 0.0
  %5708 = vmatprep.subr.mxu0 0.0
  %5709 = vmatpush1.xpose.msra.mxu0 0.0
  %5710 = vmatprep.subr.mxu0 0.0
  %5711 = vmatpush1.xpose.msra.mxu0 0.0
  %5712 = vmatprep.subr.mxu0 0.0
  %5713 = vmatpush1.xpose.msra.mxu0 0.0
  %5714 = vmatprep.subr.mxu0 0.0
  %5715 = vmatpush1.xpose.msra.mxu0 0.0
  %5716 = vmatprep.subr.mxu0 0.0
  %5717 = vmatpush1.xpose.msra.mxu0 0.0
  %5718 = vmatprep.mubr.f32.mxu0 0.0
  %5719 = vmatmul.mubr.f32.gmra.mrb[0].mxu0 %v5638
  %v5720 = vpop.f32.mrb[0].mxu0
  %v5721 = vadd.f32 %v67, %v5720
  %v5722 = vpop.f32.mrb[0].mxu0
  %5723 = vmatprep.mubr.f32.mxu0 0.0
  %5724 = vmatmul.mubr.f32.gmra.mrb[0].mxu0 %v5640
  %v5725 = vpop.f32.mrb[0].mxu0
  %v5726 = vadd.f32 %v68, %v5725
  %v5727 = vpop.f32.mrb[0].mxu0
  %5728 = vmatprep.mubr.f32.mxu0 0.0
  %5729 = vmatmul.mubr.f32.gmra.mrb[0].mxu0 %v5642
  %v5730 = vpop.f32.mrb[0].mxu0
  %v5731 = vadd.f32 %v69, %v5730
  %v5732 = vpop.f32.mrb[0].mxu0
  %5733 = vmatprep.mubr.f32.mxu0 0.0
  %5734 = vmatmul.mubr.f32.gmra.mrb[0].mxu0 %v5644
  %v5735 = vpop.f32.mrb[0].mxu0
  %v5736 = vadd.f32 %v70, %v5735
  %v5737 = vpop.f32.mrb[0].mxu0
  %5738 = vdwg.mxu0
  %v5739 = vsel %vm77, %v5721, -inf
  %5740 = vmax.xlane.f32.xlu0 %v5739
  %v5741 = vpop.xlane.xlu0 %5740
  %v5742 = vsel %vm77, %v5726, -inf
  %5743 = vmax.xlane.f32.xlu0 %v5742
  %v5744 = vpop.xlane.xlu0 %5743
  %v5745 = vsel %vm77, %v5731, -inf
  %5746 = vmax.xlane.f32.xlu0 %v5745
  %v5747 = vpop.xlane.xlu0 %5746
  %v5748 = vsel %vm77, %v5736, -inf
  %5749 = vmax.xlane.f32.xlu0 %v5748
  %v5750 = vpop.xlane.xlu0 %5749
  %v5751 = vsub.f32 %v5721, %v5741
  %v5752 = vsub.f32 %v5726, %v5744
  %v5753 = vsub.f32 %v5731, %v5747
  %v5754 = vsub.f32 %v5736, %v5750
  %v5755 = vmul.f32 %v5751, 1.442695
  %v5756 = vpow.pop %v5755
  %v5757 = vmul.f32 %v5752, 1.442695
  %v5758 = vpow.pop %v5757
  %v5759 = vmul.f32 %v5753, 1.442695
  %v5760 = vpow.pop %v5759
  %v5761 = vmul.f32 %v5754, 1.442695
  %v5762 = vpow.pop %v5761
  %v5763 = vsel %vm77, %v5756, 0.0
  %5764 = vadd.xlane.f32.xlu0 %v5763
  %v5765 = vpop.xlane.xlu0 %5764
  %v5766 = vsel %vm77, %v5758, 0.0
  %5767 = vadd.xlane.f32.xlu0 %v5766
  %v5768 = vpop.xlane.xlu0 %5767
  %v5769 = vsel %vm77, %v5760, 0.0
  %5770 = vadd.xlane.f32.xlu0 %v5769
  %v5771 = vpop.xlane.xlu0 %5770
  %v5772 = vsel %vm77, %v5762, 0.0
  %5773 = vadd.xlane.f32.xlu0 %v5772
  %v5774 = vpop.xlane.xlu0 %5773
  %v5775 = vrcp.pop %v5765
  %v5776 = vrcp.pop %v5768
  %v5777 = vrcp.pop %v5771
  %v5778 = vrcp.pop %v5774
  %v5779 = vmul.f32 %v5756, %v5775
  %v5780 = vmul.f32 %v5758, %v5776
  %v5781 = vmul.f32 %v5760, %v5777
  %v5782 = vmul.f32 %v5762, %v5778
  %s5783 = scalar_lea.vmem %s21, 352
  %5784 = vst.msk [vmem:[%s5783] sm:$0xff] %vm77, %v5779
  %5785 = vst.msk [vmem:[%s5783 + $0x8] sm:$0xff] %vm77, %v5780
  %5786 = vst.msk [vmem:[%s5783 + $0x10] sm:$0xff] %vm77, %v5781
  %5787 = vst.msk [vmem:[%s5783 + $0x18] sm:$0xff] %vm77, %v5782
  %5788 = vrot.lane.b32.xlu0 %v4475, 40
  %v5789 = vpop.permute.xlu0 %5788
  %5790 = vrot.lane.b32.xlu0 %v4480, 40
  %v5791 = vpop.permute.xlu0 %5790
  %5792 = vrot.lane.b32.xlu0 %v4485, 40
  %v5793 = vpop.permute.xlu0 %5792
  %5794 = vrot.lane.b32.xlu0 %v4490, 40
  %v5795 = vpop.permute.xlu0 %5794
  %v5801 = vsel %vm77, %v5779, 0
  %v5804 = vsel %vm77, %v5780, 0
  %v5807 = vsel %vm77, %v5781, 0
  %v5810 = vsel %vm77, %v5782, 0
  %5812 = vmatprep.subr.mxu0 0.0
  %5813 = vmatpush1.msra.mxu0 %v5789
  %5814 = vmatprep.subr.mxu0 0.0
  %5815 = vmatpush1.msra.mxu0 %v5791
  %5816 = vmatprep.subr.mxu0 0.0
  %5817 = vmatpush1.msra.mxu0 %v5793
  %5818 = vmatprep.subr.mxu0 0.0
  %5819 = vmatpush1.msra.mxu0 %v5795
  %5820 = vmatprep.subr.mxu0 0.0
  %5821 = vmatpush1.msra.mxu0 0.0
  %5822 = vmatprep.subr.mxu0 0.0
  %5823 = vmatpush1.msra.mxu0 0.0
  %5824 = vmatprep.subr.mxu0 0.0
  %5825 = vmatpush1.msra.mxu0 0.0
  %5826 = vmatprep.subr.mxu0 0.0
  %5827 = vmatpush1.msra.mxu0 0.0
  %5828 = vmatprep.subr.mxu0 0.0
  %5829 = vmatpush1.msra.mxu0 0.0
  %5830 = vmatprep.subr.mxu0 0.0
  %5831 = vmatpush1.msra.mxu0 0.0
  %5832 = vmatprep.subr.mxu0 0.0
  %5833 = vmatpush1.msra.mxu0 0.0
  %5834 = vmatprep.subr.mxu0 0.0
  %5835 = vmatpush1.msra.mxu0 0.0
  %5836 = vmatprep.subr.mxu0 0.0
  %5837 = vmatpush1.msra.mxu0 0.0
  %5838 = vmatprep.subr.mxu0 0.0
  %5839 = vmatpush1.msra.mxu0 0.0
  %5840 = vmatprep.subr.mxu0 0.0
  %5841 = vmatpush1.msra.mxu0 0.0
  %5842 = vmatprep.subr.mxu0 0.0
  %5843 = vmatpush1.msra.mxu0 0.0
  %5844 = vmatprep.subr.mxu0 0.0
  %5845 = vmatpush1.msra.mxu0 0.0
  %5846 = vmatprep.subr.mxu0 0.0
  %5847 = vmatpush1.msra.mxu0 0.0
  %5848 = vmatprep.subr.mxu0 0.0
  %5849 = vmatpush1.msra.mxu0 0.0
  %5850 = vmatprep.subr.mxu0 0.0
  %5851 = vmatpush1.msra.mxu0 0.0
  %5852 = vmatprep.subr.mxu0 0.0
  %5853 = vmatpush1.msra.mxu0 0.0
  %5854 = vmatprep.subr.mxu0 0.0
  %5855 = vmatpush1.msra.mxu0 0.0
  %5856 = vmatprep.subr.mxu0 0.0
  %5857 = vmatpush1.msra.mxu0 0.0
  %5858 = vmatprep.subr.mxu0 0.0
  %5859 = vmatpush1.msra.mxu0 0.0
  %5860 = vmatprep.subr.mxu0 0.0
  %5861 = vmatpush1.msra.mxu0 0.0
  %5862 = vmatprep.subr.mxu0 0.0
  %5863 = vmatpush1.msra.mxu0 0.0
  %5864 = vmatprep.subr.mxu0 0.0
  %5865 = vmatpush1.msra.mxu0 0.0
  %5866 = vmatprep.subr.mxu0 0.0
  %5867 = vmatpush1.msra.mxu0 0.0
  %5868 = vmatprep.subr.mxu0 0.0
  %5869 = vmatpush1.msra.mxu0 0.0
  %5870 = vmatprep.subr.mxu0 0.0
  %5871 = vmatpush1.msra.mxu0 0.0
  %5872 = vmatprep.subr.mxu0 0.0
  %5873 = vmatpush1.msra.mxu0 0.0
  %5874 = vmatprep.subr.mxu0 0.0
  %5875 = vmatpush1.msra.mxu0 0.0
  %5876 = vmatprep.mubr.f32.mxu0 0.0
  %5877 = vmatmul.mubr.f32.gmra.mrb[0].mxu0 %v5801
  %v5878 = vpop.f32.mrb[0].mxu0
  %v5879 = vadd.f32 0.0, %v5878
  %v5880 = vpop.f32.mrb[0].mxu0
  %5881 = vmatprep.mubr.f32.mxu0 0.0
  %5882 = vmatmul.mubr.f32.gmra.mrb[0].mxu0 %v5804
  %v5883 = vpop.f32.mrb[0].mxu0
  %v5884 = vadd.f32 0.0, %v5883
  %v5885 = vpop.f32.mrb[0].mxu0
  %5886 = vmatprep.mubr.f32.mxu0 0.0
  %5887 = vmatmul.mubr.f32.gmra.mrb[0].mxu0 %v5807
  %v5888 = vpop.f32.mrb[0].mxu0
  %v5889 = vadd.f32 0.0, %v5888
  %v5890 = vpop.f32.mrb[0].mxu0
  %5891 = vmatprep.mubr.f32.mxu0 0.0
  %5892 = vmatmul.mubr.f32.gmra.mrb[0].mxu0 %v5810
  %v5893 = vpop.f32.mrb[0].mxu0
  %v5894 = vadd.f32 0.0, %v5893
  %v5895 = vpop.f32.mrb[0].mxu0
  %5896 = vdwg.mxu0
  %v5898 = vsel %vm279, %v5879, 0
  %v5901 = vsel %vm279, %v5884, 0
  %v5904 = vsel %vm279, %v5889, 0
  %v5907 = vsel %vm279, %v5894, 0
  %5909 = vmatprep.subr.mxu0 0.0
  %5910 = vmatpush1.msra.mxu0 %v4497
  %5911 = vmatprep.subr.mxu0 0.0
  %5912 = vmatpush1.msra.mxu0 0.0
  %5913 = vmatprep.subr.mxu0 0.0
  %5914 = vmatpush1.msra.mxu0 0.0
  %5915 = vmatprep.subr.mxu0 0.0
  %5916 = vmatpush1.msra.mxu0 0.0
  %5917 = vmatprep.subr.mxu0 0.0
  %5918 = vmatpush1.msra.mxu0 0.0
  %5919 = vmatprep.subr.mxu0 0.0
  %5920 = vmatpush1.msra.mxu0 0.0
  %5921 = vmatprep.subr.mxu0 0.0
  %5922 = vmatpush1.msra.mxu0 0.0
  %5923 = vmatprep.subr.mxu0 0.0
  %5924 = vmatpush1.msra.mxu0 0.0
  %5925 = vmatprep.subr.mxu0 0.0
  %5926 = vmatpush1.msra.mxu0 0.0
  %5927 = vmatprep.subr.mxu0 0.0
  %5928 = vmatpush1.msra.mxu0 0.0
  %5929 = vmatprep.subr.mxu0 0.0
  %5930 = vmatpush1.msra.mxu0 0.0
  %5931 = vmatprep.subr.mxu0 0.0
  %5932 = vmatpush1.msra.mxu0 0.0
  %5933 = vmatprep.subr.mxu0 0.0
  %5934 = vmatpush1.msra.mxu0 0.0
  %5935 = vmatprep.subr.mxu0 0.0
  %5936 = vmatpush1.msra.mxu0 0.0
  %5937 = vmatprep.subr.mxu0 0.0
  %5938 = vmatpush1.msra.mxu0 0.0
  %5939 = vmatprep.subr.mxu0 0.0
  %5940 = vmatpush1.msra.mxu0 0.0
  %5941 = vmatprep.subr.mxu0 0.0
  %5942 = vmatpush1.msra.mxu0 0.0
  %5943 = vmatprep.subr.mxu0 0.0
  %5944 = vmatpush1.msra.mxu0 0.0
  %5945 = vmatprep.subr.mxu0 0.0
  %5946 = vmatpush1.msra.mxu0 0.0
  %5947 = vmatprep.subr.mxu0 0.0
  %5948 = vmatpush1.msra.mxu0 0.0
  %5949 = vmatprep.subr.mxu0 0.0
  %5950 = vmatpush1.msra.mxu0 0.0
  %5951 = vmatprep.subr.mxu0 0.0
  %5952 = vmatpush1.msra.mxu0 0.0
  %5953 = vmatprep.subr.mxu0 0.0
  %5954 = vmatpush1.msra.mxu0 0.0
  %5955 = vmatprep.subr.mxu0 0.0
  %5956 = vmatpush1.msra.mxu0 0.0
  %5957 = vmatprep.subr.mxu0 0.0
  %5958 = vmatpush1.msra.mxu0 0.0
  %5959 = vmatprep.subr.mxu0 0.0
  %5960 = vmatpush1.msra.mxu0 0.0
  %5961 = vmatprep.subr.mxu0 0.0
  %5962 = vmatpush1.msra.mxu0 0.0
  %5963 = vmatprep.subr.mxu0 0.0
  %5964 = vmatpush1.msra.mxu0 0.0
  %5965 = vmatprep.subr.mxu0 0.0
  %5966 = vmatpush1.msra.mxu0 0.0
  %5967 = vmatprep.subr.mxu0 0.0
  %5968 = vmatpush1.msra.mxu0 0.0
  %5969 = vmatprep.subr.mxu0 0.0
  %5970 = vmatpush1.msra.mxu0 0.0
  %5971 = vmatprep.subr.mxu0 0.0
  %5972 = vmatpush1.msra.mxu0 0.0
  %5973 = vmatprep.mubr.f32.mxu0 0.0
  %5974 = vmatmul.mubr.f32.gmra.mrb[0].mxu0 %v5898
  %v5975 = vpop.f32.mrb[0].mxu0
  %v5976 = vadd.f32 0.0, %v5975
  %v5977 = vpop.f32.mrb[0].mxu0
  %5978 = vmatprep.mubr.f32.mxu0 0.0
  %5979 = vmatmul.mubr.f32.gmra.mrb[0].mxu0 %v5901
  %v5980 = vpop.f32.mrb[0].mxu0
  %v5981 = vadd.f32 0.0, %v5980
  %v5982 = vpop.f32.mrb[0].mxu0
  %5983 = vmatprep.mubr.f32.mxu0 0.0
  %5984 = vmatmul.mubr.f32.gmra.mrb[0].mxu0 %v5904
  %v5985 = vpop.f32.mrb[0].mxu0
  %v5986 = vadd.f32 0.0, %v5985
  %v5987 = vpop.f32.mrb[0].mxu0
  %5988 = vmatprep.mubr.f32.mxu0 0.0
  %5989 = vmatmul.mubr.f32.gmra.mrb[0].mxu0 %v5907
  %v5990 = vpop.f32.mrb[0].mxu0
  %v5991 = vadd.f32 0.0, %v5990
  %v5992 = vpop.f32.mrb[0].mxu0
  %5993 = vdwg.mxu0
  %v5994 = vadd.f32 %v5618, %v5976
  %v5995 = vadd.f32 %v5619, %v5981
  %v5996 = vadd.f32 %v5620, %v5986
  %v5997 = vadd.f32 %v5621, %v5991
  %v5998 = vadd.f32 %v4303, %v5994
  %v5999 = vadd.f32 %v4304, %v5995
  %v6000 = vadd.f32 %v4305, %v5996
  %v6001 = vadd.f32 %v4306, %v5997
  %s6002 = scalar_lea.vmem %s8, 2
  %v6003 = vld [vmem:[%s6002] sm:$0x1]
  %v6005 = vlaneseq
  %v6006 = vshrl.u32 %v6005, 7
  %v6007 = vsub.s32 0, %v6006
  %v6008 = vrot.slane %v6003, %v6007
  %v6010 = vadd.f32 %v5998, %v6008
  %v6011 = vadd.f32 %v5999, %v6008
  %v6012 = vadd.f32 %v6000, %v6008
  %v6013 = vadd.f32 %v6001, %v6008
  %s6014 = scalar_lea.vmem %s9, 2
  %v6015 = vld [vmem:[%s6014] sm:$0x1]
  %s6016 = scalar_lea.vmem %s10, 2
  %v6017 = vld [vmem:[%s6016] sm:$0x1]
  %v6018 = vsel %vm77, %v6010, 0.0
  %6019 = vadd.xlane.f32.xlu0 %v6018
  %v6020 = vpop.xlane.xlu0 %6019
  %v6021 = vsel %vm77, %v6011, 0.0
  %6022 = vadd.xlane.f32.xlu0 %v6021
  %v6023 = vpop.xlane.xlu0 %6022
  %v6024 = vsel %vm77, %v6012, 0.0
  %6025 = vadd.xlane.f32.xlu0 %v6024
  %v6026 = vpop.xlane.xlu0 %6025
  %v6027 = vsel %vm77, %v6013, 0.0
  %6028 = vadd.xlane.f32.xlu0 %v6027
  %v6029 = vpop.xlane.xlu0 %6028
  %v6030 = vmul.f32 %v6020, %v90
  %v6031 = vmul.f32 %v6023, %v90
  %v6032 = vmul.f32 %v6026, %v90
  %v6033 = vmul.f32 %v6029, %v90
  %v6034 = vsub.f32 %v6010, %v6030
  %v6035 = vsub.f32 %v6011, %v6031
  %v6036 = vsub.f32 %v6012, %v6032
  %v6037 = vsub.f32 %v6013, %v6033
  %v6038 = vmul.f32 %v6034, %v6034
  %v6039 = vmul.f32 %v6035, %v6035
  %v6040 = vmul.f32 %v6036, %v6036
  %v6041 = vmul.f32 %v6037, %v6037
  %v6042 = vsel %vm77, %v6038, 0.0
  %6043 = vadd.xlane.f32.xlu0 %v6042
  %v6044 = vpop.xlane.xlu0 %6043
  %v6045 = vsel %vm77, %v6039, 0.0
  %6046 = vadd.xlane.f32.xlu0 %v6045
  %v6047 = vpop.xlane.xlu0 %6046
  %v6048 = vsel %vm77, %v6040, 0.0
  %6049 = vadd.xlane.f32.xlu0 %v6048
  %v6050 = vpop.xlane.xlu0 %6049
  %v6051 = vsel %vm77, %v6041, 0.0
  %6052 = vadd.xlane.f32.xlu0 %v6051
  %v6053 = vpop.xlane.xlu0 %6052
  %v6054 = vmul.f32 %v6044, %v90
  %v6055 = vmul.f32 %v6047, %v90
  %v6056 = vmul.f32 %v6050, %v90
  %v6057 = vmul.f32 %v6053, %v90
  %v6058 = vadd.f32 %v6054, 1e-05
  %v6059 = vadd.f32 %v6055, 1e-05
  %v6060 = vadd.f32 %v6056, 1e-05
  %v6061 = vadd.f32 %v6057, 1e-05
  %v6062 = vrsqrt.pop %v6058
  %v6063 = vrsqrt.pop %v6059
  %v6064 = vrsqrt.pop %v6060
  %v6065 = vrsqrt.pop %v6061
  %v6066 = vmul.f32 %v6034, %v6062
  %v6067 = vmul.f32 %v6035, %v6063
  %v6068 = vmul.f32 %v6036, %v6064
  %v6069 = vmul.f32 %v6037, %v6065
  %v6071 = vlaneseq
  %v6072 = vshrl.u32 %v6071, 7
  %v6073 = vsub.s32 0, %v6072
  %v6074 = vrot.slane %v6015, %v6073
  %v6076 = vmul.f32 %v6066, %v6074
  %v6077 = vmul.f32 %v6067, %v6074
  %v6078 = vmul.f32 %v6068, %v6074
  %v6079 = vmul.f32 %v6069, %v6074
  %v6081 = vlaneseq
  %v6082 = vshrl.u32 %v6081, 7
  %v6083 = vsub.s32 0, %v6082
  %v6084 = vrot.slane %v6017, %v6083
  %v6086 = vadd.f32 %v6076, %v6084
  %v6087 = vadd.f32 %v6077, %v6084
  %v6088 = vadd.f32 %v6078, %v6084
  %v6089 = vadd.f32 %v6079, %v6084
  %s6090 = scalar_lea.vmem %s11, 64
  %v6091 = vld [vmem:[%s6090] sm:$0xff]
  %v6092 = vld [vmem:[%s6090 + $0x8] sm:$0xff]
  %v6093 = vld [vmem:[%s6090 + $0x10] sm:$0xff]
  %v6094 = vld [vmem:[%s6090 + $0x18] sm:$0xff]
  %s6095 = scalar_lea.vmem %s12, 2
  %v6096 = vld [vmem:[%s6095] sm:$0x1]
  %v6098 = vlaneseq
  %v6099 = vshrl.u32 %v6098, 7
  %v6100 = vsub.s32 0, %v6099
  %v6101 = vrot.slane %v6096, %v6100
  %v6104 = vsel %vm77, %v6086, 0
  %v6107 = vsel %vm77, %v6087, 0
  %v6110 = vsel %vm77, %v6088, 0
  %v6113 = vsel %vm77, %v6089, 0
  %6115 = vmatprep.subr.mxu0 0.0
  %6116 = vmatpush1.msra.mxu0 %v6091
  %6117 = vmatprep.subr.mxu0 0.0
  %6118 = vmatpush1.msra.mxu0 %v6092
  %6119 = vmatprep.subr.mxu0 0.0
  %6120 = vmatpush1.msra.mxu0 %v6093
  %6121 = vmatprep.subr.mxu0 0.0
  %6122 = vmatpush1.msra.mxu0 %v6094
  %6123 = vmatprep.subr.mxu0 0.0
  %6124 = vmatpush1.msra.mxu0 0.0
  %6125 = vmatprep.subr.mxu0 0.0
  %6126 = vmatpush1.msra.mxu0 0.0
  %6127 = vmatprep.subr.mxu0 0.0
  %6128 = vmatpush1.msra.mxu0 0.0
  %6129 = vmatprep.subr.mxu0 0.0
  %6130 = vmatpush1.msra.mxu0 0.0
  %6131 = vmatprep.subr.mxu0 0.0
  %6132 = vmatpush1.msra.mxu0 0.0
  %6133 = vmatprep.subr.mxu0 0.0
  %6134 = vmatpush1.msra.mxu0 0.0
  %6135 = vmatprep.subr.mxu0 0.0
  %6136 = vmatpush1.msra.mxu0 0.0
  %6137 = vmatprep.subr.mxu0 0.0
  %6138 = vmatpush1.msra.mxu0 0.0
  %6139 = vmatprep.subr.mxu0 0.0
  %6140 = vmatpush1.msra.mxu0 0.0
  %6141 = vmatprep.subr.mxu0 0.0
  %6142 = vmatpush1.msra.mxu0 0.0
  %6143 = vmatprep.subr.mxu0 0.0
  %6144 = vmatpush1.msra.mxu0 0.0
  %6145 = vmatprep.subr.mxu0 0.0
  %6146 = vmatpush1.msra.mxu0 0.0
  %6147 = vmatprep.subr.mxu0 0.0
  %6148 = vmatpush1.msra.mxu0 0.0
  %6149 = vmatprep.subr.mxu0 0.0
  %6150 = vmatpush1.msra.mxu0 0.0
  %6151 = vmatprep.subr.mxu0 0.0
  %6152 = vmatpush1.msra.mxu0 0.0
  %6153 = vmatprep.subr.mxu0 0.0
  %6154 = vmatpush1.msra.mxu0 0.0
  %6155 = vmatprep.subr.mxu0 0.0
  %6156 = vmatpush1.msra.mxu0 0.0
  %6157 = vmatprep.subr.mxu0 0.0
  %6158 = vmatpush1.msra.mxu0 0.0
  %6159 = vmatprep.subr.mxu0 0.0
  %6160 = vmatpush1.msra.mxu0 0.0
  %6161 = vmatprep.subr.mxu0 0.0
  %6162 = vmatpush1.msra.mxu0 0.0
  %6163 = vmatprep.subr.mxu0 0.0
  %6164 = vmatpush1.msra.mxu0 0.0
  %6165 = vmatprep.subr.mxu0 0.0
  %6166 = vmatpush1.msra.mxu0 0.0
  %6167 = vmatprep.subr.mxu0 0.0
  %6168 = vmatpush1.msra.mxu0 0.0
  %6169 = vmatprep.subr.mxu0 0.0
  %6170 = vmatpush1.msra.mxu0 0.0
  %6171 = vmatprep.subr.mxu0 0.0
  %6172 = vmatpush1.msra.mxu0 0.0
  %6173 = vmatprep.subr.mxu0 0.0
  %6174 = vmatpush1.msra.mxu0 0.0
  %6175 = vmatprep.subr.mxu0 0.0
  %6176 = vmatpush1.msra.mxu0 0.0
  %6177 = vmatprep.subr.mxu0 0.0
  %6178 = vmatpush1.msra.mxu0 0.0
  %6179 = vmatprep.mubr.f32.mxu0 0.0
  %6180 = vmatmul.mubr.f32.gmra.mrb[0].mxu0 %v6104
  %v6181 = vpop.f32.mrb[0].mxu0
  %v6182 = vadd.f32 %v6101, %v6181
  %v6183 = vpop.f32.mrb[0].mxu0
  %6184 = vmatprep.mubr.f32.mxu0 0.0
  %6185 = vmatmul.mubr.f32.gmra.mrb[0].mxu0 %v6107
  %v6186 = vpop.f32.mrb[0].mxu0
  %v6187 = vadd.f32 %v6101, %v6186
  %v6188 = vpop.f32.mrb[0].mxu0
  %6189 = vmatprep.mubr.f32.mxu0 0.0
  %6190 = vmatmul.mubr.f32.gmra.mrb[0].mxu0 %v6110
  %v6191 = vpop.f32.mrb[0].mxu0
  %v6192 = vadd.f32 %v6101, %v6191
  %v6193 = vpop.f32.mrb[0].mxu0
  %6194 = vmatprep.mubr.f32.mxu0 0.0
  %6195 = vmatmul.mubr.f32.gmra.mrb[0].mxu0 %v6113
  %v6196 = vpop.f32.mrb[0].mxu0
  %v6197 = vadd.f32 %v6101, %v6196
  %v6198 = vpop.f32.mrb[0].mxu0
  %6199 = vdwg.mxu0
  %v6200 = vmul.f32 %v6182, 0.5
  %v6201 = vmul.f32 %v6187, 0.5
  %v6202 = vmul.f32 %v6192, 0.5
  %v6203 = vmul.f32 %v6197, 0.5
  %v6204 = vmul.f32 %v6182, 0.70710677
  %v6205 = vmul.f32 %v6187, 0.70710677
  %v6206 = vmul.f32 %v6192, 0.70710677
  %v6207 = vmul.f32 %v6197, 0.70710677
  %vm6208 = vcmp.ge.f32.partialorder %v6204, 0.0
  %vm6209 = vcmp.ge.f32.partialorder %v6205, 0.0
  %vm6210 = vcmp.ge.f32.partialorder %v6206, 0.0
  %vm6211 = vcmp.ge.f32.partialorder %v6207, 0.0
  %v6212 = vsel %vm6208, 1.0, -1.0
  %v6213 = vsel %vm6209, 1.0, -1.0
  %v6214 = vsel %vm6210, 1.0, -1.0
  %v6215 = vsel %vm6211, 1.0, -1.0
  %v6216 = vand.u32 2147483647, %v6204
  %v6217 = vand.u32 2147483647, %v6205
  %v6218 = vand.u32 2147483647, %v6206
  %v6219 = vand.u32 2147483647, %v6207
  %v6220 = vmul.f32 %v6216, 0.3275911
  %v6221 = vmul.f32 %v6217, 0.3275911
  %v6222 = vmul.f32 %v6218, 0.3275911
  %v6223 = vmul.f32 %v6219, 0.3275911
  %v6224 = vadd.f32 %v6220, 1.0
  %v6225 = vadd.f32 %v6221, 1.0
  %v6226 = vadd.f32 %v6222, 1.0
  %v6227 = vadd.f32 %v6223, 1.0
  %v6228 = vrcp.pop %v6224
  %v6229 = vmul.f32 1.0, %v6228
  %v6230 = vrcp.pop %v6225
  %v6231 = vmul.f32 1.0, %v6230
  %v6232 = vrcp.pop %v6226
  %v6233 = vmul.f32 1.0, %v6232
  %v6234 = vrcp.pop %v6227
  %v6235 = vmul.f32 1.0, %v6234
  %v6236 = vmul.f32 %v6229, 1.0614054
  %v6237 = vmul.f32 %v6231, 1.0614054
  %v6238 = vmul.f32 %v6233, 1.0614054
  %v6239 = vmul.f32 %v6235, 1.0614054
  %v6240 = vadd.f32 %v6236, -1.4531521
  %v6241 = vadd.f32 %v6237, -1.4531521
  %v6242 = vadd.f32 %v6238, -1.4531521
  %v6243 = vadd.f32 %v6239, -1.4531521
  %v6244 = vmul.f32 %v6229, %v6240
  %v6245 = vmul.f32 %v6231, %v6241
  %v6246 = vmul.f32 %v6233, %v6242
  %v6247 = vmul.f32 %v6235, %v6243
  %v6248 = vadd.f32 %v6244, 1.4214138
  %v6249 = vadd.f32 %v6245, 1.4214138
  %v6250 = vadd.f32 %v6246, 1.4214138
  %v6251 = vadd.f32 %v6247, 1.4214138
  %v6252 = vmul.f32 %v6229, %v6248
  %v6253 = vmul.f32 %v6231, %v6249
  %v6254 = vmul.f32 %v6233, %v6250
  %v6255 = vmul.f32 %v6235, %v6251
  %v6256 = vadd.f32 %v6252, -0.28449672
  %v6257 = vadd.f32 %v6253, -0.28449672
  %v6258 = vadd.f32 %v6254, -0.28449672
  %v6259 = vadd.f32 %v6255, -0.28449672
  %v6260 = vmul.f32 %v6229, %v6256
  %v6261 = vmul.f32 %v6231, %v6257
  %v6262 = vmul.f32 %v6233, %v6258
  %v6263 = vmul.f32 %v6235, %v6259
  %v6264 = vadd.f32 %v6260, 0.2548296
  %v6265 = vadd.f32 %v6261, 0.2548296
  %v6266 = vadd.f32 %v6262, 0.2548296
  %v6267 = vadd.f32 %v6263, 0.2548296
  %v6268 = vmul.f32 %v6229, %v6264
  %v6269 = vmul.f32 %v6231, %v6265
  %v6270 = vmul.f32 %v6233, %v6266
  %v6271 = vmul.f32 %v6235, %v6267
  %v6272 = vsub.f32 0.0, %v6216
  %v6273 = vsub.f32 0.0, %v6217
  %v6274 = vsub.f32 0.0, %v6218
  %v6275 = vsub.f32 0.0, %v6219
  %v6276 = vmul.f32 %v6272, %v6216
  %v6277 = vmul.f32 %v6273, %v6217
  %v6278 = vmul.f32 %v6274, %v6218
  %v6279 = vmul.f32 %v6275, %v6219
  %v6280 = vmul.f32 %v6276, 1.442695
  %v6281 = vpow.pop %v6280
  %v6282 = vmul.f32 %v6277, 1.442695
  %v6283 = vpow.pop %v6282
  %v6284 = vmul.f32 %v6278, 1.442695
  %v6285 = vpow.pop %v6284
  %v6286 = vmul.f32 %v6279, 1.442695
  %v6287 = vpow.pop %v6286
  %v6288 = vmul.f32 %v6268, %v6281
  %v6289 = vmul.f32 %v6269, %v6283
  %v6290 = vmul.f32 %v6270, %v6285
  %v6291 = vmul.f32 %v6271, %v6287
  %v6292 = vsub.f32 1.0, %v6288
  %v6293 = vsub.f32 1.0, %v6289
  %v6294 = vsub.f32 1.0, %v6290
  %v6295 = vsub.f32 1.0, %v6291
  %v6296 = vmul.f32 %v6212, %v6292
  %v6297 = vmul.f32 %v6213, %v6293
  %v6298 = vmul.f32 %v6214, %v6294
  %v6299 = vmul.f32 %v6215, %v6295
  %v6300 = vadd.f32 %v6296, 1.0
  %v6301 = vadd.f32 %v6297, 1.0
  %v6302 = vadd.f32 %v6298, 1.0
  %v6303 = vadd.f32 %v6299, 1.0
  %v6304 = vmul.f32 %v6200, %v6300
  %v6305 = vmul.f32 %v6201, %v6301
  %v6306 = vmul.f32 %v6202, %v6302
  %v6307 = vmul.f32 %v6203, %v6303
  %s6308 = scalar_lea.vmem %s13, 256
  %v6309 = vld [vmem:[%s6308] sm:$0xff]
  %v6310 = vld [vmem:[%s6308 + $0x8] sm:$0xff]
  %v6311 = vld [vmem:[%s6308 + $0x10] sm:$0xff]
  %v6312 = vld [vmem:[%s6308 + $0x18] sm:$0xff]
  %v6313 = vld [vmem:[%s6308 + $0x20] sm:$0xff]
  %v6314 = vld [vmem:[%s6308 + $0x28] sm:$0xff]
  %v6315 = vld [vmem:[%s6308 + $0x30] sm:$0xff]
  %v6316 = vld [vmem:[%s6308 + $0x38] sm:$0xff]
  %v6317 = vld [vmem:[%s6308 + $0x40] sm:$0xff]
  %v6318 = vld [vmem:[%s6308 + $0x48] sm:$0xff]
  %v6319 = vld [vmem:[%s6308 + $0x50] sm:$0xff]
  %v6320 = vld [vmem:[%s6308 + $0x58] sm:$0xff]
  %v6321 = vld [vmem:[%s6308 + $0x60] sm:$0xff]
  %v6322 = vld [vmem:[%s6308 + $0x68] sm:$0xff]
  %v6323 = vld [vmem:[%s6308 + $0x70] sm:$0xff]
  %v6324 = vld [vmem:[%s6308 + $0x78] sm:$0xff]
  %6325 = vmatprep.subr.mxu0 0.0
  %6326 = vmatpush1.msra.mxu0 %v6309
  %6327 = vmatprep.subr.mxu0 0.0
  %6328 = vmatpush1.msra.mxu0 %v6310
  %6329 = vmatprep.subr.mxu0 0.0
  %6330 = vmatpush1.msra.mxu0 %v6311
  %6331 = vmatprep.subr.mxu0 0.0
  %6332 = vmatpush1.msra.mxu0 %v6312
  %6333 = vmatprep.subr.mxu0 0.0
  %6334 = vmatpush1.msra.mxu0 %v6313
  %6335 = vmatprep.subr.mxu0 0.0
  %6336 = vmatpush1.msra.mxu0 %v6314
  %6337 = vmatprep.subr.mxu0 0.0
  %6338 = vmatpush1.msra.mxu0 %v6315
  %6339 = vmatprep.subr.mxu0 0.0
  %6340 = vmatpush1.msra.mxu0 %v6316
  %6341 = vmatprep.subr.mxu0 0.0
  %6342 = vmatpush1.msra.mxu0 %v6317
  %6343 = vmatprep.subr.mxu0 0.0
  %6344 = vmatpush1.msra.mxu0 %v6318
  %6345 = vmatprep.subr.mxu0 0.0
  %6346 = vmatpush1.msra.mxu0 %v6319
  %6347 = vmatprep.subr.mxu0 0.0
  %6348 = vmatpush1.msra.mxu0 %v6320
  %6349 = vmatprep.subr.mxu0 0.0
  %6350 = vmatpush1.msra.mxu0 %v6321
  %6351 = vmatprep.subr.mxu0 0.0
  %6352 = vmatpush1.msra.mxu0 %v6322
  %6353 = vmatprep.subr.mxu0 0.0
  %6354 = vmatpush1.msra.mxu0 %v6323
  %6355 = vmatprep.subr.mxu0 0.0
  %6356 = vmatpush1.msra.mxu0 %v6324
  %6357 = vmatprep.subr.mxu0 0.0
  %6358 = vmatpush1.msra.mxu0 0.0
  %6359 = vmatprep.subr.mxu0 0.0
  %6360 = vmatpush1.msra.mxu0 0.0
  %6361 = vmatprep.subr.mxu0 0.0
  %6362 = vmatpush1.msra.mxu0 0.0
  %6363 = vmatprep.subr.mxu0 0.0
  %6364 = vmatpush1.msra.mxu0 0.0
  %6365 = vmatprep.subr.mxu0 0.0
  %6366 = vmatpush1.msra.mxu0 0.0
  %6367 = vmatprep.subr.mxu0 0.0
  %6368 = vmatpush1.msra.mxu0 0.0
  %6369 = vmatprep.subr.mxu0 0.0
  %6370 = vmatpush1.msra.mxu0 0.0
  %6371 = vmatprep.subr.mxu0 0.0
  %6372 = vmatpush1.msra.mxu0 0.0
  %6373 = vmatprep.subr.mxu0 0.0
  %6374 = vmatpush1.msra.mxu0 0.0
  %6375 = vmatprep.subr.mxu0 0.0
  %6376 = vmatpush1.msra.mxu0 0.0
  %6377 = vmatprep.subr.mxu0 0.0
  %6378 = vmatpush1.msra.mxu0 0.0
  %6379 = vmatprep.subr.mxu0 0.0
  %6380 = vmatpush1.msra.mxu0 0.0
  %6381 = vmatprep.subr.mxu0 0.0
  %6382 = vmatpush1.msra.mxu0 0.0
  %6383 = vmatprep.subr.mxu0 0.0
  %6384 = vmatpush1.msra.mxu0 0.0
  %6385 = vmatprep.subr.mxu0 0.0
  %6386 = vmatpush1.msra.mxu0 0.0
  %6387 = vmatprep.subr.mxu0 0.0
  %6388 = vmatpush1.msra.mxu0 0.0
  %6389 = vmatprep.mubr.f32.mxu0 0.0
  %6390 = vmatmul.mubr.f32.gmra.mrb[0].mxu0 %v6304
  %v6391 = vpop.f32.mrb[0].mxu0
  %v6392 = vadd.f32 0.0, %v6391
  %v6393 = vpop.f32.mrb[0].mxu0
  %6394 = vmatprep.mubr.f32.mxu0 0.0
  %6395 = vmatmul.mubr.f32.gmra.mrb[0].mxu0 %v6305
  %v6396 = vpop.f32.mrb[0].mxu0
  %v6397 = vadd.f32 0.0, %v6396
  %v6398 = vpop.f32.mrb[0].mxu0
  %6399 = vmatprep.mubr.f32.mxu0 0.0
  %6400 = vmatmul.mubr.f32.gmra.mrb[0].mxu0 %v6306
  %v6401 = vpop.f32.mrb[0].mxu0
  %v6402 = vadd.f32 0.0, %v6401
  %v6403 = vpop.f32.mrb[0].mxu0
  %6404 = vmatprep.mubr.f32.mxu0 0.0
  %6405 = vmatmul.mubr.f32.gmra.mrb[0].mxu0 %v6307
  %v6406 = vpop.f32.mrb[0].mxu0
  %v6407 = vadd.f32 0.0, %v6406
  %v6408 = vpop.f32.mrb[0].mxu0
  %6409 = vdwg.mxu0
  %v6410 = vadd.f32 %v6010, %v6392
  %v6411 = vadd.f32 %v6011, %v6397
  %v6412 = vadd.f32 %v6012, %v6402
  %v6413 = vadd.f32 %v6013, %v6407
  %s6414 = scalar_lea.vmem %s14, 2
  %v6415 = vld [vmem:[%s6414] sm:$0x1]
  %v6417 = vlaneseq
  %v6418 = vshrl.u32 %v6417, 7
  %v6419 = vsub.s32 0, %v6418
  %v6420 = vrot.slane %v6415, %v6419
  %v6422 = vadd.f32 %v6410, %v6420
  %v6423 = vadd.f32 %v6411, %v6420
  %v6424 = vadd.f32 %v6412, %v6420
  %v6425 = vadd.f32 %v6413, %v6420
  %s6426 = scalar_lea.vmem %s3, 3
  %v6427 = vld [vmem:[%s6426] sm:$0x1]
  %s6428 = scalar_lea.vmem %s4, 3
  %v6429 = vld [vmem:[%s6428] sm:$0x1]
  %v6430 = vsel %vm77, %v6422, 0.0
  %6431 = vadd.xlane.f32.xlu0 %v6430
  %v6432 = vpop.xlane.xlu0 %6431
  %v6433 = vsel %vm77, %v6423, 0.0
  %6434 = vadd.xlane.f32.xlu0 %v6433
  %v6435 = vpop.xlane.xlu0 %6434
  %v6436 = vsel %vm77, %v6424, 0.0
  %6437 = vadd.xlane.f32.xlu0 %v6436
  %v6438 = vpop.xlane.xlu0 %6437
  %v6439 = vsel %vm77, %v6425, 0.0
  %6440 = vadd.xlane.f32.xlu0 %v6439
  %v6441 = vpop.xlane.xlu0 %6440
  %v6442 = vmul.f32 %v6432, %v90
  %v6443 = vmul.f32 %v6435, %v90
  %v6444 = vmul.f32 %v6438, %v90
  %v6445 = vmul.f32 %v6441, %v90
  %v6446 = vsub.f32 %v6422, %v6442
  %v6447 = vsub.f32 %v6423, %v6443
  %v6448 = vsub.f32 %v6424, %v6444
  %v6449 = vsub.f32 %v6425, %v6445
  %v6450 = vmul.f32 %v6446, %v6446
  %v6451 = vmul.f32 %v6447, %v6447
  %v6452 = vmul.f32 %v6448, %v6448
  %v6453 = vmul.f32 %v6449, %v6449
  %v6454 = vsel %vm77, %v6450, 0.0
  %6455 = vadd.xlane.f32.xlu0 %v6454
  %v6456 = vpop.xlane.xlu0 %6455
  %v6457 = vsel %vm77, %v6451, 0.0
  %6458 = vadd.xlane.f32.xlu0 %v6457
  %v6459 = vpop.xlane.xlu0 %6458
  %v6460 = vsel %vm77, %v6452, 0.0
  %6461 = vadd.xlane.f32.xlu0 %v6460
  %v6462 = vpop.xlane.xlu0 %6461
  %v6463 = vsel %vm77, %v6453, 0.0
  %6464 = vadd.xlane.f32.xlu0 %v6463
  %v6465 = vpop.xlane.xlu0 %6464
  %v6466 = vmul.f32 %v6456, %v90
  %v6467 = vmul.f32 %v6459, %v90
  %v6468 = vmul.f32 %v6462, %v90
  %v6469 = vmul.f32 %v6465, %v90
  %v6470 = vadd.f32 %v6466, 1e-05
  %v6471 = vadd.f32 %v6467, 1e-05
  %v6472 = vadd.f32 %v6468, 1e-05
  %v6473 = vadd.f32 %v6469, 1e-05
  %v6474 = vrsqrt.pop %v6470
  %v6475 = vrsqrt.pop %v6471
  %v6476 = vrsqrt.pop %v6472
  %v6477 = vrsqrt.pop %v6473
  %v6478 = vmul.f32 %v6446, %v6474
  %v6479 = vmul.f32 %v6447, %v6475
  %v6480 = vmul.f32 %v6448, %v6476
  %v6481 = vmul.f32 %v6449, %v6477
  %v6483 = vlaneseq
  %v6484 = vshrl.u32 %v6483, 7
  %v6485 = vsub.s32 0, %v6484
  %v6486 = vrot.slane %v6427, %v6485
  %v6488 = vmul.f32 %v6478, %v6486
  %v6489 = vmul.f32 %v6479, %v6486
  %v6490 = vmul.f32 %v6480, %v6486
  %v6491 = vmul.f32 %v6481, %v6486
  %v6493 = vlaneseq
  %v6494 = vshrl.u32 %v6493, 7
  %v6495 = vsub.s32 0, %v6494
  %v6496 = vrot.slane %v6429, %v6495
  %v6498 = vadd.f32 %v6488, %v6496
  %v6499 = vadd.f32 %v6489, %v6496
  %v6500 = vadd.f32 %v6490, %v6496
  %v6501 = vadd.f32 %v6491, %v6496
  %s6502 = scalar_lea.vmem %s5, 96
  %v6503 = vld [vmem:[%s6502] sm:$0xff]
  %v6504 = vld [vmem:[%s6502 + $0x8] sm:$0xff]
  %v6505 = vld [vmem:[%s6502 + $0x10] sm:$0xff]
  %v6506 = vld [vmem:[%s6502 + $0x18] sm:$0xff]
  %s6507 = scalar_lea.vmem %s6, 3
  %v6508 = vld [vmem:[%s6507] sm:$0x1]
  %v6510 = vlaneseq
  %v6511 = vshrl.u32 %v6510, 7
  %v6512 = vsub.s32 0, %v6511
  %v6513 = vrot.slane %v6508, %v6512
  %v6516 = vsel %vm77, %v6498, 0
  %v6519 = vsel %vm77, %v6499, 0
  %v6522 = vsel %vm77, %v6500, 0
  %v6525 = vsel %vm77, %v6501, 0
  %6527 = vmatprep.subr.mxu0 0.0
  %6528 = vmatpush1.msra.mxu0 %v6503
  %6529 = vmatprep.subr.mxu0 0.0
  %6530 = vmatpush1.msra.mxu0 %v6504
  %6531 = vmatprep.subr.mxu0 0.0
  %6532 = vmatpush1.msra.mxu0 %v6505
  %6533 = vmatprep.subr.mxu0 0.0
  %6534 = vmatpush1.msra.mxu0 %v6506
  %6535 = vmatprep.subr.mxu0 0.0
  %6536 = vmatpush1.msra.mxu0 0.0
  %6537 = vmatprep.subr.mxu0 0.0
  %6538 = vmatpush1.msra.mxu0 0.0
  %6539 = vmatprep.subr.mxu0 0.0
  %6540 = vmatpush1.msra.mxu0 0.0
  %6541 = vmatprep.subr.mxu0 0.0
  %6542 = vmatpush1.msra.mxu0 0.0
  %6543 = vmatprep.subr.mxu0 0.0
  %6544 = vmatpush1.msra.mxu0 0.0
  %6545 = vmatprep.subr.mxu0 0.0
  %6546 = vmatpush1.msra.mxu0 0.0
  %6547 = vmatprep.subr.mxu0 0.0
  %6548 = vmatpush1.msra.mxu0 0.0
  %6549 = vmatprep.subr.mxu0 0.0
  %6550 = vmatpush1.msra.mxu0 0.0
  %6551 = vmatprep.subr.mxu0 0.0
  %6552 = vmatpush1.msra.mxu0 0.0
  %6553 = vmatprep.subr.mxu0 0.0
  %6554 = vmatpush1.msra.mxu0 0.0
  %6555 = vmatprep.subr.mxu0 0.0
  %6556 = vmatpush1.msra.mxu0 0.0
  %6557 = vmatprep.subr.mxu0 0.0
  %6558 = vmatpush1.msra.mxu0 0.0
  %6559 = vmatprep.subr.mxu0 0.0
  %6560 = vmatpush1.msra.mxu0 0.0
  %6561 = vmatprep.subr.mxu0 0.0
  %6562 = vmatpush1.msra.mxu0 0.0
  %6563 = vmatprep.subr.mxu0 0.0
  %6564 = vmatpush1.msra.mxu0 0.0
  %6565 = vmatprep.subr.mxu0 0.0
  %6566 = vmatpush1.msra.mxu0 0.0
  %6567 = vmatprep.subr.mxu0 0.0
  %6568 = vmatpush1.msra.mxu0 0.0
  %6569 = vmatprep.subr.mxu0 0.0
  %6570 = vmatpush1.msra.mxu0 0.0
  %6571 = vmatprep.subr.mxu0 0.0
  %6572 = vmatpush1.msra.mxu0 0.0
  %6573 = vmatprep.subr.mxu0 0.0
  %6574 = vmatpush1.msra.mxu0 0.0
  %6575 = vmatprep.subr.mxu0 0.0
  %6576 = vmatpush1.msra.mxu0 0.0
  %6577 = vmatprep.subr.mxu0 0.0
  %6578 = vmatpush1.msra.mxu0 0.0
  %6579 = vmatprep.subr.mxu0 0.0
  %6580 = vmatpush1.msra.mxu0 0.0
  %6581 = vmatprep.subr.mxu0 0.0
  %6582 = vmatpush1.msra.mxu0 0.0
  %6583 = vmatprep.subr.mxu0 0.0
  %6584 = vmatpush1.msra.mxu0 0.0
  %6585 = vmatprep.subr.mxu0 0.0
  %6586 = vmatpush1.msra.mxu0 0.0
  %6587 = vmatprep.subr.mxu0 0.0
  %6588 = vmatpush1.msra.mxu0 0.0
  %6589 = vmatprep.subr.mxu0 0.0
  %6590 = vmatpush1.msra.mxu0 0.0
  %6591 = vmatprep.mubr.f32.mxu0 0.0
  %6592 = vmatmul.mubr.f32.gmra.mrb[0].mxu0 %v6516
  %v6593 = vpop.f32.mrb[0].mxu0
  %v6594 = vadd.f32 %v6513, %v6593
  %v6595 = vpop.f32.mrb[0].mxu0
  %6596 = vmatprep.mubr.f32.mxu0 0.0
  %6597 = vmatmul.mubr.f32.gmra.mrb[0].mxu0 %v6519
  %v6598 = vpop.f32.mrb[0].mxu0
  %v6599 = vadd.f32 %v6513, %v6598
  %v6600 = vpop.f32.mrb[0].mxu0
  %6601 = vmatprep.mubr.f32.mxu0 0.0
  %6602 = vmatmul.mubr.f32.gmra.mrb[0].mxu0 %v6522
  %v6603 = vpop.f32.mrb[0].mxu0
  %v6604 = vadd.f32 %v6513, %v6603
  %v6605 = vpop.f32.mrb[0].mxu0
  %6606 = vmatprep.mubr.f32.mxu0 0.0
  %6607 = vmatmul.mubr.f32.gmra.mrb[0].mxu0 %v6525
  %v6608 = vpop.f32.mrb[0].mxu0
  %v6609 = vadd.f32 %v6513, %v6608
  %v6610 = vpop.f32.mrb[0].mxu0
  %6611 = vdwg.mxu0
  %s6612 = scalar_lea.vmem %s7, 96
  %v6613 = vld [vmem:[%s6612] sm:$0xff]
  %v6614 = vld [vmem:[%s6612 + $0x8] sm:$0xff]
  %v6615 = vld [vmem:[%s6612 + $0x10] sm:$0xff]
  %v6616 = vld [vmem:[%s6612 + $0x18] sm:$0xff]
  %v6617 = vmul.f32 %v6594, 0.35355338
  %v6618 = vmul.f32 %v6599, 0.35355338
  %v6619 = vmul.f32 %v6604, 0.35355338
  %v6620 = vmul.f32 %v6609, 0.35355338
  %6625 = vrot.lane.b32.xlu0 %v6594, 96
  %v6626 = vpop.permute.xlu0 %6625
  %6627 = vrot.lane.b32.xlu0 %v6599, 96
  %v6628 = vpop.permute.xlu0 %6627
  %6629 = vrot.lane.b32.xlu0 %v6604, 96
  %v6630 = vpop.permute.xlu0 %6629
  %6631 = vrot.lane.b32.xlu0 %v6609, 96
  %v6632 = vpop.permute.xlu0 %6631
  %v6634 = vsel %vm279, %v6617, 0
  %v6637 = vsel %vm279, %v6618, 0
  %v6640 = vsel %vm279, %v6619, 0
  %v6643 = vsel %vm279, %v6620, 0
  %v6645 = vsel %vm279, %v6626, 0
  %v6647 = vsel %vm279, %v6628, 0
  %v6649 = vsel %vm279, %v6630, 0
  %v6651 = vsel %vm279, %v6632, 0
  %6653 = vmatprep.subr.mxu0 0.0
  %6654 = vmatpush1.xpose.msra.mxu0 %v6645
  %6655 = vmatprep.subr.mxu0 0.0
  %6656 = vmatpush1.xpose.msra.mxu0 %v6647
  %6657 = vmatprep.subr.mxu0 0.0
  %6658 = vmatpush1.xpose.msra.mxu0 %v6649
  %6659 = vmatprep.subr.mxu0 0.0
  %6660 = vmatpush1.xpose.msra.mxu0 %v6651
  %6661 = vmatprep.subr.mxu0 0.0
  %6662 = vmatpush1.xpose.msra.mxu0 0.0
  %6663 = vmatprep.subr.mxu0 0.0
  %6664 = vmatpush1.xpose.msra.mxu0 0.0
  %6665 = vmatprep.subr.mxu0 0.0
  %6666 = vmatpush1.xpose.msra.mxu0 0.0
  %6667 = vmatprep.subr.mxu0 0.0
  %6668 = vmatpush1.xpose.msra.mxu0 0.0
  %6669 = vmatprep.subr.mxu0 0.0
  %6670 = vmatpush1.xpose.msra.mxu0 0.0
  %6671 = vmatprep.subr.mxu0 0.0
  %6672 = vmatpush1.xpose.msra.mxu0 0.0
  %6673 = vmatprep.subr.mxu0 0.0
  %6674 = vmatpush1.xpose.msra.mxu0 0.0
  %6675 = vmatprep.subr.mxu0 0.0
  %6676 = vmatpush1.xpose.msra.mxu0 0.0
  %6677 = vmatprep.subr.mxu0 0.0
  %6678 = vmatpush1.xpose.msra.mxu0 0.0
  %6679 = vmatprep.subr.mxu0 0.0
  %6680 = vmatpush1.xpose.msra.mxu0 0.0
  %6681 = vmatprep.subr.mxu0 0.0
  %6682 = vmatpush1.xpose.msra.mxu0 0.0
  %6683 = vmatprep.subr.mxu0 0.0
  %6684 = vmatpush1.xpose.msra.mxu0 0.0
  %6685 = vmatprep.subr.mxu0 0.0
  %6686 = vmatpush1.xpose.msra.mxu0 0.0
  %6687 = vmatprep.subr.mxu0 0.0
  %6688 = vmatpush1.xpose.msra.mxu0 0.0
  %6689 = vmatprep.subr.mxu0 0.0
  %6690 = vmatpush1.xpose.msra.mxu0 0.0
  %6691 = vmatprep.subr.mxu0 0.0
  %6692 = vmatpush1.xpose.msra.mxu0 0.0
  %6693 = vmatprep.subr.mxu0 0.0
  %6694 = vmatpush1.xpose.msra.mxu0 0.0
  %6695 = vmatprep.subr.mxu0 0.0
  %6696 = vmatpush1.xpose.msra.mxu0 0.0
  %6697 = vmatprep.subr.mxu0 0.0
  %6698 = vmatpush1.xpose.msra.mxu0 0.0
  %6699 = vmatprep.subr.mxu0 0.0
  %6700 = vmatpush1.xpose.msra.mxu0 0.0
  %6701 = vmatprep.subr.mxu0 0.0
  %6702 = vmatpush1.xpose.msra.mxu0 0.0
  %6703 = vmatprep.subr.mxu0 0.0
  %6704 = vmatpush1.xpose.msra.mxu0 0.0
  %6705 = vmatprep.subr.mxu0 0.0
  %6706 = vmatpush1.xpose.msra.mxu0 0.0
  %6707 = vmatprep.subr.mxu0 0.0
  %6708 = vmatpush1.xpose.msra.mxu0 0.0
  %6709 = vmatprep.subr.mxu0 0.0
  %6710 = vmatpush1.xpose.msra.mxu0 0.0
  %6711 = vmatprep.subr.mxu0 0.0
  %6712 = vmatpush1.xpose.msra.mxu0 0.0
  %6713 = vmatprep.subr.mxu0 0.0
  %6714 = vmatpush1.xpose.msra.mxu0 0.0
  %6715 = vmatprep.subr.mxu0 0.0
  %6716 = vmatpush1.xpose.msra.mxu0 0.0
  %6717 = vmatprep.mubr.f32.mxu0 0.0
  %6718 = vmatmul.mubr.f32.gmra.mrb[0].mxu0 %v6634
  %v6719 = vpop.f32.mrb[0].mxu0
  %v6720 = vadd.f32 %v67, %v6719
  %v6721 = vpop.f32.mrb[0].mxu0
  %6722 = vmatprep.mubr.f32.mxu0 0.0
  %6723 = vmatmul.mubr.f32.gmra.mrb[0].mxu0 %v6637
  %v6724 = vpop.f32.mrb[0].mxu0
  %v6725 = vadd.f32 %v68, %v6724
  %v6726 = vpop.f32.mrb[0].mxu0
  %6727 = vmatprep.mubr.f32.mxu0 0.0
  %6728 = vmatmul.mubr.f32.gmra.mrb[0].mxu0 %v6640
  %v6729 = vpop.f32.mrb[0].mxu0
  %v6730 = vadd.f32 %v69, %v6729
  %v6731 = vpop.f32.mrb[0].mxu0
  %6732 = vmatprep.mubr.f32.mxu0 0.0
  %6733 = vmatmul.mubr.f32.gmra.mrb[0].mxu0 %v6643
  %v6734 = vpop.f32.mrb[0].mxu0
  %v6735 = vadd.f32 %v70, %v6734
  %v6736 = vpop.f32.mrb[0].mxu0
  %6737 = vdwg.mxu0
  %v6738 = vsel %vm77, %v6720, -inf
  %6739 = vmax.xlane.f32.xlu0 %v6738
  %v6740 = vpop.xlane.xlu0 %6739
  %v6741 = vsel %vm77, %v6725, -inf
  %6742 = vmax.xlane.f32.xlu0 %v6741
  %v6743 = vpop.xlane.xlu0 %6742
  %v6744 = vsel %vm77, %v6730, -inf
  %6745 = vmax.xlane.f32.xlu0 %v6744
  %v6746 = vpop.xlane.xlu0 %6745
  %v6747 = vsel %vm77, %v6735, -inf
  %6748 = vmax.xlane.f32.xlu0 %v6747
  %v6749 = vpop.xlane.xlu0 %6748
  %v6750 = vsub.f32 %v6720, %v6740
  %v6751 = vsub.f32 %v6725, %v6743
  %v6752 = vsub.f32 %v6730, %v6746
  %v6753 = vsub.f32 %v6735, %v6749
  %v6754 = vmul.f32 %v6750, 1.442695
  %v6755 = vpow.pop %v6754
  %v6756 = vmul.f32 %v6751, 1.442695
  %v6757 = vpow.pop %v6756
  %v6758 = vmul.f32 %v6752, 1.442695
  %v6759 = vpow.pop %v6758
  %v6760 = vmul.f32 %v6753, 1.442695
  %v6761 = vpow.pop %v6760
  %v6762 = vsel %vm77, %v6755, 0.0
  %6763 = vadd.xlane.f32.xlu0 %v6762
  %v6764 = vpop.xlane.xlu0 %6763
  %v6765 = vsel %vm77, %v6757, 0.0
  %6766 = vadd.xlane.f32.xlu0 %v6765
  %v6767 = vpop.xlane.xlu0 %6766
  %v6768 = vsel %vm77, %v6759, 0.0
  %6769 = vadd.xlane.f32.xlu0 %v6768
  %v6770 = vpop.xlane.xlu0 %6769
  %v6771 = vsel %vm77, %v6761, 0.0
  %6772 = vadd.xlane.f32.xlu0 %v6771
  %v6773 = vpop.xlane.xlu0 %6772
  %v6774 = vrcp.pop %v6764
  %v6775 = vrcp.pop %v6767
  %v6776 = vrcp.pop %v6770
  %v6777 = vrcp.pop %v6773
  %v6778 = vmul.f32 %v6755, %v6774
  %v6779 = vmul.f32 %v6757, %v6775
  %v6780 = vmul.f32 %v6759, %v6776
  %v6781 = vmul.f32 %v6761, %v6777
  %s6782 = scalar_lea.vmem %s21, 384
  %6783 = vst.msk [vmem:[%s6782] sm:$0xff] %vm77, %v6778
  %6784 = vst.msk [vmem:[%s6782 + $0x8] sm:$0xff] %vm77, %v6779
  %6785 = vst.msk [vmem:[%s6782 + $0x10] sm:$0xff] %vm77, %v6780
  %6786 = vst.msk [vmem:[%s6782 + $0x18] sm:$0xff] %vm77, %v6781
  %6787 = vrot.lane.b32.xlu0 %v6594, 64
  %v6788 = vpop.permute.xlu0 %6787
  %6789 = vrot.lane.b32.xlu0 %v6599, 64
  %v6790 = vpop.permute.xlu0 %6789
  %6791 = vrot.lane.b32.xlu0 %v6604, 64
  %v6792 = vpop.permute.xlu0 %6791
  %6793 = vrot.lane.b32.xlu0 %v6609, 64
  %v6794 = vpop.permute.xlu0 %6793
  %v6800 = vsel %vm77, %v6778, 0
  %v6803 = vsel %vm77, %v6779, 0
  %v6806 = vsel %vm77, %v6780, 0
  %v6809 = vsel %vm77, %v6781, 0
  %6811 = vmatprep.subr.mxu0 0.0
  %6812 = vmatpush1.msra.mxu0 %v6788
  %6813 = vmatprep.subr.mxu0 0.0
  %6814 = vmatpush1.msra.mxu0 %v6790
  %6815 = vmatprep.subr.mxu0 0.0
  %6816 = vmatpush1.msra.mxu0 %v6792
  %6817 = vmatprep.subr.mxu0 0.0
  %6818 = vmatpush1.msra.mxu0 %v6794
  %6819 = vmatprep.subr.mxu0 0.0
  %6820 = vmatpush1.msra.mxu0 0.0
  %6821 = vmatprep.subr.mxu0 0.0
  %6822 = vmatpush1.msra.mxu0 0.0
  %6823 = vmatprep.subr.mxu0 0.0
  %6824 = vmatpush1.msra.mxu0 0.0
  %6825 = vmatprep.subr.mxu0 0.0
  %6826 = vmatpush1.msra.mxu0 0.0
  %6827 = vmatprep.subr.mxu0 0.0
  %6828 = vmatpush1.msra.mxu0 0.0
  %6829 = vmatprep.subr.mxu0 0.0
  %6830 = vmatpush1.msra.mxu0 0.0
  %6831 = vmatprep.subr.mxu0 0.0
  %6832 = vmatpush1.msra.mxu0 0.0
  %6833 = vmatprep.subr.mxu0 0.0
  %6834 = vmatpush1.msra.mxu0 0.0
  %6835 = vmatprep.subr.mxu0 0.0
  %6836 = vmatpush1.msra.mxu0 0.0
  %6837 = vmatprep.subr.mxu0 0.0
  %6838 = vmatpush1.msra.mxu0 0.0
  %6839 = vmatprep.subr.mxu0 0.0
  %6840 = vmatpush1.msra.mxu0 0.0
  %6841 = vmatprep.subr.mxu0 0.0
  %6842 = vmatpush1.msra.mxu0 0.0
  %6843 = vmatprep.subr.mxu0 0.0
  %6844 = vmatpush1.msra.mxu0 0.0
  %6845 = vmatprep.subr.mxu0 0.0
  %6846 = vmatpush1.msra.mxu0 0.0
  %6847 = vmatprep.subr.mxu0 0.0
  %6848 = vmatpush1.msra.mxu0 0.0
  %6849 = vmatprep.subr.mxu0 0.0
  %6850 = vmatpush1.msra.mxu0 0.0
  %6851 = vmatprep.subr.mxu0 0.0
  %6852 = vmatpush1.msra.mxu0 0.0
  %6853 = vmatprep.subr.mxu0 0.0
  %6854 = vmatpush1.msra.mxu0 0.0
  %6855 = vmatprep.subr.mxu0 0.0
  %6856 = vmatpush1.msra.mxu0 0.0
  %6857 = vmatprep.subr.mxu0 0.0
  %6858 = vmatpush1.msra.mxu0 0.0
  %6859 = vmatprep.subr.mxu0 0.0
  %6860 = vmatpush1.msra.mxu0 0.0
  %6861 = vmatprep.subr.mxu0 0.0
  %6862 = vmatpush1.msra.mxu0 0.0
  %6863 = vmatprep.subr.mxu0 0.0
  %6864 = vmatpush1.msra.mxu0 0.0
  %6865 = vmatprep.subr.mxu0 0.0
  %6866 = vmatpush1.msra.mxu0 0.0
  %6867 = vmatprep.subr.mxu0 0.0
  %6868 = vmatpush1.msra.mxu0 0.0
  %6869 = vmatprep.subr.mxu0 0.0
  %6870 = vmatpush1.msra.mxu0 0.0
  %6871 = vmatprep.subr.mxu0 0.0
  %6872 = vmatpush1.msra.mxu0 0.0
  %6873 = vmatprep.subr.mxu0 0.0
  %6874 = vmatpush1.msra.mxu0 0.0
  %6875 = vmatprep.mubr.f32.mxu0 0.0
  %6876 = vmatmul.mubr.f32.gmra.mrb[0].mxu0 %v6800
  %v6877 = vpop.f32.mrb[0].mxu0
  %v6878 = vadd.f32 0.0, %v6877
  %v6879 = vpop.f32.mrb[0].mxu0
  %6880 = vmatprep.mubr.f32.mxu0 0.0
  %6881 = vmatmul.mubr.f32.gmra.mrb[0].mxu0 %v6803
  %v6882 = vpop.f32.mrb[0].mxu0
  %v6883 = vadd.f32 0.0, %v6882
  %v6884 = vpop.f32.mrb[0].mxu0
  %6885 = vmatprep.mubr.f32.mxu0 0.0
  %6886 = vmatmul.mubr.f32.gmra.mrb[0].mxu0 %v6806
  %v6887 = vpop.f32.mrb[0].mxu0
  %v6888 = vadd.f32 0.0, %v6887
  %v6889 = vpop.f32.mrb[0].mxu0
  %6890 = vmatprep.mubr.f32.mxu0 0.0
  %6891 = vmatmul.mubr.f32.gmra.mrb[0].mxu0 %v6809
  %v6892 = vpop.f32.mrb[0].mxu0
  %v6893 = vadd.f32 0.0, %v6892
  %v6894 = vpop.f32.mrb[0].mxu0
  %6895 = vdwg.mxu0
  %6896 = vrot.lane.b32.xlu0 %v6617, 120
  %v6897 = vpop.permute.xlu0 %6896
  %6898 = vrot.lane.b32.xlu0 %v6618, 120
  %v6899 = vpop.permute.xlu0 %6898
  %6900 = vrot.lane.b32.xlu0 %v6619, 120
  %v6901 = vpop.permute.xlu0 %6900
  %6902 = vrot.lane.b32.xlu0 %v6620, 120
  %v6903 = vpop.permute.xlu0 %6902
  %6904 = vrot.lane.b32.xlu0 %v6594, 88
  %v6905 = vpop.permute.xlu0 %6904
  %6906 = vrot.lane.b32.xlu0 %v6599, 88
  %v6907 = vpop.permute.xlu0 %6906
  %6908 = vrot.lane.b32.xlu0 %v6604, 88
  %v6909 = vpop.permute.xlu0 %6908
  %6910 = vrot.lane.b32.xlu0 %v6609, 88
  %v6911 = vpop.permute.xlu0 %6910
  %v6912 = vsel %vm279, %v6897, 0
  %v6914 = vsel %vm279, %v6899, 0
  %v6916 = vsel %vm279, %v6901, 0
  %v6918 = vsel %vm279, %v6903, 0
  %v6920 = vsel %vm279, %v6905, 0
  %v6922 = vsel %vm279, %v6907, 0
  %v6924 = vsel %vm279, %v6909, 0
  %v6926 = vsel %vm279, %v6911, 0
  %6928 = vmatprep.subr.mxu0 0.0
  %6929 = vmatpush1.xpose.msra.mxu0 %v6920
  %6930 = vmatprep.subr.mxu0 0.0
  %6931 = vmatpush1.xpose.msra.mxu0 %v6922
  %6932 = vmatprep.subr.mxu0 0.0
  %6933 = vmatpush1.xpose.msra.mxu0 %v6924
  %6934 = vmatprep.subr.mxu0 0.0
  %6935 = vmatpush1.xpose.msra.mxu0 %v6926
  %6936 = vmatprep.subr.mxu0 0.0
  %6937 = vmatpush1.xpose.msra.mxu0 0.0
  %6938 = vmatprep.subr.mxu0 0.0
  %6939 = vmatpush1.xpose.msra.mxu0 0.0
  %6940 = vmatprep.subr.mxu0 0.0
  %6941 = vmatpush1.xpose.msra.mxu0 0.0
  %6942 = vmatprep.subr.mxu0 0.0
  %6943 = vmatpush1.xpose.msra.mxu0 0.0
  %6944 = vmatprep.subr.mxu0 0.0
  %6945 = vmatpush1.xpose.msra.mxu0 0.0
  %6946 = vmatprep.subr.mxu0 0.0
  %6947 = vmatpush1.xpose.msra.mxu0 0.0
  %6948 = vmatprep.subr.mxu0 0.0
  %6949 = vmatpush1.xpose.msra.mxu0 0.0
  %6950 = vmatprep.subr.mxu0 0.0
  %6951 = vmatpush1.xpose.msra.mxu0 0.0
  %6952 = vmatprep.subr.mxu0 0.0
  %6953 = vmatpush1.xpose.msra.mxu0 0.0
  %6954 = vmatprep.subr.mxu0 0.0
  %6955 = vmatpush1.xpose.msra.mxu0 0.0
  %6956 = vmatprep.subr.mxu0 0.0
  %6957 = vmatpush1.xpose.msra.mxu0 0.0
  %6958 = vmatprep.subr.mxu0 0.0
  %6959 = vmatpush1.xpose.msra.mxu0 0.0
  %6960 = vmatprep.subr.mxu0 0.0
  %6961 = vmatpush1.xpose.msra.mxu0 0.0
  %6962 = vmatprep.subr.mxu0 0.0
  %6963 = vmatpush1.xpose.msra.mxu0 0.0
  %6964 = vmatprep.subr.mxu0 0.0
  %6965 = vmatpush1.xpose.msra.mxu0 0.0
  %6966 = vmatprep.subr.mxu0 0.0
  %6967 = vmatpush1.xpose.msra.mxu0 0.0
  %6968 = vmatprep.subr.mxu0 0.0
  %6969 = vmatpush1.xpose.msra.mxu0 0.0
  %6970 = vmatprep.subr.mxu0 0.0
  %6971 = vmatpush1.xpose.msra.mxu0 0.0
  %6972 = vmatprep.subr.mxu0 0.0
  %6973 = vmatpush1.xpose.msra.mxu0 0.0
  %6974 = vmatprep.subr.mxu0 0.0
  %6975 = vmatpush1.xpose.msra.mxu0 0.0
  %6976 = vmatprep.subr.mxu0 0.0
  %6977 = vmatpush1.xpose.msra.mxu0 0.0
  %6978 = vmatprep.subr.mxu0 0.0
  %6979 = vmatpush1.xpose.msra.mxu0 0.0
  %6980 = vmatprep.subr.mxu0 0.0
  %6981 = vmatpush1.xpose.msra.mxu0 0.0
  %6982 = vmatprep.subr.mxu0 0.0
  %6983 = vmatpush1.xpose.msra.mxu0 0.0
  %6984 = vmatprep.subr.mxu0 0.0
  %6985 = vmatpush1.xpose.msra.mxu0 0.0
  %6986 = vmatprep.subr.mxu0 0.0
  %6987 = vmatpush1.xpose.msra.mxu0 0.0
  %6988 = vmatprep.subr.mxu0 0.0
  %6989 = vmatpush1.xpose.msra.mxu0 0.0
  %6990 = vmatprep.subr.mxu0 0.0
  %6991 = vmatpush1.xpose.msra.mxu0 0.0
  %6992 = vmatprep.mubr.f32.mxu0 0.0
  %6993 = vmatmul.mubr.f32.gmra.mrb[0].mxu0 %v6912
  %v6994 = vpop.f32.mrb[0].mxu0
  %v6995 = vadd.f32 %v67, %v6994
  %v6996 = vpop.f32.mrb[0].mxu0
  %6997 = vmatprep.mubr.f32.mxu0 0.0
  %6998 = vmatmul.mubr.f32.gmra.mrb[0].mxu0 %v6914
  %v6999 = vpop.f32.mrb[0].mxu0
  %v7000 = vadd.f32 %v68, %v6999
  %v7001 = vpop.f32.mrb[0].mxu0
  %7002 = vmatprep.mubr.f32.mxu0 0.0
  %7003 = vmatmul.mubr.f32.gmra.mrb[0].mxu0 %v6916
  %v7004 = vpop.f32.mrb[0].mxu0
  %v7005 = vadd.f32 %v69, %v7004
  %v7006 = vpop.f32.mrb[0].mxu0
  %7007 = vmatprep.mubr.f32.mxu0 0.0
  %7008 = vmatmul.mubr.f32.gmra.mrb[0].mxu0 %v6918
  %v7009 = vpop.f32.mrb[0].mxu0
  %v7010 = vadd.f32 %v70, %v7009
  %v7011 = vpop.f32.mrb[0].mxu0
  %7012 = vdwg.mxu0
  %v7013 = vsel %vm77, %v6995, -inf
  %7014 = vmax.xlane.f32.xlu0 %v7013
  %v7015 = vpop.xlane.xlu0 %7014
  %v7016 = vsel %vm77, %v7000, -inf
  %7017 = vmax.xlane.f32.xlu0 %v7016
  %v7018 = vpop.xlane.xlu0 %7017
  %v7019 = vsel %vm77, %v7005, -inf
  %7020 = vmax.xlane.f32.xlu0 %v7019
  %v7021 = vpop.xlane.xlu0 %7020
  %v7022 = vsel %vm77, %v7010, -inf
  %7023 = vmax.xlane.f32.xlu0 %v7022
  %v7024 = vpop.xlane.xlu0 %7023
  %v7025 = vsub.f32 %v6995, %v7015
  %v7026 = vsub.f32 %v7000, %v7018
  %v7027 = vsub.f32 %v7005, %v7021
  %v7028 = vsub.f32 %v7010, %v7024
  %v7029 = vmul.f32 %v7025, 1.442695
  %v7030 = vpow.pop %v7029
  %v7031 = vmul.f32 %v7026, 1.442695
  %v7032 = vpow.pop %v7031
  %v7033 = vmul.f32 %v7027, 1.442695
  %v7034 = vpow.pop %v7033
  %v7035 = vmul.f32 %v7028, 1.442695
  %v7036 = vpow.pop %v7035
  %v7037 = vsel %vm77, %v7030, 0.0
  %7038 = vadd.xlane.f32.xlu0 %v7037
  %v7039 = vpop.xlane.xlu0 %7038
  %v7040 = vsel %vm77, %v7032, 0.0
  %7041 = vadd.xlane.f32.xlu0 %v7040
  %v7042 = vpop.xlane.xlu0 %7041
  %v7043 = vsel %vm77, %v7034, 0.0
  %7044 = vadd.xlane.f32.xlu0 %v7043
  %v7045 = vpop.xlane.xlu0 %7044
  %v7046 = vsel %vm77, %v7036, 0.0
  %7047 = vadd.xlane.f32.xlu0 %v7046
  %v7048 = vpop.xlane.xlu0 %7047
  %v7049 = vrcp.pop %v7039
  %v7050 = vrcp.pop %v7042
  %v7051 = vrcp.pop %v7045
  %v7052 = vrcp.pop %v7048
  %v7053 = vmul.f32 %v7030, %v7049
  %v7054 = vmul.f32 %v7032, %v7050
  %v7055 = vmul.f32 %v7034, %v7051
  %v7056 = vmul.f32 %v7036, %v7052
  %s7057 = scalar_lea.vmem %s21, 416
  %7058 = vst.msk [vmem:[%s7057] sm:$0xff] %vm77, %v7053
  %7059 = vst.msk [vmem:[%s7057 + $0x8] sm:$0xff] %vm77, %v7054
  %7060 = vst.msk [vmem:[%s7057 + $0x10] sm:$0xff] %vm77, %v7055
  %7061 = vst.msk [vmem:[%s7057 + $0x18] sm:$0xff] %vm77, %v7056
  %7062 = vrot.lane.b32.xlu0 %v6594, 56
  %v7063 = vpop.permute.xlu0 %7062
  %7064 = vrot.lane.b32.xlu0 %v6599, 56
  %v7065 = vpop.permute.xlu0 %7064
  %7066 = vrot.lane.b32.xlu0 %v6604, 56
  %v7067 = vpop.permute.xlu0 %7066
  %7068 = vrot.lane.b32.xlu0 %v6609, 56
  %v7069 = vpop.permute.xlu0 %7068
  %v7075 = vsel %vm77, %v7053, 0
  %v7078 = vsel %vm77, %v7054, 0
  %v7081 = vsel %vm77, %v7055, 0
  %v7084 = vsel %vm77, %v7056, 0
  %7086 = vmatprep.subr.mxu0 0.0
  %7087 = vmatpush1.msra.mxu0 %v7063
  %7088 = vmatprep.subr.mxu0 0.0
  %7089 = vmatpush1.msra.mxu0 %v7065
  %7090 = vmatprep.subr.mxu0 0.0
  %7091 = vmatpush1.msra.mxu0 %v7067
  %7092 = vmatprep.subr.mxu0 0.0
  %7093 = vmatpush1.msra.mxu0 %v7069
  %7094 = vmatprep.subr.mxu0 0.0
  %7095 = vmatpush1.msra.mxu0 0.0
  %7096 = vmatprep.subr.mxu0 0.0
  %7097 = vmatpush1.msra.mxu0 0.0
  %7098 = vmatprep.subr.mxu0 0.0
  %7099 = vmatpush1.msra.mxu0 0.0
  %7100 = vmatprep.subr.mxu0 0.0
  %7101 = vmatpush1.msra.mxu0 0.0
  %7102 = vmatprep.subr.mxu0 0.0
  %7103 = vmatpush1.msra.mxu0 0.0
  %7104 = vmatprep.subr.mxu0 0.0
  %7105 = vmatpush1.msra.mxu0 0.0
  %7106 = vmatprep.subr.mxu0 0.0
  %7107 = vmatpush1.msra.mxu0 0.0
  %7108 = vmatprep.subr.mxu0 0.0
  %7109 = vmatpush1.msra.mxu0 0.0
  %7110 = vmatprep.subr.mxu0 0.0
  %7111 = vmatpush1.msra.mxu0 0.0
  %7112 = vmatprep.subr.mxu0 0.0
  %7113 = vmatpush1.msra.mxu0 0.0
  %7114 = vmatprep.subr.mxu0 0.0
  %7115 = vmatpush1.msra.mxu0 0.0
  %7116 = vmatprep.subr.mxu0 0.0
  %7117 = vmatpush1.msra.mxu0 0.0
  %7118 = vmatprep.subr.mxu0 0.0
  %7119 = vmatpush1.msra.mxu0 0.0
  %7120 = vmatprep.subr.mxu0 0.0
  %7121 = vmatpush1.msra.mxu0 0.0
  %7122 = vmatprep.subr.mxu0 0.0
  %7123 = vmatpush1.msra.mxu0 0.0
  %7124 = vmatprep.subr.mxu0 0.0
  %7125 = vmatpush1.msra.mxu0 0.0
  %7126 = vmatprep.subr.mxu0 0.0
  %7127 = vmatpush1.msra.mxu0 0.0
  %7128 = vmatprep.subr.mxu0 0.0
  %7129 = vmatpush1.msra.mxu0 0.0
  %7130 = vmatprep.subr.mxu0 0.0
  %7131 = vmatpush1.msra.mxu0 0.0
  %7132 = vmatprep.subr.mxu0 0.0
  %7133 = vmatpush1.msra.mxu0 0.0
  %7134 = vmatprep.subr.mxu0 0.0
  %7135 = vmatpush1.msra.mxu0 0.0
  %7136 = vmatprep.subr.mxu0 0.0
  %7137 = vmatpush1.msra.mxu0 0.0
  %7138 = vmatprep.subr.mxu0 0.0
  %7139 = vmatpush1.msra.mxu0 0.0
  %7140 = vmatprep.subr.mxu0 0.0
  %7141 = vmatpush1.msra.mxu0 0.0
  %7142 = vmatprep.subr.mxu0 0.0
  %7143 = vmatpush1.msra.mxu0 0.0
  %7144 = vmatprep.subr.mxu0 0.0
  %7145 = vmatpush1.msra.mxu0 0.0
  %7146 = vmatprep.subr.mxu0 0.0
  %7147 = vmatpush1.msra.mxu0 0.0
  %7148 = vmatprep.subr.mxu0 0.0
  %7149 = vmatpush1.msra.mxu0 0.0
  %7150 = vmatprep.mubr.f32.mxu0 0.0
  %7151 = vmatmul.mubr.f32.gmra.mrb[0].mxu0 %v7075
  %v7152 = vpop.f32.mrb[0].mxu0
  %v7153 = vadd.f32 0.0, %v7152
  %v7154 = vpop.f32.mrb[0].mxu0
  %7155 = vmatprep.mubr.f32.mxu0 0.0
  %7156 = vmatmul.mubr.f32.gmra.mrb[0].mxu0 %v7078
  %v7157 = vpop.f32.mrb[0].mxu0
  %v7158 = vadd.f32 0.0, %v7157
  %v7159 = vpop.f32.mrb[0].mxu0
  %7160 = vmatprep.mubr.f32.mxu0 0.0
  %7161 = vmatmul.mubr.f32.gmra.mrb[0].mxu0 %v7081
  %v7162 = vpop.f32.mrb[0].mxu0
  %v7163 = vadd.f32 0.0, %v7162
  %v7164 = vpop.f32.mrb[0].mxu0
  %7165 = vmatprep.mubr.f32.mxu0 0.0
  %7166 = vmatmul.mubr.f32.gmra.mrb[0].mxu0 %v7084
  %v7167 = vpop.f32.mrb[0].mxu0
  %v7168 = vadd.f32 0.0, %v7167
  %v7169 = vpop.f32.mrb[0].mxu0
  %7170 = vdwg.mxu0
  %v7172 = vsel %vm279, %v7153, 0
  %v7175 = vsel %vm279, %v7158, 0
  %v7178 = vsel %vm279, %v7163, 0
  %v7181 = vsel %vm279, %v7168, 0
  %7183 = vmatprep.subr.mxu0 0.0
  %7184 = vmatpush1.msra.mxu0 %v6614
  %7185 = vmatprep.subr.mxu0 0.0
  %7186 = vmatpush1.msra.mxu0 0.0
  %7187 = vmatprep.subr.mxu0 0.0
  %7188 = vmatpush1.msra.mxu0 0.0
  %7189 = vmatprep.subr.mxu0 0.0
  %7190 = vmatpush1.msra.mxu0 0.0
  %7191 = vmatprep.subr.mxu0 0.0
  %7192 = vmatpush1.msra.mxu0 0.0
  %7193 = vmatprep.subr.mxu0 0.0
  %7194 = vmatpush1.msra.mxu0 0.0
  %7195 = vmatprep.subr.mxu0 0.0
  %7196 = vmatpush1.msra.mxu0 0.0
  %7197 = vmatprep.subr.mxu0 0.0
  %7198 = vmatpush1.msra.mxu0 0.0
  %7199 = vmatprep.subr.mxu0 0.0
  %7200 = vmatpush1.msra.mxu0 0.0
  %7201 = vmatprep.subr.mxu0 0.0
  %7202 = vmatpush1.msra.mxu0 0.0
  %7203 = vmatprep.subr.mxu0 0.0
  %7204 = vmatpush1.msra.mxu0 0.0
  %7205 = vmatprep.subr.mxu0 0.0
  %7206 = vmatpush1.msra.mxu0 0.0
  %7207 = vmatprep.subr.mxu0 0.0
  %7208 = vmatpush1.msra.mxu0 0.0
  %7209 = vmatprep.subr.mxu0 0.0
  %7210 = vmatpush1.msra.mxu0 0.0
  %7211 = vmatprep.subr.mxu0 0.0
  %7212 = vmatpush1.msra.mxu0 0.0
  %7213 = vmatprep.subr.mxu0 0.0
  %7214 = vmatpush1.msra.mxu0 0.0
  %7215 = vmatprep.subr.mxu0 0.0
  %7216 = vmatpush1.msra.mxu0 0.0
  %7217 = vmatprep.subr.mxu0 0.0
  %7218 = vmatpush1.msra.mxu0 0.0
  %7219 = vmatprep.subr.mxu0 0.0
  %7220 = vmatpush1.msra.mxu0 0.0
  %7221 = vmatprep.subr.mxu0 0.0
  %7222 = vmatpush1.msra.mxu0 0.0
  %7223 = vmatprep.subr.mxu0 0.0
  %7224 = vmatpush1.msra.mxu0 0.0
  %7225 = vmatprep.subr.mxu0 0.0
  %7226 = vmatpush1.msra.mxu0 0.0
  %7227 = vmatprep.subr.mxu0 0.0
  %7228 = vmatpush1.msra.mxu0 0.0
  %7229 = vmatprep.subr.mxu0 0.0
  %7230 = vmatpush1.msra.mxu0 0.0
  %7231 = vmatprep.subr.mxu0 0.0
  %7232 = vmatpush1.msra.mxu0 0.0
  %7233 = vmatprep.subr.mxu0 0.0
  %7234 = vmatpush1.msra.mxu0 0.0
  %7235 = vmatprep.subr.mxu0 0.0
  %7236 = vmatpush1.msra.mxu0 0.0
  %7237 = vmatprep.subr.mxu0 0.0
  %7238 = vmatpush1.msra.mxu0 0.0
  %7239 = vmatprep.subr.mxu0 0.0
  %7240 = vmatpush1.msra.mxu0 0.0
  %7241 = vmatprep.subr.mxu0 0.0
  %7242 = vmatpush1.msra.mxu0 0.0
  %7243 = vmatprep.subr.mxu0 0.0
  %7244 = vmatpush1.msra.mxu0 0.0
  %7245 = vmatprep.subr.mxu0 0.0
  %7246 = vmatpush1.msra.mxu0 0.0
  %7247 = vmatprep.mubr.f32.mxu0 0.0
  %7248 = vmatmul.mubr.f32.gmra.mrb[0].mxu0 %v7172
  %v7249 = vpop.f32.mrb[0].mxu0
  %v7250 = vadd.f32 0.0, %v7249
  %v7251 = vpop.f32.mrb[0].mxu0
  %7252 = vmatprep.mubr.f32.mxu0 0.0
  %7253 = vmatmul.mubr.f32.gmra.mrb[0].mxu0 %v7175
  %v7254 = vpop.f32.mrb[0].mxu0
  %v7255 = vadd.f32 0.0, %v7254
  %v7256 = vpop.f32.mrb[0].mxu0
  %7257 = vmatprep.mubr.f32.mxu0 0.0
  %7258 = vmatmul.mubr.f32.gmra.mrb[0].mxu0 %v7178
  %v7259 = vpop.f32.mrb[0].mxu0
  %v7260 = vadd.f32 0.0, %v7259
  %v7261 = vpop.f32.mrb[0].mxu0
  %7262 = vmatprep.mubr.f32.mxu0 0.0
  %7263 = vmatmul.mubr.f32.gmra.mrb[0].mxu0 %v7181
  %v7264 = vpop.f32.mrb[0].mxu0
  %v7265 = vadd.f32 0.0, %v7264
  %v7266 = vpop.f32.mrb[0].mxu0
  %7267 = vdwg.mxu0
  %v7269 = vsel %vm279, %v6878, 0
  %v7272 = vsel %vm279, %v6883, 0
  %v7275 = vsel %vm279, %v6888, 0
  %v7278 = vsel %vm279, %v6893, 0
  %7280 = vmatprep.subr.mxu0 0.0
  %7281 = vmatpush1.msra.mxu0 %v6613
  %7282 = vmatprep.subr.mxu0 0.0
  %7283 = vmatpush1.msra.mxu0 0.0
  %7284 = vmatprep.subr.mxu0 0.0
  %7285 = vmatpush1.msra.mxu0 0.0
  %7286 = vmatprep.subr.mxu0 0.0
  %7287 = vmatpush1.msra.mxu0 0.0
  %7288 = vmatprep.subr.mxu0 0.0
  %7289 = vmatpush1.msra.mxu0 0.0
  %7290 = vmatprep.subr.mxu0 0.0
  %7291 = vmatpush1.msra.mxu0 0.0
  %7292 = vmatprep.subr.mxu0 0.0
  %7293 = vmatpush1.msra.mxu0 0.0
  %7294 = vmatprep.subr.mxu0 0.0
  %7295 = vmatpush1.msra.mxu0 0.0
  %7296 = vmatprep.subr.mxu0 0.0
  %7297 = vmatpush1.msra.mxu0 0.0
  %7298 = vmatprep.subr.mxu0 0.0
  %7299 = vmatpush1.msra.mxu0 0.0
  %7300 = vmatprep.subr.mxu0 0.0
  %7301 = vmatpush1.msra.mxu0 0.0
  %7302 = vmatprep.subr.mxu0 0.0
  %7303 = vmatpush1.msra.mxu0 0.0
  %7304 = vmatprep.subr.mxu0 0.0
  %7305 = vmatpush1.msra.mxu0 0.0
  %7306 = vmatprep.subr.mxu0 0.0
  %7307 = vmatpush1.msra.mxu0 0.0
  %7308 = vmatprep.subr.mxu0 0.0
  %7309 = vmatpush1.msra.mxu0 0.0
  %7310 = vmatprep.subr.mxu0 0.0
  %7311 = vmatpush1.msra.mxu0 0.0
  %7312 = vmatprep.subr.mxu0 0.0
  %7313 = vmatpush1.msra.mxu0 0.0
  %7314 = vmatprep.subr.mxu0 0.0
  %7315 = vmatpush1.msra.mxu0 0.0
  %7316 = vmatprep.subr.mxu0 0.0
  %7317 = vmatpush1.msra.mxu0 0.0
  %7318 = vmatprep.subr.mxu0 0.0
  %7319 = vmatpush1.msra.mxu0 0.0
  %7320 = vmatprep.subr.mxu0 0.0
  %7321 = vmatpush1.msra.mxu0 0.0
  %7322 = vmatprep.subr.mxu0 0.0
  %7323 = vmatpush1.msra.mxu0 0.0
  %7324 = vmatprep.subr.mxu0 0.0
  %7325 = vmatpush1.msra.mxu0 0.0
  %7326 = vmatprep.subr.mxu0 0.0
  %7327 = vmatpush1.msra.mxu0 0.0
  %7328 = vmatprep.subr.mxu0 0.0
  %7329 = vmatpush1.msra.mxu0 0.0
  %7330 = vmatprep.subr.mxu0 0.0
  %7331 = vmatpush1.msra.mxu0 0.0
  %7332 = vmatprep.subr.mxu0 0.0
  %7333 = vmatpush1.msra.mxu0 0.0
  %7334 = vmatprep.subr.mxu0 0.0
  %7335 = vmatpush1.msra.mxu0 0.0
  %7336 = vmatprep.subr.mxu0 0.0
  %7337 = vmatpush1.msra.mxu0 0.0
  %7338 = vmatprep.subr.mxu0 0.0
  %7339 = vmatpush1.msra.mxu0 0.0
  %7340 = vmatprep.subr.mxu0 0.0
  %7341 = vmatpush1.msra.mxu0 0.0
  %7342 = vmatprep.subr.mxu0 0.0
  %7343 = vmatpush1.msra.mxu0 0.0
  %7344 = vmatprep.mubr.f32.mxu0 0.0
  %7345 = vmatmul.mubr.f32.gmra.mrb[0].mxu0 %v7269
  %v7346 = vpop.f32.mrb[0].mxu0
  %v7347 = vadd.f32 %v7250, %v7346
  %v7348 = vpop.f32.mrb[0].mxu0
  %7349 = vmatprep.mubr.f32.mxu0 0.0
  %7350 = vmatmul.mubr.f32.gmra.mrb[0].mxu0 %v7272
  %v7351 = vpop.f32.mrb[0].mxu0
  %v7352 = vadd.f32 %v7255, %v7351
  %v7353 = vpop.f32.mrb[0].mxu0
  %7354 = vmatprep.mubr.f32.mxu0 0.0
  %7355 = vmatmul.mubr.f32.gmra.mrb[0].mxu0 %v7275
  %v7356 = vpop.f32.mrb[0].mxu0
  %v7357 = vadd.f32 %v7260, %v7356
  %v7358 = vpop.f32.mrb[0].mxu0
  %7359 = vmatprep.mubr.f32.mxu0 0.0
  %7360 = vmatmul.mubr.f32.gmra.mrb[0].mxu0 %v7278
  %v7361 = vpop.f32.mrb[0].mxu0
  %v7362 = vadd.f32 %v7265, %v7361
  %v7363 = vpop.f32.mrb[0].mxu0
  %7364 = vdwg.mxu0
  %7365 = vrot.lane.b32.xlu0 %v6617, 112
  %v7366 = vpop.permute.xlu0 %7365
  %7367 = vrot.lane.b32.xlu0 %v6618, 112
  %v7368 = vpop.permute.xlu0 %7367
  %7369 = vrot.lane.b32.xlu0 %v6619, 112
  %v7370 = vpop.permute.xlu0 %7369
  %7371 = vrot.lane.b32.xlu0 %v6620, 112
  %v7372 = vpop.permute.xlu0 %7371
  %7373 = vrot.lane.b32.xlu0 %v6594, 80
  %v7374 = vpop.permute.xlu0 %7373
  %7375 = vrot.lane.b32.xlu0 %v6599, 80
  %v7376 = vpop.permute.xlu0 %7375
  %7377 = vrot.lane.b32.xlu0 %v6604, 80
  %v7378 = vpop.permute.xlu0 %7377
  %7379 = vrot.lane.b32.xlu0 %v6609, 80
  %v7380 = vpop.permute.xlu0 %7379
  %v7381 = vsel %vm279, %v7366, 0
  %v7383 = vsel %vm279, %v7368, 0
  %v7385 = vsel %vm279, %v7370, 0
  %v7387 = vsel %vm279, %v7372, 0
  %v7389 = vsel %vm279, %v7374, 0
  %v7391 = vsel %vm279, %v7376, 0
  %v7393 = vsel %vm279, %v7378, 0
  %v7395 = vsel %vm279, %v7380, 0
  %7397 = vmatprep.subr.mxu0 0.0
  %7398 = vmatpush1.xpose.msra.mxu0 %v7389
  %7399 = vmatprep.subr.mxu0 0.0
  %7400 = vmatpush1.xpose.msra.mxu0 %v7391
  %7401 = vmatprep.subr.mxu0 0.0
  %7402 = vmatpush1.xpose.msra.mxu0 %v7393
  %7403 = vmatprep.subr.mxu0 0.0
  %7404 = vmatpush1.xpose.msra.mxu0 %v7395
  %7405 = vmatprep.subr.mxu0 0.0
  %7406 = vmatpush1.xpose.msra.mxu0 0.0
  %7407 = vmatprep.subr.mxu0 0.0
  %7408 = vmatpush1.xpose.msra.mxu0 0.0
  %7409 = vmatprep.subr.mxu0 0.0
  %7410 = vmatpush1.xpose.msra.mxu0 0.0
  %7411 = vmatprep.subr.mxu0 0.0
  %7412 = vmatpush1.xpose.msra.mxu0 0.0
  %7413 = vmatprep.subr.mxu0 0.0
  %7414 = vmatpush1.xpose.msra.mxu0 0.0
  %7415 = vmatprep.subr.mxu0 0.0
  %7416 = vmatpush1.xpose.msra.mxu0 0.0
  %7417 = vmatprep.subr.mxu0 0.0
  %7418 = vmatpush1.xpose.msra.mxu0 0.0
  %7419 = vmatprep.subr.mxu0 0.0
  %7420 = vmatpush1.xpose.msra.mxu0 0.0
  %7421 = vmatprep.subr.mxu0 0.0
  %7422 = vmatpush1.xpose.msra.mxu0 0.0
  %7423 = vmatprep.subr.mxu0 0.0
  %7424 = vmatpush1.xpose.msra.mxu0 0.0
  %7425 = vmatprep.subr.mxu0 0.0
  %7426 = vmatpush1.xpose.msra.mxu0 0.0
  %7427 = vmatprep.subr.mxu0 0.0
  %7428 = vmatpush1.xpose.msra.mxu0 0.0
  %7429 = vmatprep.subr.mxu0 0.0
  %7430 = vmatpush1.xpose.msra.mxu0 0.0
  %7431 = vmatprep.subr.mxu0 0.0
  %7432 = vmatpush1.xpose.msra.mxu0 0.0
  %7433 = vmatprep.subr.mxu0 0.0
  %7434 = vmatpush1.xpose.msra.mxu0 0.0
  %7435 = vmatprep.subr.mxu0 0.0
  %7436 = vmatpush1.xpose.msra.mxu0 0.0
  %7437 = vmatprep.subr.mxu0 0.0
  %7438 = vmatpush1.xpose.msra.mxu0 0.0
  %7439 = vmatprep.subr.mxu0 0.0
  %7440 = vmatpush1.xpose.msra.mxu0 0.0
  %7441 = vmatprep.subr.mxu0 0.0
  %7442 = vmatpush1.xpose.msra.mxu0 0.0
  %7443 = vmatprep.subr.mxu0 0.0
  %7444 = vmatpush1.xpose.msra.mxu0 0.0
  %7445 = vmatprep.subr.mxu0 0.0
  %7446 = vmatpush1.xpose.msra.mxu0 0.0
  %7447 = vmatprep.subr.mxu0 0.0
  %7448 = vmatpush1.xpose.msra.mxu0 0.0
  %7449 = vmatprep.subr.mxu0 0.0
  %7450 = vmatpush1.xpose.msra.mxu0 0.0
  %7451 = vmatprep.subr.mxu0 0.0
  %7452 = vmatpush1.xpose.msra.mxu0 0.0
  %7453 = vmatprep.subr.mxu0 0.0
  %7454 = vmatpush1.xpose.msra.mxu0 0.0
  %7455 = vmatprep.subr.mxu0 0.0
  %7456 = vmatpush1.xpose.msra.mxu0 0.0
  %7457 = vmatprep.subr.mxu0 0.0
  %7458 = vmatpush1.xpose.msra.mxu0 0.0
  %7459 = vmatprep.subr.mxu0 0.0
  %7460 = vmatpush1.xpose.msra.mxu0 0.0
  %7461 = vmatprep.mubr.f32.mxu0 0.0
  %7462 = vmatmul.mubr.f32.gmra.mrb[0].mxu0 %v7381
  %v7463 = vpop.f32.mrb[0].mxu0
  %v7464 = vadd.f32 %v67, %v7463
  %v7465 = vpop.f32.mrb[0].mxu0
  %7466 = vmatprep.mubr.f32.mxu0 0.0
  %7467 = vmatmul.mubr.f32.gmra.mrb[0].mxu0 %v7383
  %v7468 = vpop.f32.mrb[0].mxu0
  %v7469 = vadd.f32 %v68, %v7468
  %v7470 = vpop.f32.mrb[0].mxu0
  %7471 = vmatprep.mubr.f32.mxu0 0.0
  %7472 = vmatmul.mubr.f32.gmra.mrb[0].mxu0 %v7385
  %v7473 = vpop.f32.mrb[0].mxu0
  %v7474 = vadd.f32 %v69, %v7473
  %v7475 = vpop.f32.mrb[0].mxu0
  %7476 = vmatprep.mubr.f32.mxu0 0.0
  %7477 = vmatmul.mubr.f32.gmra.mrb[0].mxu0 %v7387
  %v7478 = vpop.f32.mrb[0].mxu0
  %v7479 = vadd.f32 %v70, %v7478
  %v7480 = vpop.f32.mrb[0].mxu0
  %7481 = vdwg.mxu0
  %v7482 = vsel %vm77, %v7464, -inf
  %7483 = vmax.xlane.f32.xlu0 %v7482
  %v7484 = vpop.xlane.xlu0 %7483
  %v7485 = vsel %vm77, %v7469, -inf
  %7486 = vmax.xlane.f32.xlu0 %v7485
  %v7487 = vpop.xlane.xlu0 %7486
  %v7488 = vsel %vm77, %v7474, -inf
  %7489 = vmax.xlane.f32.xlu0 %v7488
  %v7490 = vpop.xlane.xlu0 %7489
  %v7491 = vsel %vm77, %v7479, -inf
  %7492 = vmax.xlane.f32.xlu0 %v7491
  %v7493 = vpop.xlane.xlu0 %7492
  %v7494 = vsub.f32 %v7464, %v7484
  %v7495 = vsub.f32 %v7469, %v7487
  %v7496 = vsub.f32 %v7474, %v7490
  %v7497 = vsub.f32 %v7479, %v7493
  %v7498 = vmul.f32 %v7494, 1.442695
  %v7499 = vpow.pop %v7498
  %v7500 = vmul.f32 %v7495, 1.442695
  %v7501 = vpow.pop %v7500
  %v7502 = vmul.f32 %v7496, 1.442695
  %v7503 = vpow.pop %v7502
  %v7504 = vmul.f32 %v7497, 1.442695
  %v7505 = vpow.pop %v7504
  %v7506 = vsel %vm77, %v7499, 0.0
  %7507 = vadd.xlane.f32.xlu0 %v7506
  %v7508 = vpop.xlane.xlu0 %7507
  %v7509 = vsel %vm77, %v7501, 0.0
  %7510 = vadd.xlane.f32.xlu0 %v7509
  %v7511 = vpop.xlane.xlu0 %7510
  %v7512 = vsel %vm77, %v7503, 0.0
  %7513 = vadd.xlane.f32.xlu0 %v7512
  %v7514 = vpop.xlane.xlu0 %7513
  %v7515 = vsel %vm77, %v7505, 0.0
  %7516 = vadd.xlane.f32.xlu0 %v7515
  %v7517 = vpop.xlane.xlu0 %7516
  %v7518 = vrcp.pop %v7508
  %v7519 = vrcp.pop %v7511
  %v7520 = vrcp.pop %v7514
  %v7521 = vrcp.pop %v7517
  %v7522 = vmul.f32 %v7499, %v7518
  %v7523 = vmul.f32 %v7501, %v7519
  %v7524 = vmul.f32 %v7503, %v7520
  %v7525 = vmul.f32 %v7505, %v7521
  %s7526 = scalar_lea.vmem %s21, 448
  %7527 = vst.msk [vmem:[%s7526] sm:$0xff] %vm77, %v7522
  %7528 = vst.msk [vmem:[%s7526 + $0x8] sm:$0xff] %vm77, %v7523
  %7529 = vst.msk [vmem:[%s7526 + $0x10] sm:$0xff] %vm77, %v7524
  %7530 = vst.msk [vmem:[%s7526 + $0x18] sm:$0xff] %vm77, %v7525
  %7531 = vrot.lane.b32.xlu0 %v6594, 48
  %v7532 = vpop.permute.xlu0 %7531
  %7533 = vrot.lane.b32.xlu0 %v6599, 48
  %v7534 = vpop.permute.xlu0 %7533
  %7535 = vrot.lane.b32.xlu0 %v6604, 48
  %v7536 = vpop.permute.xlu0 %7535
  %7537 = vrot.lane.b32.xlu0 %v6609, 48
  %v7538 = vpop.permute.xlu0 %7537
  %v7544 = vsel %vm77, %v7522, 0
  %v7547 = vsel %vm77, %v7523, 0
  %v7550 = vsel %vm77, %v7524, 0
  %v7553 = vsel %vm77, %v7525, 0
  %7555 = vmatprep.subr.mxu0 0.0
  %7556 = vmatpush1.msra.mxu0 %v7532
  %7557 = vmatprep.subr.mxu0 0.0
  %7558 = vmatpush1.msra.mxu0 %v7534
  %7559 = vmatprep.subr.mxu0 0.0
  %7560 = vmatpush1.msra.mxu0 %v7536
  %7561 = vmatprep.subr.mxu0 0.0
  %7562 = vmatpush1.msra.mxu0 %v7538
  %7563 = vmatprep.subr.mxu0 0.0
  %7564 = vmatpush1.msra.mxu0 0.0
  %7565 = vmatprep.subr.mxu0 0.0
  %7566 = vmatpush1.msra.mxu0 0.0
  %7567 = vmatprep.subr.mxu0 0.0
  %7568 = vmatpush1.msra.mxu0 0.0
  %7569 = vmatprep.subr.mxu0 0.0
  %7570 = vmatpush1.msra.mxu0 0.0
  %7571 = vmatprep.subr.mxu0 0.0
  %7572 = vmatpush1.msra.mxu0 0.0
  %7573 = vmatprep.subr.mxu0 0.0
  %7574 = vmatpush1.msra.mxu0 0.0
  %7575 = vmatprep.subr.mxu0 0.0
  %7576 = vmatpush1.msra.mxu0 0.0
  %7577 = vmatprep.subr.mxu0 0.0
  %7578 = vmatpush1.msra.mxu0 0.0
  %7579 = vmatprep.subr.mxu0 0.0
  %7580 = vmatpush1.msra.mxu0 0.0
  %7581 = vmatprep.subr.mxu0 0.0
  %7582 = vmatpush1.msra.mxu0 0.0
  %7583 = vmatprep.subr.mxu0 0.0
  %7584 = vmatpush1.msra.mxu0 0.0
  %7585 = vmatprep.subr.mxu0 0.0
  %7586 = vmatpush1.msra.mxu0 0.0
  %7587 = vmatprep.subr.mxu0 0.0
  %7588 = vmatpush1.msra.mxu0 0.0
  %7589 = vmatprep.subr.mxu0 0.0
  %7590 = vmatpush1.msra.mxu0 0.0
  %7591 = vmatprep.subr.mxu0 0.0
  %7592 = vmatpush1.msra.mxu0 0.0
  %7593 = vmatprep.subr.mxu0 0.0
  %7594 = vmatpush1.msra.mxu0 0.0
  %7595 = vmatprep.subr.mxu0 0.0
  %7596 = vmatpush1.msra.mxu0 0.0
  %7597 = vmatprep.subr.mxu0 0.0
  %7598 = vmatpush1.msra.mxu0 0.0
  %7599 = vmatprep.subr.mxu0 0.0
  %7600 = vmatpush1.msra.mxu0 0.0
  %7601 = vmatprep.subr.mxu0 0.0
  %7602 = vmatpush1.msra.mxu0 0.0
  %7603 = vmatprep.subr.mxu0 0.0
  %7604 = vmatpush1.msra.mxu0 0.0
  %7605 = vmatprep.subr.mxu0 0.0
  %7606 = vmatpush1.msra.mxu0 0.0
  %7607 = vmatprep.subr.mxu0 0.0
  %7608 = vmatpush1.msra.mxu0 0.0
  %7609 = vmatprep.subr.mxu0 0.0
  %7610 = vmatpush1.msra.mxu0 0.0
  %7611 = vmatprep.subr.mxu0 0.0
  %7612 = vmatpush1.msra.mxu0 0.0
  %7613 = vmatprep.subr.mxu0 0.0
  %7614 = vmatpush1.msra.mxu0 0.0
  %7615 = vmatprep.subr.mxu0 0.0
  %7616 = vmatpush1.msra.mxu0 0.0
  %7617 = vmatprep.subr.mxu0 0.0
  %7618 = vmatpush1.msra.mxu0 0.0
  %7619 = vmatprep.mubr.f32.mxu0 0.0
  %7620 = vmatmul.mubr.f32.gmra.mrb[0].mxu0 %v7544
  %v7621 = vpop.f32.mrb[0].mxu0
  %v7622 = vadd.f32 0.0, %v7621
  %v7623 = vpop.f32.mrb[0].mxu0
  %7624 = vmatprep.mubr.f32.mxu0 0.0
  %7625 = vmatmul.mubr.f32.gmra.mrb[0].mxu0 %v7547
  %v7626 = vpop.f32.mrb[0].mxu0
  %v7627 = vadd.f32 0.0, %v7626
  %v7628 = vpop.f32.mrb[0].mxu0
  %7629 = vmatprep.mubr.f32.mxu0 0.0
  %7630 = vmatmul.mubr.f32.gmra.mrb[0].mxu0 %v7550
  %v7631 = vpop.f32.mrb[0].mxu0
  %v7632 = vadd.f32 0.0, %v7631
  %v7633 = vpop.f32.mrb[0].mxu0
  %7634 = vmatprep.mubr.f32.mxu0 0.0
  %7635 = vmatmul.mubr.f32.gmra.mrb[0].mxu0 %v7553
  %v7636 = vpop.f32.mrb[0].mxu0
  %v7637 = vadd.f32 0.0, %v7636
  %v7638 = vpop.f32.mrb[0].mxu0
  %7639 = vdwg.mxu0
  %v7641 = vsel %vm279, %v7622, 0
  %v7644 = vsel %vm279, %v7627, 0
  %v7647 = vsel %vm279, %v7632, 0
  %v7650 = vsel %vm279, %v7637, 0
  %7652 = vmatprep.subr.mxu0 0.0
  %7653 = vmatpush1.msra.mxu0 %v6615
  %7654 = vmatprep.subr.mxu0 0.0
  %7655 = vmatpush1.msra.mxu0 0.0
  %7656 = vmatprep.subr.mxu0 0.0
  %7657 = vmatpush1.msra.mxu0 0.0
  %7658 = vmatprep.subr.mxu0 0.0
  %7659 = vmatpush1.msra.mxu0 0.0
  %7660 = vmatprep.subr.mxu0 0.0
  %7661 = vmatpush1.msra.mxu0 0.0
  %7662 = vmatprep.subr.mxu0 0.0
  %7663 = vmatpush1.msra.mxu0 0.0
  %7664 = vmatprep.subr.mxu0 0.0
  %7665 = vmatpush1.msra.mxu0 0.0
  %7666 = vmatprep.subr.mxu0 0.0
  %7667 = vmatpush1.msra.mxu0 0.0
  %7668 = vmatprep.subr.mxu0 0.0
  %7669 = vmatpush1.msra.mxu0 0.0
  %7670 = vmatprep.subr.mxu0 0.0
  %7671 = vmatpush1.msra.mxu0 0.0
  %7672 = vmatprep.subr.mxu0 0.0
  %7673 = vmatpush1.msra.mxu0 0.0
  %7674 = vmatprep.subr.mxu0 0.0
  %7675 = vmatpush1.msra.mxu0 0.0
  %7676 = vmatprep.subr.mxu0 0.0
  %7677 = vmatpush1.msra.mxu0 0.0
  %7678 = vmatprep.subr.mxu0 0.0
  %7679 = vmatpush1.msra.mxu0 0.0
  %7680 = vmatprep.subr.mxu0 0.0
  %7681 = vmatpush1.msra.mxu0 0.0
  %7682 = vmatprep.subr.mxu0 0.0
  %7683 = vmatpush1.msra.mxu0 0.0
  %7684 = vmatprep.subr.mxu0 0.0
  %7685 = vmatpush1.msra.mxu0 0.0
  %7686 = vmatprep.subr.mxu0 0.0
  %7687 = vmatpush1.msra.mxu0 0.0
  %7688 = vmatprep.subr.mxu0 0.0
  %7689 = vmatpush1.msra.mxu0 0.0
  %7690 = vmatprep.subr.mxu0 0.0
  %7691 = vmatpush1.msra.mxu0 0.0
  %7692 = vmatprep.subr.mxu0 0.0
  %7693 = vmatpush1.msra.mxu0 0.0
  %7694 = vmatprep.subr.mxu0 0.0
  %7695 = vmatpush1.msra.mxu0 0.0
  %7696 = vmatprep.subr.mxu0 0.0
  %7697 = vmatpush1.msra.mxu0 0.0
  %7698 = vmatprep.subr.mxu0 0.0
  %7699 = vmatpush1.msra.mxu0 0.0
  %7700 = vmatprep.subr.mxu0 0.0
  %7701 = vmatpush1.msra.mxu0 0.0
  %7702 = vmatprep.subr.mxu0 0.0
  %7703 = vmatpush1.msra.mxu0 0.0
  %7704 = vmatprep.subr.mxu0 0.0
  %7705 = vmatpush1.msra.mxu0 0.0
  %7706 = vmatprep.subr.mxu0 0.0
  %7707 = vmatpush1.msra.mxu0 0.0
  %7708 = vmatprep.subr.mxu0 0.0
  %7709 = vmatpush1.msra.mxu0 0.0
  %7710 = vmatprep.subr.mxu0 0.0
  %7711 = vmatpush1.msra.mxu0 0.0
  %7712 = vmatprep.subr.mxu0 0.0
  %7713 = vmatpush1.msra.mxu0 0.0
  %7714 = vmatprep.subr.mxu0 0.0
  %7715 = vmatpush1.msra.mxu0 0.0
  %7716 = vmatprep.mubr.f32.mxu0 0.0
  %7717 = vmatmul.mubr.f32.gmra.mrb[0].mxu0 %v7641
  %v7718 = vpop.f32.mrb[0].mxu0
  %v7719 = vadd.f32 0.0, %v7718
  %v7720 = vpop.f32.mrb[0].mxu0
  %7721 = vmatprep.mubr.f32.mxu0 0.0
  %7722 = vmatmul.mubr.f32.gmra.mrb[0].mxu0 %v7644
  %v7723 = vpop.f32.mrb[0].mxu0
  %v7724 = vadd.f32 0.0, %v7723
  %v7725 = vpop.f32.mrb[0].mxu0
  %7726 = vmatprep.mubr.f32.mxu0 0.0
  %7727 = vmatmul.mubr.f32.gmra.mrb[0].mxu0 %v7647
  %v7728 = vpop.f32.mrb[0].mxu0
  %v7729 = vadd.f32 0.0, %v7728
  %v7730 = vpop.f32.mrb[0].mxu0
  %7731 = vmatprep.mubr.f32.mxu0 0.0
  %7732 = vmatmul.mubr.f32.gmra.mrb[0].mxu0 %v7650
  %v7733 = vpop.f32.mrb[0].mxu0
  %v7734 = vadd.f32 0.0, %v7733
  %v7735 = vpop.f32.mrb[0].mxu0
  %7736 = vdwg.mxu0
  %v7737 = vadd.f32 %v7347, %v7719
  %v7738 = vadd.f32 %v7352, %v7724
  %v7739 = vadd.f32 %v7357, %v7729
  %v7740 = vadd.f32 %v7362, %v7734
  %7741 = vrot.lane.b32.xlu0 %v6617, 104
  %v7742 = vpop.permute.xlu0 %7741
  %7743 = vrot.lane.b32.xlu0 %v6618, 104
  %v7744 = vpop.permute.xlu0 %7743
  %7745 = vrot.lane.b32.xlu0 %v6619, 104
  %v7746 = vpop.permute.xlu0 %7745
  %7747 = vrot.lane.b32.xlu0 %v6620, 104
  %v7748 = vpop.permute.xlu0 %7747
  %7749 = vrot.lane.b32.xlu0 %v6594, 72
  %v7750 = vpop.permute.xlu0 %7749
  %7751 = vrot.lane.b32.xlu0 %v6599, 72
  %v7752 = vpop.permute.xlu0 %7751
  %7753 = vrot.lane.b32.xlu0 %v6604, 72
  %v7754 = vpop.permute.xlu0 %7753
  %7755 = vrot.lane.b32.xlu0 %v6609, 72
  %v7756 = vpop.permute.xlu0 %7755
  %v7757 = vsel %vm279, %v7742, 0
  %v7759 = vsel %vm279, %v7744, 0
  %v7761 = vsel %vm279, %v7746, 0
  %v7763 = vsel %vm279, %v7748, 0
  %v7765 = vsel %vm279, %v7750, 0
  %v7767 = vsel %vm279, %v7752, 0
  %v7769 = vsel %vm279, %v7754, 0
  %v7771 = vsel %vm279, %v7756, 0
  %7773 = vmatprep.subr.mxu0 0.0
  %7774 = vmatpush1.xpose.msra.mxu0 %v7765
  %7775 = vmatprep.subr.mxu0 0.0
  %7776 = vmatpush1.xpose.msra.mxu0 %v7767
  %7777 = vmatprep.subr.mxu0 0.0
  %7778 = vmatpush1.xpose.msra.mxu0 %v7769
  %7779 = vmatprep.subr.mxu0 0.0
  %7780 = vmatpush1.xpose.msra.mxu0 %v7771
  %7781 = vmatprep.subr.mxu0 0.0
  %7782 = vmatpush1.xpose.msra.mxu0 0.0
  %7783 = vmatprep.subr.mxu0 0.0
  %7784 = vmatpush1.xpose.msra.mxu0 0.0
  %7785 = vmatprep.subr.mxu0 0.0
  %7786 = vmatpush1.xpose.msra.mxu0 0.0
  %7787 = vmatprep.subr.mxu0 0.0
  %7788 = vmatpush1.xpose.msra.mxu0 0.0
  %7789 = vmatprep.subr.mxu0 0.0
  %7790 = vmatpush1.xpose.msra.mxu0 0.0
  %7791 = vmatprep.subr.mxu0 0.0
  %7792 = vmatpush1.xpose.msra.mxu0 0.0
  %7793 = vmatprep.subr.mxu0 0.0
  %7794 = vmatpush1.xpose.msra.mxu0 0.0
  %7795 = vmatprep.subr.mxu0 0.0
  %7796 = vmatpush1.xpose.msra.mxu0 0.0
  %7797 = vmatprep.subr.mxu0 0.0
  %7798 = vmatpush1.xpose.msra.mxu0 0.0
  %7799 = vmatprep.subr.mxu0 0.0
  %7800 = vmatpush1.xpose.msra.mxu0 0.0
  %7801 = vmatprep.subr.mxu0 0.0
  %7802 = vmatpush1.xpose.msra.mxu0 0.0
  %7803 = vmatprep.subr.mxu0 0.0
  %7804 = vmatpush1.xpose.msra.mxu0 0.0
  %7805 = vmatprep.subr.mxu0 0.0
  %7806 = vmatpush1.xpose.msra.mxu0 0.0
  %7807 = vmatprep.subr.mxu0 0.0
  %7808 = vmatpush1.xpose.msra.mxu0 0.0
  %7809 = vmatprep.subr.mxu0 0.0
  %7810 = vmatpush1.xpose.msra.mxu0 0.0
  %7811 = vmatprep.subr.mxu0 0.0
  %7812 = vmatpush1.xpose.msra.mxu0 0.0
  %7813 = vmatprep.subr.mxu0 0.0
  %7814 = vmatpush1.xpose.msra.mxu0 0.0
  %7815 = vmatprep.subr.mxu0 0.0
  %7816 = vmatpush1.xpose.msra.mxu0 0.0
  %7817 = vmatprep.subr.mxu0 0.0
  %7818 = vmatpush1.xpose.msra.mxu0 0.0
  %7819 = vmatprep.subr.mxu0 0.0
  %7820 = vmatpush1.xpose.msra.mxu0 0.0
  %7821 = vmatprep.subr.mxu0 0.0
  %7822 = vmatpush1.xpose.msra.mxu0 0.0
  %7823 = vmatprep.subr.mxu0 0.0
  %7824 = vmatpush1.xpose.msra.mxu0 0.0
  %7825 = vmatprep.subr.mxu0 0.0
  %7826 = vmatpush1.xpose.msra.mxu0 0.0
  %7827 = vmatprep.subr.mxu0 0.0
  %7828 = vmatpush1.xpose.msra.mxu0 0.0
  %7829 = vmatprep.subr.mxu0 0.0
  %7830 = vmatpush1.xpose.msra.mxu0 0.0
  %7831 = vmatprep.subr.mxu0 0.0
  %7832 = vmatpush1.xpose.msra.mxu0 0.0
  %7833 = vmatprep.subr.mxu0 0.0
  %7834 = vmatpush1.xpose.msra.mxu0 0.0
  %7835 = vmatprep.subr.mxu0 0.0
  %7836 = vmatpush1.xpose.msra.mxu0 0.0
  %7837 = vmatprep.mubr.f32.mxu0 0.0
  %7838 = vmatmul.mubr.f32.gmra.mrb[0].mxu0 %v7757
  %v7839 = vpop.f32.mrb[0].mxu0
  %v7840 = vadd.f32 %v67, %v7839
  %v7841 = vpop.f32.mrb[0].mxu0
  %7842 = vmatprep.mubr.f32.mxu0 0.0
  %7843 = vmatmul.mubr.f32.gmra.mrb[0].mxu0 %v7759
  %v7844 = vpop.f32.mrb[0].mxu0
  %v7845 = vadd.f32 %v68, %v7844
  %v7846 = vpop.f32.mrb[0].mxu0
  %7847 = vmatprep.mubr.f32.mxu0 0.0
  %7848 = vmatmul.mubr.f32.gmra.mrb[0].mxu0 %v7761
  %v7849 = vpop.f32.mrb[0].mxu0
  %v7850 = vadd.f32 %v69, %v7849
  %v7851 = vpop.f32.mrb[0].mxu0
  %7852 = vmatprep.mubr.f32.mxu0 0.0
  %7853 = vmatmul.mubr.f32.gmra.mrb[0].mxu0 %v7763
  %v7854 = vpop.f32.mrb[0].mxu0
  %v7855 = vadd.f32 %v70, %v7854
  %v7856 = vpop.f32.mrb[0].mxu0
  %7857 = vdwg.mxu0
  %v7858 = vsel %vm77, %v7840, -inf
  %7859 = vmax.xlane.f32.xlu0 %v7858
  %v7860 = vpop.xlane.xlu0 %7859
  %v7861 = vsel %vm77, %v7845, -inf
  %7862 = vmax.xlane.f32.xlu0 %v7861
  %v7863 = vpop.xlane.xlu0 %7862
  %v7864 = vsel %vm77, %v7850, -inf
  %7865 = vmax.xlane.f32.xlu0 %v7864
  %v7866 = vpop.xlane.xlu0 %7865
  %v7867 = vsel %vm77, %v7855, -inf
  %7868 = vmax.xlane.f32.xlu0 %v7867
  %v7869 = vpop.xlane.xlu0 %7868
  %v7870 = vsub.f32 %v7840, %v7860
  %v7871 = vsub.f32 %v7845, %v7863
  %v7872 = vsub.f32 %v7850, %v7866
  %v7873 = vsub.f32 %v7855, %v7869
  %v7874 = vmul.f32 %v7870, 1.442695
  %v7875 = vpow.pop %v7874
  %v7876 = vmul.f32 %v7871, 1.442695
  %v7877 = vpow.pop %v7876
  %v7878 = vmul.f32 %v7872, 1.442695
  %v7879 = vpow.pop %v7878
  %v7880 = vmul.f32 %v7873, 1.442695
  %v7881 = vpow.pop %v7880
  %v7882 = vsel %vm77, %v7875, 0.0
  %7883 = vadd.xlane.f32.xlu0 %v7882
  %v7884 = vpop.xlane.xlu0 %7883
  %v7885 = vsel %vm77, %v7877, 0.0
  %7886 = vadd.xlane.f32.xlu0 %v7885
  %v7887 = vpop.xlane.xlu0 %7886
  %v7888 = vsel %vm77, %v7879, 0.0
  %7889 = vadd.xlane.f32.xlu0 %v7888
  %v7890 = vpop.xlane.xlu0 %7889
  %v7891 = vsel %vm77, %v7881, 0.0
  %7892 = vadd.xlane.f32.xlu0 %v7891
  %v7893 = vpop.xlane.xlu0 %7892
  %v7894 = vrcp.pop %v7884
  %v7895 = vrcp.pop %v7887
  %v7896 = vrcp.pop %v7890
  %v7897 = vrcp.pop %v7893
  %v7898 = vmul.f32 %v7875, %v7894
  %v7899 = vmul.f32 %v7877, %v7895
  %v7900 = vmul.f32 %v7879, %v7896
  %v7901 = vmul.f32 %v7881, %v7897
  %s7902 = scalar_lea.vmem %s21, 480
  %7903 = vst.msk [vmem:[%s7902] sm:$0xff] %vm77, %v7898
  %7904 = vst.msk [vmem:[%s7902 + $0x8] sm:$0xff] %vm77, %v7899
  %7905 = vst.msk [vmem:[%s7902 + $0x10] sm:$0xff] %vm77, %v7900
  %7906 = vst.msk [vmem:[%s7902 + $0x18] sm:$0xff] %vm77, %v7901
  %7907 = vrot.lane.b32.xlu0 %v6594, 40
  %v7908 = vpop.permute.xlu0 %7907
  %7909 = vrot.lane.b32.xlu0 %v6599, 40
  %v7910 = vpop.permute.xlu0 %7909
  %7911 = vrot.lane.b32.xlu0 %v6604, 40
  %v7912 = vpop.permute.xlu0 %7911
  %7913 = vrot.lane.b32.xlu0 %v6609, 40
  %v7914 = vpop.permute.xlu0 %7913
  %v7920 = vsel %vm77, %v7898, 0
  %v7923 = vsel %vm77, %v7899, 0
  %v7926 = vsel %vm77, %v7900, 0
  %v7929 = vsel %vm77, %v7901, 0
  %7931 = vmatprep.subr.mxu0 0.0
  %7932 = vmatpush1.msra.mxu0 %v7908
  %7933 = vmatprep.subr.mxu0 0.0
  %7934 = vmatpush1.msra.mxu0 %v7910
  %7935 = vmatprep.subr.mxu0 0.0
  %7936 = vmatpush1.msra.mxu0 %v7912
  %7937 = vmatprep.subr.mxu0 0.0
  %7938 = vmatpush1.msra.mxu0 %v7914
  %7939 = vmatprep.subr.mxu0 0.0
  %7940 = vmatpush1.msra.mxu0 0.0
  %7941 = vmatprep.subr.mxu0 0.0
  %7942 = vmatpush1.msra.mxu0 0.0
  %7943 = vmatprep.subr.mxu0 0.0
  %7944 = vmatpush1.msra.mxu0 0.0
  %7945 = vmatprep.subr.mxu0 0.0
  %7946 = vmatpush1.msra.mxu0 0.0
  %7947 = vmatprep.subr.mxu0 0.0
  %7948 = vmatpush1.msra.mxu0 0.0
  %7949 = vmatprep.subr.mxu0 0.0
  %7950 = vmatpush1.msra.mxu0 0.0
  %7951 = vmatprep.subr.mxu0 0.0
  %7952 = vmatpush1.msra.mxu0 0.0
  %7953 = vmatprep.subr.mxu0 0.0
  %7954 = vmatpush1.msra.mxu0 0.0
  %7955 = vmatprep.subr.mxu0 0.0
  %7956 = vmatpush1.msra.mxu0 0.0
  %7957 = vmatprep.subr.mxu0 0.0
  %7958 = vmatpush1.msra.mxu0 0.0
  %7959 = vmatprep.subr.mxu0 0.0
  %7960 = vmatpush1.msra.mxu0 0.0
  %7961 = vmatprep.subr.mxu0 0.0
  %7962 = vmatpush1.msra.mxu0 0.0
  %7963 = vmatprep.subr.mxu0 0.0
  %7964 = vmatpush1.msra.mxu0 0.0
  %7965 = vmatprep.subr.mxu0 0.0
  %7966 = vmatpush1.msra.mxu0 0.0
  %7967 = vmatprep.subr.mxu0 0.0
  %7968 = vmatpush1.msra.mxu0 0.0
  %7969 = vmatprep.subr.mxu0 0.0
  %7970 = vmatpush1.msra.mxu0 0.0
  %7971 = vmatprep.subr.mxu0 0.0
  %7972 = vmatpush1.msra.mxu0 0.0
  %7973 = vmatprep.subr.mxu0 0.0
  %7974 = vmatpush1.msra.mxu0 0.0
  %7975 = vmatprep.subr.mxu0 0.0
  %7976 = vmatpush1.msra.mxu0 0.0
  %7977 = vmatprep.subr.mxu0 0.0
  %7978 = vmatpush1.msra.mxu0 0.0
  %7979 = vmatprep.subr.mxu0 0.0
  %7980 = vmatpush1.msra.mxu0 0.0
  %7981 = vmatprep.subr.mxu0 0.0
  %7982 = vmatpush1.msra.mxu0 0.0
  %7983 = vmatprep.subr.mxu0 0.0
  %7984 = vmatpush1.msra.mxu0 0.0
  %7985 = vmatprep.subr.mxu0 0.0
  %7986 = vmatpush1.msra.mxu0 0.0
  %7987 = vmatprep.subr.mxu0 0.0
  %7988 = vmatpush1.msra.mxu0 0.0
  %7989 = vmatprep.subr.mxu0 0.0
  %7990 = vmatpush1.msra.mxu0 0.0
  %7991 = vmatprep.subr.mxu0 0.0
  %7992 = vmatpush1.msra.mxu0 0.0
  %7993 = vmatprep.subr.mxu0 0.0
  %7994 = vmatpush1.msra.mxu0 0.0
  %7995 = vmatprep.mubr.f32.mxu0 0.0
  %7996 = vmatmul.mubr.f32.gmra.mrb[0].mxu0 %v7920
  %v7997 = vpop.f32.mrb[0].mxu0
  %v7998 = vadd.f32 0.0, %v7997
  %v7999 = vpop.f32.mrb[0].mxu0
  %8000 = vmatprep.mubr.f32.mxu0 0.0
  %8001 = vmatmul.mubr.f32.gmra.mrb[0].mxu0 %v7923
  %v8002 = vpop.f32.mrb[0].mxu0
  %v8003 = vadd.f32 0.0, %v8002
  %v8004 = vpop.f32.mrb[0].mxu0
  %8005 = vmatprep.mubr.f32.mxu0 0.0
  %8006 = vmatmul.mubr.f32.gmra.mrb[0].mxu0 %v7926
  %v8007 = vpop.f32.mrb[0].mxu0
  %v8008 = vadd.f32 0.0, %v8007
  %v8009 = vpop.f32.mrb[0].mxu0
  %8010 = vmatprep.mubr.f32.mxu0 0.0
  %8011 = vmatmul.mubr.f32.gmra.mrb[0].mxu0 %v7929
  %v8012 = vpop.f32.mrb[0].mxu0
  %v8013 = vadd.f32 0.0, %v8012
  %v8014 = vpop.f32.mrb[0].mxu0
  %8015 = vdwg.mxu0
  %v8017 = vsel %vm279, %v7998, 0
  %v8020 = vsel %vm279, %v8003, 0
  %v8023 = vsel %vm279, %v8008, 0
  %v8026 = vsel %vm279, %v8013, 0
  %8028 = vmatprep.subr.mxu0 0.0
  %8029 = vmatpush1.msra.mxu0 %v6616
  %8030 = vmatprep.subr.mxu0 0.0
  %8031 = vmatpush1.msra.mxu0 0.0
  %8032 = vmatprep.subr.mxu0 0.0
  %8033 = vmatpush1.msra.mxu0 0.0
  %8034 = vmatprep.subr.mxu0 0.0
  %8035 = vmatpush1.msra.mxu0 0.0
  %8036 = vmatprep.subr.mxu0 0.0
  %8037 = vmatpush1.msra.mxu0 0.0
  %8038 = vmatprep.subr.mxu0 0.0
  %8039 = vmatpush1.msra.mxu0 0.0
  %8040 = vmatprep.subr.mxu0 0.0
  %8041 = vmatpush1.msra.mxu0 0.0
  %8042 = vmatprep.subr.mxu0 0.0
  %8043 = vmatpush1.msra.mxu0 0.0
  %8044 = vmatprep.subr.mxu0 0.0
  %8045 = vmatpush1.msra.mxu0 0.0
  %8046 = vmatprep.subr.mxu0 0.0
  %8047 = vmatpush1.msra.mxu0 0.0
  %8048 = vmatprep.subr.mxu0 0.0
  %8049 = vmatpush1.msra.mxu0 0.0
  %8050 = vmatprep.subr.mxu0 0.0
  %8051 = vmatpush1.msra.mxu0 0.0
  %8052 = vmatprep.subr.mxu0 0.0
  %8053 = vmatpush1.msra.mxu0 0.0
  %8054 = vmatprep.subr.mxu0 0.0
  %8055 = vmatpush1.msra.mxu0 0.0
  %8056 = vmatprep.subr.mxu0 0.0
  %8057 = vmatpush1.msra.mxu0 0.0
  %8058 = vmatprep.subr.mxu0 0.0
  %8059 = vmatpush1.msra.mxu0 0.0
  %8060 = vmatprep.subr.mxu0 0.0
  %8061 = vmatpush1.msra.mxu0 0.0
  %8062 = vmatprep.subr.mxu0 0.0
  %8063 = vmatpush1.msra.mxu0 0.0
  %8064 = vmatprep.subr.mxu0 0.0
  %8065 = vmatpush1.msra.mxu0 0.0
  %8066 = vmatprep.subr.mxu0 0.0
  %8067 = vmatpush1.msra.mxu0 0.0
  %8068 = vmatprep.subr.mxu0 0.0
  %8069 = vmatpush1.msra.mxu0 0.0
  %8070 = vmatprep.subr.mxu0 0.0
  %8071 = vmatpush1.msra.mxu0 0.0
  %8072 = vmatprep.subr.mxu0 0.0
  %8073 = vmatpush1.msra.mxu0 0.0
  %8074 = vmatprep.subr.mxu0 0.0
  %8075 = vmatpush1.msra.mxu0 0.0
  %8076 = vmatprep.subr.mxu0 0.0
  %8077 = vmatpush1.msra.mxu0 0.0
  %8078 = vmatprep.subr.mxu0 0.0
  %8079 = vmatpush1.msra.mxu0 0.0
  %8080 = vmatprep.subr.mxu0 0.0
  %8081 = vmatpush1.msra.mxu0 0.0
  %8082 = vmatprep.subr.mxu0 0.0
  %8083 = vmatpush1.msra.mxu0 0.0
  %8084 = vmatprep.subr.mxu0 0.0
  %8085 = vmatpush1.msra.mxu0 0.0
  %8086 = vmatprep.subr.mxu0 0.0
  %8087 = vmatpush1.msra.mxu0 0.0
  %8088 = vmatprep.subr.mxu0 0.0
  %8089 = vmatpush1.msra.mxu0 0.0
  %8090 = vmatprep.subr.mxu0 0.0
  %8091 = vmatpush1.msra.mxu0 0.0
  %8092 = vmatprep.mubr.f32.mxu0 0.0
  %8093 = vmatmul.mubr.f32.gmra.mrb[0].mxu0 %v8017
  %v8094 = vpop.f32.mrb[0].mxu0
  %v8095 = vadd.f32 0.0, %v8094
  %v8096 = vpop.f32.mrb[0].mxu0
  %8097 = vmatprep.mubr.f32.mxu0 0.0
  %8098 = vmatmul.mubr.f32.gmra.mrb[0].mxu0 %v8020
  %v8099 = vpop.f32.mrb[0].mxu0
  %v8100 = vadd.f32 0.0, %v8099
  %v8101 = vpop.f32.mrb[0].mxu0
  %8102 = vmatprep.mubr.f32.mxu0 0.0
  %8103 = vmatmul.mubr.f32.gmra.mrb[0].mxu0 %v8023
  %v8104 = vpop.f32.mrb[0].mxu0
  %v8105 = vadd.f32 0.0, %v8104
  %v8106 = vpop.f32.mrb[0].mxu0
  %8107 = vmatprep.mubr.f32.mxu0 0.0
  %8108 = vmatmul.mubr.f32.gmra.mrb[0].mxu0 %v8026
  %v8109 = vpop.f32.mrb[0].mxu0
  %v8110 = vadd.f32 0.0, %v8109
  %v8111 = vpop.f32.mrb[0].mxu0
  %8112 = vdwg.mxu0
  %v8113 = vadd.f32 %v7737, %v8095
  %v8114 = vadd.f32 %v7738, %v8100
  %v8115 = vadd.f32 %v7739, %v8105
  %v8116 = vadd.f32 %v7740, %v8110
  %v8117 = vadd.f32 %v6422, %v8113
  %v8118 = vadd.f32 %v6423, %v8114
  %v8119 = vadd.f32 %v6424, %v8115
  %v8120 = vadd.f32 %v6425, %v8116
  %s8121 = scalar_lea.vmem %s8, 3
  %v8122 = vld [vmem:[%s8121] sm:$0x1]
  %v8124 = vlaneseq
  %v8125 = vshrl.u32 %v8124, 7
  %v8126 = vsub.s32 0, %v8125
  %v8127 = vrot.slane %v8122, %v8126
  %v8129 = vadd.f32 %v8117, %v8127
  %v8130 = vadd.f32 %v8118, %v8127
  %v8131 = vadd.f32 %v8119, %v8127
  %v8132 = vadd.f32 %v8120, %v8127
  %s8133 = scalar_lea.vmem %s9, 3
  %v8134 = vld [vmem:[%s8133] sm:$0x1]
  %s8135 = scalar_lea.vmem %s10, 3
  %v8136 = vld [vmem:[%s8135] sm:$0x1]
  %v8137 = vsel %vm77, %v8129, 0.0
  %8138 = vadd.xlane.f32.xlu0 %v8137
  %v8139 = vpop.xlane.xlu0 %8138
  %v8140 = vsel %vm77, %v8130, 0.0
  %8141 = vadd.xlane.f32.xlu0 %v8140
  %v8142 = vpop.xlane.xlu0 %8141
  %v8143 = vsel %vm77, %v8131, 0.0
  %8144 = vadd.xlane.f32.xlu0 %v8143
  %v8145 = vpop.xlane.xlu0 %8144
  %v8146 = vsel %vm77, %v8132, 0.0
  %8147 = vadd.xlane.f32.xlu0 %v8146
  %v8148 = vpop.xlane.xlu0 %8147
  %v8149 = vmul.f32 %v8139, %v90
  %v8150 = vmul.f32 %v8142, %v90
  %v8151 = vmul.f32 %v8145, %v90
  %v8152 = vmul.f32 %v8148, %v90
  %v8153 = vsub.f32 %v8129, %v8149
  %v8154 = vsub.f32 %v8130, %v8150
  %v8155 = vsub.f32 %v8131, %v8151
  %v8156 = vsub.f32 %v8132, %v8152
  %v8157 = vmul.f32 %v8153, %v8153
  %v8158 = vmul.f32 %v8154, %v8154
  %v8159 = vmul.f32 %v8155, %v8155
  %v8160 = vmul.f32 %v8156, %v8156
  %v8161 = vsel %vm77, %v8157, 0.0
  %8162 = vadd.xlane.f32.xlu0 %v8161
  %v8163 = vpop.xlane.xlu0 %8162
  %v8164 = vsel %vm77, %v8158, 0.0
  %8165 = vadd.xlane.f32.xlu0 %v8164
  %v8166 = vpop.xlane.xlu0 %8165
  %v8167 = vsel %vm77, %v8159, 0.0
  %8168 = vadd.xlane.f32.xlu0 %v8167
  %v8169 = vpop.xlane.xlu0 %8168
  %v8170 = vsel %vm77, %v8160, 0.0
  %8171 = vadd.xlane.f32.xlu0 %v8170
  %v8172 = vpop.xlane.xlu0 %8171
  %v8173 = vmul.f32 %v8163, %v90
  %v8174 = vmul.f32 %v8166, %v90
  %v8175 = vmul.f32 %v8169, %v90
  %v8176 = vmul.f32 %v8172, %v90
  %v8177 = vadd.f32 %v8173, 1e-05
  %v8178 = vadd.f32 %v8174, 1e-05
  %v8179 = vadd.f32 %v8175, 1e-05
  %v8180 = vadd.f32 %v8176, 1e-05
  %v8181 = vrsqrt.pop %v8177
  %v8182 = vrsqrt.pop %v8178
  %v8183 = vrsqrt.pop %v8179
  %v8184 = vrsqrt.pop %v8180
  %v8185 = vmul.f32 %v8153, %v8181
  %v8186 = vmul.f32 %v8154, %v8182
  %v8187 = vmul.f32 %v8155, %v8183
  %v8188 = vmul.f32 %v8156, %v8184
  %v8190 = vlaneseq
  %v8191 = vshrl.u32 %v8190, 7
  %v8192 = vsub.s32 0, %v8191
  %v8193 = vrot.slane %v8134, %v8192
  %v8195 = vmul.f32 %v8185, %v8193
  %v8196 = vmul.f32 %v8186, %v8193
  %v8197 = vmul.f32 %v8187, %v8193
  %v8198 = vmul.f32 %v8188, %v8193
  %v8200 = vlaneseq
  %v8201 = vshrl.u32 %v8200, 7
  %v8202 = vsub.s32 0, %v8201
  %v8203 = vrot.slane %v8136, %v8202
  %v8205 = vadd.f32 %v8195, %v8203
  %v8206 = vadd.f32 %v8196, %v8203
  %v8207 = vadd.f32 %v8197, %v8203
  %v8208 = vadd.f32 %v8198, %v8203
  %s8209 = scalar_lea.vmem %s11, 96
  %v8210 = vld [vmem:[%s8209] sm:$0xff]
  %v8211 = vld [vmem:[%s8209 + $0x8] sm:$0xff]
  %v8212 = vld [vmem:[%s8209 + $0x10] sm:$0xff]
  %v8213 = vld [vmem:[%s8209 + $0x18] sm:$0xff]
  %s8214 = scalar_lea.vmem %s12, 3
  %v8215 = vld [vmem:[%s8214] sm:$0x1]
  %v8217 = vlaneseq
  %v8218 = vshrl.u32 %v8217, 7
  %v8219 = vsub.s32 0, %v8218
  %v8220 = vrot.slane %v8215, %v8219
  %v8223 = vsel %vm77, %v8205, 0
  %v8226 = vsel %vm77, %v8206, 0
  %v8229 = vsel %vm77, %v8207, 0
  %v8232 = vsel %vm77, %v8208, 0
  %8234 = vmatprep.subr.mxu0 0.0
  %8235 = vmatpush1.msra.mxu0 %v8210
  %8236 = vmatprep.subr.mxu0 0.0
  %8237 = vmatpush1.msra.mxu0 %v8211
  %8238 = vmatprep.subr.mxu0 0.0
  %8239 = vmatpush1.msra.mxu0 %v8212
  %8240 = vmatprep.subr.mxu0 0.0
  %8241 = vmatpush1.msra.mxu0 %v8213
  %8242 = vmatprep.subr.mxu0 0.0
  %8243 = vmatpush1.msra.mxu0 0.0
  %8244 = vmatprep.subr.mxu0 0.0
  %8245 = vmatpush1.msra.mxu0 0.0
  %8246 = vmatprep.subr.mxu0 0.0
  %8247 = vmatpush1.msra.mxu0 0.0
  %8248 = vmatprep.subr.mxu0 0.0
  %8249 = vmatpush1.msra.mxu0 0.0
  %8250 = vmatprep.subr.mxu0 0.0
  %8251 = vmatpush1.msra.mxu0 0.0
  %8252 = vmatprep.subr.mxu0 0.0
  %8253 = vmatpush1.msra.mxu0 0.0
  %8254 = vmatprep.subr.mxu0 0.0
  %8255 = vmatpush1.msra.mxu0 0.0
  %8256 = vmatprep.subr.mxu0 0.0
  %8257 = vmatpush1.msra.mxu0 0.0
  %8258 = vmatprep.subr.mxu0 0.0
  %8259 = vmatpush1.msra.mxu0 0.0
  %8260 = vmatprep.subr.mxu0 0.0
  %8261 = vmatpush1.msra.mxu0 0.0
  %8262 = vmatprep.subr.mxu0 0.0
  %8263 = vmatpush1.msra.mxu0 0.0
  %8264 = vmatprep.subr.mxu0 0.0
  %8265 = vmatpush1.msra.mxu0 0.0
  %8266 = vmatprep.subr.mxu0 0.0
  %8267 = vmatpush1.msra.mxu0 0.0
  %8268 = vmatprep.subr.mxu0 0.0
  %8269 = vmatpush1.msra.mxu0 0.0
  %8270 = vmatprep.subr.mxu0 0.0
  %8271 = vmatpush1.msra.mxu0 0.0
  %8272 = vmatprep.subr.mxu0 0.0
  %8273 = vmatpush1.msra.mxu0 0.0
  %8274 = vmatprep.subr.mxu0 0.0
  %8275 = vmatpush1.msra.mxu0 0.0
  %8276 = vmatprep.subr.mxu0 0.0
  %8277 = vmatpush1.msra.mxu0 0.0
  %8278 = vmatprep.subr.mxu0 0.0
  %8279 = vmatpush1.msra.mxu0 0.0
  %8280 = vmatprep.subr.mxu0 0.0
  %8281 = vmatpush1.msra.mxu0 0.0
  %8282 = vmatprep.subr.mxu0 0.0
  %8283 = vmatpush1.msra.mxu0 0.0
  %8284 = vmatprep.subr.mxu0 0.0
  %8285 = vmatpush1.msra.mxu0 0.0
  %8286 = vmatprep.subr.mxu0 0.0
  %8287 = vmatpush1.msra.mxu0 0.0
  %8288 = vmatprep.subr.mxu0 0.0
  %8289 = vmatpush1.msra.mxu0 0.0
  %8290 = vmatprep.subr.mxu0 0.0
  %8291 = vmatpush1.msra.mxu0 0.0
  %8292 = vmatprep.subr.mxu0 0.0
  %8293 = vmatpush1.msra.mxu0 0.0
  %8294 = vmatprep.subr.mxu0 0.0
  %8295 = vmatpush1.msra.mxu0 0.0
  %8296 = vmatprep.subr.mxu0 0.0
  %8297 = vmatpush1.msra.mxu0 0.0
  %8298 = vmatprep.mubr.f32.mxu0 0.0
  %8299 = vmatmul.mubr.f32.gmra.mrb[0].mxu0 %v8223
  %v8300 = vpop.f32.mrb[0].mxu0
  %v8301 = vadd.f32 %v8220, %v8300
  %v8302 = vpop.f32.mrb[0].mxu0
  %8303 = vmatprep.mubr.f32.mxu0 0.0
  %8304 = vmatmul.mubr.f32.gmra.mrb[0].mxu0 %v8226
  %v8305 = vpop.f32.mrb[0].mxu0
  %v8306 = vadd.f32 %v8220, %v8305
  %v8307 = vpop.f32.mrb[0].mxu0
  %8308 = vmatprep.mubr.f32.mxu0 0.0
  %8309 = vmatmul.mubr.f32.gmra.mrb[0].mxu0 %v8229
  %v8310 = vpop.f32.mrb[0].mxu0
  %v8311 = vadd.f32 %v8220, %v8310
  %v8312 = vpop.f32.mrb[0].mxu0
  %8313 = vmatprep.mubr.f32.mxu0 0.0
  %8314 = vmatmul.mubr.f32.gmra.mrb[0].mxu0 %v8232
  %v8315 = vpop.f32.mrb[0].mxu0
  %v8316 = vadd.f32 %v8220, %v8315
  %v8317 = vpop.f32.mrb[0].mxu0
  %8318 = vdwg.mxu0
  %v8319 = vmul.f32 %v8301, 0.5
  %v8320 = vmul.f32 %v8306, 0.5
  %v8321 = vmul.f32 %v8311, 0.5
  %v8322 = vmul.f32 %v8316, 0.5
  %v8323 = vmul.f32 %v8301, 0.70710677
  %v8324 = vmul.f32 %v8306, 0.70710677
  %v8325 = vmul.f32 %v8311, 0.70710677
  %v8326 = vmul.f32 %v8316, 0.70710677
  %vm8327 = vcmp.ge.f32.partialorder %v8323, 0.0
  %vm8328 = vcmp.ge.f32.partialorder %v8324, 0.0
  %vm8329 = vcmp.ge.f32.partialorder %v8325, 0.0
  %vm8330 = vcmp.ge.f32.partialorder %v8326, 0.0
  %v8331 = vsel %vm8327, 1.0, -1.0
  %v8332 = vsel %vm8328, 1.0, -1.0
  %v8333 = vsel %vm8329, 1.0, -1.0
  %v8334 = vsel %vm8330, 1.0, -1.0
  %v8335 = vand.u32 2147483647, %v8323
  %v8336 = vand.u32 2147483647, %v8324
  %v8337 = vand.u32 2147483647, %v8325
  %v8338 = vand.u32 2147483647, %v8326
  %v8339 = vmul.f32 %v8335, 0.3275911
  %v8340 = vmul.f32 %v8336, 0.3275911
  %v8341 = vmul.f32 %v8337, 0.3275911
  %v8342 = vmul.f32 %v8338, 0.3275911
  %v8343 = vadd.f32 %v8339, 1.0
  %v8344 = vadd.f32 %v8340, 1.0
  %v8345 = vadd.f32 %v8341, 1.0
  %v8346 = vadd.f32 %v8342, 1.0
  %v8347 = vrcp.pop %v8343
  %v8348 = vmul.f32 1.0, %v8347
  %v8349 = vrcp.pop %v8344
  %v8350 = vmul.f32 1.0, %v8349
  %v8351 = vrcp.pop %v8345
  %v8352 = vmul.f32 1.0, %v8351
  %v8353 = vrcp.pop %v8346
  %v8354 = vmul.f32 1.0, %v8353
  %v8355 = vmul.f32 %v8348, 1.0614054
  %v8356 = vmul.f32 %v8350, 1.0614054
  %v8357 = vmul.f32 %v8352, 1.0614054
  %v8358 = vmul.f32 %v8354, 1.0614054
  %v8359 = vadd.f32 %v8355, -1.4531521
  %v8360 = vadd.f32 %v8356, -1.4531521
  %v8361 = vadd.f32 %v8357, -1.4531521
  %v8362 = vadd.f32 %v8358, -1.4531521
  %v8363 = vmul.f32 %v8348, %v8359
  %v8364 = vmul.f32 %v8350, %v8360
  %v8365 = vmul.f32 %v8352, %v8361
  %v8366 = vmul.f32 %v8354, %v8362
  %v8367 = vadd.f32 %v8363, 1.4214138
  %v8368 = vadd.f32 %v8364, 1.4214138
  %v8369 = vadd.f32 %v8365, 1.4214138
  %v8370 = vadd.f32 %v8366, 1.4214138
  %v8371 = vmul.f32 %v8348, %v8367
  %v8372 = vmul.f32 %v8350, %v8368
  %v8373 = vmul.f32 %v8352, %v8369
  %v8374 = vmul.f32 %v8354, %v8370
  %v8375 = vadd.f32 %v8371, -0.28449672
  %v8376 = vadd.f32 %v8372, -0.28449672
  %v8377 = vadd.f32 %v8373, -0.28449672
  %v8378 = vadd.f32 %v8374, -0.28449672
  %v8379 = vmul.f32 %v8348, %v8375
  %v8380 = vmul.f32 %v8350, %v8376
  %v8381 = vmul.f32 %v8352, %v8377
  %v8382 = vmul.f32 %v8354, %v8378
  %v8383 = vadd.f32 %v8379, 0.2548296
  %v8384 = vadd.f32 %v8380, 0.2548296
  %v8385 = vadd.f32 %v8381, 0.2548296
  %v8386 = vadd.f32 %v8382, 0.2548296
  %v8387 = vmul.f32 %v8348, %v8383
  %v8388 = vmul.f32 %v8350, %v8384
  %v8389 = vmul.f32 %v8352, %v8385
  %v8390 = vmul.f32 %v8354, %v8386
  %v8391 = vsub.f32 0.0, %v8335
  %v8392 = vsub.f32 0.0, %v8336
  %v8393 = vsub.f32 0.0, %v8337
  %v8394 = vsub.f32 0.0, %v8338
  %v8395 = vmul.f32 %v8391, %v8335
  %v8396 = vmul.f32 %v8392, %v8336
  %v8397 = vmul.f32 %v8393, %v8337
  %v8398 = vmul.f32 %v8394, %v8338
  %v8399 = vmul.f32 %v8395, 1.442695
  %v8400 = vpow.pop %v8399
  %v8401 = vmul.f32 %v8396, 1.442695
  %v8402 = vpow.pop %v8401
  %v8403 = vmul.f32 %v8397, 1.442695
  %v8404 = vpow.pop %v8403
  %v8405 = vmul.f32 %v8398, 1.442695
  %v8406 = vpow.pop %v8405
  %v8407 = vmul.f32 %v8387, %v8400
  %v8408 = vmul.f32 %v8388, %v8402
  %v8409 = vmul.f32 %v8389, %v8404
  %v8410 = vmul.f32 %v8390, %v8406
  %v8411 = vsub.f32 1.0, %v8407
  %v8412 = vsub.f32 1.0, %v8408
  %v8413 = vsub.f32 1.0, %v8409
  %v8414 = vsub.f32 1.0, %v8410
  %v8415 = vmul.f32 %v8331, %v8411
  %v8416 = vmul.f32 %v8332, %v8412
  %v8417 = vmul.f32 %v8333, %v8413
  %v8418 = vmul.f32 %v8334, %v8414
  %v8419 = vadd.f32 %v8415, 1.0
  %v8420 = vadd.f32 %v8416, 1.0
  %v8421 = vadd.f32 %v8417, 1.0
  %v8422 = vadd.f32 %v8418, 1.0
  %v8423 = vmul.f32 %v8319, %v8419
  %v8424 = vmul.f32 %v8320, %v8420
  %v8425 = vmul.f32 %v8321, %v8421
  %v8426 = vmul.f32 %v8322, %v8422
  %s8427 = scalar_lea.vmem %s13, 384
  %v8428 = vld [vmem:[%s8427] sm:$0xff]
  %v8429 = vld [vmem:[%s8427 + $0x8] sm:$0xff]
  %v8430 = vld [vmem:[%s8427 + $0x10] sm:$0xff]
  %v8431 = vld [vmem:[%s8427 + $0x18] sm:$0xff]
  %v8432 = vld [vmem:[%s8427 + $0x20] sm:$0xff]
  %v8433 = vld [vmem:[%s8427 + $0x28] sm:$0xff]
  %v8434 = vld [vmem:[%s8427 + $0x30] sm:$0xff]
  %v8435 = vld [vmem:[%s8427 + $0x38] sm:$0xff]
  %v8436 = vld [vmem:[%s8427 + $0x40] sm:$0xff]
  %v8437 = vld [vmem:[%s8427 + $0x48] sm:$0xff]
  %v8438 = vld [vmem:[%s8427 + $0x50] sm:$0xff]
  %v8439 = vld [vmem:[%s8427 + $0x58] sm:$0xff]
  %v8440 = vld [vmem:[%s8427 + $0x60] sm:$0xff]
  %v8441 = vld [vmem:[%s8427 + $0x68] sm:$0xff]
  %v8442 = vld [vmem:[%s8427 + $0x70] sm:$0xff]
  %v8443 = vld [vmem:[%s8427 + $0x78] sm:$0xff]
  %8444 = vmatprep.subr.mxu0 0.0
  %8445 = vmatpush1.msra.mxu0 %v8428
  %8446 = vmatprep.subr.mxu0 0.0
  %8447 = vmatpush1.msra.mxu0 %v8429
  %8448 = vmatprep.subr.mxu0 0.0
  %8449 = vmatpush1.msra.mxu0 %v8430
  %8450 = vmatprep.subr.mxu0 0.0
  %8451 = vmatpush1.msra.mxu0 %v8431
  %8452 = vmatprep.subr.mxu0 0.0
  %8453 = vmatpush1.msra.mxu0 %v8432
  %8454 = vmatprep.subr.mxu0 0.0
  %8455 = vmatpush1.msra.mxu0 %v8433
  %8456 = vmatprep.subr.mxu0 0.0
  %8457 = vmatpush1.msra.mxu0 %v8434
  %8458 = vmatprep.subr.mxu0 0.0
  %8459 = vmatpush1.msra.mxu0 %v8435
  %8460 = vmatprep.subr.mxu0 0.0
  %8461 = vmatpush1.msra.mxu0 %v8436
  %8462 = vmatprep.subr.mxu0 0.0
  %8463 = vmatpush1.msra.mxu0 %v8437
  %8464 = vmatprep.subr.mxu0 0.0
  %8465 = vmatpush1.msra.mxu0 %v8438
  %8466 = vmatprep.subr.mxu0 0.0
  %8467 = vmatpush1.msra.mxu0 %v8439
  %8468 = vmatprep.subr.mxu0 0.0
  %8469 = vmatpush1.msra.mxu0 %v8440
  %8470 = vmatprep.subr.mxu0 0.0
  %8471 = vmatpush1.msra.mxu0 %v8441
  %8472 = vmatprep.subr.mxu0 0.0
  %8473 = vmatpush1.msra.mxu0 %v8442
  %8474 = vmatprep.subr.mxu0 0.0
  %8475 = vmatpush1.msra.mxu0 %v8443
  %8476 = vmatprep.subr.mxu0 0.0
  %8477 = vmatpush1.msra.mxu0 0.0
  %8478 = vmatprep.subr.mxu0 0.0
  %8479 = vmatpush1.msra.mxu0 0.0
  %8480 = vmatprep.subr.mxu0 0.0
  %8481 = vmatpush1.msra.mxu0 0.0
  %8482 = vmatprep.subr.mxu0 0.0
  %8483 = vmatpush1.msra.mxu0 0.0
  %8484 = vmatprep.subr.mxu0 0.0
  %8485 = vmatpush1.msra.mxu0 0.0
  %8486 = vmatprep.subr.mxu0 0.0
  %8487 = vmatpush1.msra.mxu0 0.0
  %8488 = vmatprep.subr.mxu0 0.0
  %8489 = vmatpush1.msra.mxu0 0.0
  %8490 = vmatprep.subr.mxu0 0.0
  %8491 = vmatpush1.msra.mxu0 0.0
  %8492 = vmatprep.subr.mxu0 0.0
  %8493 = vmatpush1.msra.mxu0 0.0
  %8494 = vmatprep.subr.mxu0 0.0
  %8495 = vmatpush1.msra.mxu0 0.0
  %8496 = vmatprep.subr.mxu0 0.0
  %8497 = vmatpush1.msra.mxu0 0.0
  %8498 = vmatprep.subr.mxu0 0.0
  %8499 = vmatpush1.msra.mxu0 0.0
  %8500 = vmatprep.subr.mxu0 0.0
  %8501 = vmatpush1.msra.mxu0 0.0
  %8502 = vmatprep.subr.mxu0 0.0
  %8503 = vmatpush1.msra.mxu0 0.0
  %8504 = vmatprep.subr.mxu0 0.0
  %8505 = vmatpush1.msra.mxu0 0.0
  %8506 = vmatprep.subr.mxu0 0.0
  %8507 = vmatpush1.msra.mxu0 0.0
  %8508 = vmatprep.mubr.f32.mxu0 0.0
  %8509 = vmatmul.mubr.f32.gmra.mrb[0].mxu0 %v8423
  %v8510 = vpop.f32.mrb[0].mxu0
  %v8511 = vadd.f32 0.0, %v8510
  %v8512 = vpop.f32.mrb[0].mxu0
  %8513 = vmatprep.mubr.f32.mxu0 0.0
  %8514 = vmatmul.mubr.f32.gmra.mrb[0].mxu0 %v8424
  %v8515 = vpop.f32.mrb[0].mxu0
  %v8516 = vadd.f32 0.0, %v8515
  %v8517 = vpop.f32.mrb[0].mxu0
  %8518 = vmatprep.mubr.f32.mxu0 0.0
  %8519 = vmatmul.mubr.f32.gmra.mrb[0].mxu0 %v8425
  %v8520 = vpop.f32.mrb[0].mxu0
  %v8521 = vadd.f32 0.0, %v8520
  %v8522 = vpop.f32.mrb[0].mxu0
  %8523 = vmatprep.mubr.f32.mxu0 0.0
  %8524 = vmatmul.mubr.f32.gmra.mrb[0].mxu0 %v8426
  %v8525 = vpop.f32.mrb[0].mxu0
  %v8526 = vadd.f32 0.0, %v8525
  %v8527 = vpop.f32.mrb[0].mxu0
  %8528 = vdwg.mxu0
  %v8529 = vadd.f32 %v8129, %v8511
  %v8530 = vadd.f32 %v8130, %v8516
  %v8531 = vadd.f32 %v8131, %v8521
  %v8532 = vadd.f32 %v8132, %v8526
  %s8533 = scalar_lea.vmem %s14, 3
  %v8534 = vld [vmem:[%s8533] sm:$0x1]
  %v8536 = vlaneseq
  %v8537 = vshrl.u32 %v8536, 7
  %v8538 = vsub.s32 0, %v8537
  %v8539 = vrot.slane %v8534, %v8538
  %v8541 = vadd.f32 %v8529, %v8539
  %v8542 = vadd.f32 %v8530, %v8539
  %v8543 = vadd.f32 %v8531, %v8539
  %v8544 = vadd.f32 %v8532, %v8539
  %v8545 = vld [vmem:[%s15] sm:$0xff]
  %v8546 = vld [vmem:[%s15 + $0x8] sm:$0xff]
  %v8547 = vld [vmem:[%s15 + $0x10] sm:$0xff]
  %v8548 = vld [vmem:[%s15 + $0x18] sm:$0xff]
  %v8549 = vld [vmem:[%s15 + $0x20] sm:$0xff]
  %v8550 = vld [vmem:[%s15 + $0x28] sm:$0xff]
  %v8551 = vld [vmem:[%s15 + $0x30] sm:$0xff]
  %v8552 = vld [vmem:[%s15 + $0x38] sm:$0xff]
  %v8554 = vsel %vm77, %v8541, 0
  %v8557 = vsel %vm77, %v8542, 0
  %v8560 = vsel %vm77, %v8543, 0
  %v8563 = vsel %vm77, %v8544, 0
  %8565 = vmatprep.subr.mxu0 0.0
  %8566 = vmatpush1.msra.mxu0 %v8549
  %8567 = vmatprep.subr.mxu0 0.0
  %8568 = vmatpush1.msra.mxu0 %v8550
  %8569 = vmatprep.subr.mxu0 0.0
  %8570 = vmatpush1.msra.mxu0 %v8551
  %8571 = vmatprep.subr.mxu0 0.0
  %8572 = vmatpush1.msra.mxu0 %v8552
  %8573 = vmatprep.subr.mxu0 0.0
  %8574 = vmatpush1.msra.mxu0 0.0
  %8575 = vmatprep.subr.mxu0 0.0
  %8576 = vmatpush1.msra.mxu0 0.0
  %8577 = vmatprep.subr.mxu0 0.0
  %8578 = vmatpush1.msra.mxu0 0.0
  %8579 = vmatprep.subr.mxu0 0.0
  %8580 = vmatpush1.msra.mxu0 0.0
  %8581 = vmatprep.subr.mxu0 0.0
  %8582 = vmatpush1.msra.mxu0 0.0
  %8583 = vmatprep.subr.mxu0 0.0
  %8584 = vmatpush1.msra.mxu0 0.0
  %8585 = vmatprep.subr.mxu0 0.0
  %8586 = vmatpush1.msra.mxu0 0.0
  %8587 = vmatprep.subr.mxu0 0.0
  %8588 = vmatpush1.msra.mxu0 0.0
  %8589 = vmatprep.subr.mxu0 0.0
  %8590 = vmatpush1.msra.mxu0 0.0
  %8591 = vmatprep.subr.mxu0 0.0
  %8592 = vmatpush1.msra.mxu0 0.0
  %8593 = vmatprep.subr.mxu0 0.0
  %8594 = vmatpush1.msra.mxu0 0.0
  %8595 = vmatprep.subr.mxu0 0.0
  %8596 = vmatpush1.msra.mxu0 0.0
  %8597 = vmatprep.subr.mxu0 0.0
  %8598 = vmatpush1.msra.mxu0 0.0
  %8599 = vmatprep.subr.mxu0 0.0
  %8600 = vmatpush1.msra.mxu0 0.0
  %8601 = vmatprep.subr.mxu0 0.0
  %8602 = vmatpush1.msra.mxu0 0.0
  %8603 = vmatprep.subr.mxu0 0.0
  %8604 = vmatpush1.msra.mxu0 0.0
  %8605 = vmatprep.subr.mxu0 0.0
  %8606 = vmatpush1.msra.mxu0 0.0
  %8607 = vmatprep.subr.mxu0 0.0
  %8608 = vmatpush1.msra.mxu0 0.0
  %8609 = vmatprep.subr.mxu0 0.0
  %8610 = vmatpush1.msra.mxu0 0.0
  %8611 = vmatprep.subr.mxu0 0.0
  %8612 = vmatpush1.msra.mxu0 0.0
  %8613 = vmatprep.subr.mxu0 0.0
  %8614 = vmatpush1.msra.mxu0 0.0
  %8615 = vmatprep.subr.mxu0 0.0
  %8616 = vmatpush1.msra.mxu0 0.0
  %8617 = vmatprep.subr.mxu0 0.0
  %8618 = vmatpush1.msra.mxu0 0.0
  %8619 = vmatprep.subr.mxu0 0.0
  %8620 = vmatpush1.msra.mxu0 0.0
  %8621 = vmatprep.subr.mxu0 0.0
  %8622 = vmatpush1.msra.mxu0 0.0
  %8623 = vmatprep.subr.mxu0 0.0
  %8624 = vmatpush1.msra.mxu0 0.0
  %8625 = vmatprep.subr.mxu0 0.0
  %8626 = vmatpush1.msra.mxu0 0.0
  %8627 = vmatprep.subr.mxu0 0.0
  %8628 = vmatpush1.msra.mxu0 0.0
  %8629 = vmatprep.mubr.f32.mxu0 0.0
  %8630 = vmatmul.mubr.f32.gmra.mrb[0].mxu0 %v8554
  %v8631 = vpop.f32.mrb[0].mxu0
  %v8632 = vadd.f32 0.0, %v8631
  %v8633 = vpop.f32.mrb[0].mxu0
  %8634 = vmatprep.mubr.f32.mxu0 0.0
  %8635 = vmatmul.mubr.f32.gmra.mrb[0].mxu0 %v8557
  %v8636 = vpop.f32.mrb[0].mxu0
  %v8637 = vadd.f32 0.0, %v8636
  %v8638 = vpop.f32.mrb[0].mxu0
  %8639 = vmatprep.mubr.f32.mxu0 0.0
  %8640 = vmatmul.mubr.f32.gmra.mrb[0].mxu0 %v8560
  %v8641 = vpop.f32.mrb[0].mxu0
  %v8642 = vadd.f32 0.0, %v8641
  %v8643 = vpop.f32.mrb[0].mxu0
  %8644 = vmatprep.mubr.f32.mxu0 0.0
  %8645 = vmatmul.mubr.f32.gmra.mrb[0].mxu0 %v8563
  %v8646 = vpop.f32.mrb[0].mxu0
  %v8647 = vadd.f32 0.0, %v8646
  %v8648 = vpop.f32.mrb[0].mxu0
  %8649 = vdwg.mxu0
  %v8651 = vsel %vm77, %v4299, 0
  %v8654 = vsel %vm77, %v4300, 0
  %v8657 = vsel %vm77, %v4301, 0
  %v8660 = vsel %vm77, %v4302, 0
  %8662 = vmatprep.subr.mxu0 0.0
  %8663 = vmatpush1.msra.mxu0 %v8545
  %8664 = vmatprep.subr.mxu0 0.0
  %8665 = vmatpush1.msra.mxu0 %v8546
  %8666 = vmatprep.subr.mxu0 0.0
  %8667 = vmatpush1.msra.mxu0 %v8547
  %8668 = vmatprep.subr.mxu0 0.0
  %8669 = vmatpush1.msra.mxu0 %v8548
  %8670 = vmatprep.subr.mxu0 0.0
  %8671 = vmatpush1.msra.mxu0 0.0
  %8672 = vmatprep.subr.mxu0 0.0
  %8673 = vmatpush1.msra.mxu0 0.0
  %8674 = vmatprep.subr.mxu0 0.0
  %8675 = vmatpush1.msra.mxu0 0.0
  %8676 = vmatprep.subr.mxu0 0.0
  %8677 = vmatpush1.msra.mxu0 0.0
  %8678 = vmatprep.subr.mxu0 0.0
  %8679 = vmatpush1.msra.mxu0 0.0
  %8680 = vmatprep.subr.mxu0 0.0
  %8681 = vmatpush1.msra.mxu0 0.0
  %8682 = vmatprep.subr.mxu0 0.0
  %8683 = vmatpush1.msra.mxu0 0.0
  %8684 = vmatprep.subr.mxu0 0.0
  %8685 = vmatpush1.msra.mxu0 0.0
  %8686 = vmatprep.subr.mxu0 0.0
  %8687 = vmatpush1.msra.mxu0 0.0
  %8688 = vmatprep.subr.mxu0 0.0
  %8689 = vmatpush1.msra.mxu0 0.0
  %8690 = vmatprep.subr.mxu0 0.0
  %8691 = vmatpush1.msra.mxu0 0.0
  %8692 = vmatprep.subr.mxu0 0.0
  %8693 = vmatpush1.msra.mxu0 0.0
  %8694 = vmatprep.subr.mxu0 0.0
  %8695 = vmatpush1.msra.mxu0 0.0
  %8696 = vmatprep.subr.mxu0 0.0
  %8697 = vmatpush1.msra.mxu0 0.0
  %8698 = vmatprep.subr.mxu0 0.0
  %8699 = vmatpush1.msra.mxu0 0.0
  %8700 = vmatprep.subr.mxu0 0.0
  %8701 = vmatpush1.msra.mxu0 0.0
  %8702 = vmatprep.subr.mxu0 0.0
  %8703 = vmatpush1.msra.mxu0 0.0
  %8704 = vmatprep.subr.mxu0 0.0
  %8705 = vmatpush1.msra.mxu0 0.0
  %8706 = vmatprep.subr.mxu0 0.0
  %8707 = vmatpush1.msra.mxu0 0.0
  %8708 = vmatprep.subr.mxu0 0.0
  %8709 = vmatpush1.msra.mxu0 0.0
  %8710 = vmatprep.subr.mxu0 0.0
  %8711 = vmatpush1.msra.mxu0 0.0
  %8712 = vmatprep.subr.mxu0 0.0
  %8713 = vmatpush1.msra.mxu0 0.0
  %8714 = vmatprep.subr.mxu0 0.0
  %8715 = vmatpush1.msra.mxu0 0.0
  %8716 = vmatprep.subr.mxu0 0.0
  %8717 = vmatpush1.msra.mxu0 0.0
  %8718 = vmatprep.subr.mxu0 0.0
  %8719 = vmatpush1.msra.mxu0 0.0
  %8720 = vmatprep.subr.mxu0 0.0
  %8721 = vmatpush1.msra.mxu0 0.0
  %8722 = vmatprep.subr.mxu0 0.0
  %8723 = vmatpush1.msra.mxu0 0.0
  %8724 = vmatprep.subr.mxu0 0.0
  %8725 = vmatpush1.msra.mxu0 0.0
  %8726 = vmatprep.mubr.f32.mxu0 0.0
  %8727 = vmatmul.mubr.f32.gmra.mrb[0].mxu0 %v8651
  %v8728 = vpop.f32.mrb[0].mxu0
  %v8729 = vadd.f32 %v8632, %v8728
  %v8730 = vpop.f32.mrb[0].mxu0
  %8731 = vmatprep.mubr.f32.mxu0 0.0
  %8732 = vmatmul.mubr.f32.gmra.mrb[0].mxu0 %v8654
  %v8733 = vpop.f32.mrb[0].mxu0
  %v8734 = vadd.f32 %v8637, %v8733
  %v8735 = vpop.f32.mrb[0].mxu0
  %8736 = vmatprep.mubr.f32.mxu0 0.0
  %8737 = vmatmul.mubr.f32.gmra.mrb[0].mxu0 %v8657
  %v8738 = vpop.f32.mrb[0].mxu0
  %v8739 = vadd.f32 %v8642, %v8738
  %v8740 = vpop.f32.mrb[0].mxu0
  %8741 = vmatprep.mubr.f32.mxu0 0.0
  %8742 = vmatmul.mubr.f32.gmra.mrb[0].mxu0 %v8660
  %v8743 = vpop.f32.mrb[0].mxu0
  %v8744 = vadd.f32 %v8647, %v8743
  %v8745 = vpop.f32.mrb[0].mxu0
  %8746 = vdwg.mxu0
  %v8747 = vld [vmem:[%s16] sm:$0x1]
  %v8749 = vlaneseq
  %v8750 = vshrl.u32 %v8749, 7
  %v8751 = vsub.s32 0, %v8750
  %v8752 = vrot.slane %v8747, %v8751
  %v8754 = vadd.f32 %v8729, %v8752
  %v8755 = vadd.f32 %v8734, %v8752
  %v8756 = vadd.f32 %v8739, %v8752
  %v8757 = vadd.f32 %v8744, %v8752
  %v8758 = vld [vmem:[%s17] sm:$0x1]
  %v8759 = vld [vmem:[%s18] sm:$0x1]
  %v8760 = vsel %vm77, %v8754, 0.0
  %8761 = vadd.xlane.f32.xlu0 %v8760
  %v8762 = vpop.xlane.xlu0 %8761
  %v8763 = vsel %vm77, %v8755, 0.0
  %8764 = vadd.xlane.f32.xlu0 %v8763
  %v8765 = vpop.xlane.xlu0 %8764
  %v8766 = vsel %vm77, %v8756, 0.0
  %8767 = vadd.xlane.f32.xlu0 %v8766
  %v8768 = vpop.xlane.xlu0 %8767
  %v8769 = vsel %vm77, %v8757, 0.0
  %8770 = vadd.xlane.f32.xlu0 %v8769
  %v8771 = vpop.xlane.xlu0 %8770
  %v8772 = vmul.f32 %v8762, %v90
  %v8773 = vmul.f32 %v8765, %v90
  %v8774 = vmul.f32 %v8768, %v90
  %v8775 = vmul.f32 %v8771, %v90
  %v8776 = vsub.f32 %v8754, %v8772
  %v8777 = vsub.f32 %v8755, %v8773
  %v8778 = vsub.f32 %v8756, %v8774
  %v8779 = vsub.f32 %v8757, %v8775
  %v8780 = vmul.f32 %v8776, %v8776
  %v8781 = vmul.f32 %v8777, %v8777
  %v8782 = vmul.f32 %v8778, %v8778
  %v8783 = vmul.f32 %v8779, %v8779
  %v8784 = vsel %vm77, %v8780, 0.0
  %8785 = vadd.xlane.f32.xlu0 %v8784
  %v8786 = vpop.xlane.xlu0 %8785
  %v8787 = vsel %vm77, %v8781, 0.0
  %8788 = vadd.xlane.f32.xlu0 %v8787
  %v8789 = vpop.xlane.xlu0 %8788
  %v8790 = vsel %vm77, %v8782, 0.0
  %8791 = vadd.xlane.f32.xlu0 %v8790
  %v8792 = vpop.xlane.xlu0 %8791
  %v8793 = vsel %vm77, %v8783, 0.0
  %8794 = vadd.xlane.f32.xlu0 %v8793
  %v8795 = vpop.xlane.xlu0 %8794
  %v8796 = vmul.f32 %v8786, %v90
  %v8797 = vmul.f32 %v8789, %v90
  %v8798 = vmul.f32 %v8792, %v90
  %v8799 = vmul.f32 %v8795, %v90
  %v8800 = vadd.f32 %v8796, 1e-05
  %v8801 = vadd.f32 %v8797, 1e-05
  %v8802 = vadd.f32 %v8798, 1e-05
  %v8803 = vadd.f32 %v8799, 1e-05
  %v8804 = vrsqrt.pop %v8800
  %v8805 = vrsqrt.pop %v8801
  %v8806 = vrsqrt.pop %v8802
  %v8807 = vrsqrt.pop %v8803
  %v8808 = vmul.f32 %v8776, %v8804
  %v8809 = vmul.f32 %v8777, %v8805
  %v8810 = vmul.f32 %v8778, %v8806
  %v8811 = vmul.f32 %v8779, %v8807
  %v8813 = vlaneseq
  %v8814 = vshrl.u32 %v8813, 7
  %v8815 = vsub.s32 0, %v8814
  %v8816 = vrot.slane %v8758, %v8815
  %v8818 = vmul.f32 %v8808, %v8816
  %v8819 = vmul.f32 %v8809, %v8816
  %v8820 = vmul.f32 %v8810, %v8816
  %v8821 = vmul.f32 %v8811, %v8816
  %v8823 = vlaneseq
  %v8824 = vshrl.u32 %v8823, 7
  %v8825 = vsub.s32 0, %v8824
  %v8826 = vrot.slane %v8759, %v8825
  %v8828 = vadd.f32 %v8818, %v8826
  %v8829 = vadd.f32 %v8819, %v8826
  %v8830 = vadd.f32 %v8820, %v8826
  %v8831 = vadd.f32 %v8821, %v8826
  %v8832 = vld [vmem:[%s19] sm:$0xff]
  %v8833 = vld [vmem:[%s19 + $0x8] sm:$0xff]
  %v8834 = vld [vmem:[%s19 + $0x10] sm:$0xff]
  %v8835 = vld [vmem:[%s19 + $0x18] sm:$0xff]
  %v8837 = vsel %vm77, %v8828, 0
  %v8840 = vsel %vm77, %v8829, 0
  %v8843 = vsel %vm77, %v8830, 0
  %v8846 = vsel %vm77, %v8831, 0
  %8848 = vmatprep.subr.mxu0 0.0
  %8849 = vmatpush1.msra.mxu0 %v8832
  %8850 = vmatprep.subr.mxu0 0.0
  %8851 = vmatpush1.msra.mxu0 %v8833
  %8852 = vmatprep.subr.mxu0 0.0
  %8853 = vmatpush1.msra.mxu0 %v8834
  %8854 = vmatprep.subr.mxu0 0.0
  %8855 = vmatpush1.msra.mxu0 %v8835
  %8856 = vmatprep.subr.mxu0 0.0
  %8857 = vmatpush1.msra.mxu0 0.0
  %8858 = vmatprep.subr.mxu0 0.0
  %8859 = vmatpush1.msra.mxu0 0.0
  %8860 = vmatprep.subr.mxu0 0.0
  %8861 = vmatpush1.msra.mxu0 0.0
  %8862 = vmatprep.subr.mxu0 0.0
  %8863 = vmatpush1.msra.mxu0 0.0
  %8864 = vmatprep.subr.mxu0 0.0
  %8865 = vmatpush1.msra.mxu0 0.0
  %8866 = vmatprep.subr.mxu0 0.0
  %8867 = vmatpush1.msra.mxu0 0.0
  %8868 = vmatprep.subr.mxu0 0.0
  %8869 = vmatpush1.msra.mxu0 0.0
  %8870 = vmatprep.subr.mxu0 0.0
  %8871 = vmatpush1.msra.mxu0 0.0
  %8872 = vmatprep.subr.mxu0 0.0
  %8873 = vmatpush1.msra.mxu0 0.0
  %8874 = vmatprep.subr.mxu0 0.0
  %8875 = vmatpush1.msra.mxu0 0.0
  %8876 = vmatprep.subr.mxu0 0.0
  %8877 = vmatpush1.msra.mxu0 0.0
  %8878 = vmatprep.subr.mxu0 0.0
  %8879 = vmatpush1.msra.mxu0 0.0
  %8880 = vmatprep.subr.mxu0 0.0
  %8881 = vmatpush1.msra.mxu0 0.0
  %8882 = vmatprep.subr.mxu0 0.0
  %8883 = vmatpush1.msra.mxu0 0.0
  %8884 = vmatprep.subr.mxu0 0.0
  %8885 = vmatpush1.msra.mxu0 0.0
  %8886 = vmatprep.subr.mxu0 0.0
  %8887 = vmatpush1.msra.mxu0 0.0
  %8888 = vmatprep.subr.mxu0 0.0
  %8889 = vmatpush1.msra.mxu0 0.0
  %8890 = vmatprep.subr.mxu0 0.0
  %8891 = vmatpush1.msra.mxu0 0.0
  %8892 = vmatprep.subr.mxu0 0.0
  %8893 = vmatpush1.msra.mxu0 0.0
  %8894 = vmatprep.subr.mxu0 0.0
  %8895 = vmatpush1.msra.mxu0 0.0
  %8896 = vmatprep.subr.mxu0 0.0
  %8897 = vmatpush1.msra.mxu0 0.0
  %8898 = vmatprep.subr.mxu0 0.0
  %8899 = vmatpush1.msra.mxu0 0.0
  %8900 = vmatprep.subr.mxu0 0.0
  %8901 = vmatpush1.msra.mxu0 0.0
  %8902 = vmatprep.subr.mxu0 0.0
  %8903 = vmatpush1.msra.mxu0 0.0
  %8904 = vmatprep.subr.mxu0 0.0
  %8905 = vmatpush1.msra.mxu0 0.0
  %8906 = vmatprep.subr.mxu0 0.0
  %8907 = vmatpush1.msra.mxu0 0.0
  %8908 = vmatprep.subr.mxu0 0.0
  %8909 = vmatpush1.msra.mxu0 0.0
  %8910 = vmatprep.subr.mxu0 0.0
  %8911 = vmatpush1.msra.mxu0 0.0
  %8912 = vmatprep.mubr.f32.mxu0 0.0
  %8913 = vmatmul.mubr.f32.gmra.mrb[0].mxu0 %v8837
  %v8914 = vpop.f32.mrb[0].mxu0
  %v8915 = vadd.f32 0.0, %v8914
  %v8916 = vpop.f32.mrb[0].mxu0
  %8917 = vmatprep.mubr.f32.mxu0 0.0
  %8918 = vmatmul.mubr.f32.gmra.mrb[0].mxu0 %v8840
  %v8919 = vpop.f32.mrb[0].mxu0
  %v8920 = vadd.f32 0.0, %v8919
  %v8921 = vpop.f32.mrb[0].mxu0
  %8922 = vmatprep.mubr.f32.mxu0 0.0
  %8923 = vmatmul.mubr.f32.gmra.mrb[0].mxu0 %v8843
  %v8924 = vpop.f32.mrb[0].mxu0
  %v8925 = vadd.f32 0.0, %v8924
  %v8926 = vpop.f32.mrb[0].mxu0
  %8927 = vmatprep.mubr.f32.mxu0 0.0
  %8928 = vmatmul.mubr.f32.gmra.mrb[0].mxu0 %v8846
  %v8929 = vpop.f32.mrb[0].mxu0
  %v8930 = vadd.f32 0.0, %v8929
  %v8931 = vpop.f32.mrb[0].mxu0
  %8932 = vdwg.mxu0
  %8933 = vst [vmem:[%s20] sm:$0xff] %v8915
  %8934 = vst [vmem:[%s20 + $0x8] sm:$0xff] %v8920
  %8935 = vst [vmem:[%s20 + $0x10] sm:$0xff] %v8925
  %8936 = vst [vmem:[%s20 + $0x18] sm:$0xff] %v8930
  // Predicated region
  $region82: #{mattergpt_forward_pallas.1} parent=0 // pred_check
    _
  $region83: #{mattergpt_forward_pallas.1} parent=0 // pred_check_branch
    %8938 = sbr.rel (0) target = $region85
  $region84: #{mattergpt_forward_pallas.1} parent=0 // pred_region
    _
  $region85: #{mattergpt_forward_pallas.1} parent=0 // pred_fallthru
    _
  // Predicated region
  $region86: #{mattergpt_forward_pallas.1} parent=0 // pred_check
    _
  $region87: #{mattergpt_forward_pallas.1} parent=0 // pred_check_branch
    %8940 = sbr.rel (0) target = $region89
  $region88: #{mattergpt_forward_pallas.1} parent=0 // pred_region
    _
  $region89: #{mattergpt_forward_pallas.1} parent=0 // pred_fallthru
    _
  // Predicated region
  $region90: #{mattergpt_forward_pallas.1} parent=0 // pred_check
    _
  $region91: #{mattergpt_forward_pallas.1} parent=0 // pred_check_branch
    %8942 = sbr.rel (0) target = $region93
  $region92: #{mattergpt_forward_pallas.1} parent=0 // pred_region
    _
  $region93: #{mattergpt_forward_pallas.1} parent=0 // pred_fallthru
    _
  // Predicated region
  $region94: #{mattergpt_forward_pallas.1} parent=0 // pred_check
    _
  $region95: #{mattergpt_forward_pallas.1} parent=0 // pred_check_branch
    %8944 = sbr.rel (0) target = $region97
  $region96: #{mattergpt_forward_pallas.1} parent=0 // pred_region
    _
  $region97: #{mattergpt_forward_pallas.1} parent=0 // pred_fallthru
    _

</llo_original>
